<compile_context>
chip_gen: v6e
topology: v6e:2x2x1
jax: 0.10.0
libtpu: 0.0.40
codegen_flags: <defaults>
</compile_context>

<pallas_src>
import functools

import jax
import jax.numpy as jnp
from jax.experimental import pallas as pl
from jax.experimental.pallas import tpu as pltpu

LAST_CHANNEL = 1280   # mobilenet_v2 feature width
N_INTERVALS = 5
HEAD_PAD = 8          # classifier rows padded 5 -> 8 (sublane alignment)


# ---------------------------------------------------------------------------
# Fused kernel: grid = (HW tile,)
#   per step (for both streams, both endpoint frames):
#     h = relu6(W_s @ x_tile + b_s)                (bf16 MXU, f32 acc)
#     hacc += sum_lanes(h_last - h_first)          (lane/XLU reduce, signed diff)
#   last step:
#     feat = hacc * 0.5/((B-1)*HW)
#     out  = W_cls @ feat + b_cls                  (head fused in)
# ---------------------------------------------------------------------------
def _fused_kernel(x_first_ref, x_last_ref, w_ref, b_ref, wc_ref, bc_ref,
                  out_ref, hacc_ref, *, hw, n_frames):
    t = pl.program_id(0)
    n_t = pl.num_programs(0)

    @pl.when(t == 0)
    def _init():
        hacc_ref[...] = jnp.zeros_like(hacc_ref)

    part = jnp.zeros((LAST_CHANNEL, 1), jnp.float32)
    for s in range(2):                      # static unroll: 0 = imgs, 1 = preds
        w = w_ref[s]                        # (1280, nc) bf16
        b = b_ref[s]                        # (1280, 1)  f32
        x0 = x_first_ref[0, s].astype(jnp.bfloat16)   # (nc, t_hw) frame 0
        x1 = x_last_ref[0, s].astype(jnp.bfloat16)    # (nc, t_hw) frame B-1
        h0 = jnp.clip(jnp.dot(w, x0, preferred_element_type=jnp.float32) + b,
                      0.0, 6.0)
        h1 = jnp.clip(jnp.dot(w, x1, preferred_element_type=jnp.float32) + b,
                      0.0, 6.0)
        # Telescoped diff: the sign comes from (h1 - h0); spatial partial sum
        # is a lane reduce (XLU) -- the VALU/MXU stay free for the next tile.
        part = part + jnp.sum(h1 - h0, axis=1, keepdims=True)    # (1280, 1)
    hacc_ref[...] += part

    @pl.when(t == n_t - 1)
    def _finalize():
        # hacc = sum_s sum_hw (h_last - h_first); one scalar scale folds the
        # global-avg-pool (1/HW), the diff mean (1/(B-1)) and the 0.5 stream mix.
        feat = hacc_ref[...] * (0.5 / ((n_frames - 1) * hw))      # (1280, 1) f32
        # Dropout(0.2) is identity in eval mode; Linear(1280, n_intervals):
        out = jnp.dot(wc_ref[...], feat.astype(jnp.bfloat16),
                      preferred_element_type=jnp.float32) + bc_ref[...]
        out_ref[...] = out                                         # (8, 1)


def _pick_hw_tile(hw):
    """Lane-pad HW to a multiple of 128 and pick a <=256 tile dividing it."""
    hw_p = -(-hw // 128) * 128
    t_hw = 256 if hw_p % 256 == 0 else 128
    return t_hw, hw_p


# ---------------------------------------------------------------------------
# Wrapper
# ---------------------------------------------------------------------------
@functools.partial(jax.jit, static_argnames=("split",))
def avg_feat_forward(x, params, split=3):
    B, C2, H, W = x.shape
    assert B >= 2, "need >= 2 frames for a feature diff"
    assert C2 == 2 * split, "channel dim must hold the img + pred stacks"
    HW = H * W

    # Free reshape only -- no transpose / cast / copy of x in the wrapper.
    xr = x.reshape(B, 2, split, HW)
    t_hw, HW_p = _pick_hw_tile(HW)
    if HW_p != HW:
        # Zero lane-padding: padded columns produce identical bias-only
        # activations for both endpoint frames and cancel in (h_last - h_first).
        xr = jnp.pad(xr, ((0, 0), (0, 0), (0, 0), (0, HW_p - HW)))
    n_t = HW_p // t_hw

    kernel = functools.partial(_fused_kernel, hw=HW, n_frames=B)
    out = pl.pallas_call(
        kernel,
        out_shape=jax.ShapeDtypeStruct((HEAD_PAD, 1), jnp.float32),
        grid_spec=pltpu.PrefetchScalarGridSpec(
            num_scalar_prefetch=0,
            grid=(n_t,),
            in_specs=[
                # Same array, two views: frame 0 and frame B-1 (both streams).
                pl.BlockSpec((1, 2, split, t_hw), lambda t: (0, 0, 0, t)),
                pl.BlockSpec((1, 2, split, t_hw), lambda t: (B - 1, 0, 0, t)),
                pl.BlockSpec((2, LAST_CHANNEL, split), lambda t: (0, 0, 0)),
                pl.BlockSpec((2, LAST_CHANNEL, 1), lambda t: (0, 0, 0)),
                pl.BlockSpec((HEAD_PAD, LAST_CHANNEL), lambda t: (0, 0)),
                pl.BlockSpec((HEAD_PAD, 1), lambda t: (0, 0)),
            ],
            out_specs=pl.BlockSpec((HEAD_PAD, 1), lambda t: (0, 0)),
            scratch_shapes=[pltpu.VMEM((LAST_CHANNEL, 1), jnp.float32)],
        ),
        compiler_params=pltpu.CompilerParams(
            dimension_semantics=("arbitrary",)),
    )(xr, xr, params["w"], params["b"], params["w_cls"], params["b_cls"])
    return out[:N_INTERVALS, 0][None, :]              # (1, n_intervals)


def init_params(key, input_nc=3):
    ks = jax.random.split(key, 4)
    # Stem weights in (out, in) layout for the two backbones: [img, pred].
    w = 0.05 * jax.random.normal(ks[0], (2, LAST_CHANNEL, input_nc), jnp.float32)
    b = 0.05 * jax.random.normal(ks[1], (2, LAST_CHANNEL, 1), jnp.float32)
    w_cls = jnp.zeros((HEAD_PAD, LAST_CHANNEL), jnp.float32)
    w_cls = w_cls.at[:N_INTERVALS].set(
        0.02 * jax.random.normal(ks[2], (N_INTERVALS, LAST_CHANNEL), jnp.float32))
    b_cls = jnp.zeros((HEAD_PAD, 1), jnp.float32)
    b_cls = b_cls.at[:N_INTERVALS, 0].set(
        0.02 * jax.random.normal(ks[3], (N_INTERVALS,), jnp.float32))
    return {
        "w": w.astype(jnp.bfloat16),      # bf16 MXU inputs
        "b": b,                           # f32 elementwise path
        "w_cls": w_cls.astype(jnp.bfloat16),
        "b_cls": b_cls,
    }


def _ref_forward(x, params, split=3):
    """Pure-JAX reference (f32 math, mirroring the kernel's bf16 casts)."""
    B, C2, H, W = x.shape
    xr = (x.reshape(B, 2, split, H * W)
          .astype(jnp.bfloat16).astype(jnp.float32))
    w = params["w"].astype(jnp.float32)                # (2, 1280, nc)
    b = params["b"]                                    # (2, 1280, 1)
    h = jnp.einsum("skc,bsch->bskh", w, xr,
                   precision=jax.lax.Precision.HIGHEST) + b[None]
    h = jnp.clip(h, 0.0, 6.0)
    f = h.mean(axis=-1)                                # (B, 2, 1280) pooled feats
    mean_diff = (f[1:] - f[:-1]).mean(axis=0)          # (2, 1280) mean consec diff
    feat = 0.5 * (mean_diff[0] + mean_diff[1])         # (1280,)
    feat = feat.astype(jnp.bfloat16).astype(jnp.float32)
    wc = params["w_cls"].astype(jnp.float32)           # (8, 1280)
    out = feat @ wc.T + params["b_cls"][:, 0]          # (8,)
    return out[:N_INTERVALS][None, :]


if __name__ == "__main__":
    key = jax.random.PRNGKey(0)
    k_param, k_x = jax.random.split(key)
    params = init_params(k_param, input_nc=3)

    # x: [B=3 frames, 2*input_nc=6 channels (3 img + 3 pred), 16, 16] NCHW f32.
    x = jax.random.normal(k_x, (3, 6, 16, 16), jnp.float32)

    out = avg_feat_forward(x, params, split=3)
    jax.block_until_ready(out)
    assert out.shape == (1, N_INTERVALS), out.shape
    assert bool(jnp.all(jnp.isfinite(out)))

    ref = _ref_forward(x, params, split=3)
    assert bool(jnp.allclose(out, ref, rtol=2e-2, atol=1e-4)), (out, ref)
    print("KERNEL_OK")
</pallas_src>

<mosaic_0001>
module attributes {stable_mosaic.version = 11 : i64} {
  func.func @_fused_kernel(%arg0: i32, %arg1: memref<1x2x3x256xf32, #tpu.memory_space<vmem>>, %arg2: memref<1x2x3x256xf32, #tpu.memory_space<vmem>>, %arg3: memref<2x1280x3xbf16, #tpu.memory_space<vmem>>, %arg4: memref<2x1280x1xf32, #tpu.memory_space<vmem>>, %arg5: memref<8x1280xbf16, #tpu.memory_space<vmem>>, %arg6: memref<8x1xf32, #tpu.memory_space<vmem>>, %arg7: memref<8x1xf32, #tpu.memory_space<vmem>>, %arg8: memref<1280x1xf32, #tpu.memory_space<vmem>>) attributes {dimension_semantics = [#tpu.dimension_semantics<arbitrary>], iteration_bounds = array<i64: 1>, scalar_prefetch = 0 : i64, scratch_operands = 1 : i64, tpu.core_type = #tpu.core_type<tc>, window_params = [{transform_indices = @transform_0, window_bounds = array<i64: 1, 2, 3, 256>}, {transform_indices = @transform_1, window_bounds = array<i64: 1, 2, 3, 256>}, {pipeline_mode = #tpu.pipeline_mode<synchronous>, transform_indices = @transform_2, window_bounds = array<i64: 2, 1280, 3>}, {pipeline_mode = #tpu.pipeline_mode<synchronous>, transform_indices = @transform_3, window_bounds = array<i64: 2, 1280, 1>}, {pipeline_mode = #tpu.pipeline_mode<synchronous>, transform_indices = @transform_4, window_bounds = array<i64: 8, 1280>}, {pipeline_mode = #tpu.pipeline_mode<synchronous>, transform_indices = @transform_5, window_bounds = array<i64: 8, 1>}, {pipeline_mode = #tpu.pipeline_mode<synchronous>, transform_indices = @transform_6, window_bounds = array<i64: 8, 1>}]} {
    %c0_i32 = arith.constant 0 : i32
    %0 = arith.cmpi eq, %arg0, %c0_i32 : i32
    %1 = arith.extui %0 : i1 to i32
    %c0_i32_0 = arith.constant 0 : i32
    %2 = arith.cmpi ne, %1, %c0_i32_0 : i32
    scf.if %2 {
      %cst_47 = arith.constant 0.000000e+00 : f32
      %66 = vector.broadcast %cst_47 : f32 to vector<1280x1xf32>
      %c0_48 = arith.constant 0 : index
      %c0_49 = arith.constant 0 : index
      %67 = vector.load %arg8[%c0_48, %c0_49] : memref<1280x1xf32, #tpu.memory_space<vmem>>, vector<1280x1xf32>
      tpu.vector_store %arg8[%c0_48, %c0_49], %66 {strides = array<i32>} : memref<1280x1xf32, #tpu.memory_space<vmem>>, vector<1280x1xf32>,
    } else {
    }
    %cst = arith.constant 0.000000e+00 : f32
    %3 = vector.broadcast %cst : f32 to vector<1280x1xf32>
    %c0 = arith.constant 0 : index
    %c0_1 = arith.constant 0 : index
    %c0_2 = arith.constant 0 : index
    %4 = vector.load %arg3[%c0, %c0_1, %c0_2] : memref<2x1280x3xbf16, #tpu.memory_space<vmem>>, vector<1x1280x3xbf16>
    %5 = vector.shape_cast %4 : vector<1x1280x3xbf16> to vector<1280x3xbf16>
    %c0_3 = arith.constant 0 : index
    %c0_4 = arith.constant 0 : index
    %c0_5 = arith.constant 0 : index
    %6 = vector.load %arg4[%c0_3, %c0_4, %c0_5] : memref<2x1280x1xf32, #tpu.memory_space<vmem>>, vector<1x1280x1xf32>
    %7 = vector.shape_cast %6 : vector<1x1280x1xf32> to vector<1280x1xf32>
    %c0_6 = arith.constant 0 : index
    %c0_7 = arith.constant 0 : index
    %c0_8 = arith.constant 0 : index
    %c0_9 = arith.constant 0 : index
    %8 = vector.load %arg1[%c0_6, %c0_7, %c0_8, %c0_9] : memref<1x2x3x256xf32, #tpu.memory_space<vmem>>, vector<1x1x3x256xf32>
    %9 = vector.shape_cast %8 : vector<1x1x3x256xf32> to vector<3x256xf32>
    %10 = arith.truncf %9 : vector<3x256xf32> to vector<3x256xbf16>
    %c0_10 = arith.constant 0 : index
    %c0_11 = arith.constant 0 : index
    %c0_12 = arith.constant 0 : index
    %c0_13 = arith.constant 0 : index
    %11 = vector.load %arg2[%c0_10, %c0_11, %c0_12, %c0_13] : memref<1x2x3x256xf32, #tpu.memory_space<vmem>>, vector<1x1x3x256xf32>
    %12 = vector.shape_cast %11 : vector<1x1x3x256xf32> to vector<3x256xf32>
    %13 = arith.truncf %12 : vector<3x256xf32> to vector<3x256xbf16>
    %cst_14 = arith.constant dense<0.000000e+00> : vector<1280x256xf32>
    %14 = tpu.matmul %5, %10, %cst_14 {dimension_numbers = #tpu.dot_dimension_numbers<[1], [0], [0], [1], [0, 0, 1, 1], [], []>} : vector<1280x3xbf16>, vector<3x256xbf16>, vector<1280x256xf32> -> vector<1280x256xf32>
    %15 = vector.broadcast %7 : vector<1280x1xf32> to vector<1280x256xf32>
    %16 = arith.addf %14, %15 : vector<1280x256xf32>
    %cst_15 = arith.constant 0.000000e+00 : f32
    %cst_16 = arith.constant 6.000000e+00 : f32
    %17 = vector.broadcast %cst_15 : f32 to vector<1280x256xf32>
    %18 = arith.maximumf %17, %16 : vector<1280x256xf32>
    %19 = vector.broadcast %cst_16 : f32 to vector<1280x256xf32>
    %20 = arith.minimumf %19, %18 : vector<1280x256xf32>
    %cst_17 = arith.constant dense<0.000000e+00> : vector<1280x256xf32>
    %21 = tpu.matmul %5, %13, %cst_17 {dimension_numbers = #tpu.dot_dimension_numbers<[1], [0], [0], [1], [0, 0, 1, 1], [], []>} : vector<1280x3xbf16>, vector<3x256xbf16>, vector<1280x256xf32> -> vector<1280x256xf32>
    %22 = vector.broadcast %7 : vector<1280x1xf32> to vector<1280x256xf32>
    %23 = arith.addf %21, %22 : vector<1280x256xf32>
    %cst_18 = arith.constant 0.000000e+00 : f32
    %cst_19 = arith.constant 6.000000e+00 : f32
    %24 = vector.broadcast %cst_18 : f32 to vector<1280x256xf32>
    %25 = arith.maximumf %24, %23 : vector<1280x256xf32>
    %26 = vector.broadcast %cst_19 : f32 to vector<1280x256xf32>
    %27 = arith.minimumf %26, %25 : vector<1280x256xf32>
    %28 = arith.subf %27, %20 : vector<1280x256xf32>
    %cst_20 = arith.constant dense<0.000000e+00> : vector<1280xf32>
    %29 = vector.multi_reduction <add>, %28, %cst_20 [1] : vector<1280x256xf32> to vector<1280xf32>
    %30 = vector.shape_cast %29 : vector<1280xf32> to vector<1280x1xf32>
    %31 = arith.addf %3, %30 : vector<1280x1xf32>
    %c1 = arith.constant 1 : index
    %c0_21 = arith.constant 0 : index
    %c0_22 = arith.constant 0 : index
    %32 = vector.load %arg3[%c1, %c0_21, %c0_22] : memref<2x1280x3xbf16, #tpu.memory_space<vmem>>, vector<1x1280x3xbf16>
    %33 = vector.shape_cast %32 : vector<1x1280x3xbf16> to vector<1280x3xbf16>
    %c1_23 = arith.constant 1 : index
    %c0_24 = arith.constant 0 : index
    %c0_25 = arith.constant 0 : index
    %34 = vector.load %arg4[%c1_23, %c0_24, %c0_25] : memref<2x1280x1xf32, #tpu.memory_space<vmem>>, vector<1x1280x1xf32>
    %35 = vector.shape_cast %34 : vector<1x1280x1xf32> to vector<1280x1xf32>
    %c0_26 = arith.constant 0 : index
    %c1_27 = arith.constant 1 : index
    %c0_28 = arith.constant 0 : index
    %c0_29 = arith.constant 0 : index
    %36 = vector.load %arg1[%c0_26, %c1_27, %c0_28, %c0_29] : memref<1x2x3x256xf32, #tpu.memory_space<vmem>>, vector<1x1x3x256xf32>
    %37 = vector.shape_cast %36 : vector<1x1x3x256xf32> to vector<3x256xf32>
    %38 = arith.truncf %37 : vector<3x256xf32> to vector<3x256xbf16>
    %c0_30 = arith.constant 0 : index
    %c1_31 = arith.constant 1 : index
    %c0_32 = arith.constant 0 : index
    %c0_33 = arith.constant 0 : index
    %39 = vector.load %arg2[%c0_30, %c1_31, %c0_32, %c0_33] : memref<1x2x3x256xf32, #tpu.memory_space<vmem>>, vector<1x1x3x256xf32>
    %40 = vector.shape_cast %39 : vector<1x1x3x256xf32> to vector<3x256xf32>
    %41 = arith.truncf %40 : vector<3x256xf32> to vector<3x256xbf16>
    %cst_34 = arith.constant dense<0.000000e+00> : vector<1280x256xf32>
    %42 = tpu.matmul %33, %38, %cst_34 {dimension_numbers = #tpu.dot_dimension_numbers<[1], [0], [0], [1], [0, 0, 1, 1], [], []>} : vector<1280x3xbf16>, vector<3x256xbf16>, vector<1280x256xf32> -> vector<1280x256xf32>
    %43 = vector.broadcast %35 : vector<1280x1xf32> to vector<1280x256xf32>
    %44 = arith.addf %42, %43 : vector<1280x256xf32>
    %cst_35 = arith.constant 0.000000e+00 : f32
    %cst_36 = arith.constant 6.000000e+00 : f32
    %45 = vector.broadcast %cst_35 : f32 to vector<1280x256xf32>
    %46 = arith.maximumf %45, %44 : vector<1280x256xf32>
    %47 = vector.broadcast %cst_36 : f32 to vector<1280x256xf32>
    %48 = arith.minimumf %47, %46 : vector<1280x256xf32>
    %cst_37 = arith.constant dense<0.000000e+00> : vector<1280x256xf32>
    %49 = tpu.matmul %33, %41, %cst_37 {dimension_numbers = #tpu.dot_dimension_numbers<[1], [0], [0], [1], [0, 0, 1, 1], [], []>} : vector<1280x3xbf16>, vector<3x256xbf16>, vector<1280x256xf32> -> vector<1280x256xf32>
    %50 = vector.broadcast %35 : vector<1280x1xf32> to vector<1280x256xf32>
    %51 = arith.addf %49, %50 : vector<1280x256xf32>
    %cst_38 = arith.constant 0.000000e+00 : f32
    %cst_39 = arith.constant 6.000000e+00 : f32
    %52 = vector.broadcast %cst_38 : f32 to vector<1280x256xf32>
    %53 = arith.maximumf %52, %51 : vector<1280x256xf32>
    %54 = vector.broadcast %cst_39 : f32 to vector<1280x256xf32>
    %55 = arith.minimumf %54, %53 : vector<1280x256xf32>
    %56 = arith.subf %55, %48 : vector<1280x256xf32>
    %cst_40 = arith.constant dense<0.000000e+00> : vector<1280xf32>
    %57 = vector.multi_reduction <add>, %56, %cst_40 [1] : vector<1280x256xf32> to vector<1280xf32>
    %58 = vector.shape_cast %57 : vector<1280xf32> to vector<1280x1xf32>
    %59 = arith.addf %31, %58 : vector<1280x1xf32>
    %c0_41 = arith.constant 0 : index
    %c0_42 = arith.constant 0 : index
    %60 = vector.load %arg8[%c0_41, %c0_42] : memref<1280x1xf32, #tpu.memory_space<vmem>>, vector<1280x1xf32>
    %61 = arith.addf %60, %59 : vector<1280x1xf32>
    %c0_43 = arith.constant 0 : index
    %c0_44 = arith.constant 0 : index
    %62 = vector.load %arg8[%c0_43, %c0_44] : memref<1280x1xf32, #tpu.memory_space<vmem>>, vector<1280x1xf32>
    tpu.vector_store %arg8[%c0_43, %c0_44], %61 {strides = array<i32>} : memref<1280x1xf32, #tpu.memory_space<vmem>>, vector<1280x1xf32>,
    %c0_i32_45 = arith.constant 0 : i32
    %63 = arith.cmpi eq, %arg0, %c0_i32_45 : i32
    %64 = arith.extui %63 : i1 to i32
    %c0_i32_46 = arith.constant 0 : i32
    %65 = arith.cmpi ne, %64, %c0_i32_46 : i32
    scf.if %65 {
      %c0_47 = arith.constant 0 : index
      %c0_48 = arith.constant 0 : index
      %66 = vector.load %arg8[%c0_47, %c0_48] : memref<1280x1xf32, #tpu.memory_space<vmem>>, vector<1280x1xf32>
      %cst_49 = arith.constant 9.765625E-4 : f32
      %67 = vector.broadcast %cst_49 : f32 to vector<1280x1xf32>
      %68 = arith.mulf %66, %67 : vector<1280x1xf32>
      %c0_50 = arith.constant 0 : index
      %c0_51 = arith.constant 0 : index
      %69 = vector.load %arg5[%c0_50, %c0_51] : memref<8x1280xbf16, #tpu.memory_space<vmem>>, vector<8x1280xbf16>
      %70 = arith.truncf %68 : vector<1280x1xf32> to vector<1280x1xbf16>
      %cst_52 = arith.constant dense<0.000000e+00> : vector<8x1xf32>
      %71 = tpu.matmul %69, %70, %cst_52 {dimension_numbers = #tpu.dot_dimension_numbers<[1], [0], [0], [1], [0, 0, 1, 1], [], []>} : vector<8x1280xbf16>, vector<1280x1xbf16>, vector<8x1xf32> -> vector<8x1xf32>
      %c0_53 = arith.constant 0 : index
      %c0_54 = arith.constant 0 : index
      %72 = vector.load %arg6[%c0_53, %c0_54] : memref<8x1xf32, #tpu.memory_space<vmem>>, vector<8x1xf32>
      %73 = arith.addf %71, %72 : vector<8x1xf32>
      %c0_55 = arith.constant 0 : index
      %c0_56 = arith.constant 0 : index
      %74 = vector.load %arg7[%c0_55, %c0_56] : memref<8x1xf32, #tpu.memory_space<vmem>>, vector<8x1xf32>
      tpu.vector_store %arg7[%c0_55, %c0_56], %73 {strides = array<i32>} : memref<8x1xf32, #tpu.memory_space<vmem>>, vector<8x1xf32>,
    } else {
    }
    return
  }
  func.func @transform_0(%arg0: i32) -> (i32, i32, i32, i32) {
    %c0_i32 = arith.constant 0 : i32
    %c0_i32_0 = arith.constant 0 : i32
    %c0_i32_1 = arith.constant 0 : i32
    %c0_i32_2 = arith.constant 0 : i32
    return %c0_i32, %c0_i32_0, %c0_i32_1, %arg0 : i32, i32, i32, i32
  }
  func.func @transform_1(%arg0: i32) -> (i32, i32, i32, i32) {
    %c2_i32 = arith.constant 2 : i32
    %c0_i32 = arith.constant 0 : i32
    %c0_i32_0 = arith.constant 0 : i32
    %c0_i32_1 = arith.constant 0 : i32
    return %c2_i32, %c0_i32, %c0_i32_0, %arg0 : i32, i32, i32, i32
  }
  func.func @transform_2(%arg0: i32) -> (i32, i32, i32) {
    %c0_i32 = arith.constant 0 : i32
    %c0_i32_0 = arith.constant 0 : i32
    %c0_i32_1 = arith.constant 0 : i32
    %c0_i32_2 = arith.constant 0 : i32
    return %c0_i32, %c0_i32_0, %c0_i32_1 : i32, i32, i32
  }
  func.func @transform_3(%arg0: i32) -> (i32, i32, i32) {
    %c0_i32 = arith.constant 0 : i32
    %c0_i32_0 = arith.constant 0 : i32
    %c0_i32_1 = arith.constant 0 : i32
    %c0_i32_2 = arith.constant 0 : i32
    return %c0_i32, %c0_i32_0, %c0_i32_1 : i32, i32, i32
  }
  func.func @transform_4(%arg0: i32) -> (i32, i32) {
    %c0_i32 = arith.constant 0 : i32
    %c0_i32_0 = arith.constant 0 : i32
    %c0_i32_1 = arith.constant 0 : i32
    return %c0_i32, %c0_i32_0 : i32, i32
  }
  func.func @transform_5(%arg0: i32) -> (i32, i32) {
    %c0_i32 = arith.constant 0 : i32
    %c0_i32_0 = arith.constant 0 : i32
    %c0_i32_1 = arith.constant 0 : i32
    return %c0_i32, %c0_i32_0 : i32, i32
  }
  func.func @transform_6(%arg0: i32) -> (i32, i32) {
    %c0_i32 = arith.constant 0 : i32
    %c0_i32_0 = arith.constant 0 : i32
    %c0_i32_1 = arith.constant 0 : i32
    return %c0_i32, %c0_i32_0 : i32, i32
  }
}

</mosaic_0001>

<llo_original>
// kernel: avg_feat_forward.1
$region0: #{avg_feat_forward.1}
  #allocation0 [shape = 'u32[]', space=smem, size = 0x4, offset = 0x4, fixed_abs, tag = 'smem constant byte address 0x4 - core index']
  #allocation1 [shape = 'u32[144,128]{1,0:T(1,128)}', space=vmem, size = 0x12000, scoped, tag = 'internal scratch']
  #allocation2 [shape = 'f32[1280,1]{1,0:T(8,128)}', space=vmem, size = 0xa0000, scoped, tag = 'scratch operand']
  %s0 = inlined_call_operand.vmem [shape: f32[3,2,3,256], index: 0, kind: input, shape index: {}, may-alias: {0,1}]
  %s1 = inlined_call_operand.vmem [shape: f32[3,2,3,256], index: 1, kind: input, shape index: {}, may-alias: {0,1}]
  %s2 = inlined_call_operand.vmem [shape: bf16[2,1280,3], index: 2, kind: input, shape index: {}]
  %s3 = inlined_call_operand.vmem [shape: f32[2,1280,1], index: 3, kind: input, shape index: {}]
  %s4 = inlined_call_operand.vmem [shape: bf16[8,1280], index: 4, kind: input, shape index: {}]
  %s5 = inlined_call_operand.vmem [shape: f32[8,1], index: 5, kind: input, shape index: {}]
  %s6 = inlined_call_operand.vmem [shape: f32[8,1], index: 6, kind: output, shape index: {}]
  %s7 = sld [smem:[#allocation0]]
  $region42: #{avg_feat_forward.1} parent=0
    _
  %s9 = ssub.s32 1, %s7
  %s10 = scalar_select 0, %s9, %s7
  // Predicated region
  $region2: #{avg_feat_forward.1} parent=0 // pred_check
    _
  $region3: #{avg_feat_forward.1} parent=0 // pred_check_branch
    %12 = sbr.rel (0) target = $region5
  $region4: #{avg_feat_forward.1} parent=0 // pred_region
    _
  $region5: #{avg_feat_forward.1} parent=0 // pred_fallthru
    _
  // Predicated region
  $region6: #{avg_feat_forward.1} parent=0 // pred_check
    _
  $region7: #{avg_feat_forward.1} parent=0 // pred_check_branch
    %14 = sbr.rel (0) target = $region9
  $region8: #{avg_feat_forward.1} parent=0 // pred_region
    %s15 = scalar_lea.vmem %s1, 32
  $region9: #{avg_feat_forward.1} parent=0 // pred_fallthru
    _
  // Predicated region
  $region10: #{avg_feat_forward.1} parent=0 // pred_check
    _
  $region11: #{avg_feat_forward.1} parent=0 // pred_check_branch
    %17 = sbr.rel (0) target = $region13
  $region12: #{avg_feat_forward.1} parent=0 // pred_region
    _
  $region13: #{avg_feat_forward.1} parent=0 // pred_fallthru
    _
  // Predicated region
  $region14: #{avg_feat_forward.1} parent=0 // pred_check
    _
  $region15: #{avg_feat_forward.1} parent=0 // pred_check_branch
    %19 = sbr.rel (0) target = $region17
  $region16: #{avg_feat_forward.1} parent=0 // pred_region
    _
  $region17: #{avg_feat_forward.1} parent=0 // pred_fallthru
    _
  // Predicated region
  $region18: #{avg_feat_forward.1} parent=0 // pred_check
    _
  $region19: #{avg_feat_forward.1} parent=0 // pred_check_branch
    %21 = sbr.rel (0) target = $region21
  $region20: #{avg_feat_forward.1} parent=0 // pred_region
    _
  $region21: #{avg_feat_forward.1} parent=0 // pred_fallthru
    _
  // Predicated region
  $region22: #{avg_feat_forward.1} parent=0 // pred_check
    _
  $region23: #{avg_feat_forward.1} parent=0 // pred_check_branch
    %23 = sbr.rel (0) target = $region25
  $region24: #{avg_feat_forward.1} parent=0 // pred_region
    _
  $region25: #{avg_feat_forward.1} parent=0 // pred_fallthru
    _
  %s24 = scalar_lea.vmem %s1, 32
  %s25 = scalar_lea.vmem %s1, 32
  %p27 = scmp.eq.s32.totalorder 0, 0
  // Predicated region
  $region26: #{avg_feat_forward.1} parent=0 // pred_check
    %p28 = pneg %p27
  $region27: #{avg_feat_forward.1} parent=0 // pred_check_branch
    %30 = sbr.rel (%p28) target = $region29
  $region28: #{avg_feat_forward.1} parent=0 // pred_region
    %vm31 = vcmask 7168
    %32 = vst.msk [vmem:[#allocation2] sm:$0xff] %vm31, 0.0
    %33 = vst.msk [vmem:[#allocation2 + $0x8] sm:$0xff] %vm31, 0.0
    %34 = vst.msk [vmem:[#allocation2 + $0x10] sm:$0xff] %vm31, 0.0
    %35 = vst.msk [vmem:[#allocation2 + $0x18] sm:$0xff] %vm31, 0.0
    %36 = vst.msk [vmem:[#allocation2 + $0x20] sm:$0xff] %vm31, 0.0
    %37 = vst.msk [vmem:[#allocation2 + $0x28] sm:$0xff] %vm31, 0.0
    %38 = vst.msk [vmem:[#allocation2 + $0x30] sm:$0xff] %vm31, 0.0
    %39 = vst.msk [vmem:[#allocation2 + $0x38] sm:$0xff] %vm31, 0.0
    %40 = vst.msk [vmem:[#allocation2 + $0x40] sm:$0xff] %vm31, 0.0
    %41 = vst.msk [vmem:[#allocation2 + $0x48] sm:$0xff] %vm31, 0.0
    %42 = vst.msk [vmem:[#allocation2 + $0x50] sm:$0xff] %vm31, 0.0
    %43 = vst.msk [vmem:[#allocation2 + $0x58] sm:$0xff] %vm31, 0.0
    %44 = vst.msk [vmem:[#allocation2 + $0x60] sm:$0xff] %vm31, 0.0
    %45 = vst.msk [vmem:[#allocation2 + $0x68] sm:$0xff] %vm31, 0.0
    %46 = vst.msk [vmem:[#allocation2 + $0x70] sm:$0xff] %vm31, 0.0
    %47 = vst.msk [vmem:[#allocation2 + $0x78] sm:$0xff] %vm31, 0.0
    %48 = vst.msk [vmem:[#allocation2 + $0x80] sm:$0xff] %vm31, 0.0
    %49 = vst.msk [vmem:[#allocation2 + $0x88] sm:$0xff] %vm31, 0.0
    %50 = vst.msk [vmem:[#allocation2 + $0x90] sm:$0xff] %vm31, 0.0
    %51 = vst.msk [vmem:[#allocation2 + $0x98] sm:$0xff] %vm31, 0.0
    %52 = vst.msk [vmem:[#allocation2 + $0xa0] sm:$0xff] %vm31, 0.0
    %53 = vst.msk [vmem:[#allocation2 + $0xa8] sm:$0xff] %vm31, 0.0
    %54 = vst.msk [vmem:[#allocation2 + $0xb0] sm:$0xff] %vm31, 0.0
    %55 = vst.msk [vmem:[#allocation2 + $0xb8] sm:$0xff] %vm31, 0.0
    %56 = vst.msk [vmem:[#allocation2 + $0xc0] sm:$0xff] %vm31, 0.0
    %57 = vst.msk [vmem:[#allocation2 + $0xc8] sm:$0xff] %vm31, 0.0
    %58 = vst.msk [vmem:[#allocation2 + $0xd0] sm:$0xff] %vm31, 0.0
    %59 = vst.msk [vmem:[#allocation2 + $0xd8] sm:$0xff] %vm31, 0.0
    %60 = vst.msk [vmem:[#allocation2 + $0xe0] sm:$0xff] %vm31, 0.0
    %61 = vst.msk [vmem:[#allocation2 + $0xe8] sm:$0xff] %vm31, 0.0
    %62 = vst.msk [vmem:[#allocation2 + $0xf0] sm:$0xff] %vm31, 0.0
    %63 = vst.msk [vmem:[#allocation2 + $0xf8] sm:$0xff] %vm31, 0.0
    %64 = vst.msk [vmem:[#allocation2 + $0x100] sm:$0xff] %vm31, 0.0
    %65 = vst.msk [vmem:[#allocation2 + $0x108] sm:$0xff] %vm31, 0.0
    %66 = vst.msk [vmem:[#allocation2 + $0x110] sm:$0xff] %vm31, 0.0
    %67 = vst.msk [vmem:[#allocation2 + $0x118] sm:$0xff] %vm31, 0.0
    %68 = vst.msk [vmem:[#allocation2 + $0x120] sm:$0xff] %vm31, 0.0
    %69 = vst.msk [vmem:[#allocation2 + $0x128] sm:$0xff] %vm31, 0.0
    %70 = vst.msk [vmem:[#allocation2 + $0x130] sm:$0xff] %vm31, 0.0
    %71 = vst.msk [vmem:[#allocation2 + $0x138] sm:$0xff] %vm31, 0.0
    %72 = vst.msk [vmem:[#allocation2 + $0x140] sm:$0xff] %vm31, 0.0
    %73 = vst.msk [vmem:[#allocation2 + $0x148] sm:$0xff] %vm31, 0.0
    %74 = vst.msk [vmem:[#allocation2 + $0x150] sm:$0xff] %vm31, 0.0
    %75 = vst.msk [vmem:[#allocation2 + $0x158] sm:$0xff] %vm31, 0.0
    %76 = vst.msk [vmem:[#allocation2 + $0x160] sm:$0xff] %vm31, 0.0
    %77 = vst.msk [vmem:[#allocation2 + $0x168] sm:$0xff] %vm31, 0.0
    %78 = vst.msk [vmem:[#allocation2 + $0x170] sm:$0xff] %vm31, 0.0
    %79 = vst.msk [vmem:[#allocation2 + $0x178] sm:$0xff] %vm31, 0.0
    %80 = vst.msk [vmem:[#allocation2 + $0x180] sm:$0xff] %vm31, 0.0
    %81 = vst.msk [vmem:[#allocation2 + $0x188] sm:$0xff] %vm31, 0.0
    %82 = vst.msk [vmem:[#allocation2 + $0x190] sm:$0xff] %vm31, 0.0
    %83 = vst.msk [vmem:[#allocation2 + $0x198] sm:$0xff] %vm31, 0.0
    %84 = vst.msk [vmem:[#allocation2 + $0x1a0] sm:$0xff] %vm31, 0.0
    %85 = vst.msk [vmem:[#allocation2 + $0x1a8] sm:$0xff] %vm31, 0.0
    %86 = vst.msk [vmem:[#allocation2 + $0x1b0] sm:$0xff] %vm31, 0.0
    %87 = vst.msk [vmem:[#allocation2 + $0x1b8] sm:$0xff] %vm31, 0.0
    %88 = vst.msk [vmem:[#allocation2 + $0x1c0] sm:$0xff] %vm31, 0.0
    %89 = vst.msk [vmem:[#allocation2 + $0x1c8] sm:$0xff] %vm31, 0.0
    %90 = vst.msk [vmem:[#allocation2 + $0x1d0] sm:$0xff] %vm31, 0.0
    %91 = vst.msk [vmem:[#allocation2 + $0x1d8] sm:$0xff] %vm31, 0.0
    %92 = vst.msk [vmem:[#allocation2 + $0x1e0] sm:$0xff] %vm31, 0.0
    %93 = vst.msk [vmem:[#allocation2 + $0x1e8] sm:$0xff] %vm31, 0.0
    %94 = vst.msk [vmem:[#allocation2 + $0x1f0] sm:$0xff] %vm31, 0.0
    %95 = vst.msk [vmem:[#allocation2 + $0x1f8] sm:$0xff] %vm31, 0.0
    %96 = vst.msk [vmem:[#allocation2 + $0x200] sm:$0xff] %vm31, 0.0
    %97 = vst.msk [vmem:[#allocation2 + $0x208] sm:$0xff] %vm31, 0.0
    %98 = vst.msk [vmem:[#allocation2 + $0x210] sm:$0xff] %vm31, 0.0
    %99 = vst.msk [vmem:[#allocation2 + $0x218] sm:$0xff] %vm31, 0.0
    %100 = vst.msk [vmem:[#allocation2 + $0x220] sm:$0xff] %vm31, 0.0
    %101 = vst.msk [vmem:[#allocation2 + $0x228] sm:$0xff] %vm31, 0.0
    %102 = vst.msk [vmem:[#allocation2 + $0x230] sm:$0xff] %vm31, 0.0
    %103 = vst.msk [vmem:[#allocation2 + $0x238] sm:$0xff] %vm31, 0.0
    %104 = vst.msk [vmem:[#allocation2 + $0x240] sm:$0xff] %vm31, 0.0
    %105 = vst.msk [vmem:[#allocation2 + $0x248] sm:$0xff] %vm31, 0.0
    %106 = vst.msk [vmem:[#allocation2 + $0x250] sm:$0xff] %vm31, 0.0
    %107 = vst.msk [vmem:[#allocation2 + $0x258] sm:$0xff] %vm31, 0.0
    %108 = vst.msk [vmem:[#allocation2 + $0x260] sm:$0xff] %vm31, 0.0
    %109 = vst.msk [vmem:[#allocation2 + $0x268] sm:$0xff] %vm31, 0.0
    %110 = vst.msk [vmem:[#allocation2 + $0x270] sm:$0xff] %vm31, 0.0
    %111 = vst.msk [vmem:[#allocation2 + $0x278] sm:$0xff] %vm31, 0.0
    %112 = vst.msk [vmem:[#allocation2 + $0x280] sm:$0xff] %vm31, 0.0
    %113 = vst.msk [vmem:[#allocation2 + $0x288] sm:$0xff] %vm31, 0.0
    %114 = vst.msk [vmem:[#allocation2 + $0x290] sm:$0xff] %vm31, 0.0
    %115 = vst.msk [vmem:[#allocation2 + $0x298] sm:$0xff] %vm31, 0.0
    %116 = vst.msk [vmem:[#allocation2 + $0x2a0] sm:$0xff] %vm31, 0.0
    %117 = vst.msk [vmem:[#allocation2 + $0x2a8] sm:$0xff] %vm31, 0.0
    %118 = vst.msk [vmem:[#allocation2 + $0x2b0] sm:$0xff] %vm31, 0.0
    %119 = vst.msk [vmem:[#allocation2 + $0x2b8] sm:$0xff] %vm31, 0.0
    %120 = vst.msk [vmem:[#allocation2 + $0x2c0] sm:$0xff] %vm31, 0.0
    %121 = vst.msk [vmem:[#allocation2 + $0x2c8] sm:$0xff] %vm31, 0.0
    %122 = vst.msk [vmem:[#allocation2 + $0x2d0] sm:$0xff] %vm31, 0.0
    %123 = vst.msk [vmem:[#allocation2 + $0x2d8] sm:$0xff] %vm31, 0.0
    %124 = vst.msk [vmem:[#allocation2 + $0x2e0] sm:$0xff] %vm31, 0.0
    %125 = vst.msk [vmem:[#allocation2 + $0x2e8] sm:$0xff] %vm31, 0.0
    %126 = vst.msk [vmem:[#allocation2 + $0x2f0] sm:$0xff] %vm31, 0.0
    %127 = vst.msk [vmem:[#allocation2 + $0x2f8] sm:$0xff] %vm31, 0.0
    %128 = vst.msk [vmem:[#allocation2 + $0x300] sm:$0xff] %vm31, 0.0
    %129 = vst.msk [vmem:[#allocation2 + $0x308] sm:$0xff] %vm31, 0.0
    %130 = vst.msk [vmem:[#allocation2 + $0x310] sm:$0xff] %vm31, 0.0
    %131 = vst.msk [vmem:[#allocation2 + $0x318] sm:$0xff] %vm31, 0.0
    %132 = vst.msk [vmem:[#allocation2 + $0x320] sm:$0xff] %vm31, 0.0
    %133 = vst.msk [vmem:[#allocation2 + $0x328] sm:$0xff] %vm31, 0.0
    %134 = vst.msk [vmem:[#allocation2 + $0x330] sm:$0xff] %vm31, 0.0
    %135 = vst.msk [vmem:[#allocation2 + $0x338] sm:$0xff] %vm31, 0.0
    %136 = vst.msk [vmem:[#allocation2 + $0x340] sm:$0xff] %vm31, 0.0
    %137 = vst.msk [vmem:[#allocation2 + $0x348] sm:$0xff] %vm31, 0.0
    %138 = vst.msk [vmem:[#allocation2 + $0x350] sm:$0xff] %vm31, 0.0
    %139 = vst.msk [vmem:[#allocation2 + $0x358] sm:$0xff] %vm31, 0.0
    %140 = vst.msk [vmem:[#allocation2 + $0x360] sm:$0xff] %vm31, 0.0
    %141 = vst.msk [vmem:[#allocation2 + $0x368] sm:$0xff] %vm31, 0.0
    %142 = vst.msk [vmem:[#allocation2 + $0x370] sm:$0xff] %vm31, 0.0
    %143 = vst.msk [vmem:[#allocation2 + $0x378] sm:$0xff] %vm31, 0.0
    %144 = vst.msk [vmem:[#allocation2 + $0x380] sm:$0xff] %vm31, 0.0
    %145 = vst.msk [vmem:[#allocation2 + $0x388] sm:$0xff] %vm31, 0.0
    %146 = vst.msk [vmem:[#allocation2 + $0x390] sm:$0xff] %vm31, 0.0
    %147 = vst.msk [vmem:[#allocation2 + $0x398] sm:$0xff] %vm31, 0.0
    %148 = vst.msk [vmem:[#allocation2 + $0x3a0] sm:$0xff] %vm31, 0.0
    %149 = vst.msk [vmem:[#allocation2 + $0x3a8] sm:$0xff] %vm31, 0.0
    %150 = vst.msk [vmem:[#allocation2 + $0x3b0] sm:$0xff] %vm31, 0.0
    %151 = vst.msk [vmem:[#allocation2 + $0x3b8] sm:$0xff] %vm31, 0.0
    %152 = vst.msk [vmem:[#allocation2 + $0x3c0] sm:$0xff] %vm31, 0.0
    %153 = vst.msk [vmem:[#allocation2 + $0x3c8] sm:$0xff] %vm31, 0.0
    %154 = vst.msk [vmem:[#allocation2 + $0x3d0] sm:$0xff] %vm31, 0.0
    %155 = vst.msk [vmem:[#allocation2 + $0x3d8] sm:$0xff] %vm31, 0.0
    %156 = vst.msk [vmem:[#allocation2 + $0x3e0] sm:$0xff] %vm31, 0.0
    %157 = vst.msk [vmem:[#allocation2 + $0x3e8] sm:$0xff] %vm31, 0.0
    %158 = vst.msk [vmem:[#allocation2 + $0x3f0] sm:$0xff] %vm31, 0.0
    %159 = vst.msk [vmem:[#allocation2 + $0x3f8] sm:$0xff] %vm31, 0.0
    %160 = vst.msk [vmem:[#allocation2 + $0x400] sm:$0xff] %vm31, 0.0
    %161 = vst.msk [vmem:[#allocation2 + $0x408] sm:$0xff] %vm31, 0.0
    %162 = vst.msk [vmem:[#allocation2 + $0x410] sm:$0xff] %vm31, 0.0
    %163 = vst.msk [vmem:[#allocation2 + $0x418] sm:$0xff] %vm31, 0.0
    %164 = vst.msk [vmem:[#allocation2 + $0x420] sm:$0xff] %vm31, 0.0
    %165 = vst.msk [vmem:[#allocation2 + $0x428] sm:$0xff] %vm31, 0.0
    %166 = vst.msk [vmem:[#allocation2 + $0x430] sm:$0xff] %vm31, 0.0
    %167 = vst.msk [vmem:[#allocation2 + $0x438] sm:$0xff] %vm31, 0.0
    %168 = vst.msk [vmem:[#allocation2 + $0x440] sm:$0xff] %vm31, 0.0
    %169 = vst.msk [vmem:[#allocation2 + $0x448] sm:$0xff] %vm31, 0.0
    %170 = vst.msk [vmem:[#allocation2 + $0x450] sm:$0xff] %vm31, 0.0
    %171 = vst.msk [vmem:[#allocation2 + $0x458] sm:$0xff] %vm31, 0.0
    %172 = vst.msk [vmem:[#allocation2 + $0x460] sm:$0xff] %vm31, 0.0
    %173 = vst.msk [vmem:[#allocation2 + $0x468] sm:$0xff] %vm31, 0.0
    %174 = vst.msk [vmem:[#allocation2 + $0x470] sm:$0xff] %vm31, 0.0
    %175 = vst.msk [vmem:[#allocation2 + $0x478] sm:$0xff] %vm31, 0.0
    %176 = vst.msk [vmem:[#allocation2 + $0x480] sm:$0xff] %vm31, 0.0
    %177 = vst.msk [vmem:[#allocation2 + $0x488] sm:$0xff] %vm31, 0.0
    %178 = vst.msk [vmem:[#allocation2 + $0x490] sm:$0xff] %vm31, 0.0
    %179 = vst.msk [vmem:[#allocation2 + $0x498] sm:$0xff] %vm31, 0.0
    %180 = vst.msk [vmem:[#allocation2 + $0x4a0] sm:$0xff] %vm31, 0.0
    %181 = vst.msk [vmem:[#allocation2 + $0x4a8] sm:$0xff] %vm31, 0.0
    %182 = vst.msk [vmem:[#allocation2 + $0x4b0] sm:$0xff] %vm31, 0.0
    %183 = vst.msk [vmem:[#allocation2 + $0x4b8] sm:$0xff] %vm31, 0.0
    %184 = vst.msk [vmem:[#allocation2 + $0x4c0] sm:$0xff] %vm31, 0.0
    %185 = vst.msk [vmem:[#allocation2 + $0x4c8] sm:$0xff] %vm31, 0.0
    %186 = vst.msk [vmem:[#allocation2 + $0x4d0] sm:$0xff] %vm31, 0.0
    %187 = vst.msk [vmem:[#allocation2 + $0x4d8] sm:$0xff] %vm31, 0.0
    %188 = vst.msk [vmem:[#allocation2 + $0x4e0] sm:$0xff] %vm31, 0.0
    %189 = vst.msk [vmem:[#allocation2 + $0x4e8] sm:$0xff] %vm31, 0.0
    %190 = vst.msk [vmem:[#allocation2 + $0x4f0] sm:$0xff] %vm31, 0.0
    %191 = vst.msk [vmem:[#allocation2 + $0x4f8] sm:$0xff] %vm31, 0.0
  $region29: #{avg_feat_forward.1} parent=0 // pred_fallthru
    _
  %v192 = vld [vmem:[%s2] sm:$0xf]
  %v193 = vld [vmem:[%s2 + $0x4] sm:$0xf]
  %v194 = vld [vmem:[%s2 + $0x8] sm:$0xf]
  %v195 = vld [vmem:[%s2 + $0xc] sm:$0xf]
  %v196 = vld [vmem:[%s2 + $0x10] sm:$0xf]
  %v197 = vld [vmem:[%s2 + $0x14] sm:$0xf]
  %v198 = vld [vmem:[%s2 + $0x18] sm:$0xf]
  %v199 = vld [vmem:[%s2 + $0x1c] sm:$0xf]
  %v200 = vld [vmem:[%s2 + $0x20] sm:$0xf]
  %v201 = vld [vmem:[%s2 + $0x24] sm:$0xf]
  %v202 = vld [vmem:[%s2 + $0x28] sm:$0xf]
  %v203 = vld [vmem:[%s2 + $0x2c] sm:$0xf]
  %v204 = vld [vmem:[%s2 + $0x30] sm:$0xf]
  %v205 = vld [vmem:[%s2 + $0x34] sm:$0xf]
  %v206 = vld [vmem:[%s2 + $0x38] sm:$0xf]
  %v207 = vld [vmem:[%s2 + $0x3c] sm:$0xf]
  %v208 = vld [vmem:[%s2 + $0x40] sm:$0xf]
  %v209 = vld [vmem:[%s2 + $0x44] sm:$0xf]
  %v210 = vld [vmem:[%s2 + $0x48] sm:$0xf]
  %v211 = vld [vmem:[%s2 + $0x4c] sm:$0xf]
  %v212 = vld [vmem:[%s2 + $0x50] sm:$0xf]
  %v213 = vld [vmem:[%s2 + $0x54] sm:$0xf]
  %v214 = vld [vmem:[%s2 + $0x58] sm:$0xf]
  %v215 = vld [vmem:[%s2 + $0x5c] sm:$0xf]
  %v216 = vld [vmem:[%s2 + $0x60] sm:$0xf]
  %v217 = vld [vmem:[%s2 + $0x64] sm:$0xf]
  %v218 = vld [vmem:[%s2 + $0x68] sm:$0xf]
  %v219 = vld [vmem:[%s2 + $0x6c] sm:$0xf]
  %v220 = vld [vmem:[%s2 + $0x70] sm:$0xf]
  %v221 = vld [vmem:[%s2 + $0x74] sm:$0xf]
  %v222 = vld [vmem:[%s2 + $0x78] sm:$0xf]
  %v223 = vld [vmem:[%s2 + $0x7c] sm:$0xf]
  %v224 = vld [vmem:[%s2 + $0x80] sm:$0xf]
  %v225 = vld [vmem:[%s2 + $0x84] sm:$0xf]
  %v226 = vld [vmem:[%s2 + $0x88] sm:$0xf]
  %v227 = vld [vmem:[%s2 + $0x8c] sm:$0xf]
  %v228 = vld [vmem:[%s2 + $0x90] sm:$0xf]
  %v229 = vld [vmem:[%s2 + $0x94] sm:$0xf]
  %v230 = vld [vmem:[%s2 + $0x98] sm:$0xf]
  %v231 = vld [vmem:[%s2 + $0x9c] sm:$0xf]
  %v232 = vld [vmem:[%s2 + $0xa0] sm:$0xf]
  %v233 = vld [vmem:[%s2 + $0xa4] sm:$0xf]
  %v234 = vld [vmem:[%s2 + $0xa8] sm:$0xf]
  %v235 = vld [vmem:[%s2 + $0xac] sm:$0xf]
  %v236 = vld [vmem:[%s2 + $0xb0] sm:$0xf]
  %v237 = vld [vmem:[%s2 + $0xb4] sm:$0xf]
  %v238 = vld [vmem:[%s2 + $0xb8] sm:$0xf]
  %v239 = vld [vmem:[%s2 + $0xbc] sm:$0xf]
  %v240 = vld [vmem:[%s2 + $0xc0] sm:$0xf]
  %v241 = vld [vmem:[%s2 + $0xc4] sm:$0xf]
  %v242 = vld [vmem:[%s2 + $0xc8] sm:$0xf]
  %v243 = vld [vmem:[%s2 + $0xcc] sm:$0xf]
  %v244 = vld [vmem:[%s2 + $0xd0] sm:$0xf]
  %v245 = vld [vmem:[%s2 + $0xd4] sm:$0xf]
  %v246 = vld [vmem:[%s2 + $0xd8] sm:$0xf]
  %v247 = vld [vmem:[%s2 + $0xdc] sm:$0xf]
  %v248 = vld [vmem:[%s2 + $0xe0] sm:$0xf]
  %v249 = vld [vmem:[%s2 + $0xe4] sm:$0xf]
  %v250 = vld [vmem:[%s2 + $0xe8] sm:$0xf]
  %v251 = vld [vmem:[%s2 + $0xec] sm:$0xf]
  %v252 = vld [vmem:[%s2 + $0xf0] sm:$0xf]
  %v253 = vld [vmem:[%s2 + $0xf4] sm:$0xf]
  %v254 = vld [vmem:[%s2 + $0xf8] sm:$0xf]
  %v255 = vld [vmem:[%s2 + $0xfc] sm:$0xf]
  %v256 = vld [vmem:[%s2 + $0x100] sm:$0xf]
  %v257 = vld [vmem:[%s2 + $0x104] sm:$0xf]
  %v258 = vld [vmem:[%s2 + $0x108] sm:$0xf]
  %v259 = vld [vmem:[%s2 + $0x10c] sm:$0xf]
  %v260 = vld [vmem:[%s2 + $0x110] sm:$0xf]
  %v261 = vld [vmem:[%s2 + $0x114] sm:$0xf]
  %v262 = vld [vmem:[%s2 + $0x118] sm:$0xf]
  %v263 = vld [vmem:[%s2 + $0x11c] sm:$0xf]
  %v264 = vld [vmem:[%s2 + $0x120] sm:$0xf]
  %v265 = vld [vmem:[%s2 + $0x124] sm:$0xf]
  %v266 = vld [vmem:[%s2 + $0x128] sm:$0xf]
  %v267 = vld [vmem:[%s2 + $0x12c] sm:$0xf]
  %v268 = vld [vmem:[%s2 + $0x130] sm:$0xf]
  %v269 = vld [vmem:[%s2 + $0x134] sm:$0xf]
  %v270 = vld [vmem:[%s2 + $0x138] sm:$0xf]
  %v271 = vld [vmem:[%s2 + $0x13c] sm:$0xf]
  %v272 = vld [vmem:[%s2 + $0x140] sm:$0xf]
  %v273 = vld [vmem:[%s2 + $0x144] sm:$0xf]
  %v274 = vld [vmem:[%s2 + $0x148] sm:$0xf]
  %v275 = vld [vmem:[%s2 + $0x14c] sm:$0xf]
  %v276 = vld [vmem:[%s2 + $0x150] sm:$0xf]
  %v277 = vld [vmem:[%s2 + $0x154] sm:$0xf]
  %v278 = vld [vmem:[%s2 + $0x158] sm:$0xf]
  %v279 = vld [vmem:[%s2 + $0x15c] sm:$0xf]
  %v280 = vld [vmem:[%s2 + $0x160] sm:$0xf]
  %v281 = vld [vmem:[%s2 + $0x164] sm:$0xf]
  %v282 = vld [vmem:[%s2 + $0x168] sm:$0xf]
  %v283 = vld [vmem:[%s2 + $0x16c] sm:$0xf]
  %v284 = vld [vmem:[%s2 + $0x170] sm:$0xf]
  %v285 = vld [vmem:[%s2 + $0x174] sm:$0xf]
  %v286 = vld [vmem:[%s2 + $0x178] sm:$0xf]
  %v287 = vld [vmem:[%s2 + $0x17c] sm:$0xf]
  %v288 = vld [vmem:[%s2 + $0x180] sm:$0xf]
  %v289 = vld [vmem:[%s2 + $0x184] sm:$0xf]
  %v290 = vld [vmem:[%s2 + $0x188] sm:$0xf]
  %v291 = vld [vmem:[%s2 + $0x18c] sm:$0xf]
  %v292 = vld [vmem:[%s2 + $0x190] sm:$0xf]
  %v293 = vld [vmem:[%s2 + $0x194] sm:$0xf]
  %v294 = vld [vmem:[%s2 + $0x198] sm:$0xf]
  %v295 = vld [vmem:[%s2 + $0x19c] sm:$0xf]
  %v296 = vld [vmem:[%s2 + $0x1a0] sm:$0xf]
  %v297 = vld [vmem:[%s2 + $0x1a4] sm:$0xf]
  %v298 = vld [vmem:[%s2 + $0x1a8] sm:$0xf]
  %v299 = vld [vmem:[%s2 + $0x1ac] sm:$0xf]
  %v300 = vld [vmem:[%s2 + $0x1b0] sm:$0xf]
  %v301 = vld [vmem:[%s2 + $0x1b4] sm:$0xf]
  %v302 = vld [vmem:[%s2 + $0x1b8] sm:$0xf]
  %v303 = vld [vmem:[%s2 + $0x1bc] sm:$0xf]
  %v304 = vld [vmem:[%s2 + $0x1c0] sm:$0xf]
  %v305 = vld [vmem:[%s2 + $0x1c4] sm:$0xf]
  %v306 = vld [vmem:[%s2 + $0x1c8] sm:$0xf]
  %v307 = vld [vmem:[%s2 + $0x1cc] sm:$0xf]
  %v308 = vld [vmem:[%s2 + $0x1d0] sm:$0xf]
  %v309 = vld [vmem:[%s2 + $0x1d4] sm:$0xf]
  %v310 = vld [vmem:[%s2 + $0x1d8] sm:$0xf]
  %v311 = vld [vmem:[%s2 + $0x1dc] sm:$0xf]
  %v312 = vld [vmem:[%s2 + $0x1e0] sm:$0xf]
  %v313 = vld [vmem:[%s2 + $0x1e4] sm:$0xf]
  %v314 = vld [vmem:[%s2 + $0x1e8] sm:$0xf]
  %v315 = vld [vmem:[%s2 + $0x1ec] sm:$0xf]
  %v316 = vld [vmem:[%s2 + $0x1f0] sm:$0xf]
  %v317 = vld [vmem:[%s2 + $0x1f4] sm:$0xf]
  %v318 = vld [vmem:[%s2 + $0x1f8] sm:$0xf]
  %v319 = vld [vmem:[%s2 + $0x1fc] sm:$0xf]
  %v320 = vld [vmem:[%s2 + $0x200] sm:$0xf]
  %v321 = vld [vmem:[%s2 + $0x204] sm:$0xf]
  %v322 = vld [vmem:[%s2 + $0x208] sm:$0xf]
  %v323 = vld [vmem:[%s2 + $0x20c] sm:$0xf]
  %v324 = vld [vmem:[%s2 + $0x210] sm:$0xf]
  %v325 = vld [vmem:[%s2 + $0x214] sm:$0xf]
  %v326 = vld [vmem:[%s2 + $0x218] sm:$0xf]
  %v327 = vld [vmem:[%s2 + $0x21c] sm:$0xf]
  %v328 = vld [vmem:[%s2 + $0x220] sm:$0xf]
  %v329 = vld [vmem:[%s2 + $0x224] sm:$0xf]
  %v330 = vld [vmem:[%s2 + $0x228] sm:$0xf]
  %v331 = vld [vmem:[%s2 + $0x22c] sm:$0xf]
  %v332 = vld [vmem:[%s2 + $0x230] sm:$0xf]
  %v333 = vld [vmem:[%s2 + $0x234] sm:$0xf]
  %v334 = vld [vmem:[%s2 + $0x238] sm:$0xf]
  %v335 = vld [vmem:[%s2 + $0x23c] sm:$0xf]
  %v336 = vld [vmem:[%s2 + $0x240] sm:$0xf]
  %v337 = vld [vmem:[%s2 + $0x244] sm:$0xf]
  %v338 = vld [vmem:[%s2 + $0x248] sm:$0xf]
  %v339 = vld [vmem:[%s2 + $0x24c] sm:$0xf]
  %v340 = vld [vmem:[%s2 + $0x250] sm:$0xf]
  %v341 = vld [vmem:[%s2 + $0x254] sm:$0xf]
  %v342 = vld [vmem:[%s2 + $0x258] sm:$0xf]
  %v343 = vld [vmem:[%s2 + $0x25c] sm:$0xf]
  %v344 = vld [vmem:[%s2 + $0x260] sm:$0xf]
  %v345 = vld [vmem:[%s2 + $0x264] sm:$0xf]
  %v346 = vld [vmem:[%s2 + $0x268] sm:$0xf]
  %v347 = vld [vmem:[%s2 + $0x26c] sm:$0xf]
  %v348 = vld [vmem:[%s2 + $0x270] sm:$0xf]
  %v349 = vld [vmem:[%s2 + $0x274] sm:$0xf]
  %v350 = vld [vmem:[%s2 + $0x278] sm:$0xf]
  %v351 = vld [vmem:[%s2 + $0x27c] sm:$0xf]
  %v352 = vld [vmem:[%s3] sm:$0xff]
  %v353 = vld [vmem:[%s3 + $0x8] sm:$0xff]
  %v354 = vld [vmem:[%s3 + $0x10] sm:$0xff]
  %v355 = vld [vmem:[%s3 + $0x18] sm:$0xff]
  %v356 = vld [vmem:[%s3 + $0x20] sm:$0xff]
  %v357 = vld [vmem:[%s3 + $0x28] sm:$0xff]
  %v358 = vld [vmem:[%s3 + $0x30] sm:$0xff]
  %v359 = vld [vmem:[%s3 + $0x38] sm:$0xff]
  %v360 = vld [vmem:[%s3 + $0x40] sm:$0xff]
  %v361 = vld [vmem:[%s3 + $0x48] sm:$0xff]
  %v362 = vld [vmem:[%s3 + $0x50] sm:$0xff]
  %v363 = vld [vmem:[%s3 + $0x58] sm:$0xff]
  %v364 = vld [vmem:[%s3 + $0x60] sm:$0xff]
  %v365 = vld [vmem:[%s3 + $0x68] sm:$0xff]
  %v366 = vld [vmem:[%s3 + $0x70] sm:$0xff]
  %v367 = vld [vmem:[%s3 + $0x78] sm:$0xff]
  %v368 = vld [vmem:[%s3 + $0x80] sm:$0xff]
  %v369 = vld [vmem:[%s3 + $0x88] sm:$0xff]
  %v370 = vld [vmem:[%s3 + $0x90] sm:$0xff]
  %v371 = vld [vmem:[%s3 + $0x98] sm:$0xff]
  %v372 = vld [vmem:[%s3 + $0xa0] sm:$0xff]
  %v373 = vld [vmem:[%s3 + $0xa8] sm:$0xff]
  %v374 = vld [vmem:[%s3 + $0xb0] sm:$0xff]
  %v375 = vld [vmem:[%s3 + $0xb8] sm:$0xff]
  %v376 = vld [vmem:[%s3 + $0xc0] sm:$0xff]
  %v377 = vld [vmem:[%s3 + $0xc8] sm:$0xff]
  %v378 = vld [vmem:[%s3 + $0xd0] sm:$0xff]
  %v379 = vld [vmem:[%s3 + $0xd8] sm:$0xff]
  %v380 = vld [vmem:[%s3 + $0xe0] sm:$0xff]
  %v381 = vld [vmem:[%s3 + $0xe8] sm:$0xff]
  %v382 = vld [vmem:[%s3 + $0xf0] sm:$0xff]
  %v383 = vld [vmem:[%s3 + $0xf8] sm:$0xff]
  %v384 = vld [vmem:[%s3 + $0x100] sm:$0xff]
  %v385 = vld [vmem:[%s3 + $0x108] sm:$0xff]
  %v386 = vld [vmem:[%s3 + $0x110] sm:$0xff]
  %v387 = vld [vmem:[%s3 + $0x118] sm:$0xff]
  %v388 = vld [vmem:[%s3 + $0x120] sm:$0xff]
  %v389 = vld [vmem:[%s3 + $0x128] sm:$0xff]
  %v390 = vld [vmem:[%s3 + $0x130] sm:$0xff]
  %v391 = vld [vmem:[%s3 + $0x138] sm:$0xff]
  %v392 = vld [vmem:[%s3 + $0x140] sm:$0xff]
  %v393 = vld [vmem:[%s3 + $0x148] sm:$0xff]
  %v394 = vld [vmem:[%s3 + $0x150] sm:$0xff]
  %v395 = vld [vmem:[%s3 + $0x158] sm:$0xff]
  %v396 = vld [vmem:[%s3 + $0x160] sm:$0xff]
  %v397 = vld [vmem:[%s3 + $0x168] sm:$0xff]
  %v398 = vld [vmem:[%s3 + $0x170] sm:$0xff]
  %v399 = vld [vmem:[%s3 + $0x178] sm:$0xff]
  %v400 = vld [vmem:[%s3 + $0x180] sm:$0xff]
  %v401 = vld [vmem:[%s3 + $0x188] sm:$0xff]
  %v402 = vld [vmem:[%s3 + $0x190] sm:$0xff]
  %v403 = vld [vmem:[%s3 + $0x198] sm:$0xff]
  %v404 = vld [vmem:[%s3 + $0x1a0] sm:$0xff]
  %v405 = vld [vmem:[%s3 + $0x1a8] sm:$0xff]
  %v406 = vld [vmem:[%s3 + $0x1b0] sm:$0xff]
  %v407 = vld [vmem:[%s3 + $0x1b8] sm:$0xff]
  %v408 = vld [vmem:[%s3 + $0x1c0] sm:$0xff]
  %v409 = vld [vmem:[%s3 + $0x1c8] sm:$0xff]
  %v410 = vld [vmem:[%s3 + $0x1d0] sm:$0xff]
  %v411 = vld [vmem:[%s3 + $0x1d8] sm:$0xff]
  %v412 = vld [vmem:[%s3 + $0x1e0] sm:$0xff]
  %v413 = vld [vmem:[%s3 + $0x1e8] sm:$0xff]
  %v414 = vld [vmem:[%s3 + $0x1f0] sm:$0xff]
  %v415 = vld [vmem:[%s3 + $0x1f8] sm:$0xff]
  %v416 = vld [vmem:[%s3 + $0x200] sm:$0xff]
  %v417 = vld [vmem:[%s3 + $0x208] sm:$0xff]
  %v418 = vld [vmem:[%s3 + $0x210] sm:$0xff]
  %v419 = vld [vmem:[%s3 + $0x218] sm:$0xff]
  %v420 = vld [vmem:[%s3 + $0x220] sm:$0xff]
  %v421 = vld [vmem:[%s3 + $0x228] sm:$0xff]
  %v422 = vld [vmem:[%s3 + $0x230] sm:$0xff]
  %v423 = vld [vmem:[%s3 + $0x238] sm:$0xff]
  %v424 = vld [vmem:[%s3 + $0x240] sm:$0xff]
  %v425 = vld [vmem:[%s3 + $0x248] sm:$0xff]
  %v426 = vld [vmem:[%s3 + $0x250] sm:$0xff]
  %v427 = vld [vmem:[%s3 + $0x258] sm:$0xff]
  %v428 = vld [vmem:[%s3 + $0x260] sm:$0xff]
  %v429 = vld [vmem:[%s3 + $0x268] sm:$0xff]
  %v430 = vld [vmem:[%s3 + $0x270] sm:$0xff]
  %v431 = vld [vmem:[%s3 + $0x278] sm:$0xff]
  %v432 = vld [vmem:[%s3 + $0x280] sm:$0xff]
  %v433 = vld [vmem:[%s3 + $0x288] sm:$0xff]
  %v434 = vld [vmem:[%s3 + $0x290] sm:$0xff]
  %v435 = vld [vmem:[%s3 + $0x298] sm:$0xff]
  %v436 = vld [vmem:[%s3 + $0x2a0] sm:$0xff]
  %v437 = vld [vmem:[%s3 + $0x2a8] sm:$0xff]
  %v438 = vld [vmem:[%s3 + $0x2b0] sm:$0xff]
  %v439 = vld [vmem:[%s3 + $0x2b8] sm:$0xff]
  %v440 = vld [vmem:[%s3 + $0x2c0] sm:$0xff]
  %v441 = vld [vmem:[%s3 + $0x2c8] sm:$0xff]
  %v442 = vld [vmem:[%s3 + $0x2d0] sm:$0xff]
  %v443 = vld [vmem:[%s3 + $0x2d8] sm:$0xff]
  %v444 = vld [vmem:[%s3 + $0x2e0] sm:$0xff]
  %v445 = vld [vmem:[%s3 + $0x2e8] sm:$0xff]
  %v446 = vld [vmem:[%s3 + $0x2f0] sm:$0xff]
  %v447 = vld [vmem:[%s3 + $0x2f8] sm:$0xff]
  %v448 = vld [vmem:[%s3 + $0x300] sm:$0xff]
  %v449 = vld [vmem:[%s3 + $0x308] sm:$0xff]
  %v450 = vld [vmem:[%s3 + $0x310] sm:$0xff]
  %v451 = vld [vmem:[%s3 + $0x318] sm:$0xff]
  %v452 = vld [vmem:[%s3 + $0x320] sm:$0xff]
  %v453 = vld [vmem:[%s3 + $0x328] sm:$0xff]
  %v454 = vld [vmem:[%s3 + $0x330] sm:$0xff]
  %v455 = vld [vmem:[%s3 + $0x338] sm:$0xff]
  %v456 = vld [vmem:[%s3 + $0x340] sm:$0xff]
  %v457 = vld [vmem:[%s3 + $0x348] sm:$0xff]
  %v458 = vld [vmem:[%s3 + $0x350] sm:$0xff]
  %v459 = vld [vmem:[%s3 + $0x358] sm:$0xff]
  %v460 = vld [vmem:[%s3 + $0x360] sm:$0xff]
  %v461 = vld [vmem:[%s3 + $0x368] sm:$0xff]
  %v462 = vld [vmem:[%s3 + $0x370] sm:$0xff]
  %v463 = vld [vmem:[%s3 + $0x378] sm:$0xff]
  %v464 = vld [vmem:[%s3 + $0x380] sm:$0xff]
  %v465 = vld [vmem:[%s3 + $0x388] sm:$0xff]
  %v466 = vld [vmem:[%s3 + $0x390] sm:$0xff]
  %v467 = vld [vmem:[%s3 + $0x398] sm:$0xff]
  %v468 = vld [vmem:[%s3 + $0x3a0] sm:$0xff]
  %v469 = vld [vmem:[%s3 + $0x3a8] sm:$0xff]
  %v470 = vld [vmem:[%s3 + $0x3b0] sm:$0xff]
  %v471 = vld [vmem:[%s3 + $0x3b8] sm:$0xff]
  %v472 = vld [vmem:[%s3 + $0x3c0] sm:$0xff]
  %v473 = vld [vmem:[%s3 + $0x3c8] sm:$0xff]
  %v474 = vld [vmem:[%s3 + $0x3d0] sm:$0xff]
  %v475 = vld [vmem:[%s3 + $0x3d8] sm:$0xff]
  %v476 = vld [vmem:[%s3 + $0x3e0] sm:$0xff]
  %v477 = vld [vmem:[%s3 + $0x3e8] sm:$0xff]
  %v478 = vld [vmem:[%s3 + $0x3f0] sm:$0xff]
  %v479 = vld [vmem:[%s3 + $0x3f8] sm:$0xff]
  %v480 = vld [vmem:[%s3 + $0x400] sm:$0xff]
  %v481 = vld [vmem:[%s3 + $0x408] sm:$0xff]
  %v482 = vld [vmem:[%s3 + $0x410] sm:$0xff]
  %v483 = vld [vmem:[%s3 + $0x418] sm:$0xff]
  %v484 = vld [vmem:[%s3 + $0x420] sm:$0xff]
  %v485 = vld [vmem:[%s3 + $0x428] sm:$0xff]
  %v486 = vld [vmem:[%s3 + $0x430] sm:$0xff]
  %v487 = vld [vmem:[%s3 + $0x438] sm:$0xff]
  %v488 = vld [vmem:[%s3 + $0x440] sm:$0xff]
  %v489 = vld [vmem:[%s3 + $0x448] sm:$0xff]
  %v490 = vld [vmem:[%s3 + $0x450] sm:$0xff]
  %v491 = vld [vmem:[%s3 + $0x458] sm:$0xff]
  %v492 = vld [vmem:[%s3 + $0x460] sm:$0xff]
  %v493 = vld [vmem:[%s3 + $0x468] sm:$0xff]
  %v494 = vld [vmem:[%s3 + $0x470] sm:$0xff]
  %v495 = vld [vmem:[%s3 + $0x478] sm:$0xff]
  %v496 = vld [vmem:[%s3 + $0x480] sm:$0xff]
  %v497 = vld [vmem:[%s3 + $0x488] sm:$0xff]
  %v498 = vld [vmem:[%s3 + $0x490] sm:$0xff]
  %v499 = vld [vmem:[%s3 + $0x498] sm:$0xff]
  %v500 = vld [vmem:[%s3 + $0x4a0] sm:$0xff]
  %v501 = vld [vmem:[%s3 + $0x4a8] sm:$0xff]
  %v502 = vld [vmem:[%s3 + $0x4b0] sm:$0xff]
  %v503 = vld [vmem:[%s3 + $0x4b8] sm:$0xff]
  %v504 = vld [vmem:[%s3 + $0x4c0] sm:$0xff]
  %v505 = vld [vmem:[%s3 + $0x4c8] sm:$0xff]
  %v506 = vld [vmem:[%s3 + $0x4d0] sm:$0xff]
  %v507 = vld [vmem:[%s3 + $0x4d8] sm:$0xff]
  %v508 = vld [vmem:[%s3 + $0x4e0] sm:$0xff]
  %v509 = vld [vmem:[%s3 + $0x4e8] sm:$0xff]
  %v510 = vld [vmem:[%s3 + $0x4f0] sm:$0xff]
  %v511 = vld [vmem:[%s3 + $0x4f8] sm:$0xff]
  %v512 = vld [vmem:[%s0] sm:$0x77]
  %v514 = vcombine.high %v512, %v512
  %v516 = vpack.c.bf16 %v512, %v512
  %v517 = vpack.c.bf16 %v514, %v514
  %v518 = vld [vmem:[%s25] sm:$0x77]
  %v520 = vcombine.high %v518, %v518
  %v522 = vpack.c.bf16 %v518, %v518
  %v523 = vpack.c.bf16 %v520, %v520
  %525 = vset.pattern.permute.xlu0 0
  %526 = vperm.xlu0 %525, %v352
  %v527 = vpop.permute.xlu0 %526
  %530 = vset.pattern.permute.xlu0 0
  %531 = vperm.xlu0 %530, %v353
  %v532 = vpop.permute.xlu0 %531
  %535 = vset.pattern.permute.xlu0 0
  %536 = vperm.xlu0 %535, %v354
  %v537 = vpop.permute.xlu0 %536
  %540 = vset.pattern.permute.xlu0 0
  %541 = vperm.xlu0 %540, %v355
  %v542 = vpop.permute.xlu0 %541
  %545 = vset.pattern.permute.xlu0 0
  %546 = vperm.xlu0 %545, %v356
  %v547 = vpop.permute.xlu0 %546
  %550 = vset.pattern.permute.xlu0 0
  %551 = vperm.xlu0 %550, %v357
  %v552 = vpop.permute.xlu0 %551
  %555 = vset.pattern.permute.xlu0 0
  %556 = vperm.xlu0 %555, %v358
  %v557 = vpop.permute.xlu0 %556
  %560 = vset.pattern.permute.xlu0 0
  %561 = vperm.xlu0 %560, %v359
  %v562 = vpop.permute.xlu0 %561
  %565 = vset.pattern.permute.xlu0 0
  %566 = vperm.xlu0 %565, %v360
  %v567 = vpop.permute.xlu0 %566
  %570 = vset.pattern.permute.xlu0 0
  %571 = vperm.xlu0 %570, %v361
  %v572 = vpop.permute.xlu0 %571
  %575 = vset.pattern.permute.xlu0 0
  %576 = vperm.xlu0 %575, %v362
  %v577 = vpop.permute.xlu0 %576
  %580 = vset.pattern.permute.xlu0 0
  %581 = vperm.xlu0 %580, %v363
  %v582 = vpop.permute.xlu0 %581
  %585 = vset.pattern.permute.xlu0 0
  %586 = vperm.xlu0 %585, %v364
  %v587 = vpop.permute.xlu0 %586
  %590 = vset.pattern.permute.xlu0 0
  %591 = vperm.xlu0 %590, %v365
  %v592 = vpop.permute.xlu0 %591
  %595 = vset.pattern.permute.xlu0 0
  %596 = vperm.xlu0 %595, %v366
  %v597 = vpop.permute.xlu0 %596
  %600 = vset.pattern.permute.xlu0 0
  %601 = vperm.xlu0 %600, %v367
  %v602 = vpop.permute.xlu0 %601
  %605 = vset.pattern.permute.xlu0 0
  %606 = vperm.xlu0 %605, %v368
  %v607 = vpop.permute.xlu0 %606
  %610 = vset.pattern.permute.xlu0 0
  %611 = vperm.xlu0 %610, %v369
  %v612 = vpop.permute.xlu0 %611
  %615 = vset.pattern.permute.xlu0 0
  %616 = vperm.xlu0 %615, %v370
  %v617 = vpop.permute.xlu0 %616
  %620 = vset.pattern.permute.xlu0 0
  %621 = vperm.xlu0 %620, %v371
  %v622 = vpop.permute.xlu0 %621
  %625 = vset.pattern.permute.xlu0 0
  %626 = vperm.xlu0 %625, %v372
  %v627 = vpop.permute.xlu0 %626
  %630 = vset.pattern.permute.xlu0 0
  %631 = vperm.xlu0 %630, %v373
  %v632 = vpop.permute.xlu0 %631
  %635 = vset.pattern.permute.xlu0 0
  %636 = vperm.xlu0 %635, %v374
  %v637 = vpop.permute.xlu0 %636
  %640 = vset.pattern.permute.xlu0 0
  %641 = vperm.xlu0 %640, %v375
  %v642 = vpop.permute.xlu0 %641
  %645 = vset.pattern.permute.xlu0 0
  %646 = vperm.xlu0 %645, %v376
  %v647 = vpop.permute.xlu0 %646
  %650 = vset.pattern.permute.xlu0 0
  %651 = vperm.xlu0 %650, %v377
  %v652 = vpop.permute.xlu0 %651
  %655 = vset.pattern.permute.xlu0 0
  %656 = vperm.xlu0 %655, %v378
  %v657 = vpop.permute.xlu0 %656
  %660 = vset.pattern.permute.xlu0 0
  %661 = vperm.xlu0 %660, %v379
  %v662 = vpop.permute.xlu0 %661
  %665 = vset.pattern.permute.xlu0 0
  %666 = vperm.xlu0 %665, %v380
  %v667 = vpop.permute.xlu0 %666
  %670 = vset.pattern.permute.xlu0 0
  %671 = vperm.xlu0 %670, %v381
  %v672 = vpop.permute.xlu0 %671
  %675 = vset.pattern.permute.xlu0 0
  %676 = vperm.xlu0 %675, %v382
  %v677 = vpop.permute.xlu0 %676
  %680 = vset.pattern.permute.xlu0 0
  %681 = vperm.xlu0 %680, %v383
  %v682 = vpop.permute.xlu0 %681
  %685 = vset.pattern.permute.xlu0 0
  %686 = vperm.xlu0 %685, %v384
  %v687 = vpop.permute.xlu0 %686
  %690 = vset.pattern.permute.xlu0 0
  %691 = vperm.xlu0 %690, %v385
  %v692 = vpop.permute.xlu0 %691
  %695 = vset.pattern.permute.xlu0 0
  %696 = vperm.xlu0 %695, %v386
  %v697 = vpop.permute.xlu0 %696
  %700 = vset.pattern.permute.xlu0 0
  %701 = vperm.xlu0 %700, %v387
  %v702 = vpop.permute.xlu0 %701
  %705 = vset.pattern.permute.xlu0 0
  %706 = vperm.xlu0 %705, %v388
  %v707 = vpop.permute.xlu0 %706
  %710 = vset.pattern.permute.xlu0 0
  %711 = vperm.xlu0 %710, %v389
  %v712 = vpop.permute.xlu0 %711
  %715 = vset.pattern.permute.xlu0 0
  %716 = vperm.xlu0 %715, %v390
  %v717 = vpop.permute.xlu0 %716
  %720 = vset.pattern.permute.xlu0 0
  %721 = vperm.xlu0 %720, %v391
  %v722 = vpop.permute.xlu0 %721
  %725 = vset.pattern.permute.xlu0 0
  %726 = vperm.xlu0 %725, %v392
  %v727 = vpop.permute.xlu0 %726
  %730 = vset.pattern.permute.xlu0 0
  %731 = vperm.xlu0 %730, %v393
  %v732 = vpop.permute.xlu0 %731
  %735 = vset.pattern.permute.xlu0 0
  %736 = vperm.xlu0 %735, %v394
  %v737 = vpop.permute.xlu0 %736
  %740 = vset.pattern.permute.xlu0 0
  %741 = vperm.xlu0 %740, %v395
  %v742 = vpop.permute.xlu0 %741
  %745 = vset.pattern.permute.xlu0 0
  %746 = vperm.xlu0 %745, %v396
  %v747 = vpop.permute.xlu0 %746
  %750 = vset.pattern.permute.xlu0 0
  %751 = vperm.xlu0 %750, %v397
  %v752 = vpop.permute.xlu0 %751
  %755 = vset.pattern.permute.xlu0 0
  %756 = vperm.xlu0 %755, %v398
  %v757 = vpop.permute.xlu0 %756
  %760 = vset.pattern.permute.xlu0 0
  %761 = vperm.xlu0 %760, %v399
  %v762 = vpop.permute.xlu0 %761
  %765 = vset.pattern.permute.xlu0 0
  %766 = vperm.xlu0 %765, %v400
  %v767 = vpop.permute.xlu0 %766
  %770 = vset.pattern.permute.xlu0 0
  %771 = vperm.xlu0 %770, %v401
  %v772 = vpop.permute.xlu0 %771
  %775 = vset.pattern.permute.xlu0 0
  %776 = vperm.xlu0 %775, %v402
  %v777 = vpop.permute.xlu0 %776
  %780 = vset.pattern.permute.xlu0 0
  %781 = vperm.xlu0 %780, %v403
  %v782 = vpop.permute.xlu0 %781
  %785 = vset.pattern.permute.xlu0 0
  %786 = vperm.xlu0 %785, %v404
  %v787 = vpop.permute.xlu0 %786
  %790 = vset.pattern.permute.xlu0 0
  %791 = vperm.xlu0 %790, %v405
  %v792 = vpop.permute.xlu0 %791
  %795 = vset.pattern.permute.xlu0 0
  %796 = vperm.xlu0 %795, %v406
  %v797 = vpop.permute.xlu0 %796
  %800 = vset.pattern.permute.xlu0 0
  %801 = vperm.xlu0 %800, %v407
  %v802 = vpop.permute.xlu0 %801
  %805 = vset.pattern.permute.xlu0 0
  %806 = vperm.xlu0 %805, %v408
  %v807 = vpop.permute.xlu0 %806
  %810 = vset.pattern.permute.xlu0 0
  %811 = vperm.xlu0 %810, %v409
  %v812 = vpop.permute.xlu0 %811
  %815 = vset.pattern.permute.xlu0 0
  %816 = vperm.xlu0 %815, %v410
  %v817 = vpop.permute.xlu0 %816
  %820 = vset.pattern.permute.xlu0 0
  %821 = vperm.xlu0 %820, %v411
  %v822 = vpop.permute.xlu0 %821
  %825 = vset.pattern.permute.xlu0 0
  %826 = vperm.xlu0 %825, %v412
  %v827 = vpop.permute.xlu0 %826
  %830 = vset.pattern.permute.xlu0 0
  %831 = vperm.xlu0 %830, %v413
  %v832 = vpop.permute.xlu0 %831
  %835 = vset.pattern.permute.xlu0 0
  %836 = vperm.xlu0 %835, %v414
  %v837 = vpop.permute.xlu0 %836
  %840 = vset.pattern.permute.xlu0 0
  %841 = vperm.xlu0 %840, %v415
  %v842 = vpop.permute.xlu0 %841
  %845 = vset.pattern.permute.xlu0 0
  %846 = vperm.xlu0 %845, %v416
  %v847 = vpop.permute.xlu0 %846
  %850 = vset.pattern.permute.xlu0 0
  %851 = vperm.xlu0 %850, %v417
  %v852 = vpop.permute.xlu0 %851
  %855 = vset.pattern.permute.xlu0 0
  %856 = vperm.xlu0 %855, %v418
  %v857 = vpop.permute.xlu0 %856
  %860 = vset.pattern.permute.xlu0 0
  %861 = vperm.xlu0 %860, %v419
  %v862 = vpop.permute.xlu0 %861
  %865 = vset.pattern.permute.xlu0 0
  %866 = vperm.xlu0 %865, %v420
  %v867 = vpop.permute.xlu0 %866
  %870 = vset.pattern.permute.xlu0 0
  %871 = vperm.xlu0 %870, %v421
  %v872 = vpop.permute.xlu0 %871
  %875 = vset.pattern.permute.xlu0 0
  %876 = vperm.xlu0 %875, %v422
  %v877 = vpop.permute.xlu0 %876
  %880 = vset.pattern.permute.xlu0 0
  %881 = vperm.xlu0 %880, %v423
  %v882 = vpop.permute.xlu0 %881
  %885 = vset.pattern.permute.xlu0 0
  %886 = vperm.xlu0 %885, %v424
  %v887 = vpop.permute.xlu0 %886
  %890 = vset.pattern.permute.xlu0 0
  %891 = vperm.xlu0 %890, %v425
  %v892 = vpop.permute.xlu0 %891
  %895 = vset.pattern.permute.xlu0 0
  %896 = vperm.xlu0 %895, %v426
  %v897 = vpop.permute.xlu0 %896
  %900 = vset.pattern.permute.xlu0 0
  %901 = vperm.xlu0 %900, %v427
  %v902 = vpop.permute.xlu0 %901
  %905 = vset.pattern.permute.xlu0 0
  %906 = vperm.xlu0 %905, %v428
  %v907 = vpop.permute.xlu0 %906
  %910 = vset.pattern.permute.xlu0 0
  %911 = vperm.xlu0 %910, %v429
  %v912 = vpop.permute.xlu0 %911
  %915 = vset.pattern.permute.xlu0 0
  %916 = vperm.xlu0 %915, %v430
  %v917 = vpop.permute.xlu0 %916
  %920 = vset.pattern.permute.xlu0 0
  %921 = vperm.xlu0 %920, %v431
  %v922 = vpop.permute.xlu0 %921
  %925 = vset.pattern.permute.xlu0 0
  %926 = vperm.xlu0 %925, %v432
  %v927 = vpop.permute.xlu0 %926
  %930 = vset.pattern.permute.xlu0 0
  %931 = vperm.xlu0 %930, %v433
  %v932 = vpop.permute.xlu0 %931
  %935 = vset.pattern.permute.xlu0 0
  %936 = vperm.xlu0 %935, %v434
  %v937 = vpop.permute.xlu0 %936
  %940 = vset.pattern.permute.xlu0 0
  %941 = vperm.xlu0 %940, %v435
  %v942 = vpop.permute.xlu0 %941
  %945 = vset.pattern.permute.xlu0 0
  %946 = vperm.xlu0 %945, %v436
  %v947 = vpop.permute.xlu0 %946
  %950 = vset.pattern.permute.xlu0 0
  %951 = vperm.xlu0 %950, %v437
  %v952 = vpop.permute.xlu0 %951
  %955 = vset.pattern.permute.xlu0 0
  %956 = vperm.xlu0 %955, %v438
  %v957 = vpop.permute.xlu0 %956
  %960 = vset.pattern.permute.xlu0 0
  %961 = vperm.xlu0 %960, %v439
  %v962 = vpop.permute.xlu0 %961
  %965 = vset.pattern.permute.xlu0 0
  %966 = vperm.xlu0 %965, %v440
  %v967 = vpop.permute.xlu0 %966
  %970 = vset.pattern.permute.xlu0 0
  %971 = vperm.xlu0 %970, %v441
  %v972 = vpop.permute.xlu0 %971
  %975 = vset.pattern.permute.xlu0 0
  %976 = vperm.xlu0 %975, %v442
  %v977 = vpop.permute.xlu0 %976
  %980 = vset.pattern.permute.xlu0 0
  %981 = vperm.xlu0 %980, %v443
  %v982 = vpop.permute.xlu0 %981
  %985 = vset.pattern.permute.xlu0 0
  %986 = vperm.xlu0 %985, %v444
  %v987 = vpop.permute.xlu0 %986
  %990 = vset.pattern.permute.xlu0 0
  %991 = vperm.xlu0 %990, %v445
  %v992 = vpop.permute.xlu0 %991
  %995 = vset.pattern.permute.xlu0 0
  %996 = vperm.xlu0 %995, %v446
  %v997 = vpop.permute.xlu0 %996
  %1000 = vset.pattern.permute.xlu0 0
  %1001 = vperm.xlu0 %1000, %v447
  %v1002 = vpop.permute.xlu0 %1001
  %1005 = vset.pattern.permute.xlu0 0
  %1006 = vperm.xlu0 %1005, %v448
  %v1007 = vpop.permute.xlu0 %1006
  %1010 = vset.pattern.permute.xlu0 0
  %1011 = vperm.xlu0 %1010, %v449
  %v1012 = vpop.permute.xlu0 %1011
  %1015 = vset.pattern.permute.xlu0 0
  %1016 = vperm.xlu0 %1015, %v450
  %v1017 = vpop.permute.xlu0 %1016
  %1020 = vset.pattern.permute.xlu0 0
  %1021 = vperm.xlu0 %1020, %v451
  %v1022 = vpop.permute.xlu0 %1021
  %1025 = vset.pattern.permute.xlu0 0
  %1026 = vperm.xlu0 %1025, %v452
  %v1027 = vpop.permute.xlu0 %1026
  %1030 = vset.pattern.permute.xlu0 0
  %1031 = vperm.xlu0 %1030, %v453
  %v1032 = vpop.permute.xlu0 %1031
  %1035 = vset.pattern.permute.xlu0 0
  %1036 = vperm.xlu0 %1035, %v454
  %v1037 = vpop.permute.xlu0 %1036
  %1040 = vset.pattern.permute.xlu0 0
  %1041 = vperm.xlu0 %1040, %v455
  %v1042 = vpop.permute.xlu0 %1041
  %1045 = vset.pattern.permute.xlu0 0
  %1046 = vperm.xlu0 %1045, %v456
  %v1047 = vpop.permute.xlu0 %1046
  %1050 = vset.pattern.permute.xlu0 0
  %1051 = vperm.xlu0 %1050, %v457
  %v1052 = vpop.permute.xlu0 %1051
  %1055 = vset.pattern.permute.xlu0 0
  %1056 = vperm.xlu0 %1055, %v458
  %v1057 = vpop.permute.xlu0 %1056
  %1060 = vset.pattern.permute.xlu0 0
  %1061 = vperm.xlu0 %1060, %v459
  %v1062 = vpop.permute.xlu0 %1061
  %1065 = vset.pattern.permute.xlu0 0
  %1066 = vperm.xlu0 %1065, %v460
  %v1067 = vpop.permute.xlu0 %1066
  %1070 = vset.pattern.permute.xlu0 0
  %1071 = vperm.xlu0 %1070, %v461
  %v1072 = vpop.permute.xlu0 %1071
  %1075 = vset.pattern.permute.xlu0 0
  %1076 = vperm.xlu0 %1075, %v462
  %v1077 = vpop.permute.xlu0 %1076
  %1080 = vset.pattern.permute.xlu0 0
  %1081 = vperm.xlu0 %1080, %v463
  %v1082 = vpop.permute.xlu0 %1081
  %1085 = vset.pattern.permute.xlu0 0
  %1086 = vperm.xlu0 %1085, %v464
  %v1087 = vpop.permute.xlu0 %1086
  %1090 = vset.pattern.permute.xlu0 0
  %1091 = vperm.xlu0 %1090, %v465
  %v1092 = vpop.permute.xlu0 %1091
  %1095 = vset.pattern.permute.xlu0 0
  %1096 = vperm.xlu0 %1095, %v466
  %v1097 = vpop.permute.xlu0 %1096
  %1100 = vset.pattern.permute.xlu0 0
  %1101 = vperm.xlu0 %1100, %v467
  %v1102 = vpop.permute.xlu0 %1101
  %1105 = vset.pattern.permute.xlu0 0
  %1106 = vperm.xlu0 %1105, %v468
  %v1107 = vpop.permute.xlu0 %1106
  %1110 = vset.pattern.permute.xlu0 0
  %1111 = vperm.xlu0 %1110, %v469
  %v1112 = vpop.permute.xlu0 %1111
  %1115 = vset.pattern.permute.xlu0 0
  %1116 = vperm.xlu0 %1115, %v470
  %v1117 = vpop.permute.xlu0 %1116
  %1120 = vset.pattern.permute.xlu0 0
  %1121 = vperm.xlu0 %1120, %v471
  %v1122 = vpop.permute.xlu0 %1121
  %1125 = vset.pattern.permute.xlu0 0
  %1126 = vperm.xlu0 %1125, %v472
  %v1127 = vpop.permute.xlu0 %1126
  %1130 = vset.pattern.permute.xlu0 0
  %1131 = vperm.xlu0 %1130, %v473
  %v1132 = vpop.permute.xlu0 %1131
  %1135 = vset.pattern.permute.xlu0 0
  %1136 = vperm.xlu0 %1135, %v474
  %v1137 = vpop.permute.xlu0 %1136
  %1140 = vset.pattern.permute.xlu0 0
  %1141 = vperm.xlu0 %1140, %v475
  %v1142 = vpop.permute.xlu0 %1141
  %1145 = vset.pattern.permute.xlu0 0
  %1146 = vperm.xlu0 %1145, %v476
  %v1147 = vpop.permute.xlu0 %1146
  %1150 = vset.pattern.permute.xlu0 0
  %1151 = vperm.xlu0 %1150, %v477
  %v1152 = vpop.permute.xlu0 %1151
  %1155 = vset.pattern.permute.xlu0 0
  %1156 = vperm.xlu0 %1155, %v478
  %v1157 = vpop.permute.xlu0 %1156
  %1160 = vset.pattern.permute.xlu0 0
  %1161 = vperm.xlu0 %1160, %v479
  %v1162 = vpop.permute.xlu0 %1161
  %1165 = vset.pattern.permute.xlu0 0
  %1166 = vperm.xlu0 %1165, %v480
  %v1167 = vpop.permute.xlu0 %1166
  %1170 = vset.pattern.permute.xlu0 0
  %1171 = vperm.xlu0 %1170, %v481
  %v1172 = vpop.permute.xlu0 %1171
  %1175 = vset.pattern.permute.xlu0 0
  %1176 = vperm.xlu0 %1175, %v482
  %v1177 = vpop.permute.xlu0 %1176
  %1180 = vset.pattern.permute.xlu0 0
  %1181 = vperm.xlu0 %1180, %v483
  %v1182 = vpop.permute.xlu0 %1181
  %1185 = vset.pattern.permute.xlu0 0
  %1186 = vperm.xlu0 %1185, %v484
  %v1187 = vpop.permute.xlu0 %1186
  %1190 = vset.pattern.permute.xlu0 0
  %1191 = vperm.xlu0 %1190, %v485
  %v1192 = vpop.permute.xlu0 %1191
  %1195 = vset.pattern.permute.xlu0 0
  %1196 = vperm.xlu0 %1195, %v486
  %v1197 = vpop.permute.xlu0 %1196
  %1200 = vset.pattern.permute.xlu0 0
  %1201 = vperm.xlu0 %1200, %v487
  %v1202 = vpop.permute.xlu0 %1201
  %1205 = vset.pattern.permute.xlu0 0
  %1206 = vperm.xlu0 %1205, %v488
  %v1207 = vpop.permute.xlu0 %1206
  %1210 = vset.pattern.permute.xlu0 0
  %1211 = vperm.xlu0 %1210, %v489
  %v1212 = vpop.permute.xlu0 %1211
  %1215 = vset.pattern.permute.xlu0 0
  %1216 = vperm.xlu0 %1215, %v490
  %v1217 = vpop.permute.xlu0 %1216
  %1220 = vset.pattern.permute.xlu0 0
  %1221 = vperm.xlu0 %1220, %v491
  %v1222 = vpop.permute.xlu0 %1221
  %1225 = vset.pattern.permute.xlu0 0
  %1226 = vperm.xlu0 %1225, %v492
  %v1227 = vpop.permute.xlu0 %1226
  %1230 = vset.pattern.permute.xlu0 0
  %1231 = vperm.xlu0 %1230, %v493
  %v1232 = vpop.permute.xlu0 %1231
  %1235 = vset.pattern.permute.xlu0 0
  %1236 = vperm.xlu0 %1235, %v494
  %v1237 = vpop.permute.xlu0 %1236
  %1240 = vset.pattern.permute.xlu0 0
  %1241 = vperm.xlu0 %1240, %v495
  %v1242 = vpop.permute.xlu0 %1241
  %1245 = vset.pattern.permute.xlu0 0
  %1246 = vperm.xlu0 %1245, %v496
  %v1247 = vpop.permute.xlu0 %1246
  %1250 = vset.pattern.permute.xlu0 0
  %1251 = vperm.xlu0 %1250, %v497
  %v1252 = vpop.permute.xlu0 %1251
  %1255 = vset.pattern.permute.xlu0 0
  %1256 = vperm.xlu0 %1255, %v498
  %v1257 = vpop.permute.xlu0 %1256
  %1260 = vset.pattern.permute.xlu0 0
  %1261 = vperm.xlu0 %1260, %v499
  %v1262 = vpop.permute.xlu0 %1261
  %1265 = vset.pattern.permute.xlu0 0
  %1266 = vperm.xlu0 %1265, %v500
  %v1267 = vpop.permute.xlu0 %1266
  %1270 = vset.pattern.permute.xlu0 0
  %1271 = vperm.xlu0 %1270, %v501
  %v1272 = vpop.permute.xlu0 %1271
  %1275 = vset.pattern.permute.xlu0 0
  %1276 = vperm.xlu0 %1275, %v502
  %v1277 = vpop.permute.xlu0 %1276
  %1280 = vset.pattern.permute.xlu0 0
  %1281 = vperm.xlu0 %1280, %v503
  %v1282 = vpop.permute.xlu0 %1281
  %1285 = vset.pattern.permute.xlu0 0
  %1286 = vperm.xlu0 %1285, %v504
  %v1287 = vpop.permute.xlu0 %1286
  %1290 = vset.pattern.permute.xlu0 0
  %1291 = vperm.xlu0 %1290, %v505
  %v1292 = vpop.permute.xlu0 %1291
  %1295 = vset.pattern.permute.xlu0 0
  %1296 = vperm.xlu0 %1295, %v506
  %v1297 = vpop.permute.xlu0 %1296
  %1300 = vset.pattern.permute.xlu0 0
  %1301 = vperm.xlu0 %1300, %v507
  %v1302 = vpop.permute.xlu0 %1301
  %1305 = vset.pattern.permute.xlu0 0
  %1306 = vperm.xlu0 %1305, %v508
  %v1307 = vpop.permute.xlu0 %1306
  %1310 = vset.pattern.permute.xlu0 0
  %1311 = vperm.xlu0 %1310, %v509
  %v1312 = vpop.permute.xlu0 %1311
  %1315 = vset.pattern.permute.xlu0 0
  %1316 = vperm.xlu0 %1315, %v510
  %v1317 = vpop.permute.xlu0 %1316
  %1320 = vset.pattern.permute.xlu0 0
  %1321 = vperm.xlu0 %1320, %v511
  %v1322 = vpop.permute.xlu0 %1321
  %v1484 = vunpack.c.l.b16 %v192
  %v1485 = vunpack.c.l.b16 %v193
  %v1486 = vunpack.c.l.b16 %v194
  %v1487 = vunpack.c.l.b16 %v195
  %v1488 = vunpack.c.l.b16 %v196
  %v1489 = vunpack.c.l.b16 %v197
  %v1490 = vunpack.c.l.b16 %v198
  %v1491 = vunpack.c.l.b16 %v199
  %v1492 = vunpack.c.l.b16 %v200
  %v1493 = vunpack.c.l.b16 %v201
  %v1494 = vunpack.c.l.b16 %v202
  %v1495 = vunpack.c.l.b16 %v203
  %v1496 = vunpack.c.l.b16 %v204
  %v1497 = vunpack.c.l.b16 %v205
  %v1498 = vunpack.c.l.b16 %v206
  %v1499 = vunpack.c.l.b16 %v207
  %v1500 = vunpack.c.l.b16 %v208
  %v1501 = vunpack.c.l.b16 %v209
  %v1502 = vunpack.c.l.b16 %v210
  %v1503 = vunpack.c.l.b16 %v211
  %v1504 = vunpack.c.l.b16 %v212
  %v1505 = vunpack.c.l.b16 %v213
  %v1506 = vunpack.c.l.b16 %v214
  %v1507 = vunpack.c.l.b16 %v215
  %v1508 = vunpack.c.l.b16 %v216
  %v1509 = vunpack.c.l.b16 %v217
  %v1510 = vunpack.c.l.b16 %v218
  %v1511 = vunpack.c.l.b16 %v219
  %v1512 = vunpack.c.l.b16 %v220
  %v1513 = vunpack.c.l.b16 %v221
  %v1514 = vunpack.c.l.b16 %v222
  %v1515 = vunpack.c.l.b16 %v223
  %v1516 = vunpack.c.l.b16 %v224
  %v1517 = vunpack.c.l.b16 %v225
  %v1518 = vunpack.c.l.b16 %v226
  %v1519 = vunpack.c.l.b16 %v227
  %v1520 = vunpack.c.l.b16 %v228
  %v1521 = vunpack.c.l.b16 %v229
  %v1522 = vunpack.c.l.b16 %v230
  %v1523 = vunpack.c.l.b16 %v231
  %v1524 = vunpack.c.l.b16 %v232
  %v1525 = vunpack.c.l.b16 %v233
  %v1526 = vunpack.c.l.b16 %v234
  %v1527 = vunpack.c.l.b16 %v235
  %v1528 = vunpack.c.l.b16 %v236
  %v1529 = vunpack.c.l.b16 %v237
  %v1530 = vunpack.c.l.b16 %v238
  %v1531 = vunpack.c.l.b16 %v239
  %v1532 = vunpack.c.l.b16 %v240
  %v1533 = vunpack.c.l.b16 %v241
  %v1534 = vunpack.c.l.b16 %v242
  %v1535 = vunpack.c.l.b16 %v243
  %v1536 = vunpack.c.l.b16 %v244
  %v1537 = vunpack.c.l.b16 %v245
  %v1538 = vunpack.c.l.b16 %v246
  %v1539 = vunpack.c.l.b16 %v247
  %v1540 = vunpack.c.l.b16 %v248
  %v1541 = vunpack.c.l.b16 %v249
  %v1542 = vunpack.c.l.b16 %v250
  %v1543 = vunpack.c.l.b16 %v251
  %v1544 = vunpack.c.l.b16 %v252
  %v1545 = vunpack.c.l.b16 %v253
  %v1546 = vunpack.c.l.b16 %v254
  %v1547 = vunpack.c.l.b16 %v255
  %v1548 = vunpack.c.l.b16 %v256
  %v1549 = vunpack.c.l.b16 %v257
  %v1550 = vunpack.c.l.b16 %v258
  %v1551 = vunpack.c.l.b16 %v259
  %v1552 = vunpack.c.l.b16 %v260
  %v1553 = vunpack.c.l.b16 %v261
  %v1554 = vunpack.c.l.b16 %v262
  %v1555 = vunpack.c.l.b16 %v263
  %v1556 = vunpack.c.l.b16 %v264
  %v1557 = vunpack.c.l.b16 %v265
  %v1558 = vunpack.c.l.b16 %v266
  %v1559 = vunpack.c.l.b16 %v267
  %v1560 = vunpack.c.l.b16 %v268
  %v1561 = vunpack.c.l.b16 %v269
  %v1562 = vunpack.c.l.b16 %v270
  %v1563 = vunpack.c.l.b16 %v271
  %v1564 = vunpack.c.l.b16 %v272
  %v1565 = vunpack.c.l.b16 %v273
  %v1566 = vunpack.c.l.b16 %v274
  %v1567 = vunpack.c.l.b16 %v275
  %v1568 = vunpack.c.l.b16 %v276
  %v1569 = vunpack.c.l.b16 %v277
  %v1570 = vunpack.c.l.b16 %v278
  %v1571 = vunpack.c.l.b16 %v279
  %v1572 = vunpack.c.l.b16 %v280
  %v1573 = vunpack.c.l.b16 %v281
  %v1574 = vunpack.c.l.b16 %v282
  %v1575 = vunpack.c.l.b16 %v283
  %v1576 = vunpack.c.l.b16 %v284
  %v1577 = vunpack.c.l.b16 %v285
  %v1578 = vunpack.c.l.b16 %v286
  %v1579 = vunpack.c.l.b16 %v287
  %v1580 = vunpack.c.l.b16 %v288
  %v1581 = vunpack.c.l.b16 %v289
  %v1582 = vunpack.c.l.b16 %v290
  %v1583 = vunpack.c.l.b16 %v291
  %v1584 = vunpack.c.l.b16 %v292
  %v1585 = vunpack.c.l.b16 %v293
  %v1586 = vunpack.c.l.b16 %v294
  %v1587 = vunpack.c.l.b16 %v295
  %v1588 = vunpack.c.l.b16 %v296
  %v1589 = vunpack.c.l.b16 %v297
  %v1590 = vunpack.c.l.b16 %v298
  %v1591 = vunpack.c.l.b16 %v299
  %v1592 = vunpack.c.l.b16 %v300
  %v1593 = vunpack.c.l.b16 %v301
  %v1594 = vunpack.c.l.b16 %v302
  %v1595 = vunpack.c.l.b16 %v303
  %v1596 = vunpack.c.l.b16 %v304
  %v1597 = vunpack.c.l.b16 %v305
  %v1598 = vunpack.c.l.b16 %v306
  %v1599 = vunpack.c.l.b16 %v307
  %v1600 = vunpack.c.l.b16 %v308
  %v1601 = vunpack.c.l.b16 %v309
  %v1602 = vunpack.c.l.b16 %v310
  %v1603 = vunpack.c.l.b16 %v311
  %v1604 = vunpack.c.l.b16 %v312
  %v1605 = vunpack.c.l.b16 %v313
  %v1606 = vunpack.c.l.b16 %v314
  %v1607 = vunpack.c.l.b16 %v315
  %v1608 = vunpack.c.l.b16 %v316
  %v1609 = vunpack.c.l.b16 %v317
  %v1610 = vunpack.c.l.b16 %v318
  %v1611 = vunpack.c.l.b16 %v319
  %v1612 = vunpack.c.l.b16 %v320
  %v1613 = vunpack.c.l.b16 %v321
  %v1614 = vunpack.c.l.b16 %v322
  %v1615 = vunpack.c.l.b16 %v323
  %v1616 = vunpack.c.l.b16 %v324
  %v1617 = vunpack.c.l.b16 %v325
  %v1618 = vunpack.c.l.b16 %v326
  %v1619 = vunpack.c.l.b16 %v327
  %v1620 = vunpack.c.l.b16 %v328
  %v1621 = vunpack.c.l.b16 %v329
  %v1622 = vunpack.c.l.b16 %v330
  %v1623 = vunpack.c.l.b16 %v331
  %v1624 = vunpack.c.l.b16 %v332
  %v1625 = vunpack.c.l.b16 %v333
  %v1626 = vunpack.c.l.b16 %v334
  %v1627 = vunpack.c.l.b16 %v335
  %v1628 = vunpack.c.l.b16 %v336
  %v1629 = vunpack.c.l.b16 %v337
  %v1630 = vunpack.c.l.b16 %v338
  %v1631 = vunpack.c.l.b16 %v339
  %v1632 = vunpack.c.l.b16 %v340
  %v1633 = vunpack.c.l.b16 %v341
  %v1634 = vunpack.c.l.b16 %v342
  %v1635 = vunpack.c.l.b16 %v343
  %v1636 = vunpack.c.l.b16 %v344
  %v1637 = vunpack.c.l.b16 %v345
  %v1638 = vunpack.c.l.b16 %v346
  %v1639 = vunpack.c.l.b16 %v347
  %v1640 = vunpack.c.l.b16 %v348
  %v1641 = vunpack.c.l.b16 %v349
  %v1642 = vunpack.c.l.b16 %v350
  %v1643 = vunpack.c.l.b16 %v351
  %v1644 = vpack.c.b16 %v1485, %v1484
  %v1645 = vpack.c.b16 %v1487, %v1486
  %v1646 = vpack.c.b16 %v1489, %v1488
  %v1647 = vpack.c.b16 %v1491, %v1490
  %v1648 = vpack.c.b16 %v1493, %v1492
  %v1649 = vpack.c.b16 %v1495, %v1494
  %v1650 = vpack.c.b16 %v1497, %v1496
  %v1651 = vpack.c.b16 %v1499, %v1498
  %v1652 = vpack.c.b16 %v1501, %v1500
  %v1653 = vpack.c.b16 %v1503, %v1502
  %v1654 = vpack.c.b16 %v1505, %v1504
  %v1655 = vpack.c.b16 %v1507, %v1506
  %v1656 = vpack.c.b16 %v1509, %v1508
  %v1657 = vpack.c.b16 %v1511, %v1510
  %v1658 = vpack.c.b16 %v1513, %v1512
  %v1659 = vpack.c.b16 %v1515, %v1514
  %v1660 = vpack.c.b16 %v1517, %v1516
  %v1661 = vpack.c.b16 %v1519, %v1518
  %v1662 = vpack.c.b16 %v1521, %v1520
  %v1663 = vpack.c.b16 %v1523, %v1522
  %v1664 = vpack.c.b16 %v1525, %v1524
  %v1665 = vpack.c.b16 %v1527, %v1526
  %v1666 = vpack.c.b16 %v1529, %v1528
  %v1667 = vpack.c.b16 %v1531, %v1530
  %v1668 = vpack.c.b16 %v1533, %v1532
  %v1669 = vpack.c.b16 %v1535, %v1534
  %v1670 = vpack.c.b16 %v1537, %v1536
  %v1671 = vpack.c.b16 %v1539, %v1538
  %v1672 = vpack.c.b16 %v1541, %v1540
  %v1673 = vpack.c.b16 %v1543, %v1542
  %v1674 = vpack.c.b16 %v1545, %v1544
  %v1675 = vpack.c.b16 %v1547, %v1546
  %v1676 = vpack.c.b16 %v1549, %v1548
  %v1677 = vpack.c.b16 %v1551, %v1550
  %v1678 = vpack.c.b16 %v1553, %v1552
  %v1679 = vpack.c.b16 %v1555, %v1554
  %v1680 = vpack.c.b16 %v1557, %v1556
  %v1681 = vpack.c.b16 %v1559, %v1558
  %v1682 = vpack.c.b16 %v1561, %v1560
  %v1683 = vpack.c.b16 %v1563, %v1562
  %v1684 = vpack.c.b16 %v1565, %v1564
  %v1685 = vpack.c.b16 %v1567, %v1566
  %v1686 = vpack.c.b16 %v1569, %v1568
  %v1687 = vpack.c.b16 %v1571, %v1570
  %v1688 = vpack.c.b16 %v1573, %v1572
  %v1689 = vpack.c.b16 %v1575, %v1574
  %v1690 = vpack.c.b16 %v1577, %v1576
  %v1691 = vpack.c.b16 %v1579, %v1578
  %v1692 = vpack.c.b16 %v1581, %v1580
  %v1693 = vpack.c.b16 %v1583, %v1582
  %v1694 = vpack.c.b16 %v1585, %v1584
  %v1695 = vpack.c.b16 %v1587, %v1586
  %v1696 = vpack.c.b16 %v1589, %v1588
  %v1697 = vpack.c.b16 %v1591, %v1590
  %v1698 = vpack.c.b16 %v1593, %v1592
  %v1699 = vpack.c.b16 %v1595, %v1594
  %v1700 = vpack.c.b16 %v1597, %v1596
  %v1701 = vpack.c.b16 %v1599, %v1598
  %v1702 = vpack.c.b16 %v1601, %v1600
  %v1703 = vpack.c.b16 %v1603, %v1602
  %v1704 = vpack.c.b16 %v1605, %v1604
  %v1705 = vpack.c.b16 %v1607, %v1606
  %v1706 = vpack.c.b16 %v1609, %v1608
  %v1707 = vpack.c.b16 %v1611, %v1610
  %v1708 = vpack.c.b16 %v1613, %v1612
  %v1709 = vpack.c.b16 %v1615, %v1614
  %v1710 = vpack.c.b16 %v1617, %v1616
  %v1711 = vpack.c.b16 %v1619, %v1618
  %v1712 = vpack.c.b16 %v1621, %v1620
  %v1713 = vpack.c.b16 %v1623, %v1622
  %v1714 = vpack.c.b16 %v1625, %v1624
  %v1715 = vpack.c.b16 %v1627, %v1626
  %v1716 = vpack.c.b16 %v1629, %v1628
  %v1717 = vpack.c.b16 %v1631, %v1630
  %v1718 = vpack.c.b16 %v1633, %v1632
  %v1719 = vpack.c.b16 %v1635, %v1634
  %v1720 = vpack.c.b16 %v1637, %v1636
  %v1721 = vpack.c.b16 %v1639, %v1638
  %v1722 = vpack.c.b16 %v1641, %v1640
  %v1723 = vpack.c.b16 %v1643, %v1642
  %vm1724 = vcmask 23552
  %v1726 = vsel %vm1724, %v1644, 0
  %v1729 = vsel %vm1724, %v1645, 0
  %v1732 = vsel %vm1724, %v1646, 0
  %v1735 = vsel %vm1724, %v1647, 0
  %v1738 = vsel %vm1724, %v1648, 0
  %v1741 = vsel %vm1724, %v1649, 0
  %v1744 = vsel %vm1724, %v1650, 0
  %v1747 = vsel %vm1724, %v1651, 0
  %v1750 = vsel %vm1724, %v1652, 0
  %v1753 = vsel %vm1724, %v1653, 0
  %v1756 = vsel %vm1724, %v1654, 0
  %v1759 = vsel %vm1724, %v1655, 0
  %v1762 = vsel %vm1724, %v1656, 0
  %v1765 = vsel %vm1724, %v1657, 0
  %v1768 = vsel %vm1724, %v1658, 0
  %v1771 = vsel %vm1724, %v1659, 0
  %v1774 = vsel %vm1724, %v1660, 0
  %v1777 = vsel %vm1724, %v1661, 0
  %v1780 = vsel %vm1724, %v1662, 0
  %v1783 = vsel %vm1724, %v1663, 0
  %v1786 = vsel %vm1724, %v1664, 0
  %v1789 = vsel %vm1724, %v1665, 0
  %v1792 = vsel %vm1724, %v1666, 0
  %v1795 = vsel %vm1724, %v1667, 0
  %v1798 = vsel %vm1724, %v1668, 0
  %v1801 = vsel %vm1724, %v1669, 0
  %v1804 = vsel %vm1724, %v1670, 0
  %v1807 = vsel %vm1724, %v1671, 0
  %v1810 = vsel %vm1724, %v1672, 0
  %v1813 = vsel %vm1724, %v1673, 0
  %v1816 = vsel %vm1724, %v1674, 0
  %v1819 = vsel %vm1724, %v1675, 0
  %v1822 = vsel %vm1724, %v1676, 0
  %v1825 = vsel %vm1724, %v1677, 0
  %v1828 = vsel %vm1724, %v1678, 0
  %v1831 = vsel %vm1724, %v1679, 0
  %v1834 = vsel %vm1724, %v1680, 0
  %v1837 = vsel %vm1724, %v1681, 0
  %v1840 = vsel %vm1724, %v1682, 0
  %v1843 = vsel %vm1724, %v1683, 0
  %v1846 = vsel %vm1724, %v1684, 0
  %v1849 = vsel %vm1724, %v1685, 0
  %v1852 = vsel %vm1724, %v1686, 0
  %v1855 = vsel %vm1724, %v1687, 0
  %v1858 = vsel %vm1724, %v1688, 0
  %v1861 = vsel %vm1724, %v1689, 0
  %v1864 = vsel %vm1724, %v1690, 0
  %v1867 = vsel %vm1724, %v1691, 0
  %v1870 = vsel %vm1724, %v1692, 0
  %v1873 = vsel %vm1724, %v1693, 0
  %v1876 = vsel %vm1724, %v1694, 0
  %v1879 = vsel %vm1724, %v1695, 0
  %v1882 = vsel %vm1724, %v1696, 0
  %v1885 = vsel %vm1724, %v1697, 0
  %v1888 = vsel %vm1724, %v1698, 0
  %v1891 = vsel %vm1724, %v1699, 0
  %v1894 = vsel %vm1724, %v1700, 0
  %v1897 = vsel %vm1724, %v1701, 0
  %v1900 = vsel %vm1724, %v1702, 0
  %v1903 = vsel %vm1724, %v1703, 0
  %v1906 = vsel %vm1724, %v1704, 0
  %v1909 = vsel %vm1724, %v1705, 0
  %v1912 = vsel %vm1724, %v1706, 0
  %v1915 = vsel %vm1724, %v1707, 0
  %v1918 = vsel %vm1724, %v1708, 0
  %v1921 = vsel %vm1724, %v1709, 0
  %v1924 = vsel %vm1724, %v1710, 0
  %v1927 = vsel %vm1724, %v1711, 0
  %v1930 = vsel %vm1724, %v1712, 0
  %v1933 = vsel %vm1724, %v1713, 0
  %v1936 = vsel %vm1724, %v1714, 0
  %v1939 = vsel %vm1724, %v1715, 0
  %v1942 = vsel %vm1724, %v1716, 0
  %v1945 = vsel %vm1724, %v1717, 0
  %v1948 = vsel %vm1724, %v1718, 0
  %v1951 = vsel %vm1724, %v1719, 0
  %v1954 = vsel %vm1724, %v1720, 0
  %v1957 = vsel %vm1724, %v1721, 0
  %v1960 = vsel %vm1724, %v1722, 0
  %v1963 = vsel %vm1724, %v1723, 0
  %vm1965 = vcmask 1040384
  %vm1966 = vcmask 1041408
  %v1967 = vsel %vm1965, 4294967295, 65535
  %v1968 = vsel %vm1966, %v1967, 0
  %v1970 = vand.u32 %v516, %v1968
  %v1973 = vand.u32 %v517, %v1968
  %1975 = vmatprep.subr.bf16.mxu0 0
  %1976 = vmatpush1.bf16.msra.mxu0 0
  %1977 = vmatprep.subr.bf16.mxu0 0
  %1978 = vmatpush1.bf16.msra.mxu0 0
  %1979 = vmatprep.subr.bf16.mxu0 0
  %1980 = vmatpush1.bf16.msra.mxu0 0
  %1981 = vmatprep.subr.bf16.mxu0 0
  %1982 = vmatpush1.bf16.msra.mxu0 0
  %1983 = vmatprep.subr.bf16.mxu0 0
  %1984 = vmatpush1.bf16.msra.mxu0 0
  %1985 = vmatprep.subr.bf16.mxu0 0
  %1986 = vmatpush1.bf16.msra.mxu0 0
  %1987 = vmatprep.subr.bf16.mxu0 0
  %1988 = vmatpush1.bf16.msra.mxu0 0
  %1989 = vmatprep.subr.bf16.mxu0 %v1973
  %1990 = vmatpush1.bf16.msra.mxu0 %v1970
  %1991 = vmatprep.subr.bf16.mxu0 0
  %1992 = vmatpush2.bf16.msra.mxu0 0
  %1993 = vmatprep.subr.bf16.mxu0 0
  %1994 = vmatpush2.bf16.msra.mxu0 0
  %1995 = vmatprep.subr.bf16.mxu0 0
  %1996 = vmatpush2.bf16.msra.mxu0 0
  %1997 = vmatprep.subr.bf16.mxu0 0
  %1998 = vmatpush2.bf16.msra.mxu0 0
  %1999 = vmatprep.subr.bf16.mxu0 0
  %2000 = vmatpush2.bf16.msra.mxu0 0
  %2001 = vmatprep.subr.bf16.mxu0 0
  %2002 = vmatpush2.bf16.msra.mxu0 0
  %2003 = vmatprep.subr.bf16.mxu0 0
  %2004 = vmatpush2.bf16.msra.mxu0 0
  %2005 = vmatprep.subr.bf16.mxu0 0
  %2006 = vmatpush2.bf16.msra.mxu0 0
  %2007 = vmatprep.mubr.bf16.mxu0 0
  %2008 = vmatmul.mubr.bf16.gmra.mxu0 %v1726
  %v2009 = vpop.f32.mrf.mxu0
  %v2010 = vadd.f32 %v527, %v2009
  %v2011 = vpop.f32.mrf.mxu0
  %v2012 = vadd.f32 %v527, %v2011
  %v2013 = vpop.f32.mrf.mxu0
  %v2014 = vadd.f32 %v532, %v2013
  %v2015 = vpop.f32.mrf.mxu0
  %v2016 = vadd.f32 %v532, %v2015
  %2017 = vmatprep.mubr.bf16.mxu0 0
  %2018 = vmatmul.mubr.bf16.gmra.mxu0 %v1729
  %v2019 = vpop.f32.mrf.mxu0
  %v2020 = vadd.f32 %v537, %v2019
  %v2021 = vpop.f32.mrf.mxu0
  %v2022 = vadd.f32 %v537, %v2021
  %v2023 = vpop.f32.mrf.mxu0
  %v2024 = vadd.f32 %v542, %v2023
  %v2025 = vpop.f32.mrf.mxu0
  %v2026 = vadd.f32 %v542, %v2025
  %2027 = vmatprep.mubr.bf16.mxu0 0
  %2028 = vmatmul.mubr.bf16.gmra.mxu0 %v1732
  %v2029 = vpop.f32.mrf.mxu0
  %v2030 = vadd.f32 %v547, %v2029
  %v2031 = vpop.f32.mrf.mxu0
  %v2032 = vadd.f32 %v547, %v2031
  %v2033 = vpop.f32.mrf.mxu0
  %v2034 = vadd.f32 %v552, %v2033
  %v2035 = vpop.f32.mrf.mxu0
  %v2036 = vadd.f32 %v552, %v2035
  %2037 = vmatprep.mubr.bf16.mxu0 0
  %2038 = vmatmul.mubr.bf16.gmra.mxu0 %v1735
  %v2039 = vpop.f32.mrf.mxu0
  %v2040 = vadd.f32 %v557, %v2039
  %v2041 = vpop.f32.mrf.mxu0
  %v2042 = vadd.f32 %v557, %v2041
  %v2043 = vpop.f32.mrf.mxu0
  %v2044 = vadd.f32 %v562, %v2043
  %v2045 = vpop.f32.mrf.mxu0
  %v2046 = vadd.f32 %v562, %v2045
  %2047 = vmatprep.mubr.bf16.mxu0 0
  %2048 = vmatmul.mubr.bf16.gmra.mxu0 %v1738
  %v2049 = vpop.f32.mrf.mxu0
  %v2050 = vadd.f32 %v567, %v2049
  %v2051 = vpop.f32.mrf.mxu0
  %v2052 = vadd.f32 %v567, %v2051
  %v2053 = vpop.f32.mrf.mxu0
  %v2054 = vadd.f32 %v572, %v2053
  %v2055 = vpop.f32.mrf.mxu0
  %v2056 = vadd.f32 %v572, %v2055
  %2057 = vmatprep.mubr.bf16.mxu0 0
  %2058 = vmatmul.mubr.bf16.gmra.mxu0 %v1741
  %v2059 = vpop.f32.mrf.mxu0
  %v2060 = vadd.f32 %v577, %v2059
  %v2061 = vpop.f32.mrf.mxu0
  %v2062 = vadd.f32 %v577, %v2061
  %v2063 = vpop.f32.mrf.mxu0
  %v2064 = vadd.f32 %v582, %v2063
  %v2065 = vpop.f32.mrf.mxu0
  %v2066 = vadd.f32 %v582, %v2065
  %2067 = vmatprep.mubr.bf16.mxu0 0
  %2068 = vmatmul.mubr.bf16.gmra.mxu0 %v1744
  %v2069 = vpop.f32.mrf.mxu0
  %v2070 = vadd.f32 %v587, %v2069
  %v2071 = vpop.f32.mrf.mxu0
  %v2072 = vadd.f32 %v587, %v2071
  %v2073 = vpop.f32.mrf.mxu0
  %v2074 = vadd.f32 %v592, %v2073
  %v2075 = vpop.f32.mrf.mxu0
  %v2076 = vadd.f32 %v592, %v2075
  %2077 = vmatprep.mubr.bf16.mxu0 0
  %2078 = vmatmul.mubr.bf16.gmra.mxu0 %v1747
  %v2079 = vpop.f32.mrf.mxu0
  %v2080 = vadd.f32 %v597, %v2079
  %v2081 = vpop.f32.mrf.mxu0
  %v2082 = vadd.f32 %v597, %v2081
  %v2083 = vpop.f32.mrf.mxu0
  %v2084 = vadd.f32 %v602, %v2083
  %v2085 = vpop.f32.mrf.mxu0
  %v2086 = vadd.f32 %v602, %v2085
  %2087 = vmatprep.mubr.bf16.mxu0 0
  %2088 = vmatmul.mubr.bf16.gmra.mxu0 %v1750
  %v2089 = vpop.f32.mrf.mxu0
  %v2090 = vadd.f32 %v607, %v2089
  %v2091 = vpop.f32.mrf.mxu0
  %v2092 = vadd.f32 %v607, %v2091
  %v2093 = vpop.f32.mrf.mxu0
  %v2094 = vadd.f32 %v612, %v2093
  %v2095 = vpop.f32.mrf.mxu0
  %v2096 = vadd.f32 %v612, %v2095
  %2097 = vmatprep.mubr.bf16.mxu0 0
  %2098 = vmatmul.mubr.bf16.gmra.mxu0 %v1753
  %v2099 = vpop.f32.mrf.mxu0
  %v2100 = vadd.f32 %v617, %v2099
  %v2101 = vpop.f32.mrf.mxu0
  %v2102 = vadd.f32 %v617, %v2101
  %v2103 = vpop.f32.mrf.mxu0
  %v2104 = vadd.f32 %v622, %v2103
  %v2105 = vpop.f32.mrf.mxu0
  %v2106 = vadd.f32 %v622, %v2105
  %2107 = vmatprep.mubr.bf16.mxu0 0
  %2108 = vmatmul.mubr.bf16.gmra.mxu0 %v1756
  %v2109 = vpop.f32.mrf.mxu0
  %v2110 = vadd.f32 %v627, %v2109
  %v2111 = vpop.f32.mrf.mxu0
  %v2112 = vadd.f32 %v627, %v2111
  %v2113 = vpop.f32.mrf.mxu0
  %v2114 = vadd.f32 %v632, %v2113
  %v2115 = vpop.f32.mrf.mxu0
  %v2116 = vadd.f32 %v632, %v2115
  %2117 = vmatprep.mubr.bf16.mxu0 0
  %2118 = vmatmul.mubr.bf16.gmra.mxu0 %v1759
  %v2119 = vpop.f32.mrf.mxu0
  %v2120 = vadd.f32 %v637, %v2119
  %v2121 = vpop.f32.mrf.mxu0
  %v2122 = vadd.f32 %v637, %v2121
  %v2123 = vpop.f32.mrf.mxu0
  %v2124 = vadd.f32 %v642, %v2123
  %v2125 = vpop.f32.mrf.mxu0
  %v2126 = vadd.f32 %v642, %v2125
  %2127 = vmatprep.mubr.bf16.mxu0 0
  %2128 = vmatmul.mubr.bf16.gmra.mxu0 %v1762
  %v2129 = vpop.f32.mrf.mxu0
  %v2130 = vadd.f32 %v647, %v2129
  %v2131 = vpop.f32.mrf.mxu0
  %v2132 = vadd.f32 %v647, %v2131
  %v2133 = vpop.f32.mrf.mxu0
  %v2134 = vadd.f32 %v652, %v2133
  %v2135 = vpop.f32.mrf.mxu0
  %v2136 = vadd.f32 %v652, %v2135
  %2137 = vmatprep.mubr.bf16.mxu0 0
  %2138 = vmatmul.mubr.bf16.gmra.mxu0 %v1765
  %v2139 = vpop.f32.mrf.mxu0
  %v2140 = vadd.f32 %v657, %v2139
  %v2141 = vpop.f32.mrf.mxu0
  %v2142 = vadd.f32 %v657, %v2141
  %v2143 = vpop.f32.mrf.mxu0
  %v2144 = vadd.f32 %v662, %v2143
  %v2145 = vpop.f32.mrf.mxu0
  %v2146 = vadd.f32 %v662, %v2145
  %2147 = vmatprep.mubr.bf16.mxu0 0
  %2148 = vmatmul.mubr.bf16.gmra.mxu0 %v1768
  %v2149 = vpop.f32.mrf.mxu0
  %v2150 = vadd.f32 %v667, %v2149
  %v2151 = vpop.f32.mrf.mxu0
  %v2152 = vadd.f32 %v667, %v2151
  %v2153 = vpop.f32.mrf.mxu0
  %v2154 = vadd.f32 %v672, %v2153
  %v2155 = vpop.f32.mrf.mxu0
  %v2156 = vadd.f32 %v672, %v2155
  %2157 = vmatprep.mubr.bf16.mxu0 0
  %2158 = vmatmul.mubr.bf16.gmra.mxu0 %v1771
  %v2159 = vpop.f32.mrf.mxu0
  %v2160 = vadd.f32 %v677, %v2159
  %v2161 = vpop.f32.mrf.mxu0
  %v2162 = vadd.f32 %v677, %v2161
  %v2163 = vpop.f32.mrf.mxu0
  %v2164 = vadd.f32 %v682, %v2163
  %v2165 = vpop.f32.mrf.mxu0
  %v2166 = vadd.f32 %v682, %v2165
  %2167 = vmatprep.mubr.bf16.mxu0 0
  %2168 = vmatmul.mubr.bf16.gmra.mxu0 %v1774
  %v2169 = vpop.f32.mrf.mxu0
  %v2170 = vadd.f32 %v687, %v2169
  %v2171 = vpop.f32.mrf.mxu0
  %v2172 = vadd.f32 %v687, %v2171
  %v2173 = vpop.f32.mrf.mxu0
  %v2174 = vadd.f32 %v692, %v2173
  %v2175 = vpop.f32.mrf.mxu0
  %v2176 = vadd.f32 %v692, %v2175
  %2177 = vmatprep.mubr.bf16.mxu0 0
  %2178 = vmatmul.mubr.bf16.gmra.mxu0 %v1777
  %v2179 = vpop.f32.mrf.mxu0
  %v2180 = vadd.f32 %v697, %v2179
  %v2181 = vpop.f32.mrf.mxu0
  %v2182 = vadd.f32 %v697, %v2181
  %v2183 = vpop.f32.mrf.mxu0
  %v2184 = vadd.f32 %v702, %v2183
  %v2185 = vpop.f32.mrf.mxu0
  %v2186 = vadd.f32 %v702, %v2185
  %2187 = vmatprep.mubr.bf16.mxu0 0
  %2188 = vmatmul.mubr.bf16.gmra.mxu0 %v1780
  %v2189 = vpop.f32.mrf.mxu0
  %v2190 = vadd.f32 %v707, %v2189
  %v2191 = vpop.f32.mrf.mxu0
  %v2192 = vadd.f32 %v707, %v2191
  %v2193 = vpop.f32.mrf.mxu0
  %v2194 = vadd.f32 %v712, %v2193
  %v2195 = vpop.f32.mrf.mxu0
  %v2196 = vadd.f32 %v712, %v2195
  %2197 = vmatprep.mubr.bf16.mxu0 0
  %2198 = vmatmul.mubr.bf16.gmra.mxu0 %v1783
  %v2199 = vpop.f32.mrf.mxu0
  %v2200 = vadd.f32 %v717, %v2199
  %v2201 = vpop.f32.mrf.mxu0
  %v2202 = vadd.f32 %v717, %v2201
  %v2203 = vpop.f32.mrf.mxu0
  %v2204 = vadd.f32 %v722, %v2203
  %v2205 = vpop.f32.mrf.mxu0
  %v2206 = vadd.f32 %v722, %v2205
  %2207 = vmatprep.mubr.bf16.mxu0 0
  %2208 = vmatmul.mubr.bf16.gmra.mxu0 %v1786
  %v2209 = vpop.f32.mrf.mxu0
  %v2210 = vadd.f32 %v727, %v2209
  %v2211 = vpop.f32.mrf.mxu0
  %v2212 = vadd.f32 %v727, %v2211
  %v2213 = vpop.f32.mrf.mxu0
  %v2214 = vadd.f32 %v732, %v2213
  %v2215 = vpop.f32.mrf.mxu0
  %v2216 = vadd.f32 %v732, %v2215
  %2217 = vmatprep.mubr.bf16.mxu0 0
  %2218 = vmatmul.mubr.bf16.gmra.mxu0 %v1789
  %v2219 = vpop.f32.mrf.mxu0
  %v2220 = vadd.f32 %v737, %v2219
  %v2221 = vpop.f32.mrf.mxu0
  %v2222 = vadd.f32 %v737, %v2221
  %v2223 = vpop.f32.mrf.mxu0
  %v2224 = vadd.f32 %v742, %v2223
  %v2225 = vpop.f32.mrf.mxu0
  %v2226 = vadd.f32 %v742, %v2225
  %2227 = vmatprep.mubr.bf16.mxu0 0
  %2228 = vmatmul.mubr.bf16.gmra.mxu0 %v1792
  %v2229 = vpop.f32.mrf.mxu0
  %v2230 = vadd.f32 %v747, %v2229
  %v2231 = vpop.f32.mrf.mxu0
  %v2232 = vadd.f32 %v747, %v2231
  %v2233 = vpop.f32.mrf.mxu0
  %v2234 = vadd.f32 %v752, %v2233
  %v2235 = vpop.f32.mrf.mxu0
  %v2236 = vadd.f32 %v752, %v2235
  %2237 = vmatprep.mubr.bf16.mxu0 0
  %2238 = vmatmul.mubr.bf16.gmra.mxu0 %v1795
  %v2239 = vpop.f32.mrf.mxu0
  %v2240 = vadd.f32 %v757, %v2239
  %v2241 = vpop.f32.mrf.mxu0
  %v2242 = vadd.f32 %v757, %v2241
  %v2243 = vpop.f32.mrf.mxu0
  %v2244 = vadd.f32 %v762, %v2243
  %v2245 = vpop.f32.mrf.mxu0
  %v2246 = vadd.f32 %v762, %v2245
  %2247 = vmatprep.mubr.bf16.mxu0 0
  %2248 = vmatmul.mubr.bf16.gmra.mxu0 %v1798
  %v2249 = vpop.f32.mrf.mxu0
  %v2250 = vadd.f32 %v767, %v2249
  %v2251 = vpop.f32.mrf.mxu0
  %v2252 = vadd.f32 %v767, %v2251
  %v2253 = vpop.f32.mrf.mxu0
  %v2254 = vadd.f32 %v772, %v2253
  %v2255 = vpop.f32.mrf.mxu0
  %v2256 = vadd.f32 %v772, %v2255
  %2257 = vmatprep.mubr.bf16.mxu0 0
  %2258 = vmatmul.mubr.bf16.gmra.mxu0 %v1801
  %v2259 = vpop.f32.mrf.mxu0
  %v2260 = vadd.f32 %v777, %v2259
  %v2261 = vpop.f32.mrf.mxu0
  %v2262 = vadd.f32 %v777, %v2261
  %v2263 = vpop.f32.mrf.mxu0
  %v2264 = vadd.f32 %v782, %v2263
  %v2265 = vpop.f32.mrf.mxu0
  %v2266 = vadd.f32 %v782, %v2265
  %2267 = vmatprep.mubr.bf16.mxu0 0
  %2268 = vmatmul.mubr.bf16.gmra.mxu0 %v1804
  %v2269 = vpop.f32.mrf.mxu0
  %v2270 = vadd.f32 %v787, %v2269
  %v2271 = vpop.f32.mrf.mxu0
  %v2272 = vadd.f32 %v787, %v2271
  %v2273 = vpop.f32.mrf.mxu0
  %v2274 = vadd.f32 %v792, %v2273
  %v2275 = vpop.f32.mrf.mxu0
  %v2276 = vadd.f32 %v792, %v2275
  %2277 = vmatprep.mubr.bf16.mxu0 0
  %2278 = vmatmul.mubr.bf16.gmra.mxu0 %v1807
  %v2279 = vpop.f32.mrf.mxu0
  %v2280 = vadd.f32 %v797, %v2279
  %v2281 = vpop.f32.mrf.mxu0
  %v2282 = vadd.f32 %v797, %v2281
  %v2283 = vpop.f32.mrf.mxu0
  %v2284 = vadd.f32 %v802, %v2283
  %v2285 = vpop.f32.mrf.mxu0
  %v2286 = vadd.f32 %v802, %v2285
  %2287 = vmatprep.mubr.bf16.mxu0 0
  %2288 = vmatmul.mubr.bf16.gmra.mxu0 %v1810
  %v2289 = vpop.f32.mrf.mxu0
  %v2290 = vadd.f32 %v807, %v2289
  %v2291 = vpop.f32.mrf.mxu0
  %v2292 = vadd.f32 %v807, %v2291
  %v2293 = vpop.f32.mrf.mxu0
  %v2294 = vadd.f32 %v812, %v2293
  %v2295 = vpop.f32.mrf.mxu0
  %v2296 = vadd.f32 %v812, %v2295
  %2297 = vmatprep.mubr.bf16.mxu0 0
  %2298 = vmatmul.mubr.bf16.gmra.mxu0 %v1813
  %v2299 = vpop.f32.mrf.mxu0
  %v2300 = vadd.f32 %v817, %v2299
  %v2301 = vpop.f32.mrf.mxu0
  %v2302 = vadd.f32 %v817, %v2301
  %v2303 = vpop.f32.mrf.mxu0
  %v2304 = vadd.f32 %v822, %v2303
  %v2305 = vpop.f32.mrf.mxu0
  %v2306 = vadd.f32 %v822, %v2305
  %2307 = vmatprep.mubr.bf16.mxu0 0
  %2308 = vmatmul.mubr.bf16.gmra.mxu0 %v1816
  %v2309 = vpop.f32.mrf.mxu0
  %v2310 = vadd.f32 %v827, %v2309
  %v2311 = vpop.f32.mrf.mxu0
  %v2312 = vadd.f32 %v827, %v2311
  %v2313 = vpop.f32.mrf.mxu0
  %v2314 = vadd.f32 %v832, %v2313
  %v2315 = vpop.f32.mrf.mxu0
  %v2316 = vadd.f32 %v832, %v2315
  %2317 = vmatprep.mubr.bf16.mxu0 0
  %2318 = vmatmul.mubr.bf16.gmra.mxu0 %v1819
  %v2319 = vpop.f32.mrf.mxu0
  %v2320 = vadd.f32 %v837, %v2319
  %v2321 = vpop.f32.mrf.mxu0
  %v2322 = vadd.f32 %v837, %v2321
  %v2323 = vpop.f32.mrf.mxu0
  %v2324 = vadd.f32 %v842, %v2323
  %v2325 = vpop.f32.mrf.mxu0
  %v2326 = vadd.f32 %v842, %v2325
  %2327 = vmatprep.mubr.bf16.mxu0 0
  %2328 = vmatmul.mubr.bf16.gmra.mxu0 %v1822
  %v2329 = vpop.f32.mrf.mxu0
  %v2330 = vadd.f32 %v847, %v2329
  %v2331 = vpop.f32.mrf.mxu0
  %v2332 = vadd.f32 %v847, %v2331
  %v2333 = vpop.f32.mrf.mxu0
  %v2334 = vadd.f32 %v852, %v2333
  %v2335 = vpop.f32.mrf.mxu0
  %v2336 = vadd.f32 %v852, %v2335
  %2337 = vmatprep.mubr.bf16.mxu0 0
  %2338 = vmatmul.mubr.bf16.gmra.mxu0 %v1825
  %v2339 = vpop.f32.mrf.mxu0
  %v2340 = vadd.f32 %v857, %v2339
  %v2341 = vpop.f32.mrf.mxu0
  %v2342 = vadd.f32 %v857, %v2341
  %v2343 = vpop.f32.mrf.mxu0
  %v2344 = vadd.f32 %v862, %v2343
  %v2345 = vpop.f32.mrf.mxu0
  %v2346 = vadd.f32 %v862, %v2345
  %2347 = vmatprep.mubr.bf16.mxu0 0
  %2348 = vmatmul.mubr.bf16.gmra.mxu0 %v1828
  %v2349 = vpop.f32.mrf.mxu0
  %v2350 = vadd.f32 %v867, %v2349
  %v2351 = vpop.f32.mrf.mxu0
  %v2352 = vadd.f32 %v867, %v2351
  %v2353 = vpop.f32.mrf.mxu0
  %v2354 = vadd.f32 %v872, %v2353
  %v2355 = vpop.f32.mrf.mxu0
  %v2356 = vadd.f32 %v872, %v2355
  %2357 = vmatprep.mubr.bf16.mxu0 0
  %2358 = vmatmul.mubr.bf16.gmra.mxu0 %v1831
  %v2359 = vpop.f32.mrf.mxu0
  %v2360 = vadd.f32 %v877, %v2359
  %v2361 = vpop.f32.mrf.mxu0
  %v2362 = vadd.f32 %v877, %v2361
  %v2363 = vpop.f32.mrf.mxu0
  %v2364 = vadd.f32 %v882, %v2363
  %v2365 = vpop.f32.mrf.mxu0
  %v2366 = vadd.f32 %v882, %v2365
  %2367 = vmatprep.mubr.bf16.mxu0 0
  %2368 = vmatmul.mubr.bf16.gmra.mxu0 %v1834
  %v2369 = vpop.f32.mrf.mxu0
  %v2370 = vadd.f32 %v887, %v2369
  %v2371 = vpop.f32.mrf.mxu0
  %v2372 = vadd.f32 %v887, %v2371
  %v2373 = vpop.f32.mrf.mxu0
  %v2374 = vadd.f32 %v892, %v2373
  %v2375 = vpop.f32.mrf.mxu0
  %v2376 = vadd.f32 %v892, %v2375
  %2377 = vmatprep.mubr.bf16.mxu0 0
  %2378 = vmatmul.mubr.bf16.gmra.mxu0 %v1837
  %v2379 = vpop.f32.mrf.mxu0
  %v2380 = vadd.f32 %v897, %v2379
  %v2381 = vpop.f32.mrf.mxu0
  %v2382 = vadd.f32 %v897, %v2381
  %v2383 = vpop.f32.mrf.mxu0
  %v2384 = vadd.f32 %v902, %v2383
  %v2385 = vpop.f32.mrf.mxu0
  %v2386 = vadd.f32 %v902, %v2385
  %2387 = vmatprep.mubr.bf16.mxu0 0
  %2388 = vmatmul.mubr.bf16.gmra.mxu0 %v1840
  %v2389 = vpop.f32.mrf.mxu0
  %v2390 = vadd.f32 %v907, %v2389
  %v2391 = vpop.f32.mrf.mxu0
  %v2392 = vadd.f32 %v907, %v2391
  %v2393 = vpop.f32.mrf.mxu0
  %v2394 = vadd.f32 %v912, %v2393
  %v2395 = vpop.f32.mrf.mxu0
  %v2396 = vadd.f32 %v912, %v2395
  %2397 = vmatprep.mubr.bf16.mxu0 0
  %2398 = vmatmul.mubr.bf16.gmra.mxu0 %v1843
  %v2399 = vpop.f32.mrf.mxu0
  %v2400 = vadd.f32 %v917, %v2399
  %v2401 = vpop.f32.mrf.mxu0
  %v2402 = vadd.f32 %v917, %v2401
  %v2403 = vpop.f32.mrf.mxu0
  %v2404 = vadd.f32 %v922, %v2403
  %v2405 = vpop.f32.mrf.mxu0
  %v2406 = vadd.f32 %v922, %v2405
  %2407 = vmatprep.mubr.bf16.mxu0 0
  %2408 = vmatmul.mubr.bf16.gmra.mxu0 %v1846
  %v2409 = vpop.f32.mrf.mxu0
  %v2410 = vadd.f32 %v927, %v2409
  %v2411 = vpop.f32.mrf.mxu0
  %v2412 = vadd.f32 %v927, %v2411
  %v2413 = vpop.f32.mrf.mxu0
  %v2414 = vadd.f32 %v932, %v2413
  %v2415 = vpop.f32.mrf.mxu0
  %v2416 = vadd.f32 %v932, %v2415
  %2417 = vmatprep.mubr.bf16.mxu0 0
  %2418 = vmatmul.mubr.bf16.gmra.mxu0 %v1849
  %v2419 = vpop.f32.mrf.mxu0
  %v2420 = vadd.f32 %v937, %v2419
  %v2421 = vpop.f32.mrf.mxu0
  %v2422 = vadd.f32 %v937, %v2421
  %v2423 = vpop.f32.mrf.mxu0
  %v2424 = vadd.f32 %v942, %v2423
  %v2425 = vpop.f32.mrf.mxu0
  %v2426 = vadd.f32 %v942, %v2425
  %2427 = vmatprep.mubr.bf16.mxu0 0
  %2428 = vmatmul.mubr.bf16.gmra.mxu0 %v1852
  %v2429 = vpop.f32.mrf.mxu0
  %v2430 = vadd.f32 %v947, %v2429
  %v2431 = vpop.f32.mrf.mxu0
  %v2432 = vadd.f32 %v947, %v2431
  %v2433 = vpop.f32.mrf.mxu0
  %v2434 = vadd.f32 %v952, %v2433
  %v2435 = vpop.f32.mrf.mxu0
  %v2436 = vadd.f32 %v952, %v2435
  %2437 = vmatprep.mubr.bf16.mxu0 0
  %2438 = vmatmul.mubr.bf16.gmra.mxu0 %v1855
  %v2439 = vpop.f32.mrf.mxu0
  %v2440 = vadd.f32 %v957, %v2439
  %v2441 = vpop.f32.mrf.mxu0
  %v2442 = vadd.f32 %v957, %v2441
  %v2443 = vpop.f32.mrf.mxu0
  %v2444 = vadd.f32 %v962, %v2443
  %v2445 = vpop.f32.mrf.mxu0
  %v2446 = vadd.f32 %v962, %v2445
  %2447 = vmatprep.mubr.bf16.mxu0 0
  %2448 = vmatmul.mubr.bf16.gmra.mxu0 %v1858
  %v2449 = vpop.f32.mrf.mxu0
  %v2450 = vadd.f32 %v967, %v2449
  %v2451 = vpop.f32.mrf.mxu0
  %v2452 = vadd.f32 %v967, %v2451
  %v2453 = vpop.f32.mrf.mxu0
  %v2454 = vadd.f32 %v972, %v2453
  %v2455 = vpop.f32.mrf.mxu0
  %v2456 = vadd.f32 %v972, %v2455
  %2457 = vmatprep.mubr.bf16.mxu0 0
  %2458 = vmatmul.mubr.bf16.gmra.mxu0 %v1861
  %v2459 = vpop.f32.mrf.mxu0
  %v2460 = vadd.f32 %v977, %v2459
  %v2461 = vpop.f32.mrf.mxu0
  %v2462 = vadd.f32 %v977, %v2461
  %v2463 = vpop.f32.mrf.mxu0
  %v2464 = vadd.f32 %v982, %v2463
  %v2465 = vpop.f32.mrf.mxu0
  %v2466 = vadd.f32 %v982, %v2465
  %2467 = vmatprep.mubr.bf16.mxu0 0
  %2468 = vmatmul.mubr.bf16.gmra.mxu0 %v1864
  %v2469 = vpop.f32.mrf.mxu0
  %v2470 = vadd.f32 %v987, %v2469
  %v2471 = vpop.f32.mrf.mxu0
  %v2472 = vadd.f32 %v987, %v2471
  %v2473 = vpop.f32.mrf.mxu0
  %v2474 = vadd.f32 %v992, %v2473
  %v2475 = vpop.f32.mrf.mxu0
  %v2476 = vadd.f32 %v992, %v2475
  %2477 = vmatprep.mubr.bf16.mxu0 0
  %2478 = vmatmul.mubr.bf16.gmra.mxu0 %v1867
  %v2479 = vpop.f32.mrf.mxu0
  %v2480 = vadd.f32 %v997, %v2479
  %v2481 = vpop.f32.mrf.mxu0
  %v2482 = vadd.f32 %v997, %v2481
  %v2483 = vpop.f32.mrf.mxu0
  %v2484 = vadd.f32 %v1002, %v2483
  %v2485 = vpop.f32.mrf.mxu0
  %v2486 = vadd.f32 %v1002, %v2485
  %2487 = vmatprep.mubr.bf16.mxu0 0
  %2488 = vmatmul.mubr.bf16.gmra.mxu0 %v1870
  %v2489 = vpop.f32.mrf.mxu0
  %v2490 = vadd.f32 %v1007, %v2489
  %v2491 = vpop.f32.mrf.mxu0
  %v2492 = vadd.f32 %v1007, %v2491
  %v2493 = vpop.f32.mrf.mxu0
  %v2494 = vadd.f32 %v1012, %v2493
  %v2495 = vpop.f32.mrf.mxu0
  %v2496 = vadd.f32 %v1012, %v2495
  %2497 = vmatprep.mubr.bf16.mxu0 0
  %2498 = vmatmul.mubr.bf16.gmra.mxu0 %v1873
  %v2499 = vpop.f32.mrf.mxu0
  %v2500 = vadd.f32 %v1017, %v2499
  %v2501 = vpop.f32.mrf.mxu0
  %v2502 = vadd.f32 %v1017, %v2501
  %v2503 = vpop.f32.mrf.mxu0
  %v2504 = vadd.f32 %v1022, %v2503
  %v2505 = vpop.f32.mrf.mxu0
  %v2506 = vadd.f32 %v1022, %v2505
  %2507 = vmatprep.mubr.bf16.mxu0 0
  %2508 = vmatmul.mubr.bf16.gmra.mxu0 %v1876
  %v2509 = vpop.f32.mrf.mxu0
  %v2510 = vadd.f32 %v1027, %v2509
  %v2511 = vpop.f32.mrf.mxu0
  %v2512 = vadd.f32 %v1027, %v2511
  %v2513 = vpop.f32.mrf.mxu0
  %v2514 = vadd.f32 %v1032, %v2513
  %v2515 = vpop.f32.mrf.mxu0
  %v2516 = vadd.f32 %v1032, %v2515
  %2517 = vmatprep.mubr.bf16.mxu0 0
  %2518 = vmatmul.mubr.bf16.gmra.mxu0 %v1879
  %v2519 = vpop.f32.mrf.mxu0
  %v2520 = vadd.f32 %v1037, %v2519
  %v2521 = vpop.f32.mrf.mxu0
  %v2522 = vadd.f32 %v1037, %v2521
  %v2523 = vpop.f32.mrf.mxu0
  %v2524 = vadd.f32 %v1042, %v2523
  %v2525 = vpop.f32.mrf.mxu0
  %v2526 = vadd.f32 %v1042, %v2525
  %2527 = vmatprep.mubr.bf16.mxu0 0
  %2528 = vmatmul.mubr.bf16.gmra.mxu0 %v1882
  %v2529 = vpop.f32.mrf.mxu0
  %v2530 = vadd.f32 %v1047, %v2529
  %v2531 = vpop.f32.mrf.mxu0
  %v2532 = vadd.f32 %v1047, %v2531
  %v2533 = vpop.f32.mrf.mxu0
  %v2534 = vadd.f32 %v1052, %v2533
  %v2535 = vpop.f32.mrf.mxu0
  %v2536 = vadd.f32 %v1052, %v2535
  %2537 = vmatprep.mubr.bf16.mxu0 0
  %2538 = vmatmul.mubr.bf16.gmra.mxu0 %v1885
  %v2539 = vpop.f32.mrf.mxu0
  %v2540 = vadd.f32 %v1057, %v2539
  %v2541 = vpop.f32.mrf.mxu0
  %v2542 = vadd.f32 %v1057, %v2541
  %v2543 = vpop.f32.mrf.mxu0
  %v2544 = vadd.f32 %v1062, %v2543
  %v2545 = vpop.f32.mrf.mxu0
  %v2546 = vadd.f32 %v1062, %v2545
  %2547 = vmatprep.mubr.bf16.mxu0 0
  %2548 = vmatmul.mubr.bf16.gmra.mxu0 %v1888
  %v2549 = vpop.f32.mrf.mxu0
  %v2550 = vadd.f32 %v1067, %v2549
  %v2551 = vpop.f32.mrf.mxu0
  %v2552 = vadd.f32 %v1067, %v2551
  %v2553 = vpop.f32.mrf.mxu0
  %v2554 = vadd.f32 %v1072, %v2553
  %v2555 = vpop.f32.mrf.mxu0
  %v2556 = vadd.f32 %v1072, %v2555
  %2557 = vmatprep.mubr.bf16.mxu0 0
  %2558 = vmatmul.mubr.bf16.gmra.mxu0 %v1891
  %v2559 = vpop.f32.mrf.mxu0
  %v2560 = vadd.f32 %v1077, %v2559
  %v2561 = vpop.f32.mrf.mxu0
  %v2562 = vadd.f32 %v1077, %v2561
  %v2563 = vpop.f32.mrf.mxu0
  %v2564 = vadd.f32 %v1082, %v2563
  %v2565 = vpop.f32.mrf.mxu0
  %v2566 = vadd.f32 %v1082, %v2565
  %2567 = vmatprep.mubr.bf16.mxu0 0
  %2568 = vmatmul.mubr.bf16.gmra.mxu0 %v1894
  %v2569 = vpop.f32.mrf.mxu0
  %v2570 = vadd.f32 %v1087, %v2569
  %v2571 = vpop.f32.mrf.mxu0
  %v2572 = vadd.f32 %v1087, %v2571
  %v2573 = vpop.f32.mrf.mxu0
  %v2574 = vadd.f32 %v1092, %v2573
  %v2575 = vpop.f32.mrf.mxu0
  %v2576 = vadd.f32 %v1092, %v2575
  %2577 = vmatprep.mubr.bf16.mxu0 0
  %2578 = vmatmul.mubr.bf16.gmra.mxu0 %v1897
  %v2579 = vpop.f32.mrf.mxu0
  %v2580 = vadd.f32 %v1097, %v2579
  %v2581 = vpop.f32.mrf.mxu0
  %v2582 = vadd.f32 %v1097, %v2581
  %v2583 = vpop.f32.mrf.mxu0
  %v2584 = vadd.f32 %v1102, %v2583
  %v2585 = vpop.f32.mrf.mxu0
  %v2586 = vadd.f32 %v1102, %v2585
  %2587 = vmatprep.mubr.bf16.mxu0 0
  %2588 = vmatmul.mubr.bf16.gmra.mxu0 %v1900
  %v2589 = vpop.f32.mrf.mxu0
  %v2590 = vadd.f32 %v1107, %v2589
  %v2591 = vpop.f32.mrf.mxu0
  %v2592 = vadd.f32 %v1107, %v2591
  %v2593 = vpop.f32.mrf.mxu0
  %v2594 = vadd.f32 %v1112, %v2593
  %v2595 = vpop.f32.mrf.mxu0
  %v2596 = vadd.f32 %v1112, %v2595
  %2597 = vmatprep.mubr.bf16.mxu0 0
  %2598 = vmatmul.mubr.bf16.gmra.mxu0 %v1903
  %v2599 = vpop.f32.mrf.mxu0
  %v2600 = vadd.f32 %v1117, %v2599
  %v2601 = vpop.f32.mrf.mxu0
  %v2602 = vadd.f32 %v1117, %v2601
  %v2603 = vpop.f32.mrf.mxu0
  %v2604 = vadd.f32 %v1122, %v2603
  %v2605 = vpop.f32.mrf.mxu0
  %v2606 = vadd.f32 %v1122, %v2605
  %2607 = vmatprep.mubr.bf16.mxu0 0
  %2608 = vmatmul.mubr.bf16.gmra.mxu0 %v1906
  %v2609 = vpop.f32.mrf.mxu0
  %v2610 = vadd.f32 %v1127, %v2609
  %v2611 = vpop.f32.mrf.mxu0
  %v2612 = vadd.f32 %v1127, %v2611
  %v2613 = vpop.f32.mrf.mxu0
  %v2614 = vadd.f32 %v1132, %v2613
  %v2615 = vpop.f32.mrf.mxu0
  %v2616 = vadd.f32 %v1132, %v2615
  %2617 = vmatprep.mubr.bf16.mxu0 0
  %2618 = vmatmul.mubr.bf16.gmra.mxu0 %v1909
  %v2619 = vpop.f32.mrf.mxu0
  %v2620 = vadd.f32 %v1137, %v2619
  %v2621 = vpop.f32.mrf.mxu0
  %v2622 = vadd.f32 %v1137, %v2621
  %v2623 = vpop.f32.mrf.mxu0
  %v2624 = vadd.f32 %v1142, %v2623
  %v2625 = vpop.f32.mrf.mxu0
  %v2626 = vadd.f32 %v1142, %v2625
  %2627 = vmatprep.mubr.bf16.mxu0 0
  %2628 = vmatmul.mubr.bf16.gmra.mxu0 %v1912
  %v2629 = vpop.f32.mrf.mxu0
  %v2630 = vadd.f32 %v1147, %v2629
  %v2631 = vpop.f32.mrf.mxu0
  %v2632 = vadd.f32 %v1147, %v2631
  %v2633 = vpop.f32.mrf.mxu0
  %v2634 = vadd.f32 %v1152, %v2633
  %v2635 = vpop.f32.mrf.mxu0
  %v2636 = vadd.f32 %v1152, %v2635
  %2637 = vmatprep.mubr.bf16.mxu0 0
  %2638 = vmatmul.mubr.bf16.gmra.mxu0 %v1915
  %v2639 = vpop.f32.mrf.mxu0
  %v2640 = vadd.f32 %v1157, %v2639
  %v2641 = vpop.f32.mrf.mxu0
  %v2642 = vadd.f32 %v1157, %v2641
  %v2643 = vpop.f32.mrf.mxu0
  %v2644 = vadd.f32 %v1162, %v2643
  %v2645 = vpop.f32.mrf.mxu0
  %v2646 = vadd.f32 %v1162, %v2645
  %2647 = vmatprep.mubr.bf16.mxu0 0
  %2648 = vmatmul.mubr.bf16.gmra.mxu0 %v1918
  %v2649 = vpop.f32.mrf.mxu0
  %v2650 = vadd.f32 %v1167, %v2649
  %v2651 = vpop.f32.mrf.mxu0
  %v2652 = vadd.f32 %v1167, %v2651
  %v2653 = vpop.f32.mrf.mxu0
  %v2654 = vadd.f32 %v1172, %v2653
  %v2655 = vpop.f32.mrf.mxu0
  %v2656 = vadd.f32 %v1172, %v2655
  %2657 = vmatprep.mubr.bf16.mxu0 0
  %2658 = vmatmul.mubr.bf16.gmra.mxu0 %v1921
  %v2659 = vpop.f32.mrf.mxu0
  %v2660 = vadd.f32 %v1177, %v2659
  %v2661 = vpop.f32.mrf.mxu0
  %v2662 = vadd.f32 %v1177, %v2661
  %v2663 = vpop.f32.mrf.mxu0
  %v2664 = vadd.f32 %v1182, %v2663
  %v2665 = vpop.f32.mrf.mxu0
  %v2666 = vadd.f32 %v1182, %v2665
  %2667 = vmatprep.mubr.bf16.mxu0 0
  %2668 = vmatmul.mubr.bf16.gmra.mxu0 %v1924
  %v2669 = vpop.f32.mrf.mxu0
  %v2670 = vadd.f32 %v1187, %v2669
  %v2671 = vpop.f32.mrf.mxu0
  %v2672 = vadd.f32 %v1187, %v2671
  %v2673 = vpop.f32.mrf.mxu0
  %v2674 = vadd.f32 %v1192, %v2673
  %v2675 = vpop.f32.mrf.mxu0
  %v2676 = vadd.f32 %v1192, %v2675
  %2677 = vmatprep.mubr.bf16.mxu0 0
  %2678 = vmatmul.mubr.bf16.gmra.mxu0 %v1927
  %v2679 = vpop.f32.mrf.mxu0
  %v2680 = vadd.f32 %v1197, %v2679
  %v2681 = vpop.f32.mrf.mxu0
  %v2682 = vadd.f32 %v1197, %v2681
  %v2683 = vpop.f32.mrf.mxu0
  %v2684 = vadd.f32 %v1202, %v2683
  %v2685 = vpop.f32.mrf.mxu0
  %v2686 = vadd.f32 %v1202, %v2685
  %2687 = vmatprep.mubr.bf16.mxu0 0
  %2688 = vmatmul.mubr.bf16.gmra.mxu0 %v1930
  %v2689 = vpop.f32.mrf.mxu0
  %v2690 = vadd.f32 %v1207, %v2689
  %v2691 = vpop.f32.mrf.mxu0
  %v2692 = vadd.f32 %v1207, %v2691
  %v2693 = vpop.f32.mrf.mxu0
  %v2694 = vadd.f32 %v1212, %v2693
  %v2695 = vpop.f32.mrf.mxu0
  %v2696 = vadd.f32 %v1212, %v2695
  %2697 = vmatprep.mubr.bf16.mxu0 0
  %2698 = vmatmul.mubr.bf16.gmra.mxu0 %v1933
  %v2699 = vpop.f32.mrf.mxu0
  %v2700 = vadd.f32 %v1217, %v2699
  %v2701 = vpop.f32.mrf.mxu0
  %v2702 = vadd.f32 %v1217, %v2701
  %v2703 = vpop.f32.mrf.mxu0
  %v2704 = vadd.f32 %v1222, %v2703
  %v2705 = vpop.f32.mrf.mxu0
  %v2706 = vadd.f32 %v1222, %v2705
  %2707 = vmatprep.mubr.bf16.mxu0 0
  %2708 = vmatmul.mubr.bf16.gmra.mxu0 %v1936
  %v2709 = vpop.f32.mrf.mxu0
  %v2710 = vadd.f32 %v1227, %v2709
  %v2711 = vpop.f32.mrf.mxu0
  %v2712 = vadd.f32 %v1227, %v2711
  %v2713 = vpop.f32.mrf.mxu0
  %v2714 = vadd.f32 %v1232, %v2713
  %v2715 = vpop.f32.mrf.mxu0
  %v2716 = vadd.f32 %v1232, %v2715
  %2717 = vmatprep.mubr.bf16.mxu0 0
  %2718 = vmatmul.mubr.bf16.gmra.mxu0 %v1939
  %v2719 = vpop.f32.mrf.mxu0
  %v2720 = vadd.f32 %v1237, %v2719
  %v2721 = vpop.f32.mrf.mxu0
  %v2722 = vadd.f32 %v1237, %v2721
  %v2723 = vpop.f32.mrf.mxu0
  %v2724 = vadd.f32 %v1242, %v2723
  %v2725 = vpop.f32.mrf.mxu0
  %v2726 = vadd.f32 %v1242, %v2725
  %2727 = vmatprep.mubr.bf16.mxu0 0
  %2728 = vmatmul.mubr.bf16.gmra.mxu0 %v1942
  %v2729 = vpop.f32.mrf.mxu0
  %v2730 = vadd.f32 %v1247, %v2729
  %v2731 = vpop.f32.mrf.mxu0
  %v2732 = vadd.f32 %v1247, %v2731
  %v2733 = vpop.f32.mrf.mxu0
  %v2734 = vadd.f32 %v1252, %v2733
  %v2735 = vpop.f32.mrf.mxu0
  %v2736 = vadd.f32 %v1252, %v2735
  %2737 = vmatprep.mubr.bf16.mxu0 0
  %2738 = vmatmul.mubr.bf16.gmra.mxu0 %v1945
  %v2739 = vpop.f32.mrf.mxu0
  %v2740 = vadd.f32 %v1257, %v2739
  %v2741 = vpop.f32.mrf.mxu0
  %v2742 = vadd.f32 %v1257, %v2741
  %v2743 = vpop.f32.mrf.mxu0
  %v2744 = vadd.f32 %v1262, %v2743
  %v2745 = vpop.f32.mrf.mxu0
  %v2746 = vadd.f32 %v1262, %v2745
  %2747 = vmatprep.mubr.bf16.mxu0 0
  %2748 = vmatmul.mubr.bf16.gmra.mxu0 %v1948
  %v2749 = vpop.f32.mrf.mxu0
  %v2750 = vadd.f32 %v1267, %v2749
  %v2751 = vpop.f32.mrf.mxu0
  %v2752 = vadd.f32 %v1267, %v2751
  %v2753 = vpop.f32.mrf.mxu0
  %v2754 = vadd.f32 %v1272, %v2753
  %v2755 = vpop.f32.mrf.mxu0
  %v2756 = vadd.f32 %v1272, %v2755
  %2757 = vmatprep.mubr.bf16.mxu0 0
  %2758 = vmatmul.mubr.bf16.gmra.mxu0 %v1951
  %v2759 = vpop.f32.mrf.mxu0
  %v2760 = vadd.f32 %v1277, %v2759
  %v2761 = vpop.f32.mrf.mxu0
  %v2762 = vadd.f32 %v1277, %v2761
  %v2763 = vpop.f32.mrf.mxu0
  %v2764 = vadd.f32 %v1282, %v2763
  %v2765 = vpop.f32.mrf.mxu0
  %v2766 = vadd.f32 %v1282, %v2765
  %2767 = vmatprep.mubr.bf16.mxu0 0
  %2768 = vmatmul.mubr.bf16.gmra.mxu0 %v1954
  %v2769 = vpop.f32.mrf.mxu0
  %v2770 = vadd.f32 %v1287, %v2769
  %v2771 = vpop.f32.mrf.mxu0
  %v2772 = vadd.f32 %v1287, %v2771
  %v2773 = vpop.f32.mrf.mxu0
  %v2774 = vadd.f32 %v1292, %v2773
  %v2775 = vpop.f32.mrf.mxu0
  %v2776 = vadd.f32 %v1292, %v2775
  %2777 = vmatprep.mubr.bf16.mxu0 0
  %2778 = vmatmul.mubr.bf16.gmra.mxu0 %v1957
  %v2779 = vpop.f32.mrf.mxu0
  %v2780 = vadd.f32 %v1297, %v2779
  %v2781 = vpop.f32.mrf.mxu0
  %v2782 = vadd.f32 %v1297, %v2781
  %v2783 = vpop.f32.mrf.mxu0
  %v2784 = vadd.f32 %v1302, %v2783
  %v2785 = vpop.f32.mrf.mxu0
  %v2786 = vadd.f32 %v1302, %v2785
  %2787 = vmatprep.mubr.bf16.mxu0 0
  %2788 = vmatmul.mubr.bf16.gmra.mxu0 %v1960
  %v2789 = vpop.f32.mrf.mxu0
  %v2790 = vadd.f32 %v1307, %v2789
  %v2791 = vpop.f32.mrf.mxu0
  %v2792 = vadd.f32 %v1307, %v2791
  %v2793 = vpop.f32.mrf.mxu0
  %v2794 = vadd.f32 %v1312, %v2793
  %v2795 = vpop.f32.mrf.mxu0
  %v2796 = vadd.f32 %v1312, %v2795
  %2797 = vmatprep.mubr.bf16.mxu0 0
  %2798 = vmatmul.mubr.bf16.gmra.mxu0 %v1963
  %v2799 = vpop.f32.mrf.mxu0
  %v2800 = vadd.f32 %v1317, %v2799
  %v2801 = vpop.f32.mrf.mxu0
  %v2802 = vadd.f32 %v1317, %v2801
  %v2803 = vpop.f32.mrf.mxu0
  %v2804 = vadd.f32 %v1322, %v2803
  %v2805 = vpop.f32.mrf.mxu0
  %v2806 = vadd.f32 %v1322, %v2805
  %2807 = vdwg.mxu0
  %v2808 = vmax.f32 %v2010, 0.0
  %v2809 = vmax.f32 %v2012, 0.0
  %v2810 = vmax.f32 %v2014, 0.0
  %v2811 = vmax.f32 %v2016, 0.0
  %v2812 = vmax.f32 %v2020, 0.0
  %v2813 = vmax.f32 %v2022, 0.0
  %v2814 = vmax.f32 %v2024, 0.0
  %v2815 = vmax.f32 %v2026, 0.0
  %v2816 = vmax.f32 %v2030, 0.0
  %v2817 = vmax.f32 %v2032, 0.0
  %v2818 = vmax.f32 %v2034, 0.0
  %v2819 = vmax.f32 %v2036, 0.0
  %v2820 = vmax.f32 %v2040, 0.0
  %v2821 = vmax.f32 %v2042, 0.0
  %v2822 = vmax.f32 %v2044, 0.0
  %v2823 = vmax.f32 %v2046, 0.0
  %v2824 = vmax.f32 %v2050, 0.0
  %v2825 = vmax.f32 %v2052, 0.0
  %v2826 = vmax.f32 %v2054, 0.0
  %v2827 = vmax.f32 %v2056, 0.0
  %v2828 = vmax.f32 %v2060, 0.0
  %v2829 = vmax.f32 %v2062, 0.0
  %v2830 = vmax.f32 %v2064, 0.0
  %v2831 = vmax.f32 %v2066, 0.0
  %v2832 = vmax.f32 %v2070, 0.0
  %v2833 = vmax.f32 %v2072, 0.0
  %v2834 = vmax.f32 %v2074, 0.0
  %v2835 = vmax.f32 %v2076, 0.0
  %v2836 = vmax.f32 %v2080, 0.0
  %v2837 = vmax.f32 %v2082, 0.0
  %v2838 = vmax.f32 %v2084, 0.0
  %v2839 = vmax.f32 %v2086, 0.0
  %v2840 = vmax.f32 %v2090, 0.0
  %v2841 = vmax.f32 %v2092, 0.0
  %v2842 = vmax.f32 %v2094, 0.0
  %v2843 = vmax.f32 %v2096, 0.0
  %v2844 = vmax.f32 %v2100, 0.0
  %v2845 = vmax.f32 %v2102, 0.0
  %v2846 = vmax.f32 %v2104, 0.0
  %v2847 = vmax.f32 %v2106, 0.0
  %v2848 = vmax.f32 %v2110, 0.0
  %v2849 = vmax.f32 %v2112, 0.0
  %v2850 = vmax.f32 %v2114, 0.0
  %v2851 = vmax.f32 %v2116, 0.0
  %v2852 = vmax.f32 %v2120, 0.0
  %v2853 = vmax.f32 %v2122, 0.0
  %v2854 = vmax.f32 %v2124, 0.0
  %v2855 = vmax.f32 %v2126, 0.0
  %v2856 = vmax.f32 %v2130, 0.0
  %v2857 = vmax.f32 %v2132, 0.0
  %v2858 = vmax.f32 %v2134, 0.0
  %v2859 = vmax.f32 %v2136, 0.0
  %v2860 = vmax.f32 %v2140, 0.0
  %v2861 = vmax.f32 %v2142, 0.0
  %v2862 = vmax.f32 %v2144, 0.0
  %v2863 = vmax.f32 %v2146, 0.0
  %v2864 = vmax.f32 %v2150, 0.0
  %v2865 = vmax.f32 %v2152, 0.0
  %v2866 = vmax.f32 %v2154, 0.0
  %v2867 = vmax.f32 %v2156, 0.0
  %v2868 = vmax.f32 %v2160, 0.0
  %v2869 = vmax.f32 %v2162, 0.0
  %v2870 = vmax.f32 %v2164, 0.0
  %v2871 = vmax.f32 %v2166, 0.0
  %v2872 = vmax.f32 %v2170, 0.0
  %v2873 = vmax.f32 %v2172, 0.0
  %v2874 = vmax.f32 %v2174, 0.0
  %v2875 = vmax.f32 %v2176, 0.0
  %v2876 = vmax.f32 %v2180, 0.0
  %v2877 = vmax.f32 %v2182, 0.0
  %v2878 = vmax.f32 %v2184, 0.0
  %v2879 = vmax.f32 %v2186, 0.0
  %v2880 = vmax.f32 %v2190, 0.0
  %v2881 = vmax.f32 %v2192, 0.0
  %v2882 = vmax.f32 %v2194, 0.0
  %v2883 = vmax.f32 %v2196, 0.0
  %v2884 = vmax.f32 %v2200, 0.0
  %v2885 = vmax.f32 %v2202, 0.0
  %v2886 = vmax.f32 %v2204, 0.0
  %v2887 = vmax.f32 %v2206, 0.0
  %v2888 = vmax.f32 %v2210, 0.0
  %v2889 = vmax.f32 %v2212, 0.0
  %v2890 = vmax.f32 %v2214, 0.0
  %v2891 = vmax.f32 %v2216, 0.0
  %v2892 = vmax.f32 %v2220, 0.0
  %v2893 = vmax.f32 %v2222, 0.0
  %v2894 = vmax.f32 %v2224, 0.0
  %v2895 = vmax.f32 %v2226, 0.0
  %v2896 = vmax.f32 %v2230, 0.0
  %v2897 = vmax.f32 %v2232, 0.0
  %v2898 = vmax.f32 %v2234, 0.0
  %v2899 = vmax.f32 %v2236, 0.0
  %v2900 = vmax.f32 %v2240, 0.0
  %v2901 = vmax.f32 %v2242, 0.0
  %v2902 = vmax.f32 %v2244, 0.0
  %v2903 = vmax.f32 %v2246, 0.0
  %v2904 = vmax.f32 %v2250, 0.0
  %v2905 = vmax.f32 %v2252, 0.0
  %v2906 = vmax.f32 %v2254, 0.0
  %v2907 = vmax.f32 %v2256, 0.0
  %v2908 = vmax.f32 %v2260, 0.0
  %v2909 = vmax.f32 %v2262, 0.0
  %v2910 = vmax.f32 %v2264, 0.0
  %v2911 = vmax.f32 %v2266, 0.0
  %v2912 = vmax.f32 %v2270, 0.0
  %v2913 = vmax.f32 %v2272, 0.0
  %v2914 = vmax.f32 %v2274, 0.0
  %v2915 = vmax.f32 %v2276, 0.0
  %v2916 = vmax.f32 %v2280, 0.0
  %v2917 = vmax.f32 %v2282, 0.0
  %v2918 = vmax.f32 %v2284, 0.0
  %v2919 = vmax.f32 %v2286, 0.0
  %v2920 = vmax.f32 %v2290, 0.0
  %v2921 = vmax.f32 %v2292, 0.0
  %v2922 = vmax.f32 %v2294, 0.0
  %v2923 = vmax.f32 %v2296, 0.0
  %v2924 = vmax.f32 %v2300, 0.0
  %v2925 = vmax.f32 %v2302, 0.0
  %v2926 = vmax.f32 %v2304, 0.0
  %v2927 = vmax.f32 %v2306, 0.0
  %v2928 = vmax.f32 %v2310, 0.0
  %v2929 = vmax.f32 %v2312, 0.0
  %v2930 = vmax.f32 %v2314, 0.0
  %v2931 = vmax.f32 %v2316, 0.0
  %v2932 = vmax.f32 %v2320, 0.0
  %v2933 = vmax.f32 %v2322, 0.0
  %v2934 = vmax.f32 %v2324, 0.0
  %v2935 = vmax.f32 %v2326, 0.0
  %v2936 = vmax.f32 %v2330, 0.0
  %v2937 = vmax.f32 %v2332, 0.0
  %v2938 = vmax.f32 %v2334, 0.0
  %v2939 = vmax.f32 %v2336, 0.0
  %v2940 = vmax.f32 %v2340, 0.0
  %v2941 = vmax.f32 %v2342, 0.0
  %v2942 = vmax.f32 %v2344, 0.0
  %v2943 = vmax.f32 %v2346, 0.0
  %v2944 = vmax.f32 %v2350, 0.0
  %v2945 = vmax.f32 %v2352, 0.0
  %v2946 = vmax.f32 %v2354, 0.0
  %v2947 = vmax.f32 %v2356, 0.0
  %v2948 = vmax.f32 %v2360, 0.0
  %v2949 = vmax.f32 %v2362, 0.0
  %v2950 = vmax.f32 %v2364, 0.0
  %v2951 = vmax.f32 %v2366, 0.0
  %v2952 = vmax.f32 %v2370, 0.0
  %v2953 = vmax.f32 %v2372, 0.0
  %v2954 = vmax.f32 %v2374, 0.0
  %v2955 = vmax.f32 %v2376, 0.0
  %v2956 = vmax.f32 %v2380, 0.0
  %v2957 = vmax.f32 %v2382, 0.0
  %v2958 = vmax.f32 %v2384, 0.0
  %v2959 = vmax.f32 %v2386, 0.0
  %v2960 = vmax.f32 %v2390, 0.0
  %v2961 = vmax.f32 %v2392, 0.0
  %v2962 = vmax.f32 %v2394, 0.0
  %v2963 = vmax.f32 %v2396, 0.0
  %v2964 = vmax.f32 %v2400, 0.0
  %v2965 = vmax.f32 %v2402, 0.0
  %v2966 = vmax.f32 %v2404, 0.0
  %v2967 = vmax.f32 %v2406, 0.0
  %v2968 = vmax.f32 %v2410, 0.0
  %v2969 = vmax.f32 %v2412, 0.0
  %v2970 = vmax.f32 %v2414, 0.0
  %v2971 = vmax.f32 %v2416, 0.0
  %v2972 = vmax.f32 %v2420, 0.0
  %v2973 = vmax.f32 %v2422, 0.0
  %v2974 = vmax.f32 %v2424, 0.0
  %v2975 = vmax.f32 %v2426, 0.0
  %v2976 = vmax.f32 %v2430, 0.0
  %v2977 = vmax.f32 %v2432, 0.0
  %v2978 = vmax.f32 %v2434, 0.0
  %v2979 = vmax.f32 %v2436, 0.0
  %v2980 = vmax.f32 %v2440, 0.0
  %v2981 = vmax.f32 %v2442, 0.0
  %v2982 = vmax.f32 %v2444, 0.0
  %v2983 = vmax.f32 %v2446, 0.0
  %v2984 = vmax.f32 %v2450, 0.0
  %v2985 = vmax.f32 %v2452, 0.0
  %v2986 = vmax.f32 %v2454, 0.0
  %v2987 = vmax.f32 %v2456, 0.0
  %v2988 = vmax.f32 %v2460, 0.0
  %v2989 = vmax.f32 %v2462, 0.0
  %v2990 = vmax.f32 %v2464, 0.0
  %v2991 = vmax.f32 %v2466, 0.0
  %v2992 = vmax.f32 %v2470, 0.0
  %v2993 = vmax.f32 %v2472, 0.0
  %v2994 = vmax.f32 %v2474, 0.0
  %v2995 = vmax.f32 %v2476, 0.0
  %v2996 = vmax.f32 %v2480, 0.0
  %v2997 = vmax.f32 %v2482, 0.0
  %v2998 = vmax.f32 %v2484, 0.0
  %v2999 = vmax.f32 %v2486, 0.0
  %v3000 = vmax.f32 %v2490, 0.0
  %v3001 = vmax.f32 %v2492, 0.0
  %v3002 = vmax.f32 %v2494, 0.0
  %v3003 = vmax.f32 %v2496, 0.0
  %v3004 = vmax.f32 %v2500, 0.0
  %v3005 = vmax.f32 %v2502, 0.0
  %v3006 = vmax.f32 %v2504, 0.0
  %v3007 = vmax.f32 %v2506, 0.0
  %v3008 = vmax.f32 %v2510, 0.0
  %v3009 = vmax.f32 %v2512, 0.0
  %v3010 = vmax.f32 %v2514, 0.0
  %v3011 = vmax.f32 %v2516, 0.0
  %v3012 = vmax.f32 %v2520, 0.0
  %v3013 = vmax.f32 %v2522, 0.0
  %v3014 = vmax.f32 %v2524, 0.0
  %v3015 = vmax.f32 %v2526, 0.0
  %v3016 = vmax.f32 %v2530, 0.0
  %v3017 = vmax.f32 %v2532, 0.0
  %v3018 = vmax.f32 %v2534, 0.0
  %v3019 = vmax.f32 %v2536, 0.0
  %v3020 = vmax.f32 %v2540, 0.0
  %v3021 = vmax.f32 %v2542, 0.0
  %v3022 = vmax.f32 %v2544, 0.0
  %v3023 = vmax.f32 %v2546, 0.0
  %v3024 = vmax.f32 %v2550, 0.0
  %v3025 = vmax.f32 %v2552, 0.0
  %v3026 = vmax.f32 %v2554, 0.0
  %v3027 = vmax.f32 %v2556, 0.0
  %v3028 = vmax.f32 %v2560, 0.0
  %v3029 = vmax.f32 %v2562, 0.0
  %v3030 = vmax.f32 %v2564, 0.0
  %v3031 = vmax.f32 %v2566, 0.0
  %v3032 = vmax.f32 %v2570, 0.0
  %v3033 = vmax.f32 %v2572, 0.0
  %v3034 = vmax.f32 %v2574, 0.0
  %v3035 = vmax.f32 %v2576, 0.0
  %v3036 = vmax.f32 %v2580, 0.0
  %v3037 = vmax.f32 %v2582, 0.0
  %v3038 = vmax.f32 %v2584, 0.0
  %v3039 = vmax.f32 %v2586, 0.0
  %v3040 = vmax.f32 %v2590, 0.0
  %v3041 = vmax.f32 %v2592, 0.0
  %v3042 = vmax.f32 %v2594, 0.0
  %v3043 = vmax.f32 %v2596, 0.0
  %v3044 = vmax.f32 %v2600, 0.0
  %v3045 = vmax.f32 %v2602, 0.0
  %v3046 = vmax.f32 %v2604, 0.0
  %v3047 = vmax.f32 %v2606, 0.0
  %v3048 = vmax.f32 %v2610, 0.0
  %v3049 = vmax.f32 %v2612, 0.0
  %v3050 = vmax.f32 %v2614, 0.0
  %v3051 = vmax.f32 %v2616, 0.0
  %v3052 = vmax.f32 %v2620, 0.0
  %v3053 = vmax.f32 %v2622, 0.0
  %v3054 = vmax.f32 %v2624, 0.0
  %v3055 = vmax.f32 %v2626, 0.0
  %v3056 = vmax.f32 %v2630, 0.0
  %v3057 = vmax.f32 %v2632, 0.0
  %v3058 = vmax.f32 %v2634, 0.0
  %v3059 = vmax.f32 %v2636, 0.0
  %v3060 = vmax.f32 %v2640, 0.0
  %v3061 = vmax.f32 %v2642, 0.0
  %v3062 = vmax.f32 %v2644, 0.0
  %v3063 = vmax.f32 %v2646, 0.0
  %v3064 = vmax.f32 %v2650, 0.0
  %v3065 = vmax.f32 %v2652, 0.0
  %v3066 = vmax.f32 %v2654, 0.0
  %v3067 = vmax.f32 %v2656, 0.0
  %v3068 = vmax.f32 %v2660, 0.0
  %v3069 = vmax.f32 %v2662, 0.0
  %v3070 = vmax.f32 %v2664, 0.0
  %v3071 = vmax.f32 %v2666, 0.0
  %v3072 = vmax.f32 %v2670, 0.0
  %v3073 = vmax.f32 %v2672, 0.0
  %v3074 = vmax.f32 %v2674, 0.0
  %v3075 = vmax.f32 %v2676, 0.0
  %v3076 = vmax.f32 %v2680, 0.0
  %v3077 = vmax.f32 %v2682, 0.0
  %v3078 = vmax.f32 %v2684, 0.0
  %v3079 = vmax.f32 %v2686, 0.0
  %v3080 = vmax.f32 %v2690, 0.0
  %v3081 = vmax.f32 %v2692, 0.0
  %v3082 = vmax.f32 %v2694, 0.0
  %v3083 = vmax.f32 %v2696, 0.0
  %v3084 = vmax.f32 %v2700, 0.0
  %v3085 = vmax.f32 %v2702, 0.0
  %v3086 = vmax.f32 %v2704, 0.0
  %v3087 = vmax.f32 %v2706, 0.0
  %v3088 = vmax.f32 %v2710, 0.0
  %v3089 = vmax.f32 %v2712, 0.0
  %v3090 = vmax.f32 %v2714, 0.0
  %v3091 = vmax.f32 %v2716, 0.0
  %v3092 = vmax.f32 %v2720, 0.0
  %v3093 = vmax.f32 %v2722, 0.0
  %v3094 = vmax.f32 %v2724, 0.0
  %v3095 = vmax.f32 %v2726, 0.0
  %v3096 = vmax.f32 %v2730, 0.0
  %v3097 = vmax.f32 %v2732, 0.0
  %v3098 = vmax.f32 %v2734, 0.0
  %v3099 = vmax.f32 %v2736, 0.0
  %v3100 = vmax.f32 %v2740, 0.0
  %v3101 = vmax.f32 %v2742, 0.0
  %v3102 = vmax.f32 %v2744, 0.0
  %v3103 = vmax.f32 %v2746, 0.0
  %v3104 = vmax.f32 %v2750, 0.0
  %v3105 = vmax.f32 %v2752, 0.0
  %v3106 = vmax.f32 %v2754, 0.0
  %v3107 = vmax.f32 %v2756, 0.0
  %v3108 = vmax.f32 %v2760, 0.0
  %v3109 = vmax.f32 %v2762, 0.0
  %v3110 = vmax.f32 %v2764, 0.0
  %v3111 = vmax.f32 %v2766, 0.0
  %v3112 = vmax.f32 %v2770, 0.0
  %v3113 = vmax.f32 %v2772, 0.0
  %v3114 = vmax.f32 %v2774, 0.0
  %v3115 = vmax.f32 %v2776, 0.0
  %v3116 = vmax.f32 %v2780, 0.0
  %v3117 = vmax.f32 %v2782, 0.0
  %v3118 = vmax.f32 %v2784, 0.0
  %v3119 = vmax.f32 %v2786, 0.0
  %v3120 = vmax.f32 %v2790, 0.0
  %v3121 = vmax.f32 %v2792, 0.0
  %v3122 = vmax.f32 %v2794, 0.0
  %v3123 = vmax.f32 %v2796, 0.0
  %v3124 = vmax.f32 %v2800, 0.0
  %v3125 = vmax.f32 %v2802, 0.0
  %v3126 = vmax.f32 %v2804, 0.0
  %v3127 = vmax.f32 %v2806, 0.0
  %v3128 = vmin.f32 %v2808, 6.0
  %v3129 = vmin.f32 %v2809, 6.0
  %v3130 = vmin.f32 %v2810, 6.0
  %v3131 = vmin.f32 %v2811, 6.0
  %v3132 = vmin.f32 %v2812, 6.0
  %v3133 = vmin.f32 %v2813, 6.0
  %v3134 = vmin.f32 %v2814, 6.0
  %v3135 = vmin.f32 %v2815, 6.0
  %v3136 = vmin.f32 %v2816, 6.0
  %v3137 = vmin.f32 %v2817, 6.0
  %v3138 = vmin.f32 %v2818, 6.0
  %v3139 = vmin.f32 %v2819, 6.0
  %v3140 = vmin.f32 %v2820, 6.0
  %v3141 = vmin.f32 %v2821, 6.0
  %v3142 = vmin.f32 %v2822, 6.0
  %v3143 = vmin.f32 %v2823, 6.0
  %v3144 = vmin.f32 %v2824, 6.0
  %v3145 = vmin.f32 %v2825, 6.0
  %v3146 = vmin.f32 %v2826, 6.0
  %v3147 = vmin.f32 %v2827, 6.0
  %v3148 = vmin.f32 %v2828, 6.0
  %v3149 = vmin.f32 %v2829, 6.0
  %v3150 = vmin.f32 %v2830, 6.0
  %v3151 = vmin.f32 %v2831, 6.0
  %v3152 = vmin.f32 %v2832, 6.0
  %v3153 = vmin.f32 %v2833, 6.0
  %v3154 = vmin.f32 %v2834, 6.0
  %v3155 = vmin.f32 %v2835, 6.0
  %v3156 = vmin.f32 %v2836, 6.0
  %v3157 = vmin.f32 %v2837, 6.0
  %v3158 = vmin.f32 %v2838, 6.0
  %v3159 = vmin.f32 %v2839, 6.0
  %v3160 = vmin.f32 %v2840, 6.0
  %v3161 = vmin.f32 %v2841, 6.0
  %v3162 = vmin.f32 %v2842, 6.0
  %v3163 = vmin.f32 %v2843, 6.0
  %v3164 = vmin.f32 %v2844, 6.0
  %v3165 = vmin.f32 %v2845, 6.0
  %v3166 = vmin.f32 %v2846, 6.0
  %v3167 = vmin.f32 %v2847, 6.0
  %v3168 = vmin.f32 %v2848, 6.0
  %v3169 = vmin.f32 %v2849, 6.0
  %v3170 = vmin.f32 %v2850, 6.0
  %v3171 = vmin.f32 %v2851, 6.0
  %v3172 = vmin.f32 %v2852, 6.0
  %v3173 = vmin.f32 %v2853, 6.0
  %v3174 = vmin.f32 %v2854, 6.0
  %v3175 = vmin.f32 %v2855, 6.0
  %v3176 = vmin.f32 %v2856, 6.0
  %v3177 = vmin.f32 %v2857, 6.0
  %v3178 = vmin.f32 %v2858, 6.0
  %v3179 = vmin.f32 %v2859, 6.0
  %v3180 = vmin.f32 %v2860, 6.0
  %v3181 = vmin.f32 %v2861, 6.0
  %v3182 = vmin.f32 %v2862, 6.0
  %v3183 = vmin.f32 %v2863, 6.0
  %v3184 = vmin.f32 %v2864, 6.0
  %v3185 = vmin.f32 %v2865, 6.0
  %v3186 = vmin.f32 %v2866, 6.0
  %v3187 = vmin.f32 %v2867, 6.0
  %v3188 = vmin.f32 %v2868, 6.0
  %v3189 = vmin.f32 %v2869, 6.0
  %v3190 = vmin.f32 %v2870, 6.0
  %v3191 = vmin.f32 %v2871, 6.0
  %v3192 = vmin.f32 %v2872, 6.0
  %v3193 = vmin.f32 %v2873, 6.0
  %v3194 = vmin.f32 %v2874, 6.0
  %v3195 = vmin.f32 %v2875, 6.0
  %v3196 = vmin.f32 %v2876, 6.0
  %v3197 = vmin.f32 %v2877, 6.0
  %v3198 = vmin.f32 %v2878, 6.0
  %v3199 = vmin.f32 %v2879, 6.0
  %v3200 = vmin.f32 %v2880, 6.0
  %v3201 = vmin.f32 %v2881, 6.0
  %v3202 = vmin.f32 %v2882, 6.0
  %v3203 = vmin.f32 %v2883, 6.0
  %v3204 = vmin.f32 %v2884, 6.0
  %v3205 = vmin.f32 %v2885, 6.0
  %v3206 = vmin.f32 %v2886, 6.0
  %v3207 = vmin.f32 %v2887, 6.0
  %v3208 = vmin.f32 %v2888, 6.0
  %v3209 = vmin.f32 %v2889, 6.0
  %v3210 = vmin.f32 %v2890, 6.0
  %v3211 = vmin.f32 %v2891, 6.0
  %v3212 = vmin.f32 %v2892, 6.0
  %v3213 = vmin.f32 %v2893, 6.0
  %v3214 = vmin.f32 %v2894, 6.0
  %v3215 = vmin.f32 %v2895, 6.0
  %v3216 = vmin.f32 %v2896, 6.0
  %v3217 = vmin.f32 %v2897, 6.0
  %v3218 = vmin.f32 %v2898, 6.0
  %v3219 = vmin.f32 %v2899, 6.0
  %v3220 = vmin.f32 %v2900, 6.0
  %v3221 = vmin.f32 %v2901, 6.0
  %v3222 = vmin.f32 %v2902, 6.0
  %v3223 = vmin.f32 %v2903, 6.0
  %v3224 = vmin.f32 %v2904, 6.0
  %v3225 = vmin.f32 %v2905, 6.0
  %v3226 = vmin.f32 %v2906, 6.0
  %v3227 = vmin.f32 %v2907, 6.0
  %v3228 = vmin.f32 %v2908, 6.0
  %v3229 = vmin.f32 %v2909, 6.0
  %v3230 = vmin.f32 %v2910, 6.0
  %v3231 = vmin.f32 %v2911, 6.0
  %v3232 = vmin.f32 %v2912, 6.0
  %v3233 = vmin.f32 %v2913, 6.0
  %v3234 = vmin.f32 %v2914, 6.0
  %v3235 = vmin.f32 %v2915, 6.0
  %v3236 = vmin.f32 %v2916, 6.0
  %v3237 = vmin.f32 %v2917, 6.0
  %v3238 = vmin.f32 %v2918, 6.0
  %v3239 = vmin.f32 %v2919, 6.0
  %v3240 = vmin.f32 %v2920, 6.0
  %v3241 = vmin.f32 %v2921, 6.0
  %v3242 = vmin.f32 %v2922, 6.0
  %v3243 = vmin.f32 %v2923, 6.0
  %v3244 = vmin.f32 %v2924, 6.0
  %v3245 = vmin.f32 %v2925, 6.0
  %v3246 = vmin.f32 %v2926, 6.0
  %v3247 = vmin.f32 %v2927, 6.0
  %v3248 = vmin.f32 %v2928, 6.0
  %v3249 = vmin.f32 %v2929, 6.0
  %v3250 = vmin.f32 %v2930, 6.0
  %v3251 = vmin.f32 %v2931, 6.0
  %v3252 = vmin.f32 %v2932, 6.0
  %v3253 = vmin.f32 %v2933, 6.0
  %v3254 = vmin.f32 %v2934, 6.0
  %v3255 = vmin.f32 %v2935, 6.0
  %v3256 = vmin.f32 %v2936, 6.0
  %v3257 = vmin.f32 %v2937, 6.0
  %v3258 = vmin.f32 %v2938, 6.0
  %v3259 = vmin.f32 %v2939, 6.0
  %v3260 = vmin.f32 %v2940, 6.0
  %v3261 = vmin.f32 %v2941, 6.0
  %v3262 = vmin.f32 %v2942, 6.0
  %v3263 = vmin.f32 %v2943, 6.0
  %v3264 = vmin.f32 %v2944, 6.0
  %v3265 = vmin.f32 %v2945, 6.0
  %v3266 = vmin.f32 %v2946, 6.0
  %v3267 = vmin.f32 %v2947, 6.0
  %v3268 = vmin.f32 %v2948, 6.0
  %v3269 = vmin.f32 %v2949, 6.0
  %v3270 = vmin.f32 %v2950, 6.0
  %v3271 = vmin.f32 %v2951, 6.0
  %v3272 = vmin.f32 %v2952, 6.0
  %v3273 = vmin.f32 %v2953, 6.0
  %v3274 = vmin.f32 %v2954, 6.0
  %v3275 = vmin.f32 %v2955, 6.0
  %v3276 = vmin.f32 %v2956, 6.0
  %v3277 = vmin.f32 %v2957, 6.0
  %v3278 = vmin.f32 %v2958, 6.0
  %v3279 = vmin.f32 %v2959, 6.0
  %v3280 = vmin.f32 %v2960, 6.0
  %v3281 = vmin.f32 %v2961, 6.0
  %v3282 = vmin.f32 %v2962, 6.0
  %v3283 = vmin.f32 %v2963, 6.0
  %v3284 = vmin.f32 %v2964, 6.0
  %v3285 = vmin.f32 %v2965, 6.0
  %v3286 = vmin.f32 %v2966, 6.0
  %v3287 = vmin.f32 %v2967, 6.0
  %v3288 = vmin.f32 %v2968, 6.0
  %v3289 = vmin.f32 %v2969, 6.0
  %v3290 = vmin.f32 %v2970, 6.0
  %v3291 = vmin.f32 %v2971, 6.0
  %v3292 = vmin.f32 %v2972, 6.0
  %v3293 = vmin.f32 %v2973, 6.0
  %v3294 = vmin.f32 %v2974, 6.0
  %v3295 = vmin.f32 %v2975, 6.0
  %v3296 = vmin.f32 %v2976, 6.0
  %v3297 = vmin.f32 %v2977, 6.0
  %v3298 = vmin.f32 %v2978, 6.0
  %v3299 = vmin.f32 %v2979, 6.0
  %v3300 = vmin.f32 %v2980, 6.0
  %v3301 = vmin.f32 %v2981, 6.0
  %v3302 = vmin.f32 %v2982, 6.0
  %v3303 = vmin.f32 %v2983, 6.0
  %v3304 = vmin.f32 %v2984, 6.0
  %v3305 = vmin.f32 %v2985, 6.0
  %v3306 = vmin.f32 %v2986, 6.0
  %v3307 = vmin.f32 %v2987, 6.0
  %v3308 = vmin.f32 %v2988, 6.0
  %v3309 = vmin.f32 %v2989, 6.0
  %v3310 = vmin.f32 %v2990, 6.0
  %v3311 = vmin.f32 %v2991, 6.0
  %v3312 = vmin.f32 %v2992, 6.0
  %v3313 = vmin.f32 %v2993, 6.0
  %v3314 = vmin.f32 %v2994, 6.0
  %v3315 = vmin.f32 %v2995, 6.0
  %v3316 = vmin.f32 %v2996, 6.0
  %v3317 = vmin.f32 %v2997, 6.0
  %v3318 = vmin.f32 %v2998, 6.0
  %v3319 = vmin.f32 %v2999, 6.0
  %v3320 = vmin.f32 %v3000, 6.0
  %v3321 = vmin.f32 %v3001, 6.0
  %v3322 = vmin.f32 %v3002, 6.0
  %v3323 = vmin.f32 %v3003, 6.0
  %v3324 = vmin.f32 %v3004, 6.0
  %v3325 = vmin.f32 %v3005, 6.0
  %v3326 = vmin.f32 %v3006, 6.0
  %v3327 = vmin.f32 %v3007, 6.0
  %v3328 = vmin.f32 %v3008, 6.0
  %v3329 = vmin.f32 %v3009, 6.0
  %v3330 = vmin.f32 %v3010, 6.0
  %v3331 = vmin.f32 %v3011, 6.0
  %v3332 = vmin.f32 %v3012, 6.0
  %v3333 = vmin.f32 %v3013, 6.0
  %v3334 = vmin.f32 %v3014, 6.0
  %v3335 = vmin.f32 %v3015, 6.0
  %v3336 = vmin.f32 %v3016, 6.0
  %v3337 = vmin.f32 %v3017, 6.0
  %v3338 = vmin.f32 %v3018, 6.0
  %v3339 = vmin.f32 %v3019, 6.0
  %v3340 = vmin.f32 %v3020, 6.0
  %v3341 = vmin.f32 %v3021, 6.0
  %v3342 = vmin.f32 %v3022, 6.0
  %v3343 = vmin.f32 %v3023, 6.0
  %v3344 = vmin.f32 %v3024, 6.0
  %v3345 = vmin.f32 %v3025, 6.0
  %v3346 = vmin.f32 %v3026, 6.0
  %v3347 = vmin.f32 %v3027, 6.0
  %v3348 = vmin.f32 %v3028, 6.0
  %v3349 = vmin.f32 %v3029, 6.0
  %v3350 = vmin.f32 %v3030, 6.0
  %v3351 = vmin.f32 %v3031, 6.0
  %v3352 = vmin.f32 %v3032, 6.0
  %v3353 = vmin.f32 %v3033, 6.0
  %v3354 = vmin.f32 %v3034, 6.0
  %v3355 = vmin.f32 %v3035, 6.0
  %v3356 = vmin.f32 %v3036, 6.0
  %v3357 = vmin.f32 %v3037, 6.0
  %v3358 = vmin.f32 %v3038, 6.0
  %v3359 = vmin.f32 %v3039, 6.0
  %v3360 = vmin.f32 %v3040, 6.0
  %v3361 = vmin.f32 %v3041, 6.0
  %v3362 = vmin.f32 %v3042, 6.0
  %v3363 = vmin.f32 %v3043, 6.0
  %v3364 = vmin.f32 %v3044, 6.0
  %v3365 = vmin.f32 %v3045, 6.0
  %v3366 = vmin.f32 %v3046, 6.0
  %v3367 = vmin.f32 %v3047, 6.0
  %v3368 = vmin.f32 %v3048, 6.0
  %v3369 = vmin.f32 %v3049, 6.0
  %v3370 = vmin.f32 %v3050, 6.0
  %v3371 = vmin.f32 %v3051, 6.0
  %v3372 = vmin.f32 %v3052, 6.0
  %v3373 = vmin.f32 %v3053, 6.0
  %v3374 = vmin.f32 %v3054, 6.0
  %v3375 = vmin.f32 %v3055, 6.0
  %v3376 = vmin.f32 %v3056, 6.0
  %v3377 = vmin.f32 %v3057, 6.0
  %v3378 = vmin.f32 %v3058, 6.0
  %v3379 = vmin.f32 %v3059, 6.0
  %v3380 = vmin.f32 %v3060, 6.0
  %v3381 = vmin.f32 %v3061, 6.0
  %v3382 = vmin.f32 %v3062, 6.0
  %v3383 = vmin.f32 %v3063, 6.0
  %v3384 = vmin.f32 %v3064, 6.0
  %v3385 = vmin.f32 %v3065, 6.0
  %v3386 = vmin.f32 %v3066, 6.0
  %v3387 = vmin.f32 %v3067, 6.0
  %v3388 = vmin.f32 %v3068, 6.0
  %v3389 = vmin.f32 %v3069, 6.0
  %v3390 = vmin.f32 %v3070, 6.0
  %v3391 = vmin.f32 %v3071, 6.0
  %v3392 = vmin.f32 %v3072, 6.0
  %v3393 = vmin.f32 %v3073, 6.0
  %v3394 = vmin.f32 %v3074, 6.0
  %v3395 = vmin.f32 %v3075, 6.0
  %v3396 = vmin.f32 %v3076, 6.0
  %v3397 = vmin.f32 %v3077, 6.0
  %v3398 = vmin.f32 %v3078, 6.0
  %v3399 = vmin.f32 %v3079, 6.0
  %v3400 = vmin.f32 %v3080, 6.0
  %v3401 = vmin.f32 %v3081, 6.0
  %v3402 = vmin.f32 %v3082, 6.0
  %v3403 = vmin.f32 %v3083, 6.0
  %v3404 = vmin.f32 %v3084, 6.0
  %v3405 = vmin.f32 %v3085, 6.0
  %v3406 = vmin.f32 %v3086, 6.0
  %v3407 = vmin.f32 %v3087, 6.0
  %v3408 = vmin.f32 %v3088, 6.0
  %v3409 = vmin.f32 %v3089, 6.0
  %v3410 = vmin.f32 %v3090, 6.0
  %v3411 = vmin.f32 %v3091, 6.0
  %v3412 = vmin.f32 %v3092, 6.0
  %v3413 = vmin.f32 %v3093, 6.0
  %v3414 = vmin.f32 %v3094, 6.0
  %v3415 = vmin.f32 %v3095, 6.0
  %v3416 = vmin.f32 %v3096, 6.0
  %v3417 = vmin.f32 %v3097, 6.0
  %v3418 = vmin.f32 %v3098, 6.0
  %v3419 = vmin.f32 %v3099, 6.0
  %v3420 = vmin.f32 %v3100, 6.0
  %v3421 = vmin.f32 %v3101, 6.0
  %v3422 = vmin.f32 %v3102, 6.0
  %v3423 = vmin.f32 %v3103, 6.0
  %v3424 = vmin.f32 %v3104, 6.0
  %v3425 = vmin.f32 %v3105, 6.0
  %v3426 = vmin.f32 %v3106, 6.0
  %v3427 = vmin.f32 %v3107, 6.0
  %v3428 = vmin.f32 %v3108, 6.0
  %v3429 = vmin.f32 %v3109, 6.0
  %v3430 = vmin.f32 %v3110, 6.0
  %v3431 = vmin.f32 %v3111, 6.0
  %v3432 = vmin.f32 %v3112, 6.0
  %v3433 = vmin.f32 %v3113, 6.0
  %v3434 = vmin.f32 %v3114, 6.0
  %v3435 = vmin.f32 %v3115, 6.0
  %v3436 = vmin.f32 %v3116, 6.0
  %v3437 = vmin.f32 %v3117, 6.0
  %v3438 = vmin.f32 %v3118, 6.0
  %v3439 = vmin.f32 %v3119, 6.0
  %v3440 = vmin.f32 %v3120, 6.0
  %v3441 = vmin.f32 %v3121, 6.0
  %v3442 = vmin.f32 %v3122, 6.0
  %v3443 = vmin.f32 %v3123, 6.0
  %v3444 = vmin.f32 %v3124, 6.0
  %v3445 = vmin.f32 %v3125, 6.0
  %v3446 = vmin.f32 %v3126, 6.0
  %v3447 = vmin.f32 %v3127, 6.0
  %v3449 = vand.u32 %v522, %v1968
  %v3452 = vand.u32 %v523, %v1968
  %3454 = vmatprep.subr.bf16.mxu0 0
  %3455 = vmatpush1.bf16.msra.mxu0 0
  %3456 = vmatprep.subr.bf16.mxu0 0
  %3457 = vmatpush1.bf16.msra.mxu0 0
  %3458 = vmatprep.subr.bf16.mxu0 0
  %3459 = vmatpush1.bf16.msra.mxu0 0
  %3460 = vmatprep.subr.bf16.mxu0 0
  %3461 = vmatpush1.bf16.msra.mxu0 0
  %3462 = vmatprep.subr.bf16.mxu0 0
  %3463 = vmatpush1.bf16.msra.mxu0 0
  %3464 = vmatprep.subr.bf16.mxu0 0
  %3465 = vmatpush1.bf16.msra.mxu0 0
  %3466 = vmatprep.subr.bf16.mxu0 0
  %3467 = vmatpush1.bf16.msra.mxu0 0
  %3468 = vmatprep.subr.bf16.mxu0 %v3452
  %3469 = vmatpush1.bf16.msra.mxu0 %v3449
  %3470 = vmatprep.subr.bf16.mxu0 0
  %3471 = vmatpush2.bf16.msra.mxu0 0
  %3472 = vmatprep.subr.bf16.mxu0 0
  %3473 = vmatpush2.bf16.msra.mxu0 0
  %3474 = vmatprep.subr.bf16.mxu0 0
  %3475 = vmatpush2.bf16.msra.mxu0 0
  %3476 = vmatprep.subr.bf16.mxu0 0
  %3477 = vmatpush2.bf16.msra.mxu0 0
  %3478 = vmatprep.subr.bf16.mxu0 0
  %3479 = vmatpush2.bf16.msra.mxu0 0
  %3480 = vmatprep.subr.bf16.mxu0 0
  %3481 = vmatpush2.bf16.msra.mxu0 0
  %3482 = vmatprep.subr.bf16.mxu0 0
  %3483 = vmatpush2.bf16.msra.mxu0 0
  %3484 = vmatprep.subr.bf16.mxu0 0
  %3485 = vmatpush2.bf16.msra.mxu0 0
  %3486 = vmatprep.mubr.bf16.mxu0 0
  %3487 = vmatmul.mubr.bf16.gmra.mxu0 %v1726
  %v3488 = vpop.f32.mrf.mxu0
  %v3489 = vadd.f32 %v527, %v3488
  %v3490 = vpop.f32.mrf.mxu0
  %v3491 = vadd.f32 %v527, %v3490
  %v3492 = vpop.f32.mrf.mxu0
  %v3493 = vadd.f32 %v532, %v3492
  %v3494 = vpop.f32.mrf.mxu0
  %v3495 = vadd.f32 %v532, %v3494
  %3496 = vmatprep.mubr.bf16.mxu0 0
  %3497 = vmatmul.mubr.bf16.gmra.mxu0 %v1729
  %v3498 = vpop.f32.mrf.mxu0
  %v3499 = vadd.f32 %v537, %v3498
  %v3500 = vpop.f32.mrf.mxu0
  %v3501 = vadd.f32 %v537, %v3500
  %v3502 = vpop.f32.mrf.mxu0
  %v3503 = vadd.f32 %v542, %v3502
  %v3504 = vpop.f32.mrf.mxu0
  %v3505 = vadd.f32 %v542, %v3504
  %3506 = vmatprep.mubr.bf16.mxu0 0
  %3507 = vmatmul.mubr.bf16.gmra.mxu0 %v1732
  %v3508 = vpop.f32.mrf.mxu0
  %v3509 = vadd.f32 %v547, %v3508
  %v3510 = vpop.f32.mrf.mxu0
  %v3511 = vadd.f32 %v547, %v3510
  %v3512 = vpop.f32.mrf.mxu0
  %v3513 = vadd.f32 %v552, %v3512
  %v3514 = vpop.f32.mrf.mxu0
  %v3515 = vadd.f32 %v552, %v3514
  %3516 = vmatprep.mubr.bf16.mxu0 0
  %3517 = vmatmul.mubr.bf16.gmra.mxu0 %v1735
  %v3518 = vpop.f32.mrf.mxu0
  %v3519 = vadd.f32 %v557, %v3518
  %v3520 = vpop.f32.mrf.mxu0
  %v3521 = vadd.f32 %v557, %v3520
  %v3522 = vpop.f32.mrf.mxu0
  %v3523 = vadd.f32 %v562, %v3522
  %v3524 = vpop.f32.mrf.mxu0
  %v3525 = vadd.f32 %v562, %v3524
  %3526 = vmatprep.mubr.bf16.mxu0 0
  %3527 = vmatmul.mubr.bf16.gmra.mxu0 %v1738
  %v3528 = vpop.f32.mrf.mxu0
  %v3529 = vadd.f32 %v567, %v3528
  %v3530 = vpop.f32.mrf.mxu0
  %v3531 = vadd.f32 %v567, %v3530
  %v3532 = vpop.f32.mrf.mxu0
  %v3533 = vadd.f32 %v572, %v3532
  %v3534 = vpop.f32.mrf.mxu0
  %v3535 = vadd.f32 %v572, %v3534
  %3536 = vmatprep.mubr.bf16.mxu0 0
  %3537 = vmatmul.mubr.bf16.gmra.mxu0 %v1741
  %v3538 = vpop.f32.mrf.mxu0
  %v3539 = vadd.f32 %v577, %v3538
  %v3540 = vpop.f32.mrf.mxu0
  %v3541 = vadd.f32 %v577, %v3540
  %v3542 = vpop.f32.mrf.mxu0
  %v3543 = vadd.f32 %v582, %v3542
  %v3544 = vpop.f32.mrf.mxu0
  %v3545 = vadd.f32 %v582, %v3544
  %3546 = vmatprep.mubr.bf16.mxu0 0
  %3547 = vmatmul.mubr.bf16.gmra.mxu0 %v1744
  %v3548 = vpop.f32.mrf.mxu0
  %v3549 = vadd.f32 %v587, %v3548
  %v3550 = vpop.f32.mrf.mxu0
  %v3551 = vadd.f32 %v587, %v3550
  %v3552 = vpop.f32.mrf.mxu0
  %v3553 = vadd.f32 %v592, %v3552
  %v3554 = vpop.f32.mrf.mxu0
  %v3555 = vadd.f32 %v592, %v3554
  %3556 = vmatprep.mubr.bf16.mxu0 0
  %3557 = vmatmul.mubr.bf16.gmra.mxu0 %v1747
  %v3558 = vpop.f32.mrf.mxu0
  %v3559 = vadd.f32 %v597, %v3558
  %v3560 = vpop.f32.mrf.mxu0
  %v3561 = vadd.f32 %v597, %v3560
  %v3562 = vpop.f32.mrf.mxu0
  %v3563 = vadd.f32 %v602, %v3562
  %v3564 = vpop.f32.mrf.mxu0
  %v3565 = vadd.f32 %v602, %v3564
  %3566 = vmatprep.mubr.bf16.mxu0 0
  %3567 = vmatmul.mubr.bf16.gmra.mxu0 %v1750
  %v3568 = vpop.f32.mrf.mxu0
  %v3569 = vadd.f32 %v607, %v3568
  %v3570 = vpop.f32.mrf.mxu0
  %v3571 = vadd.f32 %v607, %v3570
  %v3572 = vpop.f32.mrf.mxu0
  %v3573 = vadd.f32 %v612, %v3572
  %v3574 = vpop.f32.mrf.mxu0
  %v3575 = vadd.f32 %v612, %v3574
  %3576 = vmatprep.mubr.bf16.mxu0 0
  %3577 = vmatmul.mubr.bf16.gmra.mxu0 %v1753
  %v3578 = vpop.f32.mrf.mxu0
  %v3579 = vadd.f32 %v617, %v3578
  %v3580 = vpop.f32.mrf.mxu0
  %v3581 = vadd.f32 %v617, %v3580
  %v3582 = vpop.f32.mrf.mxu0
  %v3583 = vadd.f32 %v622, %v3582
  %v3584 = vpop.f32.mrf.mxu0
  %v3585 = vadd.f32 %v622, %v3584
  %3586 = vmatprep.mubr.bf16.mxu0 0
  %3587 = vmatmul.mubr.bf16.gmra.mxu0 %v1756
  %v3588 = vpop.f32.mrf.mxu0
  %v3589 = vadd.f32 %v627, %v3588
  %v3590 = vpop.f32.mrf.mxu0
  %v3591 = vadd.f32 %v627, %v3590
  %v3592 = vpop.f32.mrf.mxu0
  %v3593 = vadd.f32 %v632, %v3592
  %v3594 = vpop.f32.mrf.mxu0
  %v3595 = vadd.f32 %v632, %v3594
  %3596 = vmatprep.mubr.bf16.mxu0 0
  %3597 = vmatmul.mubr.bf16.gmra.mxu0 %v1759
  %v3598 = vpop.f32.mrf.mxu0
  %v3599 = vadd.f32 %v637, %v3598
  %v3600 = vpop.f32.mrf.mxu0
  %v3601 = vadd.f32 %v637, %v3600
  %v3602 = vpop.f32.mrf.mxu0
  %v3603 = vadd.f32 %v642, %v3602
  %v3604 = vpop.f32.mrf.mxu0
  %v3605 = vadd.f32 %v642, %v3604
  %3606 = vmatprep.mubr.bf16.mxu0 0
  %3607 = vmatmul.mubr.bf16.gmra.mxu0 %v1762
  %v3608 = vpop.f32.mrf.mxu0
  %v3609 = vadd.f32 %v647, %v3608
  %v3610 = vpop.f32.mrf.mxu0
  %v3611 = vadd.f32 %v647, %v3610
  %v3612 = vpop.f32.mrf.mxu0
  %v3613 = vadd.f32 %v652, %v3612
  %v3614 = vpop.f32.mrf.mxu0
  %v3615 = vadd.f32 %v652, %v3614
  %3616 = vmatprep.mubr.bf16.mxu0 0
  %3617 = vmatmul.mubr.bf16.gmra.mxu0 %v1765
  %v3618 = vpop.f32.mrf.mxu0
  %v3619 = vadd.f32 %v657, %v3618
  %v3620 = vpop.f32.mrf.mxu0
  %v3621 = vadd.f32 %v657, %v3620
  %v3622 = vpop.f32.mrf.mxu0
  %v3623 = vadd.f32 %v662, %v3622
  %v3624 = vpop.f32.mrf.mxu0
  %v3625 = vadd.f32 %v662, %v3624
  %3626 = vmatprep.mubr.bf16.mxu0 0
  %3627 = vmatmul.mubr.bf16.gmra.mxu0 %v1768
  %v3628 = vpop.f32.mrf.mxu0
  %v3629 = vadd.f32 %v667, %v3628
  %v3630 = vpop.f32.mrf.mxu0
  %v3631 = vadd.f32 %v667, %v3630
  %v3632 = vpop.f32.mrf.mxu0
  %v3633 = vadd.f32 %v672, %v3632
  %v3634 = vpop.f32.mrf.mxu0
  %v3635 = vadd.f32 %v672, %v3634
  %3636 = vmatprep.mubr.bf16.mxu0 0
  %3637 = vmatmul.mubr.bf16.gmra.mxu0 %v1771
  %v3638 = vpop.f32.mrf.mxu0
  %v3639 = vadd.f32 %v677, %v3638
  %v3640 = vpop.f32.mrf.mxu0
  %v3641 = vadd.f32 %v677, %v3640
  %v3642 = vpop.f32.mrf.mxu0
  %v3643 = vadd.f32 %v682, %v3642
  %v3644 = vpop.f32.mrf.mxu0
  %v3645 = vadd.f32 %v682, %v3644
  %3646 = vmatprep.mubr.bf16.mxu0 0
  %3647 = vmatmul.mubr.bf16.gmra.mxu0 %v1774
  %v3648 = vpop.f32.mrf.mxu0
  %v3649 = vadd.f32 %v687, %v3648
  %v3650 = vpop.f32.mrf.mxu0
  %v3651 = vadd.f32 %v687, %v3650
  %v3652 = vpop.f32.mrf.mxu0
  %v3653 = vadd.f32 %v692, %v3652
  %v3654 = vpop.f32.mrf.mxu0
  %v3655 = vadd.f32 %v692, %v3654
  %3656 = vmatprep.mubr.bf16.mxu0 0
  %3657 = vmatmul.mubr.bf16.gmra.mxu0 %v1777
  %v3658 = vpop.f32.mrf.mxu0
  %v3659 = vadd.f32 %v697, %v3658
  %v3660 = vpop.f32.mrf.mxu0
  %v3661 = vadd.f32 %v697, %v3660
  %v3662 = vpop.f32.mrf.mxu0
  %v3663 = vadd.f32 %v702, %v3662
  %v3664 = vpop.f32.mrf.mxu0
  %v3665 = vadd.f32 %v702, %v3664
  %3666 = vmatprep.mubr.bf16.mxu0 0
  %3667 = vmatmul.mubr.bf16.gmra.mxu0 %v1780
  %v3668 = vpop.f32.mrf.mxu0
  %v3669 = vadd.f32 %v707, %v3668
  %v3670 = vpop.f32.mrf.mxu0
  %v3671 = vadd.f32 %v707, %v3670
  %v3672 = vpop.f32.mrf.mxu0
  %v3673 = vadd.f32 %v712, %v3672
  %v3674 = vpop.f32.mrf.mxu0
  %v3675 = vadd.f32 %v712, %v3674
  %3676 = vmatprep.mubr.bf16.mxu0 0
  %3677 = vmatmul.mubr.bf16.gmra.mxu0 %v1783
  %v3678 = vpop.f32.mrf.mxu0
  %v3679 = vadd.f32 %v717, %v3678
  %v3680 = vpop.f32.mrf.mxu0
  %v3681 = vadd.f32 %v717, %v3680
  %v3682 = vpop.f32.mrf.mxu0
  %v3683 = vadd.f32 %v722, %v3682
  %v3684 = vpop.f32.mrf.mxu0
  %v3685 = vadd.f32 %v722, %v3684
  %3686 = vmatprep.mubr.bf16.mxu0 0
  %3687 = vmatmul.mubr.bf16.gmra.mxu0 %v1786
  %v3688 = vpop.f32.mrf.mxu0
  %v3689 = vadd.f32 %v727, %v3688
  %v3690 = vpop.f32.mrf.mxu0
  %v3691 = vadd.f32 %v727, %v3690
  %v3692 = vpop.f32.mrf.mxu0
  %v3693 = vadd.f32 %v732, %v3692
  %v3694 = vpop.f32.mrf.mxu0
  %v3695 = vadd.f32 %v732, %v3694
  %3696 = vmatprep.mubr.bf16.mxu0 0
  %3697 = vmatmul.mubr.bf16.gmra.mxu0 %v1789
  %v3698 = vpop.f32.mrf.mxu0
  %v3699 = vadd.f32 %v737, %v3698
  %v3700 = vpop.f32.mrf.mxu0
  %v3701 = vadd.f32 %v737, %v3700
  %v3702 = vpop.f32.mrf.mxu0
  %v3703 = vadd.f32 %v742, %v3702
  %v3704 = vpop.f32.mrf.mxu0
  %v3705 = vadd.f32 %v742, %v3704
  %3706 = vmatprep.mubr.bf16.mxu0 0
  %3707 = vmatmul.mubr.bf16.gmra.mxu0 %v1792
  %v3708 = vpop.f32.mrf.mxu0
  %v3709 = vadd.f32 %v747, %v3708
  %v3710 = vpop.f32.mrf.mxu0
  %v3711 = vadd.f32 %v747, %v3710
  %v3712 = vpop.f32.mrf.mxu0
  %v3713 = vadd.f32 %v752, %v3712
  %v3714 = vpop.f32.mrf.mxu0
  %v3715 = vadd.f32 %v752, %v3714
  %3716 = vmatprep.mubr.bf16.mxu0 0
  %3717 = vmatmul.mubr.bf16.gmra.mxu0 %v1795
  %v3718 = vpop.f32.mrf.mxu0
  %v3719 = vadd.f32 %v757, %v3718
  %v3720 = vpop.f32.mrf.mxu0
  %v3721 = vadd.f32 %v757, %v3720
  %v3722 = vpop.f32.mrf.mxu0
  %v3723 = vadd.f32 %v762, %v3722
  %v3724 = vpop.f32.mrf.mxu0
  %v3725 = vadd.f32 %v762, %v3724
  %3726 = vmatprep.mubr.bf16.mxu0 0
  %3727 = vmatmul.mubr.bf16.gmra.mxu0 %v1798
  %v3728 = vpop.f32.mrf.mxu0
  %v3729 = vadd.f32 %v767, %v3728
  %v3730 = vpop.f32.mrf.mxu0
  %v3731 = vadd.f32 %v767, %v3730
  %v3732 = vpop.f32.mrf.mxu0
  %v3733 = vadd.f32 %v772, %v3732
  %v3734 = vpop.f32.mrf.mxu0
  %v3735 = vadd.f32 %v772, %v3734
  %3736 = vmatprep.mubr.bf16.mxu0 0
  %3737 = vmatmul.mubr.bf16.gmra.mxu0 %v1801
  %v3738 = vpop.f32.mrf.mxu0
  %v3739 = vadd.f32 %v777, %v3738
  %v3740 = vpop.f32.mrf.mxu0
  %v3741 = vadd.f32 %v777, %v3740
  %v3742 = vpop.f32.mrf.mxu0
  %v3743 = vadd.f32 %v782, %v3742
  %v3744 = vpop.f32.mrf.mxu0
  %v3745 = vadd.f32 %v782, %v3744
  %3746 = vmatprep.mubr.bf16.mxu0 0
  %3747 = vmatmul.mubr.bf16.gmra.mxu0 %v1804
  %v3748 = vpop.f32.mrf.mxu0
  %v3749 = vadd.f32 %v787, %v3748
  %v3750 = vpop.f32.mrf.mxu0
  %v3751 = vadd.f32 %v787, %v3750
  %v3752 = vpop.f32.mrf.mxu0
  %v3753 = vadd.f32 %v792, %v3752
  %v3754 = vpop.f32.mrf.mxu0
  %v3755 = vadd.f32 %v792, %v3754
  %3756 = vmatprep.mubr.bf16.mxu0 0
  %3757 = vmatmul.mubr.bf16.gmra.mxu0 %v1807
  %v3758 = vpop.f32.mrf.mxu0
  %v3759 = vadd.f32 %v797, %v3758
  %v3760 = vpop.f32.mrf.mxu0
  %v3761 = vadd.f32 %v797, %v3760
  %v3762 = vpop.f32.mrf.mxu0
  %v3763 = vadd.f32 %v802, %v3762
  %v3764 = vpop.f32.mrf.mxu0
  %v3765 = vadd.f32 %v802, %v3764
  %3766 = vmatprep.mubr.bf16.mxu0 0
  %3767 = vmatmul.mubr.bf16.gmra.mxu0 %v1810
  %v3768 = vpop.f32.mrf.mxu0
  %v3769 = vadd.f32 %v807, %v3768
  %v3770 = vpop.f32.mrf.mxu0
  %v3771 = vadd.f32 %v807, %v3770
  %v3772 = vpop.f32.mrf.mxu0
  %v3773 = vadd.f32 %v812, %v3772
  %v3774 = vpop.f32.mrf.mxu0
  %v3775 = vadd.f32 %v812, %v3774
  %3776 = vmatprep.mubr.bf16.mxu0 0
  %3777 = vmatmul.mubr.bf16.gmra.mxu0 %v1813
  %v3778 = vpop.f32.mrf.mxu0
  %v3779 = vadd.f32 %v817, %v3778
  %v3780 = vpop.f32.mrf.mxu0
  %v3781 = vadd.f32 %v817, %v3780
  %v3782 = vpop.f32.mrf.mxu0
  %v3783 = vadd.f32 %v822, %v3782
  %v3784 = vpop.f32.mrf.mxu0
  %v3785 = vadd.f32 %v822, %v3784
  %3786 = vmatprep.mubr.bf16.mxu0 0
  %3787 = vmatmul.mubr.bf16.gmra.mxu0 %v1816
  %v3788 = vpop.f32.mrf.mxu0
  %v3789 = vadd.f32 %v827, %v3788
  %v3790 = vpop.f32.mrf.mxu0
  %v3791 = vadd.f32 %v827, %v3790
  %v3792 = vpop.f32.mrf.mxu0
  %v3793 = vadd.f32 %v832, %v3792
  %v3794 = vpop.f32.mrf.mxu0
  %v3795 = vadd.f32 %v832, %v3794
  %3796 = vmatprep.mubr.bf16.mxu0 0
  %3797 = vmatmul.mubr.bf16.gmra.mxu0 %v1819
  %v3798 = vpop.f32.mrf.mxu0
  %v3799 = vadd.f32 %v837, %v3798
  %v3800 = vpop.f32.mrf.mxu0
  %v3801 = vadd.f32 %v837, %v3800
  %v3802 = vpop.f32.mrf.mxu0
  %v3803 = vadd.f32 %v842, %v3802
  %v3804 = vpop.f32.mrf.mxu0
  %v3805 = vadd.f32 %v842, %v3804
  %3806 = vmatprep.mubr.bf16.mxu0 0
  %3807 = vmatmul.mubr.bf16.gmra.mxu0 %v1822
  %v3808 = vpop.f32.mrf.mxu0
  %v3809 = vadd.f32 %v847, %v3808
  %v3810 = vpop.f32.mrf.mxu0
  %v3811 = vadd.f32 %v847, %v3810
  %v3812 = vpop.f32.mrf.mxu0
  %v3813 = vadd.f32 %v852, %v3812
  %v3814 = vpop.f32.mrf.mxu0
  %v3815 = vadd.f32 %v852, %v3814
  %3816 = vmatprep.mubr.bf16.mxu0 0
  %3817 = vmatmul.mubr.bf16.gmra.mxu0 %v1825
  %v3818 = vpop.f32.mrf.mxu0
  %v3819 = vadd.f32 %v857, %v3818
  %v3820 = vpop.f32.mrf.mxu0
  %v3821 = vadd.f32 %v857, %v3820
  %v3822 = vpop.f32.mrf.mxu0
  %v3823 = vadd.f32 %v862, %v3822
  %v3824 = vpop.f32.mrf.mxu0
  %v3825 = vadd.f32 %v862, %v3824
  %3826 = vmatprep.mubr.bf16.mxu0 0
  %3827 = vmatmul.mubr.bf16.gmra.mxu0 %v1828
  %v3828 = vpop.f32.mrf.mxu0
  %v3829 = vadd.f32 %v867, %v3828
  %v3830 = vpop.f32.mrf.mxu0
  %v3831 = vadd.f32 %v867, %v3830
  %v3832 = vpop.f32.mrf.mxu0
  %v3833 = vadd.f32 %v872, %v3832
  %v3834 = vpop.f32.mrf.mxu0
  %v3835 = vadd.f32 %v872, %v3834
  %3836 = vmatprep.mubr.bf16.mxu0 0
  %3837 = vmatmul.mubr.bf16.gmra.mxu0 %v1831
  %v3838 = vpop.f32.mrf.mxu0
  %v3839 = vadd.f32 %v877, %v3838
  %v3840 = vpop.f32.mrf.mxu0
  %v3841 = vadd.f32 %v877, %v3840
  %v3842 = vpop.f32.mrf.mxu0
  %v3843 = vadd.f32 %v882, %v3842
  %v3844 = vpop.f32.mrf.mxu0
  %v3845 = vadd.f32 %v882, %v3844
  %3846 = vmatprep.mubr.bf16.mxu0 0
  %3847 = vmatmul.mubr.bf16.gmra.mxu0 %v1834
  %v3848 = vpop.f32.mrf.mxu0
  %v3849 = vadd.f32 %v887, %v3848
  %v3850 = vpop.f32.mrf.mxu0
  %v3851 = vadd.f32 %v887, %v3850
  %v3852 = vpop.f32.mrf.mxu0
  %v3853 = vadd.f32 %v892, %v3852
  %v3854 = vpop.f32.mrf.mxu0
  %v3855 = vadd.f32 %v892, %v3854
  %3856 = vmatprep.mubr.bf16.mxu0 0
  %3857 = vmatmul.mubr.bf16.gmra.mxu0 %v1837
  %v3858 = vpop.f32.mrf.mxu0
  %v3859 = vadd.f32 %v897, %v3858
  %v3860 = vpop.f32.mrf.mxu0
  %v3861 = vadd.f32 %v897, %v3860
  %v3862 = vpop.f32.mrf.mxu0
  %v3863 = vadd.f32 %v902, %v3862
  %v3864 = vpop.f32.mrf.mxu0
  %v3865 = vadd.f32 %v902, %v3864
  %3866 = vmatprep.mubr.bf16.mxu0 0
  %3867 = vmatmul.mubr.bf16.gmra.mxu0 %v1840
  %v3868 = vpop.f32.mrf.mxu0
  %v3869 = vadd.f32 %v907, %v3868
  %v3870 = vpop.f32.mrf.mxu0
  %v3871 = vadd.f32 %v907, %v3870
  %v3872 = vpop.f32.mrf.mxu0
  %v3873 = vadd.f32 %v912, %v3872
  %v3874 = vpop.f32.mrf.mxu0
  %v3875 = vadd.f32 %v912, %v3874
  %3876 = vmatprep.mubr.bf16.mxu0 0
  %3877 = vmatmul.mubr.bf16.gmra.mxu0 %v1843
  %v3878 = vpop.f32.mrf.mxu0
  %v3879 = vadd.f32 %v917, %v3878
  %v3880 = vpop.f32.mrf.mxu0
  %v3881 = vadd.f32 %v917, %v3880
  %v3882 = vpop.f32.mrf.mxu0
  %v3883 = vadd.f32 %v922, %v3882
  %v3884 = vpop.f32.mrf.mxu0
  %v3885 = vadd.f32 %v922, %v3884
  %3886 = vmatprep.mubr.bf16.mxu0 0
  %3887 = vmatmul.mubr.bf16.gmra.mxu0 %v1846
  %v3888 = vpop.f32.mrf.mxu0
  %v3889 = vadd.f32 %v927, %v3888
  %v3890 = vpop.f32.mrf.mxu0
  %v3891 = vadd.f32 %v927, %v3890
  %v3892 = vpop.f32.mrf.mxu0
  %v3893 = vadd.f32 %v932, %v3892
  %v3894 = vpop.f32.mrf.mxu0
  %v3895 = vadd.f32 %v932, %v3894
  %3896 = vmatprep.mubr.bf16.mxu0 0
  %3897 = vmatmul.mubr.bf16.gmra.mxu0 %v1849
  %v3898 = vpop.f32.mrf.mxu0
  %v3899 = vadd.f32 %v937, %v3898
  %v3900 = vpop.f32.mrf.mxu0
  %v3901 = vadd.f32 %v937, %v3900
  %v3902 = vpop.f32.mrf.mxu0
  %v3903 = vadd.f32 %v942, %v3902
  %v3904 = vpop.f32.mrf.mxu0
  %v3905 = vadd.f32 %v942, %v3904
  %3906 = vmatprep.mubr.bf16.mxu0 0
  %3907 = vmatmul.mubr.bf16.gmra.mxu0 %v1852
  %v3908 = vpop.f32.mrf.mxu0
  %v3909 = vadd.f32 %v947, %v3908
  %v3910 = vpop.f32.mrf.mxu0
  %v3911 = vadd.f32 %v947, %v3910
  %v3912 = vpop.f32.mrf.mxu0
  %v3913 = vadd.f32 %v952, %v3912
  %v3914 = vpop.f32.mrf.mxu0
  %v3915 = vadd.f32 %v952, %v3914
  %3916 = vmatprep.mubr.bf16.mxu0 0
  %3917 = vmatmul.mubr.bf16.gmra.mxu0 %v1855
  %v3918 = vpop.f32.mrf.mxu0
  %v3919 = vadd.f32 %v957, %v3918
  %v3920 = vpop.f32.mrf.mxu0
  %v3921 = vadd.f32 %v957, %v3920
  %v3922 = vpop.f32.mrf.mxu0
  %v3923 = vadd.f32 %v962, %v3922
  %v3924 = vpop.f32.mrf.mxu0
  %v3925 = vadd.f32 %v962, %v3924
  %3926 = vmatprep.mubr.bf16.mxu0 0
  %3927 = vmatmul.mubr.bf16.gmra.mxu0 %v1858
  %v3928 = vpop.f32.mrf.mxu0
  %v3929 = vadd.f32 %v967, %v3928
  %v3930 = vpop.f32.mrf.mxu0
  %v3931 = vadd.f32 %v967, %v3930
  %v3932 = vpop.f32.mrf.mxu0
  %v3933 = vadd.f32 %v972, %v3932
  %v3934 = vpop.f32.mrf.mxu0
  %v3935 = vadd.f32 %v972, %v3934
  %3936 = vmatprep.mubr.bf16.mxu0 0
  %3937 = vmatmul.mubr.bf16.gmra.mxu0 %v1861
  %v3938 = vpop.f32.mrf.mxu0
  %v3939 = vadd.f32 %v977, %v3938
  %v3940 = vpop.f32.mrf.mxu0
  %v3941 = vadd.f32 %v977, %v3940
  %v3942 = vpop.f32.mrf.mxu0
  %v3943 = vadd.f32 %v982, %v3942
  %v3944 = vpop.f32.mrf.mxu0
  %v3945 = vadd.f32 %v982, %v3944
  %3946 = vmatprep.mubr.bf16.mxu0 0
  %3947 = vmatmul.mubr.bf16.gmra.mxu0 %v1864
  %v3948 = vpop.f32.mrf.mxu0
  %v3949 = vadd.f32 %v987, %v3948
  %v3950 = vpop.f32.mrf.mxu0
  %v3951 = vadd.f32 %v987, %v3950
  %v3952 = vpop.f32.mrf.mxu0
  %v3953 = vadd.f32 %v992, %v3952
  %v3954 = vpop.f32.mrf.mxu0
  %v3955 = vadd.f32 %v992, %v3954
  %3956 = vmatprep.mubr.bf16.mxu0 0
  %3957 = vmatmul.mubr.bf16.gmra.mxu0 %v1867
  %v3958 = vpop.f32.mrf.mxu0
  %v3959 = vadd.f32 %v997, %v3958
  %v3960 = vpop.f32.mrf.mxu0
  %v3961 = vadd.f32 %v997, %v3960
  %v3962 = vpop.f32.mrf.mxu0
  %v3963 = vadd.f32 %v1002, %v3962
  %v3964 = vpop.f32.mrf.mxu0
  %v3965 = vadd.f32 %v1002, %v3964
  %3966 = vmatprep.mubr.bf16.mxu0 0
  %3967 = vmatmul.mubr.bf16.gmra.mxu0 %v1870
  %v3968 = vpop.f32.mrf.mxu0
  %v3969 = vadd.f32 %v1007, %v3968
  %v3970 = vpop.f32.mrf.mxu0
  %v3971 = vadd.f32 %v1007, %v3970
  %v3972 = vpop.f32.mrf.mxu0
  %v3973 = vadd.f32 %v1012, %v3972
  %v3974 = vpop.f32.mrf.mxu0
  %v3975 = vadd.f32 %v1012, %v3974
  %3976 = vmatprep.mubr.bf16.mxu0 0
  %3977 = vmatmul.mubr.bf16.gmra.mxu0 %v1873
  %v3978 = vpop.f32.mrf.mxu0
  %v3979 = vadd.f32 %v1017, %v3978
  %v3980 = vpop.f32.mrf.mxu0
  %v3981 = vadd.f32 %v1017, %v3980
  %v3982 = vpop.f32.mrf.mxu0
  %v3983 = vadd.f32 %v1022, %v3982
  %v3984 = vpop.f32.mrf.mxu0
  %v3985 = vadd.f32 %v1022, %v3984
  %3986 = vmatprep.mubr.bf16.mxu0 0
  %3987 = vmatmul.mubr.bf16.gmra.mxu0 %v1876
  %v3988 = vpop.f32.mrf.mxu0
  %v3989 = vadd.f32 %v1027, %v3988
  %v3990 = vpop.f32.mrf.mxu0
  %v3991 = vadd.f32 %v1027, %v3990
  %v3992 = vpop.f32.mrf.mxu0
  %v3993 = vadd.f32 %v1032, %v3992
  %v3994 = vpop.f32.mrf.mxu0
  %v3995 = vadd.f32 %v1032, %v3994
  %3996 = vmatprep.mubr.bf16.mxu0 0
  %3997 = vmatmul.mubr.bf16.gmra.mxu0 %v1879
  %v3998 = vpop.f32.mrf.mxu0
  %v3999 = vadd.f32 %v1037, %v3998
  %v4000 = vpop.f32.mrf.mxu0
  %v4001 = vadd.f32 %v1037, %v4000
  %v4002 = vpop.f32.mrf.mxu0
  %v4003 = vadd.f32 %v1042, %v4002
  %v4004 = vpop.f32.mrf.mxu0
  %v4005 = vadd.f32 %v1042, %v4004
  %4006 = vmatprep.mubr.bf16.mxu0 0
  %4007 = vmatmul.mubr.bf16.gmra.mxu0 %v1882
  %v4008 = vpop.f32.mrf.mxu0
  %v4009 = vadd.f32 %v1047, %v4008
  %v4010 = vpop.f32.mrf.mxu0
  %v4011 = vadd.f32 %v1047, %v4010
  %v4012 = vpop.f32.mrf.mxu0
  %v4013 = vadd.f32 %v1052, %v4012
  %v4014 = vpop.f32.mrf.mxu0
  %v4015 = vadd.f32 %v1052, %v4014
  %4016 = vmatprep.mubr.bf16.mxu0 0
  %4017 = vmatmul.mubr.bf16.gmra.mxu0 %v1885
  %v4018 = vpop.f32.mrf.mxu0
  %v4019 = vadd.f32 %v1057, %v4018
  %v4020 = vpop.f32.mrf.mxu0
  %v4021 = vadd.f32 %v1057, %v4020
  %v4022 = vpop.f32.mrf.mxu0
  %v4023 = vadd.f32 %v1062, %v4022
  %v4024 = vpop.f32.mrf.mxu0
  %v4025 = vadd.f32 %v1062, %v4024
  %4026 = vmatprep.mubr.bf16.mxu0 0
  %4027 = vmatmul.mubr.bf16.gmra.mxu0 %v1888
  %v4028 = vpop.f32.mrf.mxu0
  %v4029 = vadd.f32 %v1067, %v4028
  %v4030 = vpop.f32.mrf.mxu0
  %v4031 = vadd.f32 %v1067, %v4030
  %v4032 = vpop.f32.mrf.mxu0
  %v4033 = vadd.f32 %v1072, %v4032
  %v4034 = vpop.f32.mrf.mxu0
  %v4035 = vadd.f32 %v1072, %v4034
  %4036 = vmatprep.mubr.bf16.mxu0 0
  %4037 = vmatmul.mubr.bf16.gmra.mxu0 %v1891
  %v4038 = vpop.f32.mrf.mxu0
  %v4039 = vadd.f32 %v1077, %v4038
  %v4040 = vpop.f32.mrf.mxu0
  %v4041 = vadd.f32 %v1077, %v4040
  %v4042 = vpop.f32.mrf.mxu0
  %v4043 = vadd.f32 %v1082, %v4042
  %v4044 = vpop.f32.mrf.mxu0
  %v4045 = vadd.f32 %v1082, %v4044
  %4046 = vmatprep.mubr.bf16.mxu0 0
  %4047 = vmatmul.mubr.bf16.gmra.mxu0 %v1894
  %v4048 = vpop.f32.mrf.mxu0
  %v4049 = vadd.f32 %v1087, %v4048
  %v4050 = vpop.f32.mrf.mxu0
  %v4051 = vadd.f32 %v1087, %v4050
  %v4052 = vpop.f32.mrf.mxu0
  %v4053 = vadd.f32 %v1092, %v4052
  %v4054 = vpop.f32.mrf.mxu0
  %v4055 = vadd.f32 %v1092, %v4054
  %4056 = vmatprep.mubr.bf16.mxu0 0
  %4057 = vmatmul.mubr.bf16.gmra.mxu0 %v1897
  %v4058 = vpop.f32.mrf.mxu0
  %v4059 = vadd.f32 %v1097, %v4058
  %v4060 = vpop.f32.mrf.mxu0
  %v4061 = vadd.f32 %v1097, %v4060
  %v4062 = vpop.f32.mrf.mxu0
  %v4063 = vadd.f32 %v1102, %v4062
  %v4064 = vpop.f32.mrf.mxu0
  %v4065 = vadd.f32 %v1102, %v4064
  %4066 = vmatprep.mubr.bf16.mxu0 0
  %4067 = vmatmul.mubr.bf16.gmra.mxu0 %v1900
  %v4068 = vpop.f32.mrf.mxu0
  %v4069 = vadd.f32 %v1107, %v4068
  %v4070 = vpop.f32.mrf.mxu0
  %v4071 = vadd.f32 %v1107, %v4070
  %v4072 = vpop.f32.mrf.mxu0
  %v4073 = vadd.f32 %v1112, %v4072
  %v4074 = vpop.f32.mrf.mxu0
  %v4075 = vadd.f32 %v1112, %v4074
  %4076 = vmatprep.mubr.bf16.mxu0 0
  %4077 = vmatmul.mubr.bf16.gmra.mxu0 %v1903
  %v4078 = vpop.f32.mrf.mxu0
  %v4079 = vadd.f32 %v1117, %v4078
  %v4080 = vpop.f32.mrf.mxu0
  %v4081 = vadd.f32 %v1117, %v4080
  %v4082 = vpop.f32.mrf.mxu0
  %v4083 = vadd.f32 %v1122, %v4082
  %v4084 = vpop.f32.mrf.mxu0
  %v4085 = vadd.f32 %v1122, %v4084
  %4086 = vmatprep.mubr.bf16.mxu0 0
  %4087 = vmatmul.mubr.bf16.gmra.mxu0 %v1906
  %v4088 = vpop.f32.mrf.mxu0
  %v4089 = vadd.f32 %v1127, %v4088
  %v4090 = vpop.f32.mrf.mxu0
  %v4091 = vadd.f32 %v1127, %v4090
  %v4092 = vpop.f32.mrf.mxu0
  %v4093 = vadd.f32 %v1132, %v4092
  %v4094 = vpop.f32.mrf.mxu0
  %v4095 = vadd.f32 %v1132, %v4094
  %4096 = vmatprep.mubr.bf16.mxu0 0
  %4097 = vmatmul.mubr.bf16.gmra.mxu0 %v1909
  %v4098 = vpop.f32.mrf.mxu0
  %v4099 = vadd.f32 %v1137, %v4098
  %v4100 = vpop.f32.mrf.mxu0
  %v4101 = vadd.f32 %v1137, %v4100
  %v4102 = vpop.f32.mrf.mxu0
  %v4103 = vadd.f32 %v1142, %v4102
  %v4104 = vpop.f32.mrf.mxu0
  %v4105 = vadd.f32 %v1142, %v4104
  %4106 = vmatprep.mubr.bf16.mxu0 0
  %4107 = vmatmul.mubr.bf16.gmra.mxu0 %v1912
  %v4108 = vpop.f32.mrf.mxu0
  %v4109 = vadd.f32 %v1147, %v4108
  %v4110 = vpop.f32.mrf.mxu0
  %v4111 = vadd.f32 %v1147, %v4110
  %v4112 = vpop.f32.mrf.mxu0
  %v4113 = vadd.f32 %v1152, %v4112
  %v4114 = vpop.f32.mrf.mxu0
  %v4115 = vadd.f32 %v1152, %v4114
  %4116 = vmatprep.mubr.bf16.mxu0 0
  %4117 = vmatmul.mubr.bf16.gmra.mxu0 %v1915
  %v4118 = vpop.f32.mrf.mxu0
  %v4119 = vadd.f32 %v1157, %v4118
  %v4120 = vpop.f32.mrf.mxu0
  %v4121 = vadd.f32 %v1157, %v4120
  %v4122 = vpop.f32.mrf.mxu0
  %v4123 = vadd.f32 %v1162, %v4122
  %v4124 = vpop.f32.mrf.mxu0
  %v4125 = vadd.f32 %v1162, %v4124
  %4126 = vmatprep.mubr.bf16.mxu0 0
  %4127 = vmatmul.mubr.bf16.gmra.mxu0 %v1918
  %v4128 = vpop.f32.mrf.mxu0
  %v4129 = vadd.f32 %v1167, %v4128
  %v4130 = vpop.f32.mrf.mxu0
  %v4131 = vadd.f32 %v1167, %v4130
  %v4132 = vpop.f32.mrf.mxu0
  %v4133 = vadd.f32 %v1172, %v4132
  %v4134 = vpop.f32.mrf.mxu0
  %v4135 = vadd.f32 %v1172, %v4134
  %4136 = vmatprep.mubr.bf16.mxu0 0
  %4137 = vmatmul.mubr.bf16.gmra.mxu0 %v1921
  %v4138 = vpop.f32.mrf.mxu0
  %v4139 = vadd.f32 %v1177, %v4138
  %v4140 = vpop.f32.mrf.mxu0
  %v4141 = vadd.f32 %v1177, %v4140
  %v4142 = vpop.f32.mrf.mxu0
  %v4143 = vadd.f32 %v1182, %v4142
  %v4144 = vpop.f32.mrf.mxu0
  %v4145 = vadd.f32 %v1182, %v4144
  %4146 = vmatprep.mubr.bf16.mxu0 0
  %4147 = vmatmul.mubr.bf16.gmra.mxu0 %v1924
  %v4148 = vpop.f32.mrf.mxu0
  %v4149 = vadd.f32 %v1187, %v4148
  %v4150 = vpop.f32.mrf.mxu0
  %v4151 = vadd.f32 %v1187, %v4150
  %v4152 = vpop.f32.mrf.mxu0
  %v4153 = vadd.f32 %v1192, %v4152
  %v4154 = vpop.f32.mrf.mxu0
  %v4155 = vadd.f32 %v1192, %v4154
  %4156 = vmatprep.mubr.bf16.mxu0 0
  %4157 = vmatmul.mubr.bf16.gmra.mxu0 %v1927
  %v4158 = vpop.f32.mrf.mxu0
  %v4159 = vadd.f32 %v1197, %v4158
  %v4160 = vpop.f32.mrf.mxu0
  %v4161 = vadd.f32 %v1197, %v4160
  %v4162 = vpop.f32.mrf.mxu0
  %v4163 = vadd.f32 %v1202, %v4162
  %v4164 = vpop.f32.mrf.mxu0
  %v4165 = vadd.f32 %v1202, %v4164
  %4166 = vmatprep.mubr.bf16.mxu0 0
  %4167 = vmatmul.mubr.bf16.gmra.mxu0 %v1930
  %v4168 = vpop.f32.mrf.mxu0
  %v4169 = vadd.f32 %v1207, %v4168
  %v4170 = vpop.f32.mrf.mxu0
  %v4171 = vadd.f32 %v1207, %v4170
  %v4172 = vpop.f32.mrf.mxu0
  %v4173 = vadd.f32 %v1212, %v4172
  %v4174 = vpop.f32.mrf.mxu0
  %v4175 = vadd.f32 %v1212, %v4174
  %4176 = vmatprep.mubr.bf16.mxu0 0
  %4177 = vmatmul.mubr.bf16.gmra.mxu0 %v1933
  %v4178 = vpop.f32.mrf.mxu0
  %v4179 = vadd.f32 %v1217, %v4178
  %v4180 = vpop.f32.mrf.mxu0
  %v4181 = vadd.f32 %v1217, %v4180
  %v4182 = vpop.f32.mrf.mxu0
  %v4183 = vadd.f32 %v1222, %v4182
  %v4184 = vpop.f32.mrf.mxu0
  %v4185 = vadd.f32 %v1222, %v4184
  %4186 = vmatprep.mubr.bf16.mxu0 0
  %4187 = vmatmul.mubr.bf16.gmra.mxu0 %v1936
  %v4188 = vpop.f32.mrf.mxu0
  %v4189 = vadd.f32 %v1227, %v4188
  %v4190 = vpop.f32.mrf.mxu0
  %v4191 = vadd.f32 %v1227, %v4190
  %v4192 = vpop.f32.mrf.mxu0
  %v4193 = vadd.f32 %v1232, %v4192
  %v4194 = vpop.f32.mrf.mxu0
  %v4195 = vadd.f32 %v1232, %v4194
  %4196 = vmatprep.mubr.bf16.mxu0 0
  %4197 = vmatmul.mubr.bf16.gmra.mxu0 %v1939
  %v4198 = vpop.f32.mrf.mxu0
  %v4199 = vadd.f32 %v1237, %v4198
  %v4200 = vpop.f32.mrf.mxu0
  %v4201 = vadd.f32 %v1237, %v4200
  %v4202 = vpop.f32.mrf.mxu0
  %v4203 = vadd.f32 %v1242, %v4202
  %v4204 = vpop.f32.mrf.mxu0
  %v4205 = vadd.f32 %v1242, %v4204
  %4206 = vmatprep.mubr.bf16.mxu0 0
  %4207 = vmatmul.mubr.bf16.gmra.mxu0 %v1942
  %v4208 = vpop.f32.mrf.mxu0
  %v4209 = vadd.f32 %v1247, %v4208
  %v4210 = vpop.f32.mrf.mxu0
  %v4211 = vadd.f32 %v1247, %v4210
  %v4212 = vpop.f32.mrf.mxu0
  %v4213 = vadd.f32 %v1252, %v4212
  %v4214 = vpop.f32.mrf.mxu0
  %v4215 = vadd.f32 %v1252, %v4214
  %4216 = vmatprep.mubr.bf16.mxu0 0
  %4217 = vmatmul.mubr.bf16.gmra.mxu0 %v1945
  %v4218 = vpop.f32.mrf.mxu0
  %v4219 = vadd.f32 %v1257, %v4218
  %v4220 = vpop.f32.mrf.mxu0
  %v4221 = vadd.f32 %v1257, %v4220
  %v4222 = vpop.f32.mrf.mxu0
  %v4223 = vadd.f32 %v1262, %v4222
  %v4224 = vpop.f32.mrf.mxu0
  %v4225 = vadd.f32 %v1262, %v4224
  %4226 = vmatprep.mubr.bf16.mxu0 0
  %4227 = vmatmul.mubr.bf16.gmra.mxu0 %v1948
  %v4228 = vpop.f32.mrf.mxu0
  %v4229 = vadd.f32 %v1267, %v4228
  %v4230 = vpop.f32.mrf.mxu0
  %v4231 = vadd.f32 %v1267, %v4230
  %v4232 = vpop.f32.mrf.mxu0
  %v4233 = vadd.f32 %v1272, %v4232
  %v4234 = vpop.f32.mrf.mxu0
  %v4235 = vadd.f32 %v1272, %v4234
  %4236 = vmatprep.mubr.bf16.mxu0 0
  %4237 = vmatmul.mubr.bf16.gmra.mxu0 %v1951
  %v4238 = vpop.f32.mrf.mxu0
  %v4239 = vadd.f32 %v1277, %v4238
  %v4240 = vpop.f32.mrf.mxu0
  %v4241 = vadd.f32 %v1277, %v4240
  %v4242 = vpop.f32.mrf.mxu0
  %v4243 = vadd.f32 %v1282, %v4242
  %v4244 = vpop.f32.mrf.mxu0
  %v4245 = vadd.f32 %v1282, %v4244
  %4246 = vmatprep.mubr.bf16.mxu0 0
  %4247 = vmatmul.mubr.bf16.gmra.mxu0 %v1954
  %v4248 = vpop.f32.mrf.mxu0
  %v4249 = vadd.f32 %v1287, %v4248
  %v4250 = vpop.f32.mrf.mxu0
  %v4251 = vadd.f32 %v1287, %v4250
  %v4252 = vpop.f32.mrf.mxu0
  %v4253 = vadd.f32 %v1292, %v4252
  %v4254 = vpop.f32.mrf.mxu0
  %v4255 = vadd.f32 %v1292, %v4254
  %4256 = vmatprep.mubr.bf16.mxu0 0
  %4257 = vmatmul.mubr.bf16.gmra.mxu0 %v1957
  %v4258 = vpop.f32.mrf.mxu0
  %v4259 = vadd.f32 %v1297, %v4258
  %v4260 = vpop.f32.mrf.mxu0
  %v4261 = vadd.f32 %v1297, %v4260
  %v4262 = vpop.f32.mrf.mxu0
  %v4263 = vadd.f32 %v1302, %v4262
  %v4264 = vpop.f32.mrf.mxu0
  %v4265 = vadd.f32 %v1302, %v4264
  %4266 = vmatprep.mubr.bf16.mxu0 0
  %4267 = vmatmul.mubr.bf16.gmra.mxu0 %v1960
  %v4268 = vpop.f32.mrf.mxu0
  %v4269 = vadd.f32 %v1307, %v4268
  %v4270 = vpop.f32.mrf.mxu0
  %v4271 = vadd.f32 %v1307, %v4270
  %v4272 = vpop.f32.mrf.mxu0
  %v4273 = vadd.f32 %v1312, %v4272
  %v4274 = vpop.f32.mrf.mxu0
  %v4275 = vadd.f32 %v1312, %v4274
  %4276 = vmatprep.mubr.bf16.mxu0 0
  %4277 = vmatmul.mubr.bf16.gmra.mxu0 %v1963
  %v4278 = vpop.f32.mrf.mxu0
  %v4279 = vadd.f32 %v1317, %v4278
  %v4280 = vpop.f32.mrf.mxu0
  %v4281 = vadd.f32 %v1317, %v4280
  %v4282 = vpop.f32.mrf.mxu0
  %v4283 = vadd.f32 %v1322, %v4282
  %v4284 = vpop.f32.mrf.mxu0
  %v4285 = vadd.f32 %v1322, %v4284
  %4286 = vdwg.mxu0
  %v4287 = vmax.f32 %v3489, 0.0
  %v4288 = vmax.f32 %v3491, 0.0
  %v4289 = vmax.f32 %v3493, 0.0
  %v4290 = vmax.f32 %v3495, 0.0
  %v4291 = vmax.f32 %v3499, 0.0
  %v4292 = vmax.f32 %v3501, 0.0
  %v4293 = vmax.f32 %v3503, 0.0
  %v4294 = vmax.f32 %v3505, 0.0
  %v4295 = vmax.f32 %v3509, 0.0
  %v4296 = vmax.f32 %v3511, 0.0
  %v4297 = vmax.f32 %v3513, 0.0
  %v4298 = vmax.f32 %v3515, 0.0
  %v4299 = vmax.f32 %v3519, 0.0
  %v4300 = vmax.f32 %v3521, 0.0
  %v4301 = vmax.f32 %v3523, 0.0
  %v4302 = vmax.f32 %v3525, 0.0
  %v4303 = vmax.f32 %v3529, 0.0
  %v4304 = vmax.f32 %v3531, 0.0
  %v4305 = vmax.f32 %v3533, 0.0
  %v4306 = vmax.f32 %v3535, 0.0
  %v4307 = vmax.f32 %v3539, 0.0
  %v4308 = vmax.f32 %v3541, 0.0
  %v4309 = vmax.f32 %v3543, 0.0
  %v4310 = vmax.f32 %v3545, 0.0
  %v4311 = vmax.f32 %v3549, 0.0
  %v4312 = vmax.f32 %v3551, 0.0
  %v4313 = vmax.f32 %v3553, 0.0
  %v4314 = vmax.f32 %v3555, 0.0
  %v4315 = vmax.f32 %v3559, 0.0
  %v4316 = vmax.f32 %v3561, 0.0
  %v4317 = vmax.f32 %v3563, 0.0
  %v4318 = vmax.f32 %v3565, 0.0
  %v4319 = vmax.f32 %v3569, 0.0
  %v4320 = vmax.f32 %v3571, 0.0
  %v4321 = vmax.f32 %v3573, 0.0
  %v4322 = vmax.f32 %v3575, 0.0
  %v4323 = vmax.f32 %v3579, 0.0
  %v4324 = vmax.f32 %v3581, 0.0
  %v4325 = vmax.f32 %v3583, 0.0
  %v4326 = vmax.f32 %v3585, 0.0
  %v4327 = vmax.f32 %v3589, 0.0
  %v4328 = vmax.f32 %v3591, 0.0
  %v4329 = vmax.f32 %v3593, 0.0
  %v4330 = vmax.f32 %v3595, 0.0
  %v4331 = vmax.f32 %v3599, 0.0
  %v4332 = vmax.f32 %v3601, 0.0
  %v4333 = vmax.f32 %v3603, 0.0
  %v4334 = vmax.f32 %v3605, 0.0
  %v4335 = vmax.f32 %v3609, 0.0
  %v4336 = vmax.f32 %v3611, 0.0
  %v4337 = vmax.f32 %v3613, 0.0
  %v4338 = vmax.f32 %v3615, 0.0
  %v4339 = vmax.f32 %v3619, 0.0
  %v4340 = vmax.f32 %v3621, 0.0
  %v4341 = vmax.f32 %v3623, 0.0
  %v4342 = vmax.f32 %v3625, 0.0
  %v4343 = vmax.f32 %v3629, 0.0
  %v4344 = vmax.f32 %v3631, 0.0
  %v4345 = vmax.f32 %v3633, 0.0
  %v4346 = vmax.f32 %v3635, 0.0
  %v4347 = vmax.f32 %v3639, 0.0
  %v4348 = vmax.f32 %v3641, 0.0
  %v4349 = vmax.f32 %v3643, 0.0
  %v4350 = vmax.f32 %v3645, 0.0
  %v4351 = vmax.f32 %v3649, 0.0
  %v4352 = vmax.f32 %v3651, 0.0
  %v4353 = vmax.f32 %v3653, 0.0
  %v4354 = vmax.f32 %v3655, 0.0
  %v4355 = vmax.f32 %v3659, 0.0
  %v4356 = vmax.f32 %v3661, 0.0
  %v4357 = vmax.f32 %v3663, 0.0
  %v4358 = vmax.f32 %v3665, 0.0
  %v4359 = vmax.f32 %v3669, 0.0
  %v4360 = vmax.f32 %v3671, 0.0
  %v4361 = vmax.f32 %v3673, 0.0
  %v4362 = vmax.f32 %v3675, 0.0
  %v4363 = vmax.f32 %v3679, 0.0
  %v4364 = vmax.f32 %v3681, 0.0
  %v4365 = vmax.f32 %v3683, 0.0
  %v4366 = vmax.f32 %v3685, 0.0
  %v4367 = vmax.f32 %v3689, 0.0
  %v4368 = vmax.f32 %v3691, 0.0
  %v4369 = vmax.f32 %v3693, 0.0
  %v4370 = vmax.f32 %v3695, 0.0
  %v4371 = vmax.f32 %v3699, 0.0
  %v4372 = vmax.f32 %v3701, 0.0
  %v4373 = vmax.f32 %v3703, 0.0
  %v4374 = vmax.f32 %v3705, 0.0
  %v4375 = vmax.f32 %v3709, 0.0
  %v4376 = vmax.f32 %v3711, 0.0
  %v4377 = vmax.f32 %v3713, 0.0
  %v4378 = vmax.f32 %v3715, 0.0
  %v4379 = vmax.f32 %v3719, 0.0
  %v4380 = vmax.f32 %v3721, 0.0
  %v4381 = vmax.f32 %v3723, 0.0
  %v4382 = vmax.f32 %v3725, 0.0
  %v4383 = vmax.f32 %v3729, 0.0
  %v4384 = vmax.f32 %v3731, 0.0
  %v4385 = vmax.f32 %v3733, 0.0
  %v4386 = vmax.f32 %v3735, 0.0
  %v4387 = vmax.f32 %v3739, 0.0
  %v4388 = vmax.f32 %v3741, 0.0
  %v4389 = vmax.f32 %v3743, 0.0
  %v4390 = vmax.f32 %v3745, 0.0
  %v4391 = vmax.f32 %v3749, 0.0
  %v4392 = vmax.f32 %v3751, 0.0
  %v4393 = vmax.f32 %v3753, 0.0
  %v4394 = vmax.f32 %v3755, 0.0
  %v4395 = vmax.f32 %v3759, 0.0
  %v4396 = vmax.f32 %v3761, 0.0
  %v4397 = vmax.f32 %v3763, 0.0
  %v4398 = vmax.f32 %v3765, 0.0
  %v4399 = vmax.f32 %v3769, 0.0
  %v4400 = vmax.f32 %v3771, 0.0
  %v4401 = vmax.f32 %v3773, 0.0
  %v4402 = vmax.f32 %v3775, 0.0
  %v4403 = vmax.f32 %v3779, 0.0
  %v4404 = vmax.f32 %v3781, 0.0
  %v4405 = vmax.f32 %v3783, 0.0
  %v4406 = vmax.f32 %v3785, 0.0
  %v4407 = vmax.f32 %v3789, 0.0
  %v4408 = vmax.f32 %v3791, 0.0
  %v4409 = vmax.f32 %v3793, 0.0
  %v4410 = vmax.f32 %v3795, 0.0
  %v4411 = vmax.f32 %v3799, 0.0
  %v4412 = vmax.f32 %v3801, 0.0
  %v4413 = vmax.f32 %v3803, 0.0
  %v4414 = vmax.f32 %v3805, 0.0
  %v4415 = vmax.f32 %v3809, 0.0
  %v4416 = vmax.f32 %v3811, 0.0
  %v4417 = vmax.f32 %v3813, 0.0
  %v4418 = vmax.f32 %v3815, 0.0
  %v4419 = vmax.f32 %v3819, 0.0
  %v4420 = vmax.f32 %v3821, 0.0
  %v4421 = vmax.f32 %v3823, 0.0
  %v4422 = vmax.f32 %v3825, 0.0
  %v4423 = vmax.f32 %v3829, 0.0
  %v4424 = vmax.f32 %v3831, 0.0
  %v4425 = vmax.f32 %v3833, 0.0
  %v4426 = vmax.f32 %v3835, 0.0
  %v4427 = vmax.f32 %v3839, 0.0
  %v4428 = vmax.f32 %v3841, 0.0
  %v4429 = vmax.f32 %v3843, 0.0
  %v4430 = vmax.f32 %v3845, 0.0
  %v4431 = vmax.f32 %v3849, 0.0
  %v4432 = vmax.f32 %v3851, 0.0
  %v4433 = vmax.f32 %v3853, 0.0
  %v4434 = vmax.f32 %v3855, 0.0
  %v4435 = vmax.f32 %v3859, 0.0
  %v4436 = vmax.f32 %v3861, 0.0
  %v4437 = vmax.f32 %v3863, 0.0
  %v4438 = vmax.f32 %v3865, 0.0
  %v4439 = vmax.f32 %v3869, 0.0
  %v4440 = vmax.f32 %v3871, 0.0
  %v4441 = vmax.f32 %v3873, 0.0
  %v4442 = vmax.f32 %v3875, 0.0
  %v4443 = vmax.f32 %v3879, 0.0
  %v4444 = vmax.f32 %v3881, 0.0
  %v4445 = vmax.f32 %v3883, 0.0
  %v4446 = vmax.f32 %v3885, 0.0
  %v4447 = vmax.f32 %v3889, 0.0
  %v4448 = vmax.f32 %v3891, 0.0
  %v4449 = vmax.f32 %v3893, 0.0
  %v4450 = vmax.f32 %v3895, 0.0
  %v4451 = vmax.f32 %v3899, 0.0
  %v4452 = vmax.f32 %v3901, 0.0
  %v4453 = vmax.f32 %v3903, 0.0
  %v4454 = vmax.f32 %v3905, 0.0
  %v4455 = vmax.f32 %v3909, 0.0
  %v4456 = vmax.f32 %v3911, 0.0
  %v4457 = vmax.f32 %v3913, 0.0
  %v4458 = vmax.f32 %v3915, 0.0
  %v4459 = vmax.f32 %v3919, 0.0
  %v4460 = vmax.f32 %v3921, 0.0
  %v4461 = vmax.f32 %v3923, 0.0
  %v4462 = vmax.f32 %v3925, 0.0
  %v4463 = vmax.f32 %v3929, 0.0
  %v4464 = vmax.f32 %v3931, 0.0
  %v4465 = vmax.f32 %v3933, 0.0
  %v4466 = vmax.f32 %v3935, 0.0
  %v4467 = vmax.f32 %v3939, 0.0
  %v4468 = vmax.f32 %v3941, 0.0
  %v4469 = vmax.f32 %v3943, 0.0
  %v4470 = vmax.f32 %v3945, 0.0
  %v4471 = vmax.f32 %v3949, 0.0
  %v4472 = vmax.f32 %v3951, 0.0
  %v4473 = vmax.f32 %v3953, 0.0
  %v4474 = vmax.f32 %v3955, 0.0
  %v4475 = vmax.f32 %v3959, 0.0
  %v4476 = vmax.f32 %v3961, 0.0
  %v4477 = vmax.f32 %v3963, 0.0
  %v4478 = vmax.f32 %v3965, 0.0
  %v4479 = vmax.f32 %v3969, 0.0
  %v4480 = vmax.f32 %v3971, 0.0
  %v4481 = vmax.f32 %v3973, 0.0
  %v4482 = vmax.f32 %v3975, 0.0
  %v4483 = vmax.f32 %v3979, 0.0
  %v4484 = vmax.f32 %v3981, 0.0
  %v4485 = vmax.f32 %v3983, 0.0
  %v4486 = vmax.f32 %v3985, 0.0
  %v4487 = vmax.f32 %v3989, 0.0
  %v4488 = vmax.f32 %v3991, 0.0
  %v4489 = vmax.f32 %v3993, 0.0
  %v4490 = vmax.f32 %v3995, 0.0
  %v4491 = vmax.f32 %v3999, 0.0
  %v4492 = vmax.f32 %v4001, 0.0
  %v4493 = vmax.f32 %v4003, 0.0
  %v4494 = vmax.f32 %v4005, 0.0
  %v4495 = vmax.f32 %v4009, 0.0
  %v4496 = vmax.f32 %v4011, 0.0
  %v4497 = vmax.f32 %v4013, 0.0
  %v4498 = vmax.f32 %v4015, 0.0
  %v4499 = vmax.f32 %v4019, 0.0
  %v4500 = vmax.f32 %v4021, 0.0
  %v4501 = vmax.f32 %v4023, 0.0
  %v4502 = vmax.f32 %v4025, 0.0
  %v4503 = vmax.f32 %v4029, 0.0
  %v4504 = vmax.f32 %v4031, 0.0
  %v4505 = vmax.f32 %v4033, 0.0
  %v4506 = vmax.f32 %v4035, 0.0
  %v4507 = vmax.f32 %v4039, 0.0
  %v4508 = vmax.f32 %v4041, 0.0
  %v4509 = vmax.f32 %v4043, 0.0
  %v4510 = vmax.f32 %v4045, 0.0
  %v4511 = vmax.f32 %v4049, 0.0
  %v4512 = vmax.f32 %v4051, 0.0
  %v4513 = vmax.f32 %v4053, 0.0
  %v4514 = vmax.f32 %v4055, 0.0
  %v4515 = vmax.f32 %v4059, 0.0
  %v4516 = vmax.f32 %v4061, 0.0
  %v4517 = vmax.f32 %v4063, 0.0
  %v4518 = vmax.f32 %v4065, 0.0
  %v4519 = vmax.f32 %v4069, 0.0
  %v4520 = vmax.f32 %v4071, 0.0
  %v4521 = vmax.f32 %v4073, 0.0
  %v4522 = vmax.f32 %v4075, 0.0
  %v4523 = vmax.f32 %v4079, 0.0
  %v4524 = vmax.f32 %v4081, 0.0
  %v4525 = vmax.f32 %v4083, 0.0
  %v4526 = vmax.f32 %v4085, 0.0
  %v4527 = vmax.f32 %v4089, 0.0
  %v4528 = vmax.f32 %v4091, 0.0
  %v4529 = vmax.f32 %v4093, 0.0
  %v4530 = vmax.f32 %v4095, 0.0
  %v4531 = vmax.f32 %v4099, 0.0
  %v4532 = vmax.f32 %v4101, 0.0
  %v4533 = vmax.f32 %v4103, 0.0
  %v4534 = vmax.f32 %v4105, 0.0
  %v4535 = vmax.f32 %v4109, 0.0
  %v4536 = vmax.f32 %v4111, 0.0
  %v4537 = vmax.f32 %v4113, 0.0
  %v4538 = vmax.f32 %v4115, 0.0
  %v4539 = vmax.f32 %v4119, 0.0
  %v4540 = vmax.f32 %v4121, 0.0
  %v4541 = vmax.f32 %v4123, 0.0
  %v4542 = vmax.f32 %v4125, 0.0
  %v4543 = vmax.f32 %v4129, 0.0
  %v4544 = vmax.f32 %v4131, 0.0
  %v4545 = vmax.f32 %v4133, 0.0
  %v4546 = vmax.f32 %v4135, 0.0
  %v4547 = vmax.f32 %v4139, 0.0
  %v4548 = vmax.f32 %v4141, 0.0
  %v4549 = vmax.f32 %v4143, 0.0
  %v4550 = vmax.f32 %v4145, 0.0
  %v4551 = vmax.f32 %v4149, 0.0
  %v4552 = vmax.f32 %v4151, 0.0
  %v4553 = vmax.f32 %v4153, 0.0
  %v4554 = vmax.f32 %v4155, 0.0
  %v4555 = vmax.f32 %v4159, 0.0
  %v4556 = vmax.f32 %v4161, 0.0
  %v4557 = vmax.f32 %v4163, 0.0
  %v4558 = vmax.f32 %v4165, 0.0
  %v4559 = vmax.f32 %v4169, 0.0
  %v4560 = vmax.f32 %v4171, 0.0
  %v4561 = vmax.f32 %v4173, 0.0
  %v4562 = vmax.f32 %v4175, 0.0
  %v4563 = vmax.f32 %v4179, 0.0
  %v4564 = vmax.f32 %v4181, 0.0
  %v4565 = vmax.f32 %v4183, 0.0
  %v4566 = vmax.f32 %v4185, 0.0
  %v4567 = vmax.f32 %v4189, 0.0
  %v4568 = vmax.f32 %v4191, 0.0
  %v4569 = vmax.f32 %v4193, 0.0
  %v4570 = vmax.f32 %v4195, 0.0
  %v4571 = vmax.f32 %v4199, 0.0
  %v4572 = vmax.f32 %v4201, 0.0
  %v4573 = vmax.f32 %v4203, 0.0
  %v4574 = vmax.f32 %v4205, 0.0
  %v4575 = vmax.f32 %v4209, 0.0
  %v4576 = vmax.f32 %v4211, 0.0
  %v4577 = vmax.f32 %v4213, 0.0
  %v4578 = vmax.f32 %v4215, 0.0
  %v4579 = vmax.f32 %v4219, 0.0
  %v4580 = vmax.f32 %v4221, 0.0
  %v4581 = vmax.f32 %v4223, 0.0
  %v4582 = vmax.f32 %v4225, 0.0
  %v4583 = vmax.f32 %v4229, 0.0
  %v4584 = vmax.f32 %v4231, 0.0
  %v4585 = vmax.f32 %v4233, 0.0
  %v4586 = vmax.f32 %v4235, 0.0
  %v4587 = vmax.f32 %v4239, 0.0
  %v4588 = vmax.f32 %v4241, 0.0
  %v4589 = vmax.f32 %v4243, 0.0
  %v4590 = vmax.f32 %v4245, 0.0
  %v4591 = vmax.f32 %v4249, 0.0
  %v4592 = vmax.f32 %v4251, 0.0
  %v4593 = vmax.f32 %v4253, 0.0
  %v4594 = vmax.f32 %v4255, 0.0
  %v4595 = vmax.f32 %v4259, 0.0
  %v4596 = vmax.f32 %v4261, 0.0
  %v4597 = vmax.f32 %v4263, 0.0
  %v4598 = vmax.f32 %v4265, 0.0
  %v4599 = vmax.f32 %v4269, 0.0
  %v4600 = vmax.f32 %v4271, 0.0
  %v4601 = vmax.f32 %v4273, 0.0
  %v4602 = vmax.f32 %v4275, 0.0
  %v4603 = vmax.f32 %v4279, 0.0
  %v4604 = vmax.f32 %v4281, 0.0
  %v4605 = vmax.f32 %v4283, 0.0
  %v4606 = vmax.f32 %v4285, 0.0
  %v4607 = vmin.f32 %v4287, 6.0
  %v4608 = vmin.f32 %v4288, 6.0
  %v4609 = vmin.f32 %v4289, 6.0
  %v4610 = vmin.f32 %v4290, 6.0
  %v4611 = vmin.f32 %v4291, 6.0
  %v4612 = vmin.f32 %v4292, 6.0
  %v4613 = vmin.f32 %v4293, 6.0
  %v4614 = vmin.f32 %v4294, 6.0
  %v4615 = vmin.f32 %v4295, 6.0
  %v4616 = vmin.f32 %v4296, 6.0
  %v4617 = vmin.f32 %v4297, 6.0
  %v4618 = vmin.f32 %v4298, 6.0
  %v4619 = vmin.f32 %v4299, 6.0
  %v4620 = vmin.f32 %v4300, 6.0
  %v4621 = vmin.f32 %v4301, 6.0
  %v4622 = vmin.f32 %v4302, 6.0
  %v4623 = vmin.f32 %v4303, 6.0
  %v4624 = vmin.f32 %v4304, 6.0
  %v4625 = vmin.f32 %v4305, 6.0
  %v4626 = vmin.f32 %v4306, 6.0
  %v4627 = vmin.f32 %v4307, 6.0
  %v4628 = vmin.f32 %v4308, 6.0
  %v4629 = vmin.f32 %v4309, 6.0
  %v4630 = vmin.f32 %v4310, 6.0
  %v4631 = vmin.f32 %v4311, 6.0
  %v4632 = vmin.f32 %v4312, 6.0
  %v4633 = vmin.f32 %v4313, 6.0
  %v4634 = vmin.f32 %v4314, 6.0
  %v4635 = vmin.f32 %v4315, 6.0
  %v4636 = vmin.f32 %v4316, 6.0
  %v4637 = vmin.f32 %v4317, 6.0
  %v4638 = vmin.f32 %v4318, 6.0
  %v4639 = vmin.f32 %v4319, 6.0
  %v4640 = vmin.f32 %v4320, 6.0
  %v4641 = vmin.f32 %v4321, 6.0
  %v4642 = vmin.f32 %v4322, 6.0
  %v4643 = vmin.f32 %v4323, 6.0
  %v4644 = vmin.f32 %v4324, 6.0
  %v4645 = vmin.f32 %v4325, 6.0
  %v4646 = vmin.f32 %v4326, 6.0
  %v4647 = vmin.f32 %v4327, 6.0
  %v4648 = vmin.f32 %v4328, 6.0
  %v4649 = vmin.f32 %v4329, 6.0
  %v4650 = vmin.f32 %v4330, 6.0
  %v4651 = vmin.f32 %v4331, 6.0
  %v4652 = vmin.f32 %v4332, 6.0
  %v4653 = vmin.f32 %v4333, 6.0
  %v4654 = vmin.f32 %v4334, 6.0
  %v4655 = vmin.f32 %v4335, 6.0
  %v4656 = vmin.f32 %v4336, 6.0
  %v4657 = vmin.f32 %v4337, 6.0
  %v4658 = vmin.f32 %v4338, 6.0
  %v4659 = vmin.f32 %v4339, 6.0
  %v4660 = vmin.f32 %v4340, 6.0
  %v4661 = vmin.f32 %v4341, 6.0
  %v4662 = vmin.f32 %v4342, 6.0
  %v4663 = vmin.f32 %v4343, 6.0
  %v4664 = vmin.f32 %v4344, 6.0
  %v4665 = vmin.f32 %v4345, 6.0
  %v4666 = vmin.f32 %v4346, 6.0
  %v4667 = vmin.f32 %v4347, 6.0
  %v4668 = vmin.f32 %v4348, 6.0
  %v4669 = vmin.f32 %v4349, 6.0
  %v4670 = vmin.f32 %v4350, 6.0
  %v4671 = vmin.f32 %v4351, 6.0
  %v4672 = vmin.f32 %v4352, 6.0
  %v4673 = vmin.f32 %v4353, 6.0
  %v4674 = vmin.f32 %v4354, 6.0
  %v4675 = vmin.f32 %v4355, 6.0
  %v4676 = vmin.f32 %v4356, 6.0
  %v4677 = vmin.f32 %v4357, 6.0
  %v4678 = vmin.f32 %v4358, 6.0
  %v4679 = vmin.f32 %v4359, 6.0
  %v4680 = vmin.f32 %v4360, 6.0
  %v4681 = vmin.f32 %v4361, 6.0
  %v4682 = vmin.f32 %v4362, 6.0
  %v4683 = vmin.f32 %v4363, 6.0
  %v4684 = vmin.f32 %v4364, 6.0
  %v4685 = vmin.f32 %v4365, 6.0
  %v4686 = vmin.f32 %v4366, 6.0
  %v4687 = vmin.f32 %v4367, 6.0
  %v4688 = vmin.f32 %v4368, 6.0
  %v4689 = vmin.f32 %v4369, 6.0
  %v4690 = vmin.f32 %v4370, 6.0
  %v4691 = vmin.f32 %v4371, 6.0
  %v4692 = vmin.f32 %v4372, 6.0
  %v4693 = vmin.f32 %v4373, 6.0
  %v4694 = vmin.f32 %v4374, 6.0
  %v4695 = vmin.f32 %v4375, 6.0
  %v4696 = vmin.f32 %v4376, 6.0
  %v4697 = vmin.f32 %v4377, 6.0
  %v4698 = vmin.f32 %v4378, 6.0
  %v4699 = vmin.f32 %v4379, 6.0
  %v4700 = vmin.f32 %v4380, 6.0
  %v4701 = vmin.f32 %v4381, 6.0
  %v4702 = vmin.f32 %v4382, 6.0
  %v4703 = vmin.f32 %v4383, 6.0
  %v4704 = vmin.f32 %v4384, 6.0
  %v4705 = vmin.f32 %v4385, 6.0
  %v4706 = vmin.f32 %v4386, 6.0
  %v4707 = vmin.f32 %v4387, 6.0
  %v4708 = vmin.f32 %v4388, 6.0
  %v4709 = vmin.f32 %v4389, 6.0
  %v4710 = vmin.f32 %v4390, 6.0
  %v4711 = vmin.f32 %v4391, 6.0
  %v4712 = vmin.f32 %v4392, 6.0
  %v4713 = vmin.f32 %v4393, 6.0
  %v4714 = vmin.f32 %v4394, 6.0
  %v4715 = vmin.f32 %v4395, 6.0
  %v4716 = vmin.f32 %v4396, 6.0
  %v4717 = vmin.f32 %v4397, 6.0
  %v4718 = vmin.f32 %v4398, 6.0
  %v4719 = vmin.f32 %v4399, 6.0
  %v4720 = vmin.f32 %v4400, 6.0
  %v4721 = vmin.f32 %v4401, 6.0
  %v4722 = vmin.f32 %v4402, 6.0
  %v4723 = vmin.f32 %v4403, 6.0
  %v4724 = vmin.f32 %v4404, 6.0
  %v4725 = vmin.f32 %v4405, 6.0
  %v4726 = vmin.f32 %v4406, 6.0
  %v4727 = vmin.f32 %v4407, 6.0
  %v4728 = vmin.f32 %v4408, 6.0
  %v4729 = vmin.f32 %v4409, 6.0
  %v4730 = vmin.f32 %v4410, 6.0
  %v4731 = vmin.f32 %v4411, 6.0
  %v4732 = vmin.f32 %v4412, 6.0
  %v4733 = vmin.f32 %v4413, 6.0
  %v4734 = vmin.f32 %v4414, 6.0
  %v4735 = vmin.f32 %v4415, 6.0
  %v4736 = vmin.f32 %v4416, 6.0
  %v4737 = vmin.f32 %v4417, 6.0
  %v4738 = vmin.f32 %v4418, 6.0
  %v4739 = vmin.f32 %v4419, 6.0
  %v4740 = vmin.f32 %v4420, 6.0
  %v4741 = vmin.f32 %v4421, 6.0
  %v4742 = vmin.f32 %v4422, 6.0
  %v4743 = vmin.f32 %v4423, 6.0
  %v4744 = vmin.f32 %v4424, 6.0
  %v4745 = vmin.f32 %v4425, 6.0
  %v4746 = vmin.f32 %v4426, 6.0
  %v4747 = vmin.f32 %v4427, 6.0
  %v4748 = vmin.f32 %v4428, 6.0
  %v4749 = vmin.f32 %v4429, 6.0
  %v4750 = vmin.f32 %v4430, 6.0
  %v4751 = vmin.f32 %v4431, 6.0
  %v4752 = vmin.f32 %v4432, 6.0
  %v4753 = vmin.f32 %v4433, 6.0
  %v4754 = vmin.f32 %v4434, 6.0
  %v4755 = vmin.f32 %v4435, 6.0
  %v4756 = vmin.f32 %v4436, 6.0
  %v4757 = vmin.f32 %v4437, 6.0
  %v4758 = vmin.f32 %v4438, 6.0
  %v4759 = vmin.f32 %v4439, 6.0
  %v4760 = vmin.f32 %v4440, 6.0
  %v4761 = vmin.f32 %v4441, 6.0
  %v4762 = vmin.f32 %v4442, 6.0
  %v4763 = vmin.f32 %v4443, 6.0
  %v4764 = vmin.f32 %v4444, 6.0
  %v4765 = vmin.f32 %v4445, 6.0
  %v4766 = vmin.f32 %v4446, 6.0
  %v4767 = vmin.f32 %v4447, 6.0
  %v4768 = vmin.f32 %v4448, 6.0
  %v4769 = vmin.f32 %v4449, 6.0
  %v4770 = vmin.f32 %v4450, 6.0
  %v4771 = vmin.f32 %v4451, 6.0
  %v4772 = vmin.f32 %v4452, 6.0
  %v4773 = vmin.f32 %v4453, 6.0
  %v4774 = vmin.f32 %v4454, 6.0
  %v4775 = vmin.f32 %v4455, 6.0
  %v4776 = vmin.f32 %v4456, 6.0
  %v4777 = vmin.f32 %v4457, 6.0
  %v4778 = vmin.f32 %v4458, 6.0
  %v4779 = vmin.f32 %v4459, 6.0
  %v4780 = vmin.f32 %v4460, 6.0
  %v4781 = vmin.f32 %v4461, 6.0
  %v4782 = vmin.f32 %v4462, 6.0
  %v4783 = vmin.f32 %v4463, 6.0
  %v4784 = vmin.f32 %v4464, 6.0
  %v4785 = vmin.f32 %v4465, 6.0
  %v4786 = vmin.f32 %v4466, 6.0
  %v4787 = vmin.f32 %v4467, 6.0
  %v4788 = vmin.f32 %v4468, 6.0
  %v4789 = vmin.f32 %v4469, 6.0
  %v4790 = vmin.f32 %v4470, 6.0
  %v4791 = vmin.f32 %v4471, 6.0
  %v4792 = vmin.f32 %v4472, 6.0
  %v4793 = vmin.f32 %v4473, 6.0
  %v4794 = vmin.f32 %v4474, 6.0
  %v4795 = vmin.f32 %v4475, 6.0
  %v4796 = vmin.f32 %v4476, 6.0
  %v4797 = vmin.f32 %v4477, 6.0
  %v4798 = vmin.f32 %v4478, 6.0
  %v4799 = vmin.f32 %v4479, 6.0
  %v4800 = vmin.f32 %v4480, 6.0
  %v4801 = vmin.f32 %v4481, 6.0
  %v4802 = vmin.f32 %v4482, 6.0
  %v4803 = vmin.f32 %v4483, 6.0
  %v4804 = vmin.f32 %v4484, 6.0
  %v4805 = vmin.f32 %v4485, 6.0
  %v4806 = vmin.f32 %v4486, 6.0
  %v4807 = vmin.f32 %v4487, 6.0
  %v4808 = vmin.f32 %v4488, 6.0
  %v4809 = vmin.f32 %v4489, 6.0
  %v4810 = vmin.f32 %v4490, 6.0
  %v4811 = vmin.f32 %v4491, 6.0
  %v4812 = vmin.f32 %v4492, 6.0
  %v4813 = vmin.f32 %v4493, 6.0
  %v4814 = vmin.f32 %v4494, 6.0
  %v4815 = vmin.f32 %v4495, 6.0
  %v4816 = vmin.f32 %v4496, 6.0
  %v4817 = vmin.f32 %v4497, 6.0
  %v4818 = vmin.f32 %v4498, 6.0
  %v4819 = vmin.f32 %v4499, 6.0
  %v4820 = vmin.f32 %v4500, 6.0
  %v4821 = vmin.f32 %v4501, 6.0
  %v4822 = vmin.f32 %v4502, 6.0
  %v4823 = vmin.f32 %v4503, 6.0
  %v4824 = vmin.f32 %v4504, 6.0
  %v4825 = vmin.f32 %v4505, 6.0
  %v4826 = vmin.f32 %v4506, 6.0
  %v4827 = vmin.f32 %v4507, 6.0
  %v4828 = vmin.f32 %v4508, 6.0
  %v4829 = vmin.f32 %v4509, 6.0
  %v4830 = vmin.f32 %v4510, 6.0
  %v4831 = vmin.f32 %v4511, 6.0
  %v4832 = vmin.f32 %v4512, 6.0
  %v4833 = vmin.f32 %v4513, 6.0
  %v4834 = vmin.f32 %v4514, 6.0
  %v4835 = vmin.f32 %v4515, 6.0
  %v4836 = vmin.f32 %v4516, 6.0
  %v4837 = vmin.f32 %v4517, 6.0
  %v4838 = vmin.f32 %v4518, 6.0
  %v4839 = vmin.f32 %v4519, 6.0
  %v4840 = vmin.f32 %v4520, 6.0
  %v4841 = vmin.f32 %v4521, 6.0
  %v4842 = vmin.f32 %v4522, 6.0
  %v4843 = vmin.f32 %v4523, 6.0
  %v4844 = vmin.f32 %v4524, 6.0
  %v4845 = vmin.f32 %v4525, 6.0
  %v4846 = vmin.f32 %v4526, 6.0
  %v4847 = vmin.f32 %v4527, 6.0
  %v4848 = vmin.f32 %v4528, 6.0
  %v4849 = vmin.f32 %v4529, 6.0
  %v4850 = vmin.f32 %v4530, 6.0
  %v4851 = vmin.f32 %v4531, 6.0
  %v4852 = vmin.f32 %v4532, 6.0
  %v4853 = vmin.f32 %v4533, 6.0
  %v4854 = vmin.f32 %v4534, 6.0
  %v4855 = vmin.f32 %v4535, 6.0
  %v4856 = vmin.f32 %v4536, 6.0
  %v4857 = vmin.f32 %v4537, 6.0
  %v4858 = vmin.f32 %v4538, 6.0
  %v4859 = vmin.f32 %v4539, 6.0
  %v4860 = vmin.f32 %v4540, 6.0
  %v4861 = vmin.f32 %v4541, 6.0
  %v4862 = vmin.f32 %v4542, 6.0
  %v4863 = vmin.f32 %v4543, 6.0
  %v4864 = vmin.f32 %v4544, 6.0
  %v4865 = vmin.f32 %v4545, 6.0
  %v4866 = vmin.f32 %v4546, 6.0
  %v4867 = vmin.f32 %v4547, 6.0
  %v4868 = vmin.f32 %v4548, 6.0
  %v4869 = vmin.f32 %v4549, 6.0
  %v4870 = vmin.f32 %v4550, 6.0
  %v4871 = vmin.f32 %v4551, 6.0
  %v4872 = vmin.f32 %v4552, 6.0
  %v4873 = vmin.f32 %v4553, 6.0
  %v4874 = vmin.f32 %v4554, 6.0
  %v4875 = vmin.f32 %v4555, 6.0
  %v4876 = vmin.f32 %v4556, 6.0
  %v4877 = vmin.f32 %v4557, 6.0
  %v4878 = vmin.f32 %v4558, 6.0
  %v4879 = vmin.f32 %v4559, 6.0
  %v4880 = vmin.f32 %v4560, 6.0
  %v4881 = vmin.f32 %v4561, 6.0
  %v4882 = vmin.f32 %v4562, 6.0
  %v4883 = vmin.f32 %v4563, 6.0
  %v4884 = vmin.f32 %v4564, 6.0
  %v4885 = vmin.f32 %v4565, 6.0
  %v4886 = vmin.f32 %v4566, 6.0
  %v4887 = vmin.f32 %v4567, 6.0
  %v4888 = vmin.f32 %v4568, 6.0
  %v4889 = vmin.f32 %v4569, 6.0
  %v4890 = vmin.f32 %v4570, 6.0
  %v4891 = vmin.f32 %v4571, 6.0
  %v4892 = vmin.f32 %v4572, 6.0
  %v4893 = vmin.f32 %v4573, 6.0
  %v4894 = vmin.f32 %v4574, 6.0
  %v4895 = vmin.f32 %v4575, 6.0
  %v4896 = vmin.f32 %v4576, 6.0
  %v4897 = vmin.f32 %v4577, 6.0
  %v4898 = vmin.f32 %v4578, 6.0
  %v4899 = vmin.f32 %v4579, 6.0
  %v4900 = vmin.f32 %v4580, 6.0
  %v4901 = vmin.f32 %v4581, 6.0
  %v4902 = vmin.f32 %v4582, 6.0
  %v4903 = vmin.f32 %v4583, 6.0
  %v4904 = vmin.f32 %v4584, 6.0
  %v4905 = vmin.f32 %v4585, 6.0
  %v4906 = vmin.f32 %v4586, 6.0
  %v4907 = vmin.f32 %v4587, 6.0
  %v4908 = vmin.f32 %v4588, 6.0
  %v4909 = vmin.f32 %v4589, 6.0
  %v4910 = vmin.f32 %v4590, 6.0
  %v4911 = vmin.f32 %v4591, 6.0
  %v4912 = vmin.f32 %v4592, 6.0
  %v4913 = vmin.f32 %v4593, 6.0
  %v4914 = vmin.f32 %v4594, 6.0
  %v4915 = vmin.f32 %v4595, 6.0
  %v4916 = vmin.f32 %v4596, 6.0
  %v4917 = vmin.f32 %v4597, 6.0
  %v4918 = vmin.f32 %v4598, 6.0
  %v4919 = vmin.f32 %v4599, 6.0
  %v4920 = vmin.f32 %v4600, 6.0
  %v4921 = vmin.f32 %v4601, 6.0
  %v4922 = vmin.f32 %v4602, 6.0
  %v4923 = vmin.f32 %v4603, 6.0
  %v4924 = vmin.f32 %v4604, 6.0
  %v4925 = vmin.f32 %v4605, 6.0
  %v4926 = vmin.f32 %v4606, 6.0
  %v4927 = vsub.f32 %v4607, %v3128
  %v4928 = vsub.f32 %v4608, %v3129
  %v4929 = vsub.f32 %v4609, %v3130
  %v4930 = vsub.f32 %v4610, %v3131
  %v4931 = vsub.f32 %v4611, %v3132
  %v4932 = vsub.f32 %v4612, %v3133
  %v4933 = vsub.f32 %v4613, %v3134
  %v4934 = vsub.f32 %v4614, %v3135
  %v4935 = vsub.f32 %v4615, %v3136
  %v4936 = vsub.f32 %v4616, %v3137
  %v4937 = vsub.f32 %v4617, %v3138
  %v4938 = vsub.f32 %v4618, %v3139
  %v4939 = vsub.f32 %v4619, %v3140
  %v4940 = vsub.f32 %v4620, %v3141
  %v4941 = vsub.f32 %v4621, %v3142
  %v4942 = vsub.f32 %v4622, %v3143
  %v4943 = vsub.f32 %v4623, %v3144
  %v4944 = vsub.f32 %v4624, %v3145
  %v4945 = vsub.f32 %v4625, %v3146
  %v4946 = vsub.f32 %v4626, %v3147
  %v4947 = vsub.f32 %v4627, %v3148
  %v4948 = vsub.f32 %v4628, %v3149
  %v4949 = vsub.f32 %v4629, %v3150
  %v4950 = vsub.f32 %v4630, %v3151
  %v4951 = vsub.f32 %v4631, %v3152
  %v4952 = vsub.f32 %v4632, %v3153
  %v4953 = vsub.f32 %v4633, %v3154
  %v4954 = vsub.f32 %v4634, %v3155
  %v4955 = vsub.f32 %v4635, %v3156
  %v4956 = vsub.f32 %v4636, %v3157
  %v4957 = vsub.f32 %v4637, %v3158
  %v4958 = vsub.f32 %v4638, %v3159
  %v4959 = vsub.f32 %v4639, %v3160
  %v4960 = vsub.f32 %v4640, %v3161
  %v4961 = vsub.f32 %v4641, %v3162
  %v4962 = vsub.f32 %v4642, %v3163
  %v4963 = vsub.f32 %v4643, %v3164
  %v4964 = vsub.f32 %v4644, %v3165
  %v4965 = vsub.f32 %v4645, %v3166
  %v4966 = vsub.f32 %v4646, %v3167
  %v4967 = vsub.f32 %v4647, %v3168
  %v4968 = vsub.f32 %v4648, %v3169
  %v4969 = vsub.f32 %v4649, %v3170
  %v4970 = vsub.f32 %v4650, %v3171
  %v4971 = vsub.f32 %v4651, %v3172
  %v4972 = vsub.f32 %v4652, %v3173
  %v4973 = vsub.f32 %v4653, %v3174
  %v4974 = vsub.f32 %v4654, %v3175
  %v4975 = vsub.f32 %v4655, %v3176
  %v4976 = vsub.f32 %v4656, %v3177
  %v4977 = vsub.f32 %v4657, %v3178
  %v4978 = vsub.f32 %v4658, %v3179
  %v4979 = vsub.f32 %v4659, %v3180
  %v4980 = vsub.f32 %v4660, %v3181
  %v4981 = vsub.f32 %v4661, %v3182
  %v4982 = vsub.f32 %v4662, %v3183
  %v4983 = vsub.f32 %v4663, %v3184
  %v4984 = vsub.f32 %v4664, %v3185
  %v4985 = vsub.f32 %v4665, %v3186
  %v4986 = vsub.f32 %v4666, %v3187
  %v4987 = vsub.f32 %v4667, %v3188
  %v4988 = vsub.f32 %v4668, %v3189
  %v4989 = vsub.f32 %v4669, %v3190
  %v4990 = vsub.f32 %v4670, %v3191
  %v4991 = vsub.f32 %v4671, %v3192
  %v4992 = vsub.f32 %v4672, %v3193
  %v4993 = vsub.f32 %v4673, %v3194
  %v4994 = vsub.f32 %v4674, %v3195
  %v4995 = vsub.f32 %v4675, %v3196
  %v4996 = vsub.f32 %v4676, %v3197
  %v4997 = vsub.f32 %v4677, %v3198
  %v4998 = vsub.f32 %v4678, %v3199
  %v4999 = vsub.f32 %v4679, %v3200
  %v5000 = vsub.f32 %v4680, %v3201
  %v5001 = vsub.f32 %v4681, %v3202
  %v5002 = vsub.f32 %v4682, %v3203
  %v5003 = vsub.f32 %v4683, %v3204
  %v5004 = vsub.f32 %v4684, %v3205
  %v5005 = vsub.f32 %v4685, %v3206
  %v5006 = vsub.f32 %v4686, %v3207
  %v5007 = vsub.f32 %v4687, %v3208
  %v5008 = vsub.f32 %v4688, %v3209
  %v5009 = vsub.f32 %v4689, %v3210
  %v5010 = vsub.f32 %v4690, %v3211
  %v5011 = vsub.f32 %v4691, %v3212
  %v5012 = vsub.f32 %v4692, %v3213
  %v5013 = vsub.f32 %v4693, %v3214
  %v5014 = vsub.f32 %v4694, %v3215
  %v5015 = vsub.f32 %v4695, %v3216
  %v5016 = vsub.f32 %v4696, %v3217
  %v5017 = vsub.f32 %v4697, %v3218
  %v5018 = vsub.f32 %v4698, %v3219
  %v5019 = vsub.f32 %v4699, %v3220
  %v5020 = vsub.f32 %v4700, %v3221
  %v5021 = vsub.f32 %v4701, %v3222
  %v5022 = vsub.f32 %v4702, %v3223
  %v5023 = vsub.f32 %v4703, %v3224
  %v5024 = vsub.f32 %v4704, %v3225
  %v5025 = vsub.f32 %v4705, %v3226
  %v5026 = vsub.f32 %v4706, %v3227
  %v5027 = vsub.f32 %v4707, %v3228
  %v5028 = vsub.f32 %v4708, %v3229
  %v5029 = vsub.f32 %v4709, %v3230
  %v5030 = vsub.f32 %v4710, %v3231
  %v5031 = vsub.f32 %v4711, %v3232
  %v5032 = vsub.f32 %v4712, %v3233
  %v5033 = vsub.f32 %v4713, %v3234
  %v5034 = vsub.f32 %v4714, %v3235
  %v5035 = vsub.f32 %v4715, %v3236
  %v5036 = vsub.f32 %v4716, %v3237
  %v5037 = vsub.f32 %v4717, %v3238
  %v5038 = vsub.f32 %v4718, %v3239
  %v5039 = vsub.f32 %v4719, %v3240
  %v5040 = vsub.f32 %v4720, %v3241
  %v5041 = vsub.f32 %v4721, %v3242
  %v5042 = vsub.f32 %v4722, %v3243
  %v5043 = vsub.f32 %v4723, %v3244
  %v5044 = vsub.f32 %v4724, %v3245
  %v5045 = vsub.f32 %v4725, %v3246
  %v5046 = vsub.f32 %v4726, %v3247
  %v5047 = vsub.f32 %v4727, %v3248
  %v5048 = vsub.f32 %v4728, %v3249
  %v5049 = vsub.f32 %v4729, %v3250
  %v5050 = vsub.f32 %v4730, %v3251
  %v5051 = vsub.f32 %v4731, %v3252
  %v5052 = vsub.f32 %v4732, %v3253
  %v5053 = vsub.f32 %v4733, %v3254
  %v5054 = vsub.f32 %v4734, %v3255
  %v5055 = vsub.f32 %v4735, %v3256
  %v5056 = vsub.f32 %v4736, %v3257
  %v5057 = vsub.f32 %v4737, %v3258
  %v5058 = vsub.f32 %v4738, %v3259
  %v5059 = vsub.f32 %v4739, %v3260
  %v5060 = vsub.f32 %v4740, %v3261
  %v5061 = vsub.f32 %v4741, %v3262
  %v5062 = vsub.f32 %v4742, %v3263
  %v5063 = vsub.f32 %v4743, %v3264
  %v5064 = vsub.f32 %v4744, %v3265
  %v5065 = vsub.f32 %v4745, %v3266
  %v5066 = vsub.f32 %v4746, %v3267
  %v5067 = vsub.f32 %v4747, %v3268
  %v5068 = vsub.f32 %v4748, %v3269
  %v5069 = vsub.f32 %v4749, %v3270
  %v5070 = vsub.f32 %v4750, %v3271
  %v5071 = vsub.f32 %v4751, %v3272
  %v5072 = vsub.f32 %v4752, %v3273
  %v5073 = vsub.f32 %v4753, %v3274
  %v5074 = vsub.f32 %v4754, %v3275
  %v5075 = vsub.f32 %v4755, %v3276
  %v5076 = vsub.f32 %v4756, %v3277
  %v5077 = vsub.f32 %v4757, %v3278
  %v5078 = vsub.f32 %v4758, %v3279
  %v5079 = vsub.f32 %v4759, %v3280
  %v5080 = vsub.f32 %v4760, %v3281
  %v5081 = vsub.f32 %v4761, %v3282
  %v5082 = vsub.f32 %v4762, %v3283
  %v5083 = vsub.f32 %v4763, %v3284
  %v5084 = vsub.f32 %v4764, %v3285
  %v5085 = vsub.f32 %v4765, %v3286
  %v5086 = vsub.f32 %v4766, %v3287
  %v5087 = vsub.f32 %v4767, %v3288
  %v5088 = vsub.f32 %v4768, %v3289
  %v5089 = vsub.f32 %v4769, %v3290
  %v5090 = vsub.f32 %v4770, %v3291
  %v5091 = vsub.f32 %v4771, %v3292
  %v5092 = vsub.f32 %v4772, %v3293
  %v5093 = vsub.f32 %v4773, %v3294
  %v5094 = vsub.f32 %v4774, %v3295
  %v5095 = vsub.f32 %v4775, %v3296
  %v5096 = vsub.f32 %v4776, %v3297
  %v5097 = vsub.f32 %v4777, %v3298
  %v5098 = vsub.f32 %v4778, %v3299
  %v5099 = vsub.f32 %v4779, %v3300
  %v5100 = vsub.f32 %v4780, %v3301
  %v5101 = vsub.f32 %v4781, %v3302
  %v5102 = vsub.f32 %v4782, %v3303
  %v5103 = vsub.f32 %v4783, %v3304
  %v5104 = vsub.f32 %v4784, %v3305
  %v5105 = vsub.f32 %v4785, %v3306
  %v5106 = vsub.f32 %v4786, %v3307
  %v5107 = vsub.f32 %v4787, %v3308
  %v5108 = vsub.f32 %v4788, %v3309
  %v5109 = vsub.f32 %v4789, %v3310
  %v5110 = vsub.f32 %v4790, %v3311
  %v5111 = vsub.f32 %v4791, %v3312
  %v5112 = vsub.f32 %v4792, %v3313
  %v5113 = vsub.f32 %v4793, %v3314
  %v5114 = vsub.f32 %v4794, %v3315
  %v5115 = vsub.f32 %v4795, %v3316
  %v5116 = vsub.f32 %v4796, %v3317
  %v5117 = vsub.f32 %v4797, %v3318
  %v5118 = vsub.f32 %v4798, %v3319
  %v5119 = vsub.f32 %v4799, %v3320
  %v5120 = vsub.f32 %v4800, %v3321
  %v5121 = vsub.f32 %v4801, %v3322
  %v5122 = vsub.f32 %v4802, %v3323
  %v5123 = vsub.f32 %v4803, %v3324
  %v5124 = vsub.f32 %v4804, %v3325
  %v5125 = vsub.f32 %v4805, %v3326
  %v5126 = vsub.f32 %v4806, %v3327
  %v5127 = vsub.f32 %v4807, %v3328
  %v5128 = vsub.f32 %v4808, %v3329
  %v5129 = vsub.f32 %v4809, %v3330
  %v5130 = vsub.f32 %v4810, %v3331
  %v5131 = vsub.f32 %v4811, %v3332
  %v5132 = vsub.f32 %v4812, %v3333
  %v5133 = vsub.f32 %v4813, %v3334
  %v5134 = vsub.f32 %v4814, %v3335
  %v5135 = vsub.f32 %v4815, %v3336
  %v5136 = vsub.f32 %v4816, %v3337
  %v5137 = vsub.f32 %v4817, %v3338
  %v5138 = vsub.f32 %v4818, %v3339
  %v5139 = vsub.f32 %v4819, %v3340
  %v5140 = vsub.f32 %v4820, %v3341
  %v5141 = vsub.f32 %v4821, %v3342
  %v5142 = vsub.f32 %v4822, %v3343
  %v5143 = vsub.f32 %v4823, %v3344
  %v5144 = vsub.f32 %v4824, %v3345
  %v5145 = vsub.f32 %v4825, %v3346
  %v5146 = vsub.f32 %v4826, %v3347
  %v5147 = vsub.f32 %v4827, %v3348
  %v5148 = vsub.f32 %v4828, %v3349
  %v5149 = vsub.f32 %v4829, %v3350
  %v5150 = vsub.f32 %v4830, %v3351
  %v5151 = vsub.f32 %v4831, %v3352
  %v5152 = vsub.f32 %v4832, %v3353
  %v5153 = vsub.f32 %v4833, %v3354
  %v5154 = vsub.f32 %v4834, %v3355
  %v5155 = vsub.f32 %v4835, %v3356
  %v5156 = vsub.f32 %v4836, %v3357
  %v5157 = vsub.f32 %v4837, %v3358
  %v5158 = vsub.f32 %v4838, %v3359
  %v5159 = vsub.f32 %v4839, %v3360
  %v5160 = vsub.f32 %v4840, %v3361
  %v5161 = vsub.f32 %v4841, %v3362
  %v5162 = vsub.f32 %v4842, %v3363
  %v5163 = vsub.f32 %v4843, %v3364
  %v5164 = vsub.f32 %v4844, %v3365
  %v5165 = vsub.f32 %v4845, %v3366
  %v5166 = vsub.f32 %v4846, %v3367
  %v5167 = vsub.f32 %v4847, %v3368
  %v5168 = vsub.f32 %v4848, %v3369
  %v5169 = vsub.f32 %v4849, %v3370
  %v5170 = vsub.f32 %v4850, %v3371
  %v5171 = vsub.f32 %v4851, %v3372
  %v5172 = vsub.f32 %v4852, %v3373
  %v5173 = vsub.f32 %v4853, %v3374
  %v5174 = vsub.f32 %v4854, %v3375
  %v5175 = vsub.f32 %v4855, %v3376
  %v5176 = vsub.f32 %v4856, %v3377
  %v5177 = vsub.f32 %v4857, %v3378
  %v5178 = vsub.f32 %v4858, %v3379
  %v5179 = vsub.f32 %v4859, %v3380
  %v5180 = vsub.f32 %v4860, %v3381
  %v5181 = vsub.f32 %v4861, %v3382
  %v5182 = vsub.f32 %v4862, %v3383
  %v5183 = vsub.f32 %v4863, %v3384
  %v5184 = vsub.f32 %v4864, %v3385
  %v5185 = vsub.f32 %v4865, %v3386
  %v5186 = vsub.f32 %v4866, %v3387
  %v5187 = vsub.f32 %v4867, %v3388
  %v5188 = vsub.f32 %v4868, %v3389
  %v5189 = vsub.f32 %v4869, %v3390
  %v5190 = vsub.f32 %v4870, %v3391
  %v5191 = vsub.f32 %v4871, %v3392
  %v5192 = vsub.f32 %v4872, %v3393
  %v5193 = vsub.f32 %v4873, %v3394
  %v5194 = vsub.f32 %v4874, %v3395
  %v5195 = vsub.f32 %v4875, %v3396
  %v5196 = vsub.f32 %v4876, %v3397
  %v5197 = vsub.f32 %v4877, %v3398
  %v5198 = vsub.f32 %v4878, %v3399
  %v5199 = vsub.f32 %v4879, %v3400
  %v5200 = vsub.f32 %v4880, %v3401
  %v5201 = vsub.f32 %v4881, %v3402
  %v5202 = vsub.f32 %v4882, %v3403
  %v5203 = vsub.f32 %v4883, %v3404
  %v5204 = vsub.f32 %v4884, %v3405
  %v5205 = vsub.f32 %v4885, %v3406
  %v5206 = vsub.f32 %v4886, %v3407
  %v5207 = vsub.f32 %v4887, %v3408
  %v5208 = vsub.f32 %v4888, %v3409
  %v5209 = vsub.f32 %v4889, %v3410
  %v5210 = vsub.f32 %v4890, %v3411
  %v5211 = vsub.f32 %v4891, %v3412
  %v5212 = vsub.f32 %v4892, %v3413
  %v5213 = vsub.f32 %v4893, %v3414
  %v5214 = vsub.f32 %v4894, %v3415
  %v5215 = vsub.f32 %v4895, %v3416
  %v5216 = vsub.f32 %v4896, %v3417
  %v5217 = vsub.f32 %v4897, %v3418
  %v5218 = vsub.f32 %v4898, %v3419
  %v5219 = vsub.f32 %v4899, %v3420
  %v5220 = vsub.f32 %v4900, %v3421
  %v5221 = vsub.f32 %v4901, %v3422
  %v5222 = vsub.f32 %v4902, %v3423
  %v5223 = vsub.f32 %v4903, %v3424
  %v5224 = vsub.f32 %v4904, %v3425
  %v5225 = vsub.f32 %v4905, %v3426
  %v5226 = vsub.f32 %v4906, %v3427
  %v5227 = vsub.f32 %v4907, %v3428
  %v5228 = vsub.f32 %v4908, %v3429
  %v5229 = vsub.f32 %v4909, %v3430
  %v5230 = vsub.f32 %v4910, %v3431
  %v5231 = vsub.f32 %v4911, %v3432
  %v5232 = vsub.f32 %v4912, %v3433
  %v5233 = vsub.f32 %v4913, %v3434
  %v5234 = vsub.f32 %v4914, %v3435
  %v5235 = vsub.f32 %v4915, %v3436
  %v5236 = vsub.f32 %v4916, %v3437
  %v5237 = vsub.f32 %v4917, %v3438
  %v5238 = vsub.f32 %v4918, %v3439
  %v5239 = vsub.f32 %v4919, %v3440
  %v5240 = vsub.f32 %v4920, %v3441
  %v5241 = vsub.f32 %v4921, %v3442
  %v5242 = vsub.f32 %v4922, %v3443
  %v5243 = vsub.f32 %v4923, %v3444
  %v5244 = vsub.f32 %v4924, %v3445
  %v5245 = vsub.f32 %v4925, %v3446
  %v5246 = vsub.f32 %v4926, %v3447
  %v5247 = vadd.f32 %v4927, %v4928
  %5248 = vadd.xlane.f32.xlu0 %v5247
  %v5249 = vpop.xlane.xlu0 %5248
  %v5250 = vadd.f32 %v4929, %v4930
  %5251 = vadd.xlane.f32.xlu0 %v5250
  %v5252 = vpop.xlane.xlu0 %5251
  %v5253 = vadd.f32 %v4931, %v4932
  %5254 = vadd.xlane.f32.xlu0 %v5253
  %v5255 = vpop.xlane.xlu0 %5254
  %v5256 = vadd.f32 %v4933, %v4934
  %5257 = vadd.xlane.f32.xlu0 %v5256
  %v5258 = vpop.xlane.xlu0 %5257
  %v5259 = vadd.f32 %v4935, %v4936
  %5260 = vadd.xlane.f32.xlu0 %v5259
  %v5261 = vpop.xlane.xlu0 %5260
  %v5262 = vadd.f32 %v4937, %v4938
  %5263 = vadd.xlane.f32.xlu0 %v5262
  %v5264 = vpop.xlane.xlu0 %5263
  %v5265 = vadd.f32 %v4939, %v4940
  %5266 = vadd.xlane.f32.xlu0 %v5265
  %v5267 = vpop.xlane.xlu0 %5266
  %v5268 = vadd.f32 %v4941, %v4942
  %5269 = vadd.xlane.f32.xlu0 %v5268
  %v5270 = vpop.xlane.xlu0 %5269
  %v5271 = vadd.f32 %v4943, %v4944
  %5272 = vadd.xlane.f32.xlu0 %v5271
  %v5273 = vpop.xlane.xlu0 %5272
  %v5274 = vadd.f32 %v4945, %v4946
  %5275 = vadd.xlane.f32.xlu0 %v5274
  %v5276 = vpop.xlane.xlu0 %5275
  %v5277 = vadd.f32 %v4947, %v4948
  %5278 = vadd.xlane.f32.xlu0 %v5277
  %v5279 = vpop.xlane.xlu0 %5278
  %v5280 = vadd.f32 %v4949, %v4950
  %5281 = vadd.xlane.f32.xlu0 %v5280
  %v5282 = vpop.xlane.xlu0 %5281
  %v5283 = vadd.f32 %v4951, %v4952
  %5284 = vadd.xlane.f32.xlu0 %v5283
  %v5285 = vpop.xlane.xlu0 %5284
  %v5286 = vadd.f32 %v4953, %v4954
  %5287 = vadd.xlane.f32.xlu0 %v5286
  %v5288 = vpop.xlane.xlu0 %5287
  %v5289 = vadd.f32 %v4955, %v4956
  %5290 = vadd.xlane.f32.xlu0 %v5289
  %v5291 = vpop.xlane.xlu0 %5290
  %v5292 = vadd.f32 %v4957, %v4958
  %5293 = vadd.xlane.f32.xlu0 %v5292
  %v5294 = vpop.xlane.xlu0 %5293
  %v5295 = vadd.f32 %v4959, %v4960
  %5296 = vadd.xlane.f32.xlu0 %v5295
  %v5297 = vpop.xlane.xlu0 %5296
  %v5298 = vadd.f32 %v4961, %v4962
  %5299 = vadd.xlane.f32.xlu0 %v5298
  %v5300 = vpop.xlane.xlu0 %5299
  %v5301 = vadd.f32 %v4963, %v4964
  %5302 = vadd.xlane.f32.xlu0 %v5301
  %v5303 = vpop.xlane.xlu0 %5302
  %v5304 = vadd.f32 %v4965, %v4966
  %5305 = vadd.xlane.f32.xlu0 %v5304
  %v5306 = vpop.xlane.xlu0 %5305
  %v5307 = vadd.f32 %v4967, %v4968
  %5308 = vadd.xlane.f32.xlu0 %v5307
  %v5309 = vpop.xlane.xlu0 %5308
  %v5310 = vadd.f32 %v4969, %v4970
  %5311 = vadd.xlane.f32.xlu0 %v5310
  %v5312 = vpop.xlane.xlu0 %5311
  %v5313 = vadd.f32 %v4971, %v4972
  %5314 = vadd.xlane.f32.xlu0 %v5313
  %v5315 = vpop.xlane.xlu0 %5314
  %v5316 = vadd.f32 %v4973, %v4974
  %5317 = vadd.xlane.f32.xlu0 %v5316
  %v5318 = vpop.xlane.xlu0 %5317
  %v5319 = vadd.f32 %v4975, %v4976
  %5320 = vadd.xlane.f32.xlu0 %v5319
  %v5321 = vpop.xlane.xlu0 %5320
  %v5322 = vadd.f32 %v4977, %v4978
  %5323 = vadd.xlane.f32.xlu0 %v5322
  %v5324 = vpop.xlane.xlu0 %5323
  %v5325 = vadd.f32 %v4979, %v4980
  %5326 = vadd.xlane.f32.xlu0 %v5325
  %v5327 = vpop.xlane.xlu0 %5326
  %v5328 = vadd.f32 %v4981, %v4982
  %5329 = vadd.xlane.f32.xlu0 %v5328
  %v5330 = vpop.xlane.xlu0 %5329
  %v5331 = vadd.f32 %v4983, %v4984
  %5332 = vadd.xlane.f32.xlu0 %v5331
  %v5333 = vpop.xlane.xlu0 %5332
  %v5334 = vadd.f32 %v4985, %v4986
  %5335 = vadd.xlane.f32.xlu0 %v5334
  %v5336 = vpop.xlane.xlu0 %5335
  %v5337 = vadd.f32 %v4987, %v4988
  %5338 = vadd.xlane.f32.xlu0 %v5337
  %v5339 = vpop.xlane.xlu0 %5338
  %v5340 = vadd.f32 %v4989, %v4990
  %5341 = vadd.xlane.f32.xlu0 %v5340
  %v5342 = vpop.xlane.xlu0 %5341
  %v5343 = vadd.f32 %v4991, %v4992
  %5344 = vadd.xlane.f32.xlu0 %v5343
  %v5345 = vpop.xlane.xlu0 %5344
  %v5346 = vadd.f32 %v4993, %v4994
  %5347 = vadd.xlane.f32.xlu0 %v5346
  %v5348 = vpop.xlane.xlu0 %5347
  %v5349 = vadd.f32 %v4995, %v4996
  %5350 = vadd.xlane.f32.xlu0 %v5349
  %v5351 = vpop.xlane.xlu0 %5350
  %v5352 = vadd.f32 %v4997, %v4998
  %5353 = vadd.xlane.f32.xlu0 %v5352
  %v5354 = vpop.xlane.xlu0 %5353
  %v5355 = vadd.f32 %v4999, %v5000
  %5356 = vadd.xlane.f32.xlu0 %v5355
  %v5357 = vpop.xlane.xlu0 %5356
  %v5358 = vadd.f32 %v5001, %v5002
  %5359 = vadd.xlane.f32.xlu0 %v5358
  %v5360 = vpop.xlane.xlu0 %5359
  %v5361 = vadd.f32 %v5003, %v5004
  %5362 = vadd.xlane.f32.xlu0 %v5361
  %v5363 = vpop.xlane.xlu0 %5362
  %v5364 = vadd.f32 %v5005, %v5006
  %5365 = vadd.xlane.f32.xlu0 %v5364
  %v5366 = vpop.xlane.xlu0 %5365
  %v5367 = vadd.f32 %v5007, %v5008
  %5368 = vadd.xlane.f32.xlu0 %v5367
  %v5369 = vpop.xlane.xlu0 %5368
  %v5370 = vadd.f32 %v5009, %v5010
  %5371 = vadd.xlane.f32.xlu0 %v5370
  %v5372 = vpop.xlane.xlu0 %5371
  %v5373 = vadd.f32 %v5011, %v5012
  %5374 = vadd.xlane.f32.xlu0 %v5373
  %v5375 = vpop.xlane.xlu0 %5374
  %v5376 = vadd.f32 %v5013, %v5014
  %5377 = vadd.xlane.f32.xlu0 %v5376
  %v5378 = vpop.xlane.xlu0 %5377
  %v5379 = vadd.f32 %v5015, %v5016
  %5380 = vadd.xlane.f32.xlu0 %v5379
  %v5381 = vpop.xlane.xlu0 %5380
  %v5382 = vadd.f32 %v5017, %v5018
  %5383 = vadd.xlane.f32.xlu0 %v5382
  %v5384 = vpop.xlane.xlu0 %5383
  %v5385 = vadd.f32 %v5019, %v5020
  %5386 = vadd.xlane.f32.xlu0 %v5385
  %v5387 = vpop.xlane.xlu0 %5386
  %v5388 = vadd.f32 %v5021, %v5022
  %5389 = vadd.xlane.f32.xlu0 %v5388
  %v5390 = vpop.xlane.xlu0 %5389
  %v5391 = vadd.f32 %v5023, %v5024
  %5392 = vadd.xlane.f32.xlu0 %v5391
  %v5393 = vpop.xlane.xlu0 %5392
  %v5394 = vadd.f32 %v5025, %v5026
  %5395 = vadd.xlane.f32.xlu0 %v5394
  %v5396 = vpop.xlane.xlu0 %5395
  %v5397 = vadd.f32 %v5027, %v5028
  %5398 = vadd.xlane.f32.xlu0 %v5397
  %v5399 = vpop.xlane.xlu0 %5398
  %v5400 = vadd.f32 %v5029, %v5030
  %5401 = vadd.xlane.f32.xlu0 %v5400
  %v5402 = vpop.xlane.xlu0 %5401
  %v5403 = vadd.f32 %v5031, %v5032
  %5404 = vadd.xlane.f32.xlu0 %v5403
  %v5405 = vpop.xlane.xlu0 %5404
  %v5406 = vadd.f32 %v5033, %v5034
  %5407 = vadd.xlane.f32.xlu0 %v5406
  %v5408 = vpop.xlane.xlu0 %5407
  %v5409 = vadd.f32 %v5035, %v5036
  %5410 = vadd.xlane.f32.xlu0 %v5409
  %v5411 = vpop.xlane.xlu0 %5410
  %v5412 = vadd.f32 %v5037, %v5038
  %5413 = vadd.xlane.f32.xlu0 %v5412
  %v5414 = vpop.xlane.xlu0 %5413
  %v5415 = vadd.f32 %v5039, %v5040
  %5416 = vadd.xlane.f32.xlu0 %v5415
  %v5417 = vpop.xlane.xlu0 %5416
  %v5418 = vadd.f32 %v5041, %v5042
  %5419 = vadd.xlane.f32.xlu0 %v5418
  %v5420 = vpop.xlane.xlu0 %5419
  %v5421 = vadd.f32 %v5043, %v5044
  %5422 = vadd.xlane.f32.xlu0 %v5421
  %v5423 = vpop.xlane.xlu0 %5422
  %v5424 = vadd.f32 %v5045, %v5046
  %5425 = vadd.xlane.f32.xlu0 %v5424
  %v5426 = vpop.xlane.xlu0 %5425
  %v5427 = vadd.f32 %v5047, %v5048
  %5428 = vadd.xlane.f32.xlu0 %v5427
  %v5429 = vpop.xlane.xlu0 %5428
  %v5430 = vadd.f32 %v5049, %v5050
  %5431 = vadd.xlane.f32.xlu0 %v5430
  %v5432 = vpop.xlane.xlu0 %5431
  %v5433 = vadd.f32 %v5051, %v5052
  %5434 = vadd.xlane.f32.xlu0 %v5433
  %v5435 = vpop.xlane.xlu0 %5434
  %v5436 = vadd.f32 %v5053, %v5054
  %5437 = vadd.xlane.f32.xlu0 %v5436
  %v5438 = vpop.xlane.xlu0 %5437
  %v5439 = vadd.f32 %v5055, %v5056
  %5440 = vadd.xlane.f32.xlu0 %v5439
  %v5441 = vpop.xlane.xlu0 %5440
  %v5442 = vadd.f32 %v5057, %v5058
  %5443 = vadd.xlane.f32.xlu0 %v5442
  %v5444 = vpop.xlane.xlu0 %5443
  %v5445 = vadd.f32 %v5059, %v5060
  %5446 = vadd.xlane.f32.xlu0 %v5445
  %v5447 = vpop.xlane.xlu0 %5446
  %v5448 = vadd.f32 %v5061, %v5062
  %5449 = vadd.xlane.f32.xlu0 %v5448
  %v5450 = vpop.xlane.xlu0 %5449
  %v5451 = vadd.f32 %v5063, %v5064
  %5452 = vadd.xlane.f32.xlu0 %v5451
  %v5453 = vpop.xlane.xlu0 %5452
  %v5454 = vadd.f32 %v5065, %v5066
  %5455 = vadd.xlane.f32.xlu0 %v5454
  %v5456 = vpop.xlane.xlu0 %5455
  %v5457 = vadd.f32 %v5067, %v5068
  %5458 = vadd.xlane.f32.xlu0 %v5457
  %v5459 = vpop.xlane.xlu0 %5458
  %v5460 = vadd.f32 %v5069, %v5070
  %5461 = vadd.xlane.f32.xlu0 %v5460
  %v5462 = vpop.xlane.xlu0 %5461
  %v5463 = vadd.f32 %v5071, %v5072
  %5464 = vadd.xlane.f32.xlu0 %v5463
  %v5465 = vpop.xlane.xlu0 %5464
  %v5466 = vadd.f32 %v5073, %v5074
  %5467 = vadd.xlane.f32.xlu0 %v5466
  %v5468 = vpop.xlane.xlu0 %5467
  %v5469 = vadd.f32 %v5075, %v5076
  %5470 = vadd.xlane.f32.xlu0 %v5469
  %v5471 = vpop.xlane.xlu0 %5470
  %v5472 = vadd.f32 %v5077, %v5078
  %5473 = vadd.xlane.f32.xlu0 %v5472
  %v5474 = vpop.xlane.xlu0 %5473
  %v5475 = vadd.f32 %v5079, %v5080
  %5476 = vadd.xlane.f32.xlu0 %v5475
  %v5477 = vpop.xlane.xlu0 %5476
  %v5478 = vadd.f32 %v5081, %v5082
  %5479 = vadd.xlane.f32.xlu0 %v5478
  %v5480 = vpop.xlane.xlu0 %5479
  %v5481 = vadd.f32 %v5083, %v5084
  %5482 = vadd.xlane.f32.xlu0 %v5481
  %v5483 = vpop.xlane.xlu0 %5482
  %v5484 = vadd.f32 %v5085, %v5086
  %5485 = vadd.xlane.f32.xlu0 %v5484
  %v5486 = vpop.xlane.xlu0 %5485
  %v5487 = vadd.f32 %v5087, %v5088
  %5488 = vadd.xlane.f32.xlu0 %v5487
  %v5489 = vpop.xlane.xlu0 %5488
  %v5490 = vadd.f32 %v5089, %v5090
  %5491 = vadd.xlane.f32.xlu0 %v5490
  %v5492 = vpop.xlane.xlu0 %5491
  %v5493 = vadd.f32 %v5091, %v5092
  %5494 = vadd.xlane.f32.xlu0 %v5493
  %v5495 = vpop.xlane.xlu0 %5494
  %v5496 = vadd.f32 %v5093, %v5094
  %5497 = vadd.xlane.f32.xlu0 %v5496
  %v5498 = vpop.xlane.xlu0 %5497
  %v5499 = vadd.f32 %v5095, %v5096
  %5500 = vadd.xlane.f32.xlu0 %v5499
  %v5501 = vpop.xlane.xlu0 %5500
  %v5502 = vadd.f32 %v5097, %v5098
  %5503 = vadd.xlane.f32.xlu0 %v5502
  %v5504 = vpop.xlane.xlu0 %5503
  %v5505 = vadd.f32 %v5099, %v5100
  %5506 = vadd.xlane.f32.xlu0 %v5505
  %v5507 = vpop.xlane.xlu0 %5506
  %v5508 = vadd.f32 %v5101, %v5102
  %5509 = vadd.xlane.f32.xlu0 %v5508
  %v5510 = vpop.xlane.xlu0 %5509
  %v5511 = vadd.f32 %v5103, %v5104
  %5512 = vadd.xlane.f32.xlu0 %v5511
  %v5513 = vpop.xlane.xlu0 %5512
  %v5514 = vadd.f32 %v5105, %v5106
  %5515 = vadd.xlane.f32.xlu0 %v5514
  %v5516 = vpop.xlane.xlu0 %5515
  %v5517 = vadd.f32 %v5107, %v5108
  %5518 = vadd.xlane.f32.xlu0 %v5517
  %v5519 = vpop.xlane.xlu0 %5518
  %v5520 = vadd.f32 %v5109, %v5110
  %5521 = vadd.xlane.f32.xlu0 %v5520
  %v5522 = vpop.xlane.xlu0 %5521
  %v5523 = vadd.f32 %v5111, %v5112
  %5524 = vadd.xlane.f32.xlu0 %v5523
  %v5525 = vpop.xlane.xlu0 %5524
  %v5526 = vadd.f32 %v5113, %v5114
  %5527 = vadd.xlane.f32.xlu0 %v5526
  %v5528 = vpop.xlane.xlu0 %5527
  %v5529 = vadd.f32 %v5115, %v5116
  %5530 = vadd.xlane.f32.xlu0 %v5529
  %v5531 = vpop.xlane.xlu0 %5530
  %v5532 = vadd.f32 %v5117, %v5118
  %5533 = vadd.xlane.f32.xlu0 %v5532
  %v5534 = vpop.xlane.xlu0 %5533
  %v5535 = vadd.f32 %v5119, %v5120
  %5536 = vadd.xlane.f32.xlu0 %v5535
  %v5537 = vpop.xlane.xlu0 %5536
  %v5538 = vadd.f32 %v5121, %v5122
  %5539 = vadd.xlane.f32.xlu0 %v5538
  %v5540 = vpop.xlane.xlu0 %5539
  %v5541 = vadd.f32 %v5123, %v5124
  %5542 = vadd.xlane.f32.xlu0 %v5541
  %v5543 = vpop.xlane.xlu0 %5542
  %v5544 = vadd.f32 %v5125, %v5126
  %5545 = vadd.xlane.f32.xlu0 %v5544
  %v5546 = vpop.xlane.xlu0 %5545
  %v5547 = vadd.f32 %v5127, %v5128
  %5548 = vadd.xlane.f32.xlu0 %v5547
  %v5549 = vpop.xlane.xlu0 %5548
  %v5550 = vadd.f32 %v5129, %v5130
  %5551 = vadd.xlane.f32.xlu0 %v5550
  %v5552 = vpop.xlane.xlu0 %5551
  %v5553 = vadd.f32 %v5131, %v5132
  %5554 = vadd.xlane.f32.xlu0 %v5553
  %v5555 = vpop.xlane.xlu0 %5554
  %v5556 = vadd.f32 %v5133, %v5134
  %5557 = vadd.xlane.f32.xlu0 %v5556
  %v5558 = vpop.xlane.xlu0 %5557
  %v5559 = vadd.f32 %v5135, %v5136
  %5560 = vadd.xlane.f32.xlu0 %v5559
  %v5561 = vpop.xlane.xlu0 %5560
  %v5562 = vadd.f32 %v5137, %v5138
  %5563 = vadd.xlane.f32.xlu0 %v5562
  %v5564 = vpop.xlane.xlu0 %5563
  %v5565 = vadd.f32 %v5139, %v5140
  %5566 = vadd.xlane.f32.xlu0 %v5565
  %v5567 = vpop.xlane.xlu0 %5566
  %v5568 = vadd.f32 %v5141, %v5142
  %5569 = vadd.xlane.f32.xlu0 %v5568
  %v5570 = vpop.xlane.xlu0 %5569
  %v5571 = vadd.f32 %v5143, %v5144
  %5572 = vadd.xlane.f32.xlu0 %v5571
  %v5573 = vpop.xlane.xlu0 %5572
  %v5574 = vadd.f32 %v5145, %v5146
  %5575 = vadd.xlane.f32.xlu0 %v5574
  %v5576 = vpop.xlane.xlu0 %5575
  %v5577 = vadd.f32 %v5147, %v5148
  %5578 = vadd.xlane.f32.xlu0 %v5577
  %v5579 = vpop.xlane.xlu0 %5578
  %v5580 = vadd.f32 %v5149, %v5150
  %5581 = vadd.xlane.f32.xlu0 %v5580
  %v5582 = vpop.xlane.xlu0 %5581
  %v5583 = vadd.f32 %v5151, %v5152
  %5584 = vadd.xlane.f32.xlu0 %v5583
  %v5585 = vpop.xlane.xlu0 %5584
  %v5586 = vadd.f32 %v5153, %v5154
  %5587 = vadd.xlane.f32.xlu0 %v5586
  %v5588 = vpop.xlane.xlu0 %5587
  %v5589 = vadd.f32 %v5155, %v5156
  %5590 = vadd.xlane.f32.xlu0 %v5589
  %v5591 = vpop.xlane.xlu0 %5590
  %v5592 = vadd.f32 %v5157, %v5158
  %5593 = vadd.xlane.f32.xlu0 %v5592
  %v5594 = vpop.xlane.xlu0 %5593
  %v5595 = vadd.f32 %v5159, %v5160
  %5596 = vadd.xlane.f32.xlu0 %v5595
  %v5597 = vpop.xlane.xlu0 %5596
  %v5598 = vadd.f32 %v5161, %v5162
  %5599 = vadd.xlane.f32.xlu0 %v5598
  %v5600 = vpop.xlane.xlu0 %5599
  %v5601 = vadd.f32 %v5163, %v5164
  %5602 = vadd.xlane.f32.xlu0 %v5601
  %v5603 = vpop.xlane.xlu0 %5602
  %v5604 = vadd.f32 %v5165, %v5166
  %5605 = vadd.xlane.f32.xlu0 %v5604
  %v5606 = vpop.xlane.xlu0 %5605
  %v5607 = vadd.f32 %v5167, %v5168
  %5608 = vadd.xlane.f32.xlu0 %v5607
  %v5609 = vpop.xlane.xlu0 %5608
  %v5610 = vadd.f32 %v5169, %v5170
  %5611 = vadd.xlane.f32.xlu0 %v5610
  %v5612 = vpop.xlane.xlu0 %5611
  %v5613 = vadd.f32 %v5171, %v5172
  %5614 = vadd.xlane.f32.xlu0 %v5613
  %v5615 = vpop.xlane.xlu0 %5614
  %v5616 = vadd.f32 %v5173, %v5174
  %5617 = vadd.xlane.f32.xlu0 %v5616
  %v5618 = vpop.xlane.xlu0 %5617
  %v5619 = vadd.f32 %v5175, %v5176
  %5620 = vadd.xlane.f32.xlu0 %v5619
  %v5621 = vpop.xlane.xlu0 %5620
  %v5622 = vadd.f32 %v5177, %v5178
  %5623 = vadd.xlane.f32.xlu0 %v5622
  %v5624 = vpop.xlane.xlu0 %5623
  %v5625 = vadd.f32 %v5179, %v5180
  %5626 = vadd.xlane.f32.xlu0 %v5625
  %v5627 = vpop.xlane.xlu0 %5626
  %v5628 = vadd.f32 %v5181, %v5182
  %5629 = vadd.xlane.f32.xlu0 %v5628
  %v5630 = vpop.xlane.xlu0 %5629
  %v5631 = vadd.f32 %v5183, %v5184
  %5632 = vadd.xlane.f32.xlu0 %v5631
  %v5633 = vpop.xlane.xlu0 %5632
  %v5634 = vadd.f32 %v5185, %v5186
  %5635 = vadd.xlane.f32.xlu0 %v5634
  %v5636 = vpop.xlane.xlu0 %5635
  %v5637 = vadd.f32 %v5187, %v5188
  %5638 = vadd.xlane.f32.xlu0 %v5637
  %v5639 = vpop.xlane.xlu0 %5638
  %v5640 = vadd.f32 %v5189, %v5190
  %5641 = vadd.xlane.f32.xlu0 %v5640
  %v5642 = vpop.xlane.xlu0 %5641
  %v5643 = vadd.f32 %v5191, %v5192
  %5644 = vadd.xlane.f32.xlu0 %v5643
  %v5645 = vpop.xlane.xlu0 %5644
  %v5646 = vadd.f32 %v5193, %v5194
  %5647 = vadd.xlane.f32.xlu0 %v5646
  %v5648 = vpop.xlane.xlu0 %5647
  %v5649 = vadd.f32 %v5195, %v5196
  %5650 = vadd.xlane.f32.xlu0 %v5649
  %v5651 = vpop.xlane.xlu0 %5650
  %v5652 = vadd.f32 %v5197, %v5198
  %5653 = vadd.xlane.f32.xlu0 %v5652
  %v5654 = vpop.xlane.xlu0 %5653
  %v5655 = vadd.f32 %v5199, %v5200
  %5656 = vadd.xlane.f32.xlu0 %v5655
  %v5657 = vpop.xlane.xlu0 %5656
  %v5658 = vadd.f32 %v5201, %v5202
  %5659 = vadd.xlane.f32.xlu0 %v5658
  %v5660 = vpop.xlane.xlu0 %5659
  %v5661 = vadd.f32 %v5203, %v5204
  %5662 = vadd.xlane.f32.xlu0 %v5661
  %v5663 = vpop.xlane.xlu0 %5662
  %v5664 = vadd.f32 %v5205, %v5206
  %5665 = vadd.xlane.f32.xlu0 %v5664
  %v5666 = vpop.xlane.xlu0 %5665
  %v5667 = vadd.f32 %v5207, %v5208
  %5668 = vadd.xlane.f32.xlu0 %v5667
  %v5669 = vpop.xlane.xlu0 %5668
  %v5670 = vadd.f32 %v5209, %v5210
  %5671 = vadd.xlane.f32.xlu0 %v5670
  %v5672 = vpop.xlane.xlu0 %5671
  %v5673 = vadd.f32 %v5211, %v5212
  %5674 = vadd.xlane.f32.xlu0 %v5673
  %v5675 = vpop.xlane.xlu0 %5674
  %v5676 = vadd.f32 %v5213, %v5214
  %5677 = vadd.xlane.f32.xlu0 %v5676
  %v5678 = vpop.xlane.xlu0 %5677
  %v5679 = vadd.f32 %v5215, %v5216
  %5680 = vadd.xlane.f32.xlu0 %v5679
  %v5681 = vpop.xlane.xlu0 %5680
  %v5682 = vadd.f32 %v5217, %v5218
  %5683 = vadd.xlane.f32.xlu0 %v5682
  %v5684 = vpop.xlane.xlu0 %5683
  %v5685 = vadd.f32 %v5219, %v5220
  %5686 = vadd.xlane.f32.xlu0 %v5685
  %v5687 = vpop.xlane.xlu0 %5686
  %v5688 = vadd.f32 %v5221, %v5222
  %5689 = vadd.xlane.f32.xlu0 %v5688
  %v5690 = vpop.xlane.xlu0 %5689
  %v5691 = vadd.f32 %v5223, %v5224
  %5692 = vadd.xlane.f32.xlu0 %v5691
  %v5693 = vpop.xlane.xlu0 %5692
  %v5694 = vadd.f32 %v5225, %v5226
  %5695 = vadd.xlane.f32.xlu0 %v5694
  %v5696 = vpop.xlane.xlu0 %5695
  %v5697 = vadd.f32 %v5227, %v5228
  %5698 = vadd.xlane.f32.xlu0 %v5697
  %v5699 = vpop.xlane.xlu0 %5698
  %v5700 = vadd.f32 %v5229, %v5230
  %5701 = vadd.xlane.f32.xlu0 %v5700
  %v5702 = vpop.xlane.xlu0 %5701
  %v5703 = vadd.f32 %v5231, %v5232
  %5704 = vadd.xlane.f32.xlu0 %v5703
  %v5705 = vpop.xlane.xlu0 %5704
  %v5706 = vadd.f32 %v5233, %v5234
  %5707 = vadd.xlane.f32.xlu0 %v5706
  %v5708 = vpop.xlane.xlu0 %5707
  %v5709 = vadd.f32 %v5235, %v5236
  %5710 = vadd.xlane.f32.xlu0 %v5709
  %v5711 = vpop.xlane.xlu0 %5710
  %v5712 = vadd.f32 %v5237, %v5238
  %5713 = vadd.xlane.f32.xlu0 %v5712
  %v5714 = vpop.xlane.xlu0 %5713
  %v5715 = vadd.f32 %v5239, %v5240
  %5716 = vadd.xlane.f32.xlu0 %v5715
  %v5717 = vpop.xlane.xlu0 %5716
  %v5718 = vadd.f32 %v5241, %v5242
  %5719 = vadd.xlane.f32.xlu0 %v5718
  %v5720 = vpop.xlane.xlu0 %5719
  %v5721 = vadd.f32 %v5243, %v5244
  %5722 = vadd.xlane.f32.xlu0 %v5721
  %v5723 = vpop.xlane.xlu0 %5722
  %v5724 = vadd.f32 %v5245, %v5246
  %5725 = vadd.xlane.f32.xlu0 %v5724
  %v5726 = vpop.xlane.xlu0 %5725
  %v5727 = vadd.f32 %v5249, 0.0
  %v5728 = vadd.f32 %v5252, 0.0
  %v5729 = vadd.f32 %v5255, 0.0
  %v5730 = vadd.f32 %v5258, 0.0
  %v5731 = vadd.f32 %v5261, 0.0
  %v5732 = vadd.f32 %v5264, 0.0
  %v5733 = vadd.f32 %v5267, 0.0
  %v5734 = vadd.f32 %v5270, 0.0
  %v5735 = vadd.f32 %v5273, 0.0
  %v5736 = vadd.f32 %v5276, 0.0
  %v5737 = vadd.f32 %v5279, 0.0
  %v5738 = vadd.f32 %v5282, 0.0
  %v5739 = vadd.f32 %v5285, 0.0
  %v5740 = vadd.f32 %v5288, 0.0
  %v5741 = vadd.f32 %v5291, 0.0
  %v5742 = vadd.f32 %v5294, 0.0
  %v5743 = vadd.f32 %v5297, 0.0
  %v5744 = vadd.f32 %v5300, 0.0
  %v5745 = vadd.f32 %v5303, 0.0
  %v5746 = vadd.f32 %v5306, 0.0
  %v5747 = vadd.f32 %v5309, 0.0
  %v5748 = vadd.f32 %v5312, 0.0
  %v5749 = vadd.f32 %v5315, 0.0
  %v5750 = vadd.f32 %v5318, 0.0
  %v5751 = vadd.f32 %v5321, 0.0
  %v5752 = vadd.f32 %v5324, 0.0
  %v5753 = vadd.f32 %v5327, 0.0
  %v5754 = vadd.f32 %v5330, 0.0
  %v5755 = vadd.f32 %v5333, 0.0
  %v5756 = vadd.f32 %v5336, 0.0
  %v5757 = vadd.f32 %v5339, 0.0
  %v5758 = vadd.f32 %v5342, 0.0
  %v5759 = vadd.f32 %v5345, 0.0
  %v5760 = vadd.f32 %v5348, 0.0
  %v5761 = vadd.f32 %v5351, 0.0
  %v5762 = vadd.f32 %v5354, 0.0
  %v5763 = vadd.f32 %v5357, 0.0
  %v5764 = vadd.f32 %v5360, 0.0
  %v5765 = vadd.f32 %v5363, 0.0
  %v5766 = vadd.f32 %v5366, 0.0
  %v5767 = vadd.f32 %v5369, 0.0
  %v5768 = vadd.f32 %v5372, 0.0
  %v5769 = vadd.f32 %v5375, 0.0
  %v5770 = vadd.f32 %v5378, 0.0
  %v5771 = vadd.f32 %v5381, 0.0
  %v5772 = vadd.f32 %v5384, 0.0
  %v5773 = vadd.f32 %v5387, 0.0
  %v5774 = vadd.f32 %v5390, 0.0
  %v5775 = vadd.f32 %v5393, 0.0
  %v5776 = vadd.f32 %v5396, 0.0
  %v5777 = vadd.f32 %v5399, 0.0
  %v5778 = vadd.f32 %v5402, 0.0
  %v5779 = vadd.f32 %v5405, 0.0
  %v5780 = vadd.f32 %v5408, 0.0
  %v5781 = vadd.f32 %v5411, 0.0
  %v5782 = vadd.f32 %v5414, 0.0
  %v5783 = vadd.f32 %v5417, 0.0
  %v5784 = vadd.f32 %v5420, 0.0
  %v5785 = vadd.f32 %v5423, 0.0
  %v5786 = vadd.f32 %v5426, 0.0
  %v5787 = vadd.f32 %v5429, 0.0
  %v5788 = vadd.f32 %v5432, 0.0
  %v5789 = vadd.f32 %v5435, 0.0
  %v5790 = vadd.f32 %v5438, 0.0
  %v5791 = vadd.f32 %v5441, 0.0
  %v5792 = vadd.f32 %v5444, 0.0
  %v5793 = vadd.f32 %v5447, 0.0
  %v5794 = vadd.f32 %v5450, 0.0
  %v5795 = vadd.f32 %v5453, 0.0
  %v5796 = vadd.f32 %v5456, 0.0
  %v5797 = vadd.f32 %v5459, 0.0
  %v5798 = vadd.f32 %v5462, 0.0
  %v5799 = vadd.f32 %v5465, 0.0
  %v5800 = vadd.f32 %v5468, 0.0
  %v5801 = vadd.f32 %v5471, 0.0
  %v5802 = vadd.f32 %v5474, 0.0
  %v5803 = vadd.f32 %v5477, 0.0
  %v5804 = vadd.f32 %v5480, 0.0
  %v5805 = vadd.f32 %v5483, 0.0
  %v5806 = vadd.f32 %v5486, 0.0
  %v5807 = vadd.f32 %v5489, 0.0
  %v5808 = vadd.f32 %v5492, 0.0
  %v5809 = vadd.f32 %v5495, 0.0
  %v5810 = vadd.f32 %v5498, 0.0
  %v5811 = vadd.f32 %v5501, 0.0
  %v5812 = vadd.f32 %v5504, 0.0
  %v5813 = vadd.f32 %v5507, 0.0
  %v5814 = vadd.f32 %v5510, 0.0
  %v5815 = vadd.f32 %v5513, 0.0
  %v5816 = vadd.f32 %v5516, 0.0
  %v5817 = vadd.f32 %v5519, 0.0
  %v5818 = vadd.f32 %v5522, 0.0
  %v5819 = vadd.f32 %v5525, 0.0
  %v5820 = vadd.f32 %v5528, 0.0
  %v5821 = vadd.f32 %v5531, 0.0
  %v5822 = vadd.f32 %v5534, 0.0
  %v5823 = vadd.f32 %v5537, 0.0
  %v5824 = vadd.f32 %v5540, 0.0
  %v5825 = vadd.f32 %v5543, 0.0
  %v5826 = vadd.f32 %v5546, 0.0
  %v5827 = vadd.f32 %v5549, 0.0
  %v5828 = vadd.f32 %v5552, 0.0
  %v5829 = vadd.f32 %v5555, 0.0
  %v5830 = vadd.f32 %v5558, 0.0
  %v5831 = vadd.f32 %v5561, 0.0
  %v5832 = vadd.f32 %v5564, 0.0
  %v5833 = vadd.f32 %v5567, 0.0
  %v5834 = vadd.f32 %v5570, 0.0
  %v5835 = vadd.f32 %v5573, 0.0
  %v5836 = vadd.f32 %v5576, 0.0
  %v5837 = vadd.f32 %v5579, 0.0
  %v5838 = vadd.f32 %v5582, 0.0
  %v5839 = vadd.f32 %v5585, 0.0
  %v5840 = vadd.f32 %v5588, 0.0
  %v5841 = vadd.f32 %v5591, 0.0
  %v5842 = vadd.f32 %v5594, 0.0
  %v5843 = vadd.f32 %v5597, 0.0
  %v5844 = vadd.f32 %v5600, 0.0
  %v5845 = vadd.f32 %v5603, 0.0
  %v5846 = vadd.f32 %v5606, 0.0
  %v5847 = vadd.f32 %v5609, 0.0
  %v5848 = vadd.f32 %v5612, 0.0
  %v5849 = vadd.f32 %v5615, 0.0
  %v5850 = vadd.f32 %v5618, 0.0
  %v5851 = vadd.f32 %v5621, 0.0
  %v5852 = vadd.f32 %v5624, 0.0
  %v5853 = vadd.f32 %v5627, 0.0
  %v5854 = vadd.f32 %v5630, 0.0
  %v5855 = vadd.f32 %v5633, 0.0
  %v5856 = vadd.f32 %v5636, 0.0
  %v5857 = vadd.f32 %v5639, 0.0
  %v5858 = vadd.f32 %v5642, 0.0
  %v5859 = vadd.f32 %v5645, 0.0
  %v5860 = vadd.f32 %v5648, 0.0
  %v5861 = vadd.f32 %v5651, 0.0
  %v5862 = vadd.f32 %v5654, 0.0
  %v5863 = vadd.f32 %v5657, 0.0
  %v5864 = vadd.f32 %v5660, 0.0
  %v5865 = vadd.f32 %v5663, 0.0
  %v5866 = vadd.f32 %v5666, 0.0
  %v5867 = vadd.f32 %v5669, 0.0
  %v5868 = vadd.f32 %v5672, 0.0
  %v5869 = vadd.f32 %v5675, 0.0
  %v5870 = vadd.f32 %v5678, 0.0
  %v5871 = vadd.f32 %v5681, 0.0
  %v5872 = vadd.f32 %v5684, 0.0
  %v5873 = vadd.f32 %v5687, 0.0
  %v5874 = vadd.f32 %v5690, 0.0
  %v5875 = vadd.f32 %v5693, 0.0
  %v5876 = vadd.f32 %v5696, 0.0
  %v5877 = vadd.f32 %v5699, 0.0
  %v5878 = vadd.f32 %v5702, 0.0
  %v5879 = vadd.f32 %v5705, 0.0
  %v5880 = vadd.f32 %v5708, 0.0
  %v5881 = vadd.f32 %v5711, 0.0
  %v5882 = vadd.f32 %v5714, 0.0
  %v5883 = vadd.f32 %v5717, 0.0
  %v5884 = vadd.f32 %v5720, 0.0
  %v5885 = vadd.f32 %v5723, 0.0
  %v5886 = vadd.f32 %v5726, 0.0
  %s5887 = scalar_lea.vmem %s2, 640
  %v5888 = vld [vmem:[%s5887] sm:$0xf]
  %v5889 = vld [vmem:[%s5887 + $0x4] sm:$0xf]
  %v5890 = vld [vmem:[%s5887 + $0x8] sm:$0xf]
  %v5891 = vld [vmem:[%s5887 + $0xc] sm:$0xf]
  %v5892 = vld [vmem:[%s5887 + $0x10] sm:$0xf]
  %v5893 = vld [vmem:[%s5887 + $0x14] sm:$0xf]
  %v5894 = vld [vmem:[%s5887 + $0x18] sm:$0xf]
  %v5895 = vld [vmem:[%s5887 + $0x1c] sm:$0xf]
  %v5896 = vld [vmem:[%s5887 + $0x20] sm:$0xf]
  %v5897 = vld [vmem:[%s5887 + $0x24] sm:$0xf]
  %v5898 = vld [vmem:[%s5887 + $0x28] sm:$0xf]
  %v5899 = vld [vmem:[%s5887 + $0x2c] sm:$0xf]
  %v5900 = vld [vmem:[%s5887 + $0x30] sm:$0xf]
  %v5901 = vld [vmem:[%s5887 + $0x34] sm:$0xf]
  %v5902 = vld [vmem:[%s5887 + $0x38] sm:$0xf]
  %v5903 = vld [vmem:[%s5887 + $0x3c] sm:$0xf]
  %v5904 = vld [vmem:[%s5887 + $0x40] sm:$0xf]
  %v5905 = vld [vmem:[%s5887 + $0x44] sm:$0xf]
  %v5906 = vld [vmem:[%s5887 + $0x48] sm:$0xf]
  %v5907 = vld [vmem:[%s5887 + $0x4c] sm:$0xf]
  %v5908 = vld [vmem:[%s5887 + $0x50] sm:$0xf]
  %v5909 = vld [vmem:[%s5887 + $0x54] sm:$0xf]
  %v5910 = vld [vmem:[%s5887 + $0x58] sm:$0xf]
  %v5911 = vld [vmem:[%s5887 + $0x5c] sm:$0xf]
  %v5912 = vld [vmem:[%s5887 + $0x60] sm:$0xf]
  %v5913 = vld [vmem:[%s5887 + $0x64] sm:$0xf]
  %v5914 = vld [vmem:[%s5887 + $0x68] sm:$0xf]
  %v5915 = vld [vmem:[%s5887 + $0x6c] sm:$0xf]
  %v5916 = vld [vmem:[%s5887 + $0x70] sm:$0xf]
  %v5917 = vld [vmem:[%s5887 + $0x74] sm:$0xf]
  %v5918 = vld [vmem:[%s5887 + $0x78] sm:$0xf]
  %v5919 = vld [vmem:[%s5887 + $0x7c] sm:$0xf]
  %v5920 = vld [vmem:[%s5887 + $0x80] sm:$0xf]
  %v5921 = vld [vmem:[%s5887 + $0x84] sm:$0xf]
  %v5922 = vld [vmem:[%s5887 + $0x88] sm:$0xf]
  %v5923 = vld [vmem:[%s5887 + $0x8c] sm:$0xf]
  %v5924 = vld [vmem:[%s5887 + $0x90] sm:$0xf]
  %v5925 = vld [vmem:[%s5887 + $0x94] sm:$0xf]
  %v5926 = vld [vmem:[%s5887 + $0x98] sm:$0xf]
  %v5927 = vld [vmem:[%s5887 + $0x9c] sm:$0xf]
  %v5928 = vld [vmem:[%s5887 + $0xa0] sm:$0xf]
  %v5929 = vld [vmem:[%s5887 + $0xa4] sm:$0xf]
  %v5930 = vld [vmem:[%s5887 + $0xa8] sm:$0xf]
  %v5931 = vld [vmem:[%s5887 + $0xac] sm:$0xf]
  %v5932 = vld [vmem:[%s5887 + $0xb0] sm:$0xf]
  %v5933 = vld [vmem:[%s5887 + $0xb4] sm:$0xf]
  %v5934 = vld [vmem:[%s5887 + $0xb8] sm:$0xf]
  %v5935 = vld [vmem:[%s5887 + $0xbc] sm:$0xf]
  %v5936 = vld [vmem:[%s5887 + $0xc0] sm:$0xf]
  %v5937 = vld [vmem:[%s5887 + $0xc4] sm:$0xf]
  %v5938 = vld [vmem:[%s5887 + $0xc8] sm:$0xf]
  %v5939 = vld [vmem:[%s5887 + $0xcc] sm:$0xf]
  %v5940 = vld [vmem:[%s5887 + $0xd0] sm:$0xf]
  %v5941 = vld [vmem:[%s5887 + $0xd4] sm:$0xf]
  %v5942 = vld [vmem:[%s5887 + $0xd8] sm:$0xf]
  %v5943 = vld [vmem:[%s5887 + $0xdc] sm:$0xf]
  %v5944 = vld [vmem:[%s5887 + $0xe0] sm:$0xf]
  %v5945 = vld [vmem:[%s5887 + $0xe4] sm:$0xf]
  %v5946 = vld [vmem:[%s5887 + $0xe8] sm:$0xf]
  %v5947 = vld [vmem:[%s5887 + $0xec] sm:$0xf]
  %v5948 = vld [vmem:[%s5887 + $0xf0] sm:$0xf]
  %v5949 = vld [vmem:[%s5887 + $0xf4] sm:$0xf]
  %v5950 = vld [vmem:[%s5887 + $0xf8] sm:$0xf]
  %v5951 = vld [vmem:[%s5887 + $0xfc] sm:$0xf]
  %v5952 = vld [vmem:[%s5887 + $0x100] sm:$0xf]
  %v5953 = vld [vmem:[%s5887 + $0x104] sm:$0xf]
  %v5954 = vld [vmem:[%s5887 + $0x108] sm:$0xf]
  %v5955 = vld [vmem:[%s5887 + $0x10c] sm:$0xf]
  %v5956 = vld [vmem:[%s5887 + $0x110] sm:$0xf]
  %v5957 = vld [vmem:[%s5887 + $0x114] sm:$0xf]
  %v5958 = vld [vmem:[%s5887 + $0x118] sm:$0xf]
  %v5959 = vld [vmem:[%s5887 + $0x11c] sm:$0xf]
  %v5960 = vld [vmem:[%s5887 + $0x120] sm:$0xf]
  %v5961 = vld [vmem:[%s5887 + $0x124] sm:$0xf]
  %v5962 = vld [vmem:[%s5887 + $0x128] sm:$0xf]
  %v5963 = vld [vmem:[%s5887 + $0x12c] sm:$0xf]
  %v5964 = vld [vmem:[%s5887 + $0x130] sm:$0xf]
  %v5965 = vld [vmem:[%s5887 + $0x134] sm:$0xf]
  %v5966 = vld [vmem:[%s5887 + $0x138] sm:$0xf]
  %v5967 = vld [vmem:[%s5887 + $0x13c] sm:$0xf]
  %v5968 = vld [vmem:[%s5887 + $0x140] sm:$0xf]
  %v5969 = vld [vmem:[%s5887 + $0x144] sm:$0xf]
  %v5970 = vld [vmem:[%s5887 + $0x148] sm:$0xf]
  %v5971 = vld [vmem:[%s5887 + $0x14c] sm:$0xf]
  %v5972 = vld [vmem:[%s5887 + $0x150] sm:$0xf]
  %v5973 = vld [vmem:[%s5887 + $0x154] sm:$0xf]
  %v5974 = vld [vmem:[%s5887 + $0x158] sm:$0xf]
  %v5975 = vld [vmem:[%s5887 + $0x15c] sm:$0xf]
  %v5976 = vld [vmem:[%s5887 + $0x160] sm:$0xf]
  %v5977 = vld [vmem:[%s5887 + $0x164] sm:$0xf]
  %v5978 = vld [vmem:[%s5887 + $0x168] sm:$0xf]
  %v5979 = vld [vmem:[%s5887 + $0x16c] sm:$0xf]
  %v5980 = vld [vmem:[%s5887 + $0x170] sm:$0xf]
  %v5981 = vld [vmem:[%s5887 + $0x174] sm:$0xf]
  %v5982 = vld [vmem:[%s5887 + $0x178] sm:$0xf]
  %v5983 = vld [vmem:[%s5887 + $0x17c] sm:$0xf]
  %v5984 = vld [vmem:[%s5887 + $0x180] sm:$0xf]
  %v5985 = vld [vmem:[%s5887 + $0x184] sm:$0xf]
  %v5986 = vld [vmem:[%s5887 + $0x188] sm:$0xf]
  %v5987 = vld [vmem:[%s5887 + $0x18c] sm:$0xf]
  %v5988 = vld [vmem:[%s5887 + $0x190] sm:$0xf]
  %v5989 = vld [vmem:[%s5887 + $0x194] sm:$0xf]
  %v5990 = vld [vmem:[%s5887 + $0x198] sm:$0xf]
  %v5991 = vld [vmem:[%s5887 + $0x19c] sm:$0xf]
  %v5992 = vld [vmem:[%s5887 + $0x1a0] sm:$0xf]
  %v5993 = vld [vmem:[%s5887 + $0x1a4] sm:$0xf]
  %v5994 = vld [vmem:[%s5887 + $0x1a8] sm:$0xf]
  %v5995 = vld [vmem:[%s5887 + $0x1ac] sm:$0xf]
  %v5996 = vld [vmem:[%s5887 + $0x1b0] sm:$0xf]
  %v5997 = vld [vmem:[%s5887 + $0x1b4] sm:$0xf]
  %v5998 = vld [vmem:[%s5887 + $0x1b8] sm:$0xf]
  %v5999 = vld [vmem:[%s5887 + $0x1bc] sm:$0xf]
  %v6000 = vld [vmem:[%s5887 + $0x1c0] sm:$0xf]
  %v6001 = vld [vmem:[%s5887 + $0x1c4] sm:$0xf]
  %v6002 = vld [vmem:[%s5887 + $0x1c8] sm:$0xf]
  %v6003 = vld [vmem:[%s5887 + $0x1cc] sm:$0xf]
  %v6004 = vld [vmem:[%s5887 + $0x1d0] sm:$0xf]
  %v6005 = vld [vmem:[%s5887 + $0x1d4] sm:$0xf]
  %v6006 = vld [vmem:[%s5887 + $0x1d8] sm:$0xf]
  %v6007 = vld [vmem:[%s5887 + $0x1dc] sm:$0xf]
  %v6008 = vld [vmem:[%s5887 + $0x1e0] sm:$0xf]
  %v6009 = vld [vmem:[%s5887 + $0x1e4] sm:$0xf]
  %v6010 = vld [vmem:[%s5887 + $0x1e8] sm:$0xf]
  %v6011 = vld [vmem:[%s5887 + $0x1ec] sm:$0xf]
  %v6012 = vld [vmem:[%s5887 + $0x1f0] sm:$0xf]
  %v6013 = vld [vmem:[%s5887 + $0x1f4] sm:$0xf]
  %v6014 = vld [vmem:[%s5887 + $0x1f8] sm:$0xf]
  %v6015 = vld [vmem:[%s5887 + $0x1fc] sm:$0xf]
  %v6016 = vld [vmem:[%s5887 + $0x200] sm:$0xf]
  %v6017 = vld [vmem:[%s5887 + $0x204] sm:$0xf]
  %v6018 = vld [vmem:[%s5887 + $0x208] sm:$0xf]
  %v6019 = vld [vmem:[%s5887 + $0x20c] sm:$0xf]
  %v6020 = vld [vmem:[%s5887 + $0x210] sm:$0xf]
  %v6021 = vld [vmem:[%s5887 + $0x214] sm:$0xf]
  %v6022 = vld [vmem:[%s5887 + $0x218] sm:$0xf]
  %v6023 = vld [vmem:[%s5887 + $0x21c] sm:$0xf]
  %v6024 = vld [vmem:[%s5887 + $0x220] sm:$0xf]
  %v6025 = vld [vmem:[%s5887 + $0x224] sm:$0xf]
  %v6026 = vld [vmem:[%s5887 + $0x228] sm:$0xf]
  %v6027 = vld [vmem:[%s5887 + $0x22c] sm:$0xf]
  %v6028 = vld [vmem:[%s5887 + $0x230] sm:$0xf]
  %v6029 = vld [vmem:[%s5887 + $0x234] sm:$0xf]
  %v6030 = vld [vmem:[%s5887 + $0x238] sm:$0xf]
  %v6031 = vld [vmem:[%s5887 + $0x23c] sm:$0xf]
  %v6032 = vld [vmem:[%s5887 + $0x240] sm:$0xf]
  %v6033 = vld [vmem:[%s5887 + $0x244] sm:$0xf]
  %v6034 = vld [vmem:[%s5887 + $0x248] sm:$0xf]
  %v6035 = vld [vmem:[%s5887 + $0x24c] sm:$0xf]
  %v6036 = vld [vmem:[%s5887 + $0x250] sm:$0xf]
  %v6037 = vld [vmem:[%s5887 + $0x254] sm:$0xf]
  %v6038 = vld [vmem:[%s5887 + $0x258] sm:$0xf]
  %v6039 = vld [vmem:[%s5887 + $0x25c] sm:$0xf]
  %v6040 = vld [vmem:[%s5887 + $0x260] sm:$0xf]
  %v6041 = vld [vmem:[%s5887 + $0x264] sm:$0xf]
  %v6042 = vld [vmem:[%s5887 + $0x268] sm:$0xf]
  %v6043 = vld [vmem:[%s5887 + $0x26c] sm:$0xf]
  %v6044 = vld [vmem:[%s5887 + $0x270] sm:$0xf]
  %v6045 = vld [vmem:[%s5887 + $0x274] sm:$0xf]
  %v6046 = vld [vmem:[%s5887 + $0x278] sm:$0xf]
  %v6047 = vld [vmem:[%s5887 + $0x27c] sm:$0xf]
  %s6048 = scalar_lea.vmem %s3, 1280
  %v6049 = vld [vmem:[%s6048] sm:$0xff]
  %v6050 = vld [vmem:[%s6048 + $0x8] sm:$0xff]
  %v6051 = vld [vmem:[%s6048 + $0x10] sm:$0xff]
  %v6052 = vld [vmem:[%s6048 + $0x18] sm:$0xff]
  %v6053 = vld [vmem:[%s6048 + $0x20] sm:$0xff]
  %v6054 = vld [vmem:[%s6048 + $0x28] sm:$0xff]
  %v6055 = vld [vmem:[%s6048 + $0x30] sm:$0xff]
  %v6056 = vld [vmem:[%s6048 + $0x38] sm:$0xff]
  %v6057 = vld [vmem:[%s6048 + $0x40] sm:$0xff]
  %v6058 = vld [vmem:[%s6048 + $0x48] sm:$0xff]
  %v6059 = vld [vmem:[%s6048 + $0x50] sm:$0xff]
  %v6060 = vld [vmem:[%s6048 + $0x58] sm:$0xff]
  %v6061 = vld [vmem:[%s6048 + $0x60] sm:$0xff]
  %v6062 = vld [vmem:[%s6048 + $0x68] sm:$0xff]
  %v6063 = vld [vmem:[%s6048 + $0x70] sm:$0xff]
  %v6064 = vld [vmem:[%s6048 + $0x78] sm:$0xff]
  %v6065 = vld [vmem:[%s6048 + $0x80] sm:$0xff]
  %v6066 = vld [vmem:[%s6048 + $0x88] sm:$0xff]
  %v6067 = vld [vmem:[%s6048 + $0x90] sm:$0xff]
  %v6068 = vld [vmem:[%s6048 + $0x98] sm:$0xff]
  %v6069 = vld [vmem:[%s6048 + $0xa0] sm:$0xff]
  %v6070 = vld [vmem:[%s6048 + $0xa8] sm:$0xff]
  %v6071 = vld [vmem:[%s6048 + $0xb0] sm:$0xff]
  %v6072 = vld [vmem:[%s6048 + $0xb8] sm:$0xff]
  %v6073 = vld [vmem:[%s6048 + $0xc0] sm:$0xff]
  %v6074 = vld [vmem:[%s6048 + $0xc8] sm:$0xff]
  %v6075 = vld [vmem:[%s6048 + $0xd0] sm:$0xff]
  %v6076 = vld [vmem:[%s6048 + $0xd8] sm:$0xff]
  %v6077 = vld [vmem:[%s6048 + $0xe0] sm:$0xff]
  %v6078 = vld [vmem:[%s6048 + $0xe8] sm:$0xff]
  %v6079 = vld [vmem:[%s6048 + $0xf0] sm:$0xff]
  %v6080 = vld [vmem:[%s6048 + $0xf8] sm:$0xff]
  %v6081 = vld [vmem:[%s6048 + $0x100] sm:$0xff]
  %v6082 = vld [vmem:[%s6048 + $0x108] sm:$0xff]
  %v6083 = vld [vmem:[%s6048 + $0x110] sm:$0xff]
  %v6084 = vld [vmem:[%s6048 + $0x118] sm:$0xff]
  %v6085 = vld [vmem:[%s6048 + $0x120] sm:$0xff]
  %v6086 = vld [vmem:[%s6048 + $0x128] sm:$0xff]
  %v6087 = vld [vmem:[%s6048 + $0x130] sm:$0xff]
  %v6088 = vld [vmem:[%s6048 + $0x138] sm:$0xff]
  %v6089 = vld [vmem:[%s6048 + $0x140] sm:$0xff]
  %v6090 = vld [vmem:[%s6048 + $0x148] sm:$0xff]
  %v6091 = vld [vmem:[%s6048 + $0x150] sm:$0xff]
  %v6092 = vld [vmem:[%s6048 + $0x158] sm:$0xff]
  %v6093 = vld [vmem:[%s6048 + $0x160] sm:$0xff]
  %v6094 = vld [vmem:[%s6048 + $0x168] sm:$0xff]
  %v6095 = vld [vmem:[%s6048 + $0x170] sm:$0xff]
  %v6096 = vld [vmem:[%s6048 + $0x178] sm:$0xff]
  %v6097 = vld [vmem:[%s6048 + $0x180] sm:$0xff]
  %v6098 = vld [vmem:[%s6048 + $0x188] sm:$0xff]
  %v6099 = vld [vmem:[%s6048 + $0x190] sm:$0xff]
  %v6100 = vld [vmem:[%s6048 + $0x198] sm:$0xff]
  %v6101 = vld [vmem:[%s6048 + $0x1a0] sm:$0xff]
  %v6102 = vld [vmem:[%s6048 + $0x1a8] sm:$0xff]
  %v6103 = vld [vmem:[%s6048 + $0x1b0] sm:$0xff]
  %v6104 = vld [vmem:[%s6048 + $0x1b8] sm:$0xff]
  %v6105 = vld [vmem:[%s6048 + $0x1c0] sm:$0xff]
  %v6106 = vld [vmem:[%s6048 + $0x1c8] sm:$0xff]
  %v6107 = vld [vmem:[%s6048 + $0x1d0] sm:$0xff]
  %v6108 = vld [vmem:[%s6048 + $0x1d8] sm:$0xff]
  %v6109 = vld [vmem:[%s6048 + $0x1e0] sm:$0xff]
  %v6110 = vld [vmem:[%s6048 + $0x1e8] sm:$0xff]
  %v6111 = vld [vmem:[%s6048 + $0x1f0] sm:$0xff]
  %v6112 = vld [vmem:[%s6048 + $0x1f8] sm:$0xff]
  %v6113 = vld [vmem:[%s6048 + $0x200] sm:$0xff]
  %v6114 = vld [vmem:[%s6048 + $0x208] sm:$0xff]
  %v6115 = vld [vmem:[%s6048 + $0x210] sm:$0xff]
  %v6116 = vld [vmem:[%s6048 + $0x218] sm:$0xff]
  %v6117 = vld [vmem:[%s6048 + $0x220] sm:$0xff]
  %v6118 = vld [vmem:[%s6048 + $0x228] sm:$0xff]
  %v6119 = vld [vmem:[%s6048 + $0x230] sm:$0xff]
  %v6120 = vld [vmem:[%s6048 + $0x238] sm:$0xff]
  %v6121 = vld [vmem:[%s6048 + $0x240] sm:$0xff]
  %v6122 = vld [vmem:[%s6048 + $0x248] sm:$0xff]
  %v6123 = vld [vmem:[%s6048 + $0x250] sm:$0xff]
  %v6124 = vld [vmem:[%s6048 + $0x258] sm:$0xff]
  %v6125 = vld [vmem:[%s6048 + $0x260] sm:$0xff]
  %v6126 = vld [vmem:[%s6048 + $0x268] sm:$0xff]
  %v6127 = vld [vmem:[%s6048 + $0x270] sm:$0xff]
  %v6128 = vld [vmem:[%s6048 + $0x278] sm:$0xff]
  %v6129 = vld [vmem:[%s6048 + $0x280] sm:$0xff]
  %v6130 = vld [vmem:[%s6048 + $0x288] sm:$0xff]
  %v6131 = vld [vmem:[%s6048 + $0x290] sm:$0xff]
  %v6132 = vld [vmem:[%s6048 + $0x298] sm:$0xff]
  %v6133 = vld [vmem:[%s6048 + $0x2a0] sm:$0xff]
  %v6134 = vld [vmem:[%s6048 + $0x2a8] sm:$0xff]
  %v6135 = vld [vmem:[%s6048 + $0x2b0] sm:$0xff]
  %v6136 = vld [vmem:[%s6048 + $0x2b8] sm:$0xff]
  %v6137 = vld [vmem:[%s6048 + $0x2c0] sm:$0xff]
  %v6138 = vld [vmem:[%s6048 + $0x2c8] sm:$0xff]
  %v6139 = vld [vmem:[%s6048 + $0x2d0] sm:$0xff]
  %v6140 = vld [vmem:[%s6048 + $0x2d8] sm:$0xff]
  %v6141 = vld [vmem:[%s6048 + $0x2e0] sm:$0xff]
  %v6142 = vld [vmem:[%s6048 + $0x2e8] sm:$0xff]
  %v6143 = vld [vmem:[%s6048 + $0x2f0] sm:$0xff]
  %v6144 = vld [vmem:[%s6048 + $0x2f8] sm:$0xff]
  %v6145 = vld [vmem:[%s6048 + $0x300] sm:$0xff]
  %v6146 = vld [vmem:[%s6048 + $0x308] sm:$0xff]
  %v6147 = vld [vmem:[%s6048 + $0x310] sm:$0xff]
  %v6148 = vld [vmem:[%s6048 + $0x318] sm:$0xff]
  %v6149 = vld [vmem:[%s6048 + $0x320] sm:$0xff]
  %v6150 = vld [vmem:[%s6048 + $0x328] sm:$0xff]
  %v6151 = vld [vmem:[%s6048 + $0x330] sm:$0xff]
  %v6152 = vld [vmem:[%s6048 + $0x338] sm:$0xff]
  %v6153 = vld [vmem:[%s6048 + $0x340] sm:$0xff]
  %v6154 = vld [vmem:[%s6048 + $0x348] sm:$0xff]
  %v6155 = vld [vmem:[%s6048 + $0x350] sm:$0xff]
  %v6156 = vld [vmem:[%s6048 + $0x358] sm:$0xff]
  %v6157 = vld [vmem:[%s6048 + $0x360] sm:$0xff]
  %v6158 = vld [vmem:[%s6048 + $0x368] sm:$0xff]
  %v6159 = vld [vmem:[%s6048 + $0x370] sm:$0xff]
  %v6160 = vld [vmem:[%s6048 + $0x378] sm:$0xff]
  %v6161 = vld [vmem:[%s6048 + $0x380] sm:$0xff]
  %v6162 = vld [vmem:[%s6048 + $0x388] sm:$0xff]
  %v6163 = vld [vmem:[%s6048 + $0x390] sm:$0xff]
  %v6164 = vld [vmem:[%s6048 + $0x398] sm:$0xff]
  %v6165 = vld [vmem:[%s6048 + $0x3a0] sm:$0xff]
  %v6166 = vld [vmem:[%s6048 + $0x3a8] sm:$0xff]
  %v6167 = vld [vmem:[%s6048 + $0x3b0] sm:$0xff]
  %v6168 = vld [vmem:[%s6048 + $0x3b8] sm:$0xff]
  %v6169 = vld [vmem:[%s6048 + $0x3c0] sm:$0xff]
  %v6170 = vld [vmem:[%s6048 + $0x3c8] sm:$0xff]
  %v6171 = vld [vmem:[%s6048 + $0x3d0] sm:$0xff]
  %v6172 = vld [vmem:[%s6048 + $0x3d8] sm:$0xff]
  %v6173 = vld [vmem:[%s6048 + $0x3e0] sm:$0xff]
  %v6174 = vld [vmem:[%s6048 + $0x3e8] sm:$0xff]
  %v6175 = vld [vmem:[%s6048 + $0x3f0] sm:$0xff]
  %v6176 = vld [vmem:[%s6048 + $0x3f8] sm:$0xff]
  %v6177 = vld [vmem:[%s6048 + $0x400] sm:$0xff]
  %v6178 = vld [vmem:[%s6048 + $0x408] sm:$0xff]
  %v6179 = vld [vmem:[%s6048 + $0x410] sm:$0xff]
  %v6180 = vld [vmem:[%s6048 + $0x418] sm:$0xff]
  %v6181 = vld [vmem:[%s6048 + $0x420] sm:$0xff]
  %v6182 = vld [vmem:[%s6048 + $0x428] sm:$0xff]
  %v6183 = vld [vmem:[%s6048 + $0x430] sm:$0xff]
  %v6184 = vld [vmem:[%s6048 + $0x438] sm:$0xff]
  %v6185 = vld [vmem:[%s6048 + $0x440] sm:$0xff]
  %v6186 = vld [vmem:[%s6048 + $0x448] sm:$0xff]
  %v6187 = vld [vmem:[%s6048 + $0x450] sm:$0xff]
  %v6188 = vld [vmem:[%s6048 + $0x458] sm:$0xff]
  %v6189 = vld [vmem:[%s6048 + $0x460] sm:$0xff]
  %v6190 = vld [vmem:[%s6048 + $0x468] sm:$0xff]
  %v6191 = vld [vmem:[%s6048 + $0x470] sm:$0xff]
  %v6192 = vld [vmem:[%s6048 + $0x478] sm:$0xff]
  %v6193 = vld [vmem:[%s6048 + $0x480] sm:$0xff]
  %v6194 = vld [vmem:[%s6048 + $0x488] sm:$0xff]
  %v6195 = vld [vmem:[%s6048 + $0x490] sm:$0xff]
  %v6196 = vld [vmem:[%s6048 + $0x498] sm:$0xff]
  %v6197 = vld [vmem:[%s6048 + $0x4a0] sm:$0xff]
  %v6198 = vld [vmem:[%s6048 + $0x4a8] sm:$0xff]
  %v6199 = vld [vmem:[%s6048 + $0x4b0] sm:$0xff]
  %v6200 = vld [vmem:[%s6048 + $0x4b8] sm:$0xff]
  %v6201 = vld [vmem:[%s6048 + $0x4c0] sm:$0xff]
  %v6202 = vld [vmem:[%s6048 + $0x4c8] sm:$0xff]
  %v6203 = vld [vmem:[%s6048 + $0x4d0] sm:$0xff]
  %v6204 = vld [vmem:[%s6048 + $0x4d8] sm:$0xff]
  %v6205 = vld [vmem:[%s6048 + $0x4e0] sm:$0xff]
  %v6206 = vld [vmem:[%s6048 + $0x4e8] sm:$0xff]
  %v6207 = vld [vmem:[%s6048 + $0x4f0] sm:$0xff]
  %v6208 = vld [vmem:[%s6048 + $0x4f8] sm:$0xff]
  %s6209 = scalar_lea.vmem %s0, 8
  %v6210 = vld [vmem:[%s6209] sm:$0x77]
  %v6212 = vcombine.high %v6210, %v6210
  %v6214 = vpack.c.bf16 %v6210, %v6210
  %v6215 = vpack.c.bf16 %v6212, %v6212
  %s6216 = scalar_lea.vmem %s25, 8
  %v6217 = vld [vmem:[%s6216] sm:$0x77]
  %v6219 = vcombine.high %v6217, %v6217
  %v6221 = vpack.c.bf16 %v6217, %v6217
  %v6222 = vpack.c.bf16 %v6219, %v6219
  %6224 = vset.pattern.permute.xlu0 0
  %6225 = vperm.xlu0 %6224, %v6049
  %v6226 = vpop.permute.xlu0 %6225
  %6229 = vset.pattern.permute.xlu0 0
  %6230 = vperm.xlu0 %6229, %v6050
  %v6231 = vpop.permute.xlu0 %6230
  %6234 = vset.pattern.permute.xlu0 0
  %6235 = vperm.xlu0 %6234, %v6051
  %v6236 = vpop.permute.xlu0 %6235
  %6239 = vset.pattern.permute.xlu0 0
  %6240 = vperm.xlu0 %6239, %v6052
  %v6241 = vpop.permute.xlu0 %6240
  %6244 = vset.pattern.permute.xlu0 0
  %6245 = vperm.xlu0 %6244, %v6053
  %v6246 = vpop.permute.xlu0 %6245
  %6249 = vset.pattern.permute.xlu0 0
  %6250 = vperm.xlu0 %6249, %v6054
  %v6251 = vpop.permute.xlu0 %6250
  %6254 = vset.pattern.permute.xlu0 0
  %6255 = vperm.xlu0 %6254, %v6055
  %v6256 = vpop.permute.xlu0 %6255
  %6259 = vset.pattern.permute.xlu0 0
  %6260 = vperm.xlu0 %6259, %v6056
  %v6261 = vpop.permute.xlu0 %6260
  %6264 = vset.pattern.permute.xlu0 0
  %6265 = vperm.xlu0 %6264, %v6057
  %v6266 = vpop.permute.xlu0 %6265
  %6269 = vset.pattern.permute.xlu0 0
  %6270 = vperm.xlu0 %6269, %v6058
  %v6271 = vpop.permute.xlu0 %6270
  %6274 = vset.pattern.permute.xlu0 0
  %6275 = vperm.xlu0 %6274, %v6059
  %v6276 = vpop.permute.xlu0 %6275
  %6279 = vset.pattern.permute.xlu0 0
  %6280 = vperm.xlu0 %6279, %v6060
  %v6281 = vpop.permute.xlu0 %6280
  %6284 = vset.pattern.permute.xlu0 0
  %6285 = vperm.xlu0 %6284, %v6061
  %v6286 = vpop.permute.xlu0 %6285
  %6289 = vset.pattern.permute.xlu0 0
  %6290 = vperm.xlu0 %6289, %v6062
  %v6291 = vpop.permute.xlu0 %6290
  %6294 = vset.pattern.permute.xlu0 0
  %6295 = vperm.xlu0 %6294, %v6063
  %v6296 = vpop.permute.xlu0 %6295
  %6299 = vset.pattern.permute.xlu0 0
  %6300 = vperm.xlu0 %6299, %v6064
  %v6301 = vpop.permute.xlu0 %6300
  %6304 = vset.pattern.permute.xlu0 0
  %6305 = vperm.xlu0 %6304, %v6065
  %v6306 = vpop.permute.xlu0 %6305
  %6309 = vset.pattern.permute.xlu0 0
  %6310 = vperm.xlu0 %6309, %v6066
  %v6311 = vpop.permute.xlu0 %6310
  %6314 = vset.pattern.permute.xlu0 0
  %6315 = vperm.xlu0 %6314, %v6067
  %v6316 = vpop.permute.xlu0 %6315
  %6319 = vset.pattern.permute.xlu0 0
  %6320 = vperm.xlu0 %6319, %v6068
  %v6321 = vpop.permute.xlu0 %6320
  %6324 = vset.pattern.permute.xlu0 0
  %6325 = vperm.xlu0 %6324, %v6069
  %v6326 = vpop.permute.xlu0 %6325
  %6329 = vset.pattern.permute.xlu0 0
  %6330 = vperm.xlu0 %6329, %v6070
  %v6331 = vpop.permute.xlu0 %6330
  %6334 = vset.pattern.permute.xlu0 0
  %6335 = vperm.xlu0 %6334, %v6071
  %v6336 = vpop.permute.xlu0 %6335
  %6339 = vset.pattern.permute.xlu0 0
  %6340 = vperm.xlu0 %6339, %v6072
  %v6341 = vpop.permute.xlu0 %6340
  %6344 = vset.pattern.permute.xlu0 0
  %6345 = vperm.xlu0 %6344, %v6073
  %v6346 = vpop.permute.xlu0 %6345
  %6349 = vset.pattern.permute.xlu0 0
  %6350 = vperm.xlu0 %6349, %v6074
  %v6351 = vpop.permute.xlu0 %6350
  %6354 = vset.pattern.permute.xlu0 0
  %6355 = vperm.xlu0 %6354, %v6075
  %v6356 = vpop.permute.xlu0 %6355
  %6359 = vset.pattern.permute.xlu0 0
  %6360 = vperm.xlu0 %6359, %v6076
  %v6361 = vpop.permute.xlu0 %6360
  %6364 = vset.pattern.permute.xlu0 0
  %6365 = vperm.xlu0 %6364, %v6077
  %v6366 = vpop.permute.xlu0 %6365
  %6369 = vset.pattern.permute.xlu0 0
  %6370 = vperm.xlu0 %6369, %v6078
  %v6371 = vpop.permute.xlu0 %6370
  %6374 = vset.pattern.permute.xlu0 0
  %6375 = vperm.xlu0 %6374, %v6079
  %v6376 = vpop.permute.xlu0 %6375
  %6379 = vset.pattern.permute.xlu0 0
  %6380 = vperm.xlu0 %6379, %v6080
  %v6381 = vpop.permute.xlu0 %6380
  %6384 = vset.pattern.permute.xlu0 0
  %6385 = vperm.xlu0 %6384, %v6081
  %v6386 = vpop.permute.xlu0 %6385
  %6389 = vset.pattern.permute.xlu0 0
  %6390 = vperm.xlu0 %6389, %v6082
  %v6391 = vpop.permute.xlu0 %6390
  %6394 = vset.pattern.permute.xlu0 0
  %6395 = vperm.xlu0 %6394, %v6083
  %v6396 = vpop.permute.xlu0 %6395
  %6399 = vset.pattern.permute.xlu0 0
  %6400 = vperm.xlu0 %6399, %v6084
  %v6401 = vpop.permute.xlu0 %6400
  %6404 = vset.pattern.permute.xlu0 0
  %6405 = vperm.xlu0 %6404, %v6085
  %v6406 = vpop.permute.xlu0 %6405
  %6409 = vset.pattern.permute.xlu0 0
  %6410 = vperm.xlu0 %6409, %v6086
  %v6411 = vpop.permute.xlu0 %6410
  %6414 = vset.pattern.permute.xlu0 0
  %6415 = vperm.xlu0 %6414, %v6087
  %v6416 = vpop.permute.xlu0 %6415
  %6419 = vset.pattern.permute.xlu0 0
  %6420 = vperm.xlu0 %6419, %v6088
  %v6421 = vpop.permute.xlu0 %6420
  %6424 = vset.pattern.permute.xlu0 0
  %6425 = vperm.xlu0 %6424, %v6089
  %v6426 = vpop.permute.xlu0 %6425
  %6429 = vset.pattern.permute.xlu0 0
  %6430 = vperm.xlu0 %6429, %v6090
  %v6431 = vpop.permute.xlu0 %6430
  %6434 = vset.pattern.permute.xlu0 0
  %6435 = vperm.xlu0 %6434, %v6091
  %v6436 = vpop.permute.xlu0 %6435
  %6439 = vset.pattern.permute.xlu0 0
  %6440 = vperm.xlu0 %6439, %v6092
  %v6441 = vpop.permute.xlu0 %6440
  %6444 = vset.pattern.permute.xlu0 0
  %6445 = vperm.xlu0 %6444, %v6093
  %v6446 = vpop.permute.xlu0 %6445
  %6449 = vset.pattern.permute.xlu0 0
  %6450 = vperm.xlu0 %6449, %v6094
  %v6451 = vpop.permute.xlu0 %6450
  %6454 = vset.pattern.permute.xlu0 0
  %6455 = vperm.xlu0 %6454, %v6095
  %v6456 = vpop.permute.xlu0 %6455
  %6459 = vset.pattern.permute.xlu0 0
  %6460 = vperm.xlu0 %6459, %v6096
  %v6461 = vpop.permute.xlu0 %6460
  %6464 = vset.pattern.permute.xlu0 0
  %6465 = vperm.xlu0 %6464, %v6097
  %v6466 = vpop.permute.xlu0 %6465
  %6469 = vset.pattern.permute.xlu0 0
  %6470 = vperm.xlu0 %6469, %v6098
  %v6471 = vpop.permute.xlu0 %6470
  %6474 = vset.pattern.permute.xlu0 0
  %6475 = vperm.xlu0 %6474, %v6099
  %v6476 = vpop.permute.xlu0 %6475
  %6479 = vset.pattern.permute.xlu0 0
  %6480 = vperm.xlu0 %6479, %v6100
  %v6481 = vpop.permute.xlu0 %6480
  %6484 = vset.pattern.permute.xlu0 0
  %6485 = vperm.xlu0 %6484, %v6101
  %v6486 = vpop.permute.xlu0 %6485
  %6489 = vset.pattern.permute.xlu0 0
  %6490 = vperm.xlu0 %6489, %v6102
  %v6491 = vpop.permute.xlu0 %6490
  %6494 = vset.pattern.permute.xlu0 0
  %6495 = vperm.xlu0 %6494, %v6103
  %v6496 = vpop.permute.xlu0 %6495
  %6499 = vset.pattern.permute.xlu0 0
  %6500 = vperm.xlu0 %6499, %v6104
  %v6501 = vpop.permute.xlu0 %6500
  %6504 = vset.pattern.permute.xlu0 0
  %6505 = vperm.xlu0 %6504, %v6105
  %v6506 = vpop.permute.xlu0 %6505
  %6509 = vset.pattern.permute.xlu0 0
  %6510 = vperm.xlu0 %6509, %v6106
  %v6511 = vpop.permute.xlu0 %6510
  %6514 = vset.pattern.permute.xlu0 0
  %6515 = vperm.xlu0 %6514, %v6107
  %v6516 = vpop.permute.xlu0 %6515
  %6519 = vset.pattern.permute.xlu0 0
  %6520 = vperm.xlu0 %6519, %v6108
  %v6521 = vpop.permute.xlu0 %6520
  %6524 = vset.pattern.permute.xlu0 0
  %6525 = vperm.xlu0 %6524, %v6109
  %v6526 = vpop.permute.xlu0 %6525
  %6529 = vset.pattern.permute.xlu0 0
  %6530 = vperm.xlu0 %6529, %v6110
  %v6531 = vpop.permute.xlu0 %6530
  %6534 = vset.pattern.permute.xlu0 0
  %6535 = vperm.xlu0 %6534, %v6111
  %v6536 = vpop.permute.xlu0 %6535
  %6539 = vset.pattern.permute.xlu0 0
  %6540 = vperm.xlu0 %6539, %v6112
  %v6541 = vpop.permute.xlu0 %6540
  %6544 = vset.pattern.permute.xlu0 0
  %6545 = vperm.xlu0 %6544, %v6113
  %v6546 = vpop.permute.xlu0 %6545
  %6549 = vset.pattern.permute.xlu0 0
  %6550 = vperm.xlu0 %6549, %v6114
  %v6551 = vpop.permute.xlu0 %6550
  %6554 = vset.pattern.permute.xlu0 0
  %6555 = vperm.xlu0 %6554, %v6115
  %v6556 = vpop.permute.xlu0 %6555
  %6559 = vset.pattern.permute.xlu0 0
  %6560 = vperm.xlu0 %6559, %v6116
  %v6561 = vpop.permute.xlu0 %6560
  %6564 = vset.pattern.permute.xlu0 0
  %6565 = vperm.xlu0 %6564, %v6117
  %v6566 = vpop.permute.xlu0 %6565
  %6569 = vset.pattern.permute.xlu0 0
  %6570 = vperm.xlu0 %6569, %v6118
  %v6571 = vpop.permute.xlu0 %6570
  %6574 = vset.pattern.permute.xlu0 0
  %6575 = vperm.xlu0 %6574, %v6119
  %v6576 = vpop.permute.xlu0 %6575
  %6579 = vset.pattern.permute.xlu0 0
  %6580 = vperm.xlu0 %6579, %v6120
  %v6581 = vpop.permute.xlu0 %6580
  %6584 = vset.pattern.permute.xlu0 0
  %6585 = vperm.xlu0 %6584, %v6121
  %v6586 = vpop.permute.xlu0 %6585
  %6589 = vset.pattern.permute.xlu0 0
  %6590 = vperm.xlu0 %6589, %v6122
  %v6591 = vpop.permute.xlu0 %6590
  %6594 = vset.pattern.permute.xlu0 0
  %6595 = vperm.xlu0 %6594, %v6123
  %v6596 = vpop.permute.xlu0 %6595
  %6599 = vset.pattern.permute.xlu0 0
  %6600 = vperm.xlu0 %6599, %v6124
  %v6601 = vpop.permute.xlu0 %6600
  %6604 = vset.pattern.permute.xlu0 0
  %6605 = vperm.xlu0 %6604, %v6125
  %v6606 = vpop.permute.xlu0 %6605
  %6609 = vset.pattern.permute.xlu0 0
  %6610 = vperm.xlu0 %6609, %v6126
  %v6611 = vpop.permute.xlu0 %6610
  %6614 = vset.pattern.permute.xlu0 0
  %6615 = vperm.xlu0 %6614, %v6127
  %v6616 = vpop.permute.xlu0 %6615
  %6619 = vset.pattern.permute.xlu0 0
  %6620 = vperm.xlu0 %6619, %v6128
  %v6621 = vpop.permute.xlu0 %6620
  %6624 = vset.pattern.permute.xlu0 0
  %6625 = vperm.xlu0 %6624, %v6129
  %v6626 = vpop.permute.xlu0 %6625
  %6629 = vset.pattern.permute.xlu0 0
  %6630 = vperm.xlu0 %6629, %v6130
  %v6631 = vpop.permute.xlu0 %6630
  %6634 = vset.pattern.permute.xlu0 0
  %6635 = vperm.xlu0 %6634, %v6131
  %v6636 = vpop.permute.xlu0 %6635
  %6639 = vset.pattern.permute.xlu0 0
  %6640 = vperm.xlu0 %6639, %v6132
  %v6641 = vpop.permute.xlu0 %6640
  %6644 = vset.pattern.permute.xlu0 0
  %6645 = vperm.xlu0 %6644, %v6133
  %v6646 = vpop.permute.xlu0 %6645
  %6649 = vset.pattern.permute.xlu0 0
  %6650 = vperm.xlu0 %6649, %v6134
  %v6651 = vpop.permute.xlu0 %6650
  %6654 = vset.pattern.permute.xlu0 0
  %6655 = vperm.xlu0 %6654, %v6135
  %v6656 = vpop.permute.xlu0 %6655
  %6659 = vset.pattern.permute.xlu0 0
  %6660 = vperm.xlu0 %6659, %v6136
  %v6661 = vpop.permute.xlu0 %6660
  %6664 = vset.pattern.permute.xlu0 0
  %6665 = vperm.xlu0 %6664, %v6137
  %v6666 = vpop.permute.xlu0 %6665
  %6669 = vset.pattern.permute.xlu0 0
  %6670 = vperm.xlu0 %6669, %v6138
  %v6671 = vpop.permute.xlu0 %6670
  %6674 = vset.pattern.permute.xlu0 0
  %6675 = vperm.xlu0 %6674, %v6139
  %v6676 = vpop.permute.xlu0 %6675
  %6679 = vset.pattern.permute.xlu0 0
  %6680 = vperm.xlu0 %6679, %v6140
  %v6681 = vpop.permute.xlu0 %6680
  %6684 = vset.pattern.permute.xlu0 0
  %6685 = vperm.xlu0 %6684, %v6141
  %v6686 = vpop.permute.xlu0 %6685
  %6689 = vset.pattern.permute.xlu0 0
  %6690 = vperm.xlu0 %6689, %v6142
  %v6691 = vpop.permute.xlu0 %6690
  %6694 = vset.pattern.permute.xlu0 0
  %6695 = vperm.xlu0 %6694, %v6143
  %v6696 = vpop.permute.xlu0 %6695
  %6699 = vset.pattern.permute.xlu0 0
  %6700 = vperm.xlu0 %6699, %v6144
  %v6701 = vpop.permute.xlu0 %6700
  %6704 = vset.pattern.permute.xlu0 0
  %6705 = vperm.xlu0 %6704, %v6145
  %v6706 = vpop.permute.xlu0 %6705
  %6709 = vset.pattern.permute.xlu0 0
  %6710 = vperm.xlu0 %6709, %v6146
  %v6711 = vpop.permute.xlu0 %6710
  %6714 = vset.pattern.permute.xlu0 0
  %6715 = vperm.xlu0 %6714, %v6147
  %v6716 = vpop.permute.xlu0 %6715
  %6719 = vset.pattern.permute.xlu0 0
  %6720 = vperm.xlu0 %6719, %v6148
  %v6721 = vpop.permute.xlu0 %6720
  %6724 = vset.pattern.permute.xlu0 0
  %6725 = vperm.xlu0 %6724, %v6149
  %v6726 = vpop.permute.xlu0 %6725
  %6729 = vset.pattern.permute.xlu0 0
  %6730 = vperm.xlu0 %6729, %v6150
  %v6731 = vpop.permute.xlu0 %6730
  %6734 = vset.pattern.permute.xlu0 0
  %6735 = vperm.xlu0 %6734, %v6151
  %v6736 = vpop.permute.xlu0 %6735
  %6739 = vset.pattern.permute.xlu0 0
  %6740 = vperm.xlu0 %6739, %v6152
  %v6741 = vpop.permute.xlu0 %6740
  %6744 = vset.pattern.permute.xlu0 0
  %6745 = vperm.xlu0 %6744, %v6153
  %v6746 = vpop.permute.xlu0 %6745
  %6749 = vset.pattern.permute.xlu0 0
  %6750 = vperm.xlu0 %6749, %v6154
  %v6751 = vpop.permute.xlu0 %6750
  %6754 = vset.pattern.permute.xlu0 0
  %6755 = vperm.xlu0 %6754, %v6155
  %v6756 = vpop.permute.xlu0 %6755
  %6759 = vset.pattern.permute.xlu0 0
  %6760 = vperm.xlu0 %6759, %v6156
  %v6761 = vpop.permute.xlu0 %6760
  %6764 = vset.pattern.permute.xlu0 0
  %6765 = vperm.xlu0 %6764, %v6157
  %v6766 = vpop.permute.xlu0 %6765
  %6769 = vset.pattern.permute.xlu0 0
  %6770 = vperm.xlu0 %6769, %v6158
  %v6771 = vpop.permute.xlu0 %6770
  %6774 = vset.pattern.permute.xlu0 0
  %6775 = vperm.xlu0 %6774, %v6159
  %v6776 = vpop.permute.xlu0 %6775
  %6779 = vset.pattern.permute.xlu0 0
  %6780 = vperm.xlu0 %6779, %v6160
  %v6781 = vpop.permute.xlu0 %6780
  %6784 = vset.pattern.permute.xlu0 0
  %6785 = vperm.xlu0 %6784, %v6161
  %v6786 = vpop.permute.xlu0 %6785
  %6789 = vset.pattern.permute.xlu0 0
  %6790 = vperm.xlu0 %6789, %v6162
  %v6791 = vpop.permute.xlu0 %6790
  %6794 = vset.pattern.permute.xlu0 0
  %6795 = vperm.xlu0 %6794, %v6163
  %v6796 = vpop.permute.xlu0 %6795
  %6799 = vset.pattern.permute.xlu0 0
  %6800 = vperm.xlu0 %6799, %v6164
  %v6801 = vpop.permute.xlu0 %6800
  %6804 = vset.pattern.permute.xlu0 0
  %6805 = vperm.xlu0 %6804, %v6165
  %v6806 = vpop.permute.xlu0 %6805
  %6809 = vset.pattern.permute.xlu0 0
  %6810 = vperm.xlu0 %6809, %v6166
  %v6811 = vpop.permute.xlu0 %6810
  %6814 = vset.pattern.permute.xlu0 0
  %6815 = vperm.xlu0 %6814, %v6167
  %v6816 = vpop.permute.xlu0 %6815
  %6819 = vset.pattern.permute.xlu0 0
  %6820 = vperm.xlu0 %6819, %v6168
  %v6821 = vpop.permute.xlu0 %6820
  %6824 = vset.pattern.permute.xlu0 0
  %6825 = vperm.xlu0 %6824, %v6169
  %v6826 = vpop.permute.xlu0 %6825
  %6829 = vset.pattern.permute.xlu0 0
  %6830 = vperm.xlu0 %6829, %v6170
  %v6831 = vpop.permute.xlu0 %6830
  %6834 = vset.pattern.permute.xlu0 0
  %6835 = vperm.xlu0 %6834, %v6171
  %v6836 = vpop.permute.xlu0 %6835
  %6839 = vset.pattern.permute.xlu0 0
  %6840 = vperm.xlu0 %6839, %v6172
  %v6841 = vpop.permute.xlu0 %6840
  %6844 = vset.pattern.permute.xlu0 0
  %6845 = vperm.xlu0 %6844, %v6173
  %v6846 = vpop.permute.xlu0 %6845
  %6849 = vset.pattern.permute.xlu0 0
  %6850 = vperm.xlu0 %6849, %v6174
  %v6851 = vpop.permute.xlu0 %6850
  %6854 = vset.pattern.permute.xlu0 0
  %6855 = vperm.xlu0 %6854, %v6175
  %v6856 = vpop.permute.xlu0 %6855
  %6859 = vset.pattern.permute.xlu0 0
  %6860 = vperm.xlu0 %6859, %v6176
  %v6861 = vpop.permute.xlu0 %6860
  %6864 = vset.pattern.permute.xlu0 0
  %6865 = vperm.xlu0 %6864, %v6177
  %v6866 = vpop.permute.xlu0 %6865
  %6869 = vset.pattern.permute.xlu0 0
  %6870 = vperm.xlu0 %6869, %v6178
  %v6871 = vpop.permute.xlu0 %6870
  %6874 = vset.pattern.permute.xlu0 0
  %6875 = vperm.xlu0 %6874, %v6179
  %v6876 = vpop.permute.xlu0 %6875
  %6879 = vset.pattern.permute.xlu0 0
  %6880 = vperm.xlu0 %6879, %v6180
  %v6881 = vpop.permute.xlu0 %6880
  %6884 = vset.pattern.permute.xlu0 0
  %6885 = vperm.xlu0 %6884, %v6181
  %v6886 = vpop.permute.xlu0 %6885
  %6889 = vset.pattern.permute.xlu0 0
  %6890 = vperm.xlu0 %6889, %v6182
  %v6891 = vpop.permute.xlu0 %6890
  %6894 = vset.pattern.permute.xlu0 0
  %6895 = vperm.xlu0 %6894, %v6183
  %v6896 = vpop.permute.xlu0 %6895
  %6899 = vset.pattern.permute.xlu0 0
  %6900 = vperm.xlu0 %6899, %v6184
  %v6901 = vpop.permute.xlu0 %6900
  %6904 = vset.pattern.permute.xlu0 0
  %6905 = vperm.xlu0 %6904, %v6185
  %v6906 = vpop.permute.xlu0 %6905
  %6909 = vset.pattern.permute.xlu0 0
  %6910 = vperm.xlu0 %6909, %v6186
  %v6911 = vpop.permute.xlu0 %6910
  %6914 = vset.pattern.permute.xlu0 0
  %6915 = vperm.xlu0 %6914, %v6187
  %v6916 = vpop.permute.xlu0 %6915
  %6919 = vset.pattern.permute.xlu0 0
  %6920 = vperm.xlu0 %6919, %v6188
  %v6921 = vpop.permute.xlu0 %6920
  %6924 = vset.pattern.permute.xlu0 0
  %6925 = vperm.xlu0 %6924, %v6189
  %v6926 = vpop.permute.xlu0 %6925
  %6929 = vset.pattern.permute.xlu0 0
  %6930 = vperm.xlu0 %6929, %v6190
  %v6931 = vpop.permute.xlu0 %6930
  %6934 = vset.pattern.permute.xlu0 0
  %6935 = vperm.xlu0 %6934, %v6191
  %v6936 = vpop.permute.xlu0 %6935
  %6939 = vset.pattern.permute.xlu0 0
  %6940 = vperm.xlu0 %6939, %v6192
  %v6941 = vpop.permute.xlu0 %6940
  %6944 = vset.pattern.permute.xlu0 0
  %6945 = vperm.xlu0 %6944, %v6193
  %v6946 = vpop.permute.xlu0 %6945
  %6949 = vset.pattern.permute.xlu0 0
  %6950 = vperm.xlu0 %6949, %v6194
  %v6951 = vpop.permute.xlu0 %6950
  %6954 = vset.pattern.permute.xlu0 0
  %6955 = vperm.xlu0 %6954, %v6195
  %v6956 = vpop.permute.xlu0 %6955
  %6959 = vset.pattern.permute.xlu0 0
  %6960 = vperm.xlu0 %6959, %v6196
  %v6961 = vpop.permute.xlu0 %6960
  %6964 = vset.pattern.permute.xlu0 0
  %6965 = vperm.xlu0 %6964, %v6197
  %v6966 = vpop.permute.xlu0 %6965
  %6969 = vset.pattern.permute.xlu0 0
  %6970 = vperm.xlu0 %6969, %v6198
  %v6971 = vpop.permute.xlu0 %6970
  %6974 = vset.pattern.permute.xlu0 0
  %6975 = vperm.xlu0 %6974, %v6199
  %v6976 = vpop.permute.xlu0 %6975
  %6979 = vset.pattern.permute.xlu0 0
  %6980 = vperm.xlu0 %6979, %v6200
  %v6981 = vpop.permute.xlu0 %6980
  %6984 = vset.pattern.permute.xlu0 0
  %6985 = vperm.xlu0 %6984, %v6201
  %v6986 = vpop.permute.xlu0 %6985
  %6989 = vset.pattern.permute.xlu0 0
  %6990 = vperm.xlu0 %6989, %v6202
  %v6991 = vpop.permute.xlu0 %6990
  %6994 = vset.pattern.permute.xlu0 0
  %6995 = vperm.xlu0 %6994, %v6203
  %v6996 = vpop.permute.xlu0 %6995
  %6999 = vset.pattern.permute.xlu0 0
  %7000 = vperm.xlu0 %6999, %v6204
  %v7001 = vpop.permute.xlu0 %7000
  %7004 = vset.pattern.permute.xlu0 0
  %7005 = vperm.xlu0 %7004, %v6205
  %v7006 = vpop.permute.xlu0 %7005
  %7009 = vset.pattern.permute.xlu0 0
  %7010 = vperm.xlu0 %7009, %v6206
  %v7011 = vpop.permute.xlu0 %7010
  %7014 = vset.pattern.permute.xlu0 0
  %7015 = vperm.xlu0 %7014, %v6207
  %v7016 = vpop.permute.xlu0 %7015
  %7019 = vset.pattern.permute.xlu0 0
  %7020 = vperm.xlu0 %7019, %v6208
  %v7021 = vpop.permute.xlu0 %7020
  %v7183 = vunpack.c.l.b16 %v5888
  %v7184 = vunpack.c.l.b16 %v5889
  %v7185 = vunpack.c.l.b16 %v5890
  %v7186 = vunpack.c.l.b16 %v5891
  %v7187 = vunpack.c.l.b16 %v5892
  %v7188 = vunpack.c.l.b16 %v5893
  %v7189 = vunpack.c.l.b16 %v5894
  %v7190 = vunpack.c.l.b16 %v5895
  %v7191 = vunpack.c.l.b16 %v5896
  %v7192 = vunpack.c.l.b16 %v5897
  %v7193 = vunpack.c.l.b16 %v5898
  %v7194 = vunpack.c.l.b16 %v5899
  %v7195 = vunpack.c.l.b16 %v5900
  %v7196 = vunpack.c.l.b16 %v5901
  %v7197 = vunpack.c.l.b16 %v5902
  %v7198 = vunpack.c.l.b16 %v5903
  %v7199 = vunpack.c.l.b16 %v5904
  %v7200 = vunpack.c.l.b16 %v5905
  %v7201 = vunpack.c.l.b16 %v5906
  %v7202 = vunpack.c.l.b16 %v5907
  %v7203 = vunpack.c.l.b16 %v5908
  %v7204 = vunpack.c.l.b16 %v5909
  %v7205 = vunpack.c.l.b16 %v5910
  %v7206 = vunpack.c.l.b16 %v5911
  %v7207 = vunpack.c.l.b16 %v5912
  %v7208 = vunpack.c.l.b16 %v5913
  %v7209 = vunpack.c.l.b16 %v5914
  %v7210 = vunpack.c.l.b16 %v5915
  %v7211 = vunpack.c.l.b16 %v5916
  %v7212 = vunpack.c.l.b16 %v5917
  %v7213 = vunpack.c.l.b16 %v5918
  %v7214 = vunpack.c.l.b16 %v5919
  %v7215 = vunpack.c.l.b16 %v5920
  %v7216 = vunpack.c.l.b16 %v5921
  %v7217 = vunpack.c.l.b16 %v5922
  %v7218 = vunpack.c.l.b16 %v5923
  %v7219 = vunpack.c.l.b16 %v5924
  %v7220 = vunpack.c.l.b16 %v5925
  %v7221 = vunpack.c.l.b16 %v5926
  %v7222 = vunpack.c.l.b16 %v5927
  %v7223 = vunpack.c.l.b16 %v5928
  %v7224 = vunpack.c.l.b16 %v5929
  %v7225 = vunpack.c.l.b16 %v5930
  %v7226 = vunpack.c.l.b16 %v5931
  %v7227 = vunpack.c.l.b16 %v5932
  %v7228 = vunpack.c.l.b16 %v5933
  %v7229 = vunpack.c.l.b16 %v5934
  %v7230 = vunpack.c.l.b16 %v5935
  %v7231 = vunpack.c.l.b16 %v5936
  %v7232 = vunpack.c.l.b16 %v5937
  %v7233 = vunpack.c.l.b16 %v5938
  %v7234 = vunpack.c.l.b16 %v5939
  %v7235 = vunpack.c.l.b16 %v5940
  %v7236 = vunpack.c.l.b16 %v5941
  %v7237 = vunpack.c.l.b16 %v5942
  %v7238 = vunpack.c.l.b16 %v5943
  %v7239 = vunpack.c.l.b16 %v5944
  %v7240 = vunpack.c.l.b16 %v5945
  %v7241 = vunpack.c.l.b16 %v5946
  %v7242 = vunpack.c.l.b16 %v5947
  %v7243 = vunpack.c.l.b16 %v5948
  %v7244 = vunpack.c.l.b16 %v5949
  %v7245 = vunpack.c.l.b16 %v5950
  %v7246 = vunpack.c.l.b16 %v5951
  %v7247 = vunpack.c.l.b16 %v5952
  %v7248 = vunpack.c.l.b16 %v5953
  %v7249 = vunpack.c.l.b16 %v5954
  %v7250 = vunpack.c.l.b16 %v5955
  %v7251 = vunpack.c.l.b16 %v5956
  %v7252 = vunpack.c.l.b16 %v5957
  %v7253 = vunpack.c.l.b16 %v5958
  %v7254 = vunpack.c.l.b16 %v5959
  %v7255 = vunpack.c.l.b16 %v5960
  %v7256 = vunpack.c.l.b16 %v5961
  %v7257 = vunpack.c.l.b16 %v5962
  %v7258 = vunpack.c.l.b16 %v5963
  %v7259 = vunpack.c.l.b16 %v5964
  %v7260 = vunpack.c.l.b16 %v5965
  %v7261 = vunpack.c.l.b16 %v5966
  %v7262 = vunpack.c.l.b16 %v5967
  %v7263 = vunpack.c.l.b16 %v5968
  %v7264 = vunpack.c.l.b16 %v5969
  %v7265 = vunpack.c.l.b16 %v5970
  %v7266 = vunpack.c.l.b16 %v5971
  %v7267 = vunpack.c.l.b16 %v5972
  %v7268 = vunpack.c.l.b16 %v5973
  %v7269 = vunpack.c.l.b16 %v5974
  %v7270 = vunpack.c.l.b16 %v5975
  %v7271 = vunpack.c.l.b16 %v5976
  %v7272 = vunpack.c.l.b16 %v5977
  %v7273 = vunpack.c.l.b16 %v5978
  %v7274 = vunpack.c.l.b16 %v5979
  %v7275 = vunpack.c.l.b16 %v5980
  %v7276 = vunpack.c.l.b16 %v5981
  %v7277 = vunpack.c.l.b16 %v5982
  %v7278 = vunpack.c.l.b16 %v5983
  %v7279 = vunpack.c.l.b16 %v5984
  %v7280 = vunpack.c.l.b16 %v5985
  %v7281 = vunpack.c.l.b16 %v5986
  %v7282 = vunpack.c.l.b16 %v5987
  %v7283 = vunpack.c.l.b16 %v5988
  %v7284 = vunpack.c.l.b16 %v5989
  %v7285 = vunpack.c.l.b16 %v5990
  %v7286 = vunpack.c.l.b16 %v5991
  %v7287 = vunpack.c.l.b16 %v5992
  %v7288 = vunpack.c.l.b16 %v5993
  %v7289 = vunpack.c.l.b16 %v5994
  %v7290 = vunpack.c.l.b16 %v5995
  %v7291 = vunpack.c.l.b16 %v5996
  %v7292 = vunpack.c.l.b16 %v5997
  %v7293 = vunpack.c.l.b16 %v5998
  %v7294 = vunpack.c.l.b16 %v5999
  %v7295 = vunpack.c.l.b16 %v6000
  %v7296 = vunpack.c.l.b16 %v6001
  %v7297 = vunpack.c.l.b16 %v6002
  %v7298 = vunpack.c.l.b16 %v6003
  %v7299 = vunpack.c.l.b16 %v6004
  %v7300 = vunpack.c.l.b16 %v6005
  %v7301 = vunpack.c.l.b16 %v6006
  %v7302 = vunpack.c.l.b16 %v6007
  %v7303 = vunpack.c.l.b16 %v6008
  %v7304 = vunpack.c.l.b16 %v6009
  %v7305 = vunpack.c.l.b16 %v6010
  %v7306 = vunpack.c.l.b16 %v6011
  %v7307 = vunpack.c.l.b16 %v6012
  %v7308 = vunpack.c.l.b16 %v6013
  %v7309 = vunpack.c.l.b16 %v6014
  %v7310 = vunpack.c.l.b16 %v6015
  %v7311 = vunpack.c.l.b16 %v6016
  %v7312 = vunpack.c.l.b16 %v6017
  %v7313 = vunpack.c.l.b16 %v6018
  %v7314 = vunpack.c.l.b16 %v6019
  %v7315 = vunpack.c.l.b16 %v6020
  %v7316 = vunpack.c.l.b16 %v6021
  %v7317 = vunpack.c.l.b16 %v6022
  %v7318 = vunpack.c.l.b16 %v6023
  %v7319 = vunpack.c.l.b16 %v6024
  %v7320 = vunpack.c.l.b16 %v6025
  %v7321 = vunpack.c.l.b16 %v6026
  %v7322 = vunpack.c.l.b16 %v6027
  %v7323 = vunpack.c.l.b16 %v6028
  %v7324 = vunpack.c.l.b16 %v6029
  %v7325 = vunpack.c.l.b16 %v6030
  %v7326 = vunpack.c.l.b16 %v6031
  %v7327 = vunpack.c.l.b16 %v6032
  %v7328 = vunpack.c.l.b16 %v6033
  %v7329 = vunpack.c.l.b16 %v6034
  %v7330 = vunpack.c.l.b16 %v6035
  %v7331 = vunpack.c.l.b16 %v6036
  %v7332 = vunpack.c.l.b16 %v6037
  %v7333 = vunpack.c.l.b16 %v6038
  %v7334 = vunpack.c.l.b16 %v6039
  %v7335 = vunpack.c.l.b16 %v6040
  %v7336 = vunpack.c.l.b16 %v6041
  %v7337 = vunpack.c.l.b16 %v6042
  %v7338 = vunpack.c.l.b16 %v6043
  %v7339 = vunpack.c.l.b16 %v6044
  %v7340 = vunpack.c.l.b16 %v6045
  %v7341 = vunpack.c.l.b16 %v6046
  %v7342 = vunpack.c.l.b16 %v6047
  %v7343 = vpack.c.b16 %v7184, %v7183
  %v7344 = vpack.c.b16 %v7186, %v7185
  %v7345 = vpack.c.b16 %v7188, %v7187
  %v7346 = vpack.c.b16 %v7190, %v7189
  %v7347 = vpack.c.b16 %v7192, %v7191
  %v7348 = vpack.c.b16 %v7194, %v7193
  %v7349 = vpack.c.b16 %v7196, %v7195
  %v7350 = vpack.c.b16 %v7198, %v7197
  %v7351 = vpack.c.b16 %v7200, %v7199
  %v7352 = vpack.c.b16 %v7202, %v7201
  %v7353 = vpack.c.b16 %v7204, %v7203
  %v7354 = vpack.c.b16 %v7206, %v7205
  %v7355 = vpack.c.b16 %v7208, %v7207
  %v7356 = vpack.c.b16 %v7210, %v7209
  %v7357 = vpack.c.b16 %v7212, %v7211
  %v7358 = vpack.c.b16 %v7214, %v7213
  %v7359 = vpack.c.b16 %v7216, %v7215
  %v7360 = vpack.c.b16 %v7218, %v7217
  %v7361 = vpack.c.b16 %v7220, %v7219
  %v7362 = vpack.c.b16 %v7222, %v7221
  %v7363 = vpack.c.b16 %v7224, %v7223
  %v7364 = vpack.c.b16 %v7226, %v7225
  %v7365 = vpack.c.b16 %v7228, %v7227
  %v7366 = vpack.c.b16 %v7230, %v7229
  %v7367 = vpack.c.b16 %v7232, %v7231
  %v7368 = vpack.c.b16 %v7234, %v7233
  %v7369 = vpack.c.b16 %v7236, %v7235
  %v7370 = vpack.c.b16 %v7238, %v7237
  %v7371 = vpack.c.b16 %v7240, %v7239
  %v7372 = vpack.c.b16 %v7242, %v7241
  %v7373 = vpack.c.b16 %v7244, %v7243
  %v7374 = vpack.c.b16 %v7246, %v7245
  %v7375 = vpack.c.b16 %v7248, %v7247
  %v7376 = vpack.c.b16 %v7250, %v7249
  %v7377 = vpack.c.b16 %v7252, %v7251
  %v7378 = vpack.c.b16 %v7254, %v7253
  %v7379 = vpack.c.b16 %v7256, %v7255
  %v7380 = vpack.c.b16 %v7258, %v7257
  %v7381 = vpack.c.b16 %v7260, %v7259
  %v7382 = vpack.c.b16 %v7262, %v7261
  %v7383 = vpack.c.b16 %v7264, %v7263
  %v7384 = vpack.c.b16 %v7266, %v7265
  %v7385 = vpack.c.b16 %v7268, %v7267
  %v7386 = vpack.c.b16 %v7270, %v7269
  %v7387 = vpack.c.b16 %v7272, %v7271
  %v7388 = vpack.c.b16 %v7274, %v7273
  %v7389 = vpack.c.b16 %v7276, %v7275
  %v7390 = vpack.c.b16 %v7278, %v7277
  %v7391 = vpack.c.b16 %v7280, %v7279
  %v7392 = vpack.c.b16 %v7282, %v7281
  %v7393 = vpack.c.b16 %v7284, %v7283
  %v7394 = vpack.c.b16 %v7286, %v7285
  %v7395 = vpack.c.b16 %v7288, %v7287
  %v7396 = vpack.c.b16 %v7290, %v7289
  %v7397 = vpack.c.b16 %v7292, %v7291
  %v7398 = vpack.c.b16 %v7294, %v7293
  %v7399 = vpack.c.b16 %v7296, %v7295
  %v7400 = vpack.c.b16 %v7298, %v7297
  %v7401 = vpack.c.b16 %v7300, %v7299
  %v7402 = vpack.c.b16 %v7302, %v7301
  %v7403 = vpack.c.b16 %v7304, %v7303
  %v7404 = vpack.c.b16 %v7306, %v7305
  %v7405 = vpack.c.b16 %v7308, %v7307
  %v7406 = vpack.c.b16 %v7310, %v7309
  %v7407 = vpack.c.b16 %v7312, %v7311
  %v7408 = vpack.c.b16 %v7314, %v7313
  %v7409 = vpack.c.b16 %v7316, %v7315
  %v7410 = vpack.c.b16 %v7318, %v7317
  %v7411 = vpack.c.b16 %v7320, %v7319
  %v7412 = vpack.c.b16 %v7322, %v7321
  %v7413 = vpack.c.b16 %v7324, %v7323
  %v7414 = vpack.c.b16 %v7326, %v7325
  %v7415 = vpack.c.b16 %v7328, %v7327
  %v7416 = vpack.c.b16 %v7330, %v7329
  %v7417 = vpack.c.b16 %v7332, %v7331
  %v7418 = vpack.c.b16 %v7334, %v7333
  %v7419 = vpack.c.b16 %v7336, %v7335
  %v7420 = vpack.c.b16 %v7338, %v7337
  %v7421 = vpack.c.b16 %v7340, %v7339
  %v7422 = vpack.c.b16 %v7342, %v7341
  %v7424 = vsel %vm1724, %v7343, 0
  %v7427 = vsel %vm1724, %v7344, 0
  %v7430 = vsel %vm1724, %v7345, 0
  %v7433 = vsel %vm1724, %v7346, 0
  %v7436 = vsel %vm1724, %v7347, 0
  %v7439 = vsel %vm1724, %v7348, 0
  %v7442 = vsel %vm1724, %v7349, 0
  %v7445 = vsel %vm1724, %v7350, 0
  %v7448 = vsel %vm1724, %v7351, 0
  %v7451 = vsel %vm1724, %v7352, 0
  %v7454 = vsel %vm1724, %v7353, 0
  %v7457 = vsel %vm1724, %v7354, 0
  %v7460 = vsel %vm1724, %v7355, 0
  %v7463 = vsel %vm1724, %v7356, 0
  %v7466 = vsel %vm1724, %v7357, 0
  %v7469 = vsel %vm1724, %v7358, 0
  %v7472 = vsel %vm1724, %v7359, 0
  %v7475 = vsel %vm1724, %v7360, 0
  %v7478 = vsel %vm1724, %v7361, 0
  %v7481 = vsel %vm1724, %v7362, 0
  %v7484 = vsel %vm1724, %v7363, 0
  %v7487 = vsel %vm1724, %v7364, 0
  %v7490 = vsel %vm1724, %v7365, 0
  %v7493 = vsel %vm1724, %v7366, 0
  %v7496 = vsel %vm1724, %v7367, 0
  %v7499 = vsel %vm1724, %v7368, 0
  %v7502 = vsel %vm1724, %v7369, 0
  %v7505 = vsel %vm1724, %v7370, 0
  %v7508 = vsel %vm1724, %v7371, 0
  %v7511 = vsel %vm1724, %v7372, 0
  %v7514 = vsel %vm1724, %v7373, 0
  %v7517 = vsel %vm1724, %v7374, 0
  %v7520 = vsel %vm1724, %v7375, 0
  %v7523 = vsel %vm1724, %v7376, 0
  %v7526 = vsel %vm1724, %v7377, 0
  %v7529 = vsel %vm1724, %v7378, 0
  %v7532 = vsel %vm1724, %v7379, 0
  %v7535 = vsel %vm1724, %v7380, 0
  %v7538 = vsel %vm1724, %v7381, 0
  %v7541 = vsel %vm1724, %v7382, 0
  %v7544 = vsel %vm1724, %v7383, 0
  %v7547 = vsel %vm1724, %v7384, 0
  %v7550 = vsel %vm1724, %v7385, 0
  %v7553 = vsel %vm1724, %v7386, 0
  %v7556 = vsel %vm1724, %v7387, 0
  %v7559 = vsel %vm1724, %v7388, 0
  %v7562 = vsel %vm1724, %v7389, 0
  %v7565 = vsel %vm1724, %v7390, 0
  %v7568 = vsel %vm1724, %v7391, 0
  %v7571 = vsel %vm1724, %v7392, 0
  %v7574 = vsel %vm1724, %v7393, 0
  %v7577 = vsel %vm1724, %v7394, 0
  %v7580 = vsel %vm1724, %v7395, 0
  %v7583 = vsel %vm1724, %v7396, 0
  %v7586 = vsel %vm1724, %v7397, 0
  %v7589 = vsel %vm1724, %v7398, 0
  %v7592 = vsel %vm1724, %v7399, 0
  %v7595 = vsel %vm1724, %v7400, 0
  %v7598 = vsel %vm1724, %v7401, 0
  %v7601 = vsel %vm1724, %v7402, 0
  %v7604 = vsel %vm1724, %v7403, 0
  %v7607 = vsel %vm1724, %v7404, 0
  %v7610 = vsel %vm1724, %v7405, 0
  %v7613 = vsel %vm1724, %v7406, 0
  %v7616 = vsel %vm1724, %v7407, 0
  %v7619 = vsel %vm1724, %v7408, 0
  %v7622 = vsel %vm1724, %v7409, 0
  %v7625 = vsel %vm1724, %v7410, 0
  %v7628 = vsel %vm1724, %v7411, 0
  %v7631 = vsel %vm1724, %v7412, 0
  %v7634 = vsel %vm1724, %v7413, 0
  %v7637 = vsel %vm1724, %v7414, 0
  %v7640 = vsel %vm1724, %v7415, 0
  %v7643 = vsel %vm1724, %v7416, 0
  %v7646 = vsel %vm1724, %v7417, 0
  %v7649 = vsel %vm1724, %v7418, 0
  %v7652 = vsel %vm1724, %v7419, 0
  %v7655 = vsel %vm1724, %v7420, 0
  %v7658 = vsel %vm1724, %v7421, 0
  %v7661 = vsel %vm1724, %v7422, 0
  %v7664 = vand.u32 %v6214, %v1968
  %v7667 = vand.u32 %v6215, %v1968
  %7669 = vmatprep.subr.bf16.mxu0 0
  %7670 = vmatpush1.bf16.msra.mxu0 0
  %7671 = vmatprep.subr.bf16.mxu0 0
  %7672 = vmatpush1.bf16.msra.mxu0 0
  %7673 = vmatprep.subr.bf16.mxu0 0
  %7674 = vmatpush1.bf16.msra.mxu0 0
  %7675 = vmatprep.subr.bf16.mxu0 0
  %7676 = vmatpush1.bf16.msra.mxu0 0
  %7677 = vmatprep.subr.bf16.mxu0 0
  %7678 = vmatpush1.bf16.msra.mxu0 0
  %7679 = vmatprep.subr.bf16.mxu0 0
  %7680 = vmatpush1.bf16.msra.mxu0 0
  %7681 = vmatprep.subr.bf16.mxu0 0
  %7682 = vmatpush1.bf16.msra.mxu0 0
  %7683 = vmatprep.subr.bf16.mxu0 %v7667
  %7684 = vmatpush1.bf16.msra.mxu0 %v7664
  %7685 = vmatprep.subr.bf16.mxu0 0
  %7686 = vmatpush2.bf16.msra.mxu0 0
  %7687 = vmatprep.subr.bf16.mxu0 0
  %7688 = vmatpush2.bf16.msra.mxu0 0
  %7689 = vmatprep.subr.bf16.mxu0 0
  %7690 = vmatpush2.bf16.msra.mxu0 0
  %7691 = vmatprep.subr.bf16.mxu0 0
  %7692 = vmatpush2.bf16.msra.mxu0 0
  %7693 = vmatprep.subr.bf16.mxu0 0
  %7694 = vmatpush2.bf16.msra.mxu0 0
  %7695 = vmatprep.subr.bf16.mxu0 0
  %7696 = vmatpush2.bf16.msra.mxu0 0
  %7697 = vmatprep.subr.bf16.mxu0 0
  %7698 = vmatpush2.bf16.msra.mxu0 0
  %7699 = vmatprep.subr.bf16.mxu0 0
  %7700 = vmatpush2.bf16.msra.mxu0 0
  %7701 = vmatprep.mubr.bf16.mxu0 0
  %7702 = vmatmul.mubr.bf16.gmra.mxu0 %v7424
  %v7703 = vpop.f32.mrf.mxu0
  %v7704 = vadd.f32 %v6226, %v7703
  %v7705 = vpop.f32.mrf.mxu0
  %v7706 = vadd.f32 %v6226, %v7705
  %v7707 = vpop.f32.mrf.mxu0
  %v7708 = vadd.f32 %v6231, %v7707
  %v7709 = vpop.f32.mrf.mxu0
  %v7710 = vadd.f32 %v6231, %v7709
  %7711 = vmatprep.mubr.bf16.mxu0 0
  %7712 = vmatmul.mubr.bf16.gmra.mxu0 %v7427
  %v7713 = vpop.f32.mrf.mxu0
  %v7714 = vadd.f32 %v6236, %v7713
  %v7715 = vpop.f32.mrf.mxu0
  %v7716 = vadd.f32 %v6236, %v7715
  %v7717 = vpop.f32.mrf.mxu0
  %v7718 = vadd.f32 %v6241, %v7717
  %v7719 = vpop.f32.mrf.mxu0
  %v7720 = vadd.f32 %v6241, %v7719
  %7721 = vmatprep.mubr.bf16.mxu0 0
  %7722 = vmatmul.mubr.bf16.gmra.mxu0 %v7430
  %v7723 = vpop.f32.mrf.mxu0
  %v7724 = vadd.f32 %v6246, %v7723
  %v7725 = vpop.f32.mrf.mxu0
  %v7726 = vadd.f32 %v6246, %v7725
  %v7727 = vpop.f32.mrf.mxu0
  %v7728 = vadd.f32 %v6251, %v7727
  %v7729 = vpop.f32.mrf.mxu0
  %v7730 = vadd.f32 %v6251, %v7729
  %7731 = vmatprep.mubr.bf16.mxu0 0
  %7732 = vmatmul.mubr.bf16.gmra.mxu0 %v7433
  %v7733 = vpop.f32.mrf.mxu0
  %v7734 = vadd.f32 %v6256, %v7733
  %v7735 = vpop.f32.mrf.mxu0
  %v7736 = vadd.f32 %v6256, %v7735
  %v7737 = vpop.f32.mrf.mxu0
  %v7738 = vadd.f32 %v6261, %v7737
  %v7739 = vpop.f32.mrf.mxu0
  %v7740 = vadd.f32 %v6261, %v7739
  %7741 = vmatprep.mubr.bf16.mxu0 0
  %7742 = vmatmul.mubr.bf16.gmra.mxu0 %v7436
  %v7743 = vpop.f32.mrf.mxu0
  %v7744 = vadd.f32 %v6266, %v7743
  %v7745 = vpop.f32.mrf.mxu0
  %v7746 = vadd.f32 %v6266, %v7745
  %v7747 = vpop.f32.mrf.mxu0
  %v7748 = vadd.f32 %v6271, %v7747
  %v7749 = vpop.f32.mrf.mxu0
  %v7750 = vadd.f32 %v6271, %v7749
  %7751 = vmatprep.mubr.bf16.mxu0 0
  %7752 = vmatmul.mubr.bf16.gmra.mxu0 %v7439
  %v7753 = vpop.f32.mrf.mxu0
  %v7754 = vadd.f32 %v6276, %v7753
  %v7755 = vpop.f32.mrf.mxu0
  %v7756 = vadd.f32 %v6276, %v7755
  %v7757 = vpop.f32.mrf.mxu0
  %v7758 = vadd.f32 %v6281, %v7757
  %v7759 = vpop.f32.mrf.mxu0
  %v7760 = vadd.f32 %v6281, %v7759
  %7761 = vmatprep.mubr.bf16.mxu0 0
  %7762 = vmatmul.mubr.bf16.gmra.mxu0 %v7442
  %v7763 = vpop.f32.mrf.mxu0
  %v7764 = vadd.f32 %v6286, %v7763
  %v7765 = vpop.f32.mrf.mxu0
  %v7766 = vadd.f32 %v6286, %v7765
  %v7767 = vpop.f32.mrf.mxu0
  %v7768 = vadd.f32 %v6291, %v7767
  %v7769 = vpop.f32.mrf.mxu0
  %v7770 = vadd.f32 %v6291, %v7769
  %7771 = vmatprep.mubr.bf16.mxu0 0
  %7772 = vmatmul.mubr.bf16.gmra.mxu0 %v7445
  %v7773 = vpop.f32.mrf.mxu0
  %v7774 = vadd.f32 %v6296, %v7773
  %v7775 = vpop.f32.mrf.mxu0
  %v7776 = vadd.f32 %v6296, %v7775
  %v7777 = vpop.f32.mrf.mxu0
  %v7778 = vadd.f32 %v6301, %v7777
  %v7779 = vpop.f32.mrf.mxu0
  %v7780 = vadd.f32 %v6301, %v7779
  %7781 = vmatprep.mubr.bf16.mxu0 0
  %7782 = vmatmul.mubr.bf16.gmra.mxu0 %v7448
  %v7783 = vpop.f32.mrf.mxu0
  %v7784 = vadd.f32 %v6306, %v7783
  %v7785 = vpop.f32.mrf.mxu0
  %v7786 = vadd.f32 %v6306, %v7785
  %v7787 = vpop.f32.mrf.mxu0
  %v7788 = vadd.f32 %v6311, %v7787
  %v7789 = vpop.f32.mrf.mxu0
  %v7790 = vadd.f32 %v6311, %v7789
  %7791 = vmatprep.mubr.bf16.mxu0 0
  %7792 = vmatmul.mubr.bf16.gmra.mxu0 %v7451
  %v7793 = vpop.f32.mrf.mxu0
  %v7794 = vadd.f32 %v6316, %v7793
  %v7795 = vpop.f32.mrf.mxu0
  %v7796 = vadd.f32 %v6316, %v7795
  %v7797 = vpop.f32.mrf.mxu0
  %v7798 = vadd.f32 %v6321, %v7797
  %v7799 = vpop.f32.mrf.mxu0
  %v7800 = vadd.f32 %v6321, %v7799
  %7801 = vmatprep.mubr.bf16.mxu0 0
  %7802 = vmatmul.mubr.bf16.gmra.mxu0 %v7454
  %v7803 = vpop.f32.mrf.mxu0
  %v7804 = vadd.f32 %v6326, %v7803
  %v7805 = vpop.f32.mrf.mxu0
  %v7806 = vadd.f32 %v6326, %v7805
  %v7807 = vpop.f32.mrf.mxu0
  %v7808 = vadd.f32 %v6331, %v7807
  %v7809 = vpop.f32.mrf.mxu0
  %v7810 = vadd.f32 %v6331, %v7809
  %7811 = vmatprep.mubr.bf16.mxu0 0
  %7812 = vmatmul.mubr.bf16.gmra.mxu0 %v7457
  %v7813 = vpop.f32.mrf.mxu0
  %v7814 = vadd.f32 %v6336, %v7813
  %v7815 = vpop.f32.mrf.mxu0
  %v7816 = vadd.f32 %v6336, %v7815
  %v7817 = vpop.f32.mrf.mxu0
  %v7818 = vadd.f32 %v6341, %v7817
  %v7819 = vpop.f32.mrf.mxu0
  %v7820 = vadd.f32 %v6341, %v7819
  %7821 = vmatprep.mubr.bf16.mxu0 0
  %7822 = vmatmul.mubr.bf16.gmra.mxu0 %v7460
  %v7823 = vpop.f32.mrf.mxu0
  %v7824 = vadd.f32 %v6346, %v7823
  %v7825 = vpop.f32.mrf.mxu0
  %v7826 = vadd.f32 %v6346, %v7825
  %v7827 = vpop.f32.mrf.mxu0
  %v7828 = vadd.f32 %v6351, %v7827
  %v7829 = vpop.f32.mrf.mxu0
  %v7830 = vadd.f32 %v6351, %v7829
  %7831 = vmatprep.mubr.bf16.mxu0 0
  %7832 = vmatmul.mubr.bf16.gmra.mxu0 %v7463
  %v7833 = vpop.f32.mrf.mxu0
  %v7834 = vadd.f32 %v6356, %v7833
  %v7835 = vpop.f32.mrf.mxu0
  %v7836 = vadd.f32 %v6356, %v7835
  %v7837 = vpop.f32.mrf.mxu0
  %v7838 = vadd.f32 %v6361, %v7837
  %v7839 = vpop.f32.mrf.mxu0
  %v7840 = vadd.f32 %v6361, %v7839
  %7841 = vmatprep.mubr.bf16.mxu0 0
  %7842 = vmatmul.mubr.bf16.gmra.mxu0 %v7466
  %v7843 = vpop.f32.mrf.mxu0
  %v7844 = vadd.f32 %v6366, %v7843
  %v7845 = vpop.f32.mrf.mxu0
  %v7846 = vadd.f32 %v6366, %v7845
  %v7847 = vpop.f32.mrf.mxu0
  %v7848 = vadd.f32 %v6371, %v7847
  %v7849 = vpop.f32.mrf.mxu0
  %v7850 = vadd.f32 %v6371, %v7849
  %7851 = vmatprep.mubr.bf16.mxu0 0
  %7852 = vmatmul.mubr.bf16.gmra.mxu0 %v7469
  %v7853 = vpop.f32.mrf.mxu0
  %v7854 = vadd.f32 %v6376, %v7853
  %v7855 = vpop.f32.mrf.mxu0
  %v7856 = vadd.f32 %v6376, %v7855
  %v7857 = vpop.f32.mrf.mxu0
  %v7858 = vadd.f32 %v6381, %v7857
  %v7859 = vpop.f32.mrf.mxu0
  %v7860 = vadd.f32 %v6381, %v7859
  %7861 = vmatprep.mubr.bf16.mxu0 0
  %7862 = vmatmul.mubr.bf16.gmra.mxu0 %v7472
  %v7863 = vpop.f32.mrf.mxu0
  %v7864 = vadd.f32 %v6386, %v7863
  %v7865 = vpop.f32.mrf.mxu0
  %v7866 = vadd.f32 %v6386, %v7865
  %v7867 = vpop.f32.mrf.mxu0
  %v7868 = vadd.f32 %v6391, %v7867
  %v7869 = vpop.f32.mrf.mxu0
  %v7870 = vadd.f32 %v6391, %v7869
  %7871 = vmatprep.mubr.bf16.mxu0 0
  %7872 = vmatmul.mubr.bf16.gmra.mxu0 %v7475
  %v7873 = vpop.f32.mrf.mxu0
  %v7874 = vadd.f32 %v6396, %v7873
  %v7875 = vpop.f32.mrf.mxu0
  %v7876 = vadd.f32 %v6396, %v7875
  %v7877 = vpop.f32.mrf.mxu0
  %v7878 = vadd.f32 %v6401, %v7877
  %v7879 = vpop.f32.mrf.mxu0
  %v7880 = vadd.f32 %v6401, %v7879
  %7881 = vmatprep.mubr.bf16.mxu0 0
  %7882 = vmatmul.mubr.bf16.gmra.mxu0 %v7478
  %v7883 = vpop.f32.mrf.mxu0
  %v7884 = vadd.f32 %v6406, %v7883
  %v7885 = vpop.f32.mrf.mxu0
  %v7886 = vadd.f32 %v6406, %v7885
  %v7887 = vpop.f32.mrf.mxu0
  %v7888 = vadd.f32 %v6411, %v7887
  %v7889 = vpop.f32.mrf.mxu0
  %v7890 = vadd.f32 %v6411, %v7889
  %7891 = vmatprep.mubr.bf16.mxu0 0
  %7892 = vmatmul.mubr.bf16.gmra.mxu0 %v7481
  %v7893 = vpop.f32.mrf.mxu0
  %v7894 = vadd.f32 %v6416, %v7893
  %v7895 = vpop.f32.mrf.mxu0
  %v7896 = vadd.f32 %v6416, %v7895
  %v7897 = vpop.f32.mrf.mxu0
  %v7898 = vadd.f32 %v6421, %v7897
  %v7899 = vpop.f32.mrf.mxu0
  %v7900 = vadd.f32 %v6421, %v7899
  %7901 = vmatprep.mubr.bf16.mxu0 0
  %7902 = vmatmul.mubr.bf16.gmra.mxu0 %v7484
  %v7903 = vpop.f32.mrf.mxu0
  %v7904 = vadd.f32 %v6426, %v7903
  %v7905 = vpop.f32.mrf.mxu0
  %v7906 = vadd.f32 %v6426, %v7905
  %v7907 = vpop.f32.mrf.mxu0
  %v7908 = vadd.f32 %v6431, %v7907
  %v7909 = vpop.f32.mrf.mxu0
  %v7910 = vadd.f32 %v6431, %v7909
  %7911 = vmatprep.mubr.bf16.mxu0 0
  %7912 = vmatmul.mubr.bf16.gmra.mxu0 %v7487
  %v7913 = vpop.f32.mrf.mxu0
  %v7914 = vadd.f32 %v6436, %v7913
  %v7915 = vpop.f32.mrf.mxu0
  %v7916 = vadd.f32 %v6436, %v7915
  %v7917 = vpop.f32.mrf.mxu0
  %v7918 = vadd.f32 %v6441, %v7917
  %v7919 = vpop.f32.mrf.mxu0
  %v7920 = vadd.f32 %v6441, %v7919
  %7921 = vmatprep.mubr.bf16.mxu0 0
  %7922 = vmatmul.mubr.bf16.gmra.mxu0 %v7490
  %v7923 = vpop.f32.mrf.mxu0
  %v7924 = vadd.f32 %v6446, %v7923
  %v7925 = vpop.f32.mrf.mxu0
  %v7926 = vadd.f32 %v6446, %v7925
  %v7927 = vpop.f32.mrf.mxu0
  %v7928 = vadd.f32 %v6451, %v7927
  %v7929 = vpop.f32.mrf.mxu0
  %v7930 = vadd.f32 %v6451, %v7929
  %7931 = vmatprep.mubr.bf16.mxu0 0
  %7932 = vmatmul.mubr.bf16.gmra.mxu0 %v7493
  %v7933 = vpop.f32.mrf.mxu0
  %v7934 = vadd.f32 %v6456, %v7933
  %v7935 = vpop.f32.mrf.mxu0
  %v7936 = vadd.f32 %v6456, %v7935
  %v7937 = vpop.f32.mrf.mxu0
  %v7938 = vadd.f32 %v6461, %v7937
  %v7939 = vpop.f32.mrf.mxu0
  %v7940 = vadd.f32 %v6461, %v7939
  %7941 = vmatprep.mubr.bf16.mxu0 0
  %7942 = vmatmul.mubr.bf16.gmra.mxu0 %v7496
  %v7943 = vpop.f32.mrf.mxu0
  %v7944 = vadd.f32 %v6466, %v7943
  %v7945 = vpop.f32.mrf.mxu0
  %v7946 = vadd.f32 %v6466, %v7945
  %v7947 = vpop.f32.mrf.mxu0
  %v7948 = vadd.f32 %v6471, %v7947
  %v7949 = vpop.f32.mrf.mxu0
  %v7950 = vadd.f32 %v6471, %v7949
  %7951 = vmatprep.mubr.bf16.mxu0 0
  %7952 = vmatmul.mubr.bf16.gmra.mxu0 %v7499
  %v7953 = vpop.f32.mrf.mxu0
  %v7954 = vadd.f32 %v6476, %v7953
  %v7955 = vpop.f32.mrf.mxu0
  %v7956 = vadd.f32 %v6476, %v7955
  %v7957 = vpop.f32.mrf.mxu0
  %v7958 = vadd.f32 %v6481, %v7957
  %v7959 = vpop.f32.mrf.mxu0
  %v7960 = vadd.f32 %v6481, %v7959
  %7961 = vmatprep.mubr.bf16.mxu0 0
  %7962 = vmatmul.mubr.bf16.gmra.mxu0 %v7502
  %v7963 = vpop.f32.mrf.mxu0
  %v7964 = vadd.f32 %v6486, %v7963
  %v7965 = vpop.f32.mrf.mxu0
  %v7966 = vadd.f32 %v6486, %v7965
  %v7967 = vpop.f32.mrf.mxu0
  %v7968 = vadd.f32 %v6491, %v7967
  %v7969 = vpop.f32.mrf.mxu0
  %v7970 = vadd.f32 %v6491, %v7969
  %7971 = vmatprep.mubr.bf16.mxu0 0
  %7972 = vmatmul.mubr.bf16.gmra.mxu0 %v7505
  %v7973 = vpop.f32.mrf.mxu0
  %v7974 = vadd.f32 %v6496, %v7973
  %v7975 = vpop.f32.mrf.mxu0
  %v7976 = vadd.f32 %v6496, %v7975
  %v7977 = vpop.f32.mrf.mxu0
  %v7978 = vadd.f32 %v6501, %v7977
  %v7979 = vpop.f32.mrf.mxu0
  %v7980 = vadd.f32 %v6501, %v7979
  %7981 = vmatprep.mubr.bf16.mxu0 0
  %7982 = vmatmul.mubr.bf16.gmra.mxu0 %v7508
  %v7983 = vpop.f32.mrf.mxu0
  %v7984 = vadd.f32 %v6506, %v7983
  %v7985 = vpop.f32.mrf.mxu0
  %v7986 = vadd.f32 %v6506, %v7985
  %v7987 = vpop.f32.mrf.mxu0
  %v7988 = vadd.f32 %v6511, %v7987
  %v7989 = vpop.f32.mrf.mxu0
  %v7990 = vadd.f32 %v6511, %v7989
  %7991 = vmatprep.mubr.bf16.mxu0 0
  %7992 = vmatmul.mubr.bf16.gmra.mxu0 %v7511
  %v7993 = vpop.f32.mrf.mxu0
  %v7994 = vadd.f32 %v6516, %v7993
  %v7995 = vpop.f32.mrf.mxu0
  %v7996 = vadd.f32 %v6516, %v7995
  %v7997 = vpop.f32.mrf.mxu0
  %v7998 = vadd.f32 %v6521, %v7997
  %v7999 = vpop.f32.mrf.mxu0
  %v8000 = vadd.f32 %v6521, %v7999
  %8001 = vmatprep.mubr.bf16.mxu0 0
  %8002 = vmatmul.mubr.bf16.gmra.mxu0 %v7514
  %v8003 = vpop.f32.mrf.mxu0
  %v8004 = vadd.f32 %v6526, %v8003
  %v8005 = vpop.f32.mrf.mxu0
  %v8006 = vadd.f32 %v6526, %v8005
  %v8007 = vpop.f32.mrf.mxu0
  %v8008 = vadd.f32 %v6531, %v8007
  %v8009 = vpop.f32.mrf.mxu0
  %v8010 = vadd.f32 %v6531, %v8009
  %8011 = vmatprep.mubr.bf16.mxu0 0
  %8012 = vmatmul.mubr.bf16.gmra.mxu0 %v7517
  %v8013 = vpop.f32.mrf.mxu0
  %v8014 = vadd.f32 %v6536, %v8013
  %v8015 = vpop.f32.mrf.mxu0
  %v8016 = vadd.f32 %v6536, %v8015
  %v8017 = vpop.f32.mrf.mxu0
  %v8018 = vadd.f32 %v6541, %v8017
  %v8019 = vpop.f32.mrf.mxu0
  %v8020 = vadd.f32 %v6541, %v8019
  %8021 = vmatprep.mubr.bf16.mxu0 0
  %8022 = vmatmul.mubr.bf16.gmra.mxu0 %v7520
  %v8023 = vpop.f32.mrf.mxu0
  %v8024 = vadd.f32 %v6546, %v8023
  %v8025 = vpop.f32.mrf.mxu0
  %v8026 = vadd.f32 %v6546, %v8025
  %v8027 = vpop.f32.mrf.mxu0
  %v8028 = vadd.f32 %v6551, %v8027
  %v8029 = vpop.f32.mrf.mxu0
  %v8030 = vadd.f32 %v6551, %v8029
  %8031 = vmatprep.mubr.bf16.mxu0 0
  %8032 = vmatmul.mubr.bf16.gmra.mxu0 %v7523
  %v8033 = vpop.f32.mrf.mxu0
  %v8034 = vadd.f32 %v6556, %v8033
  %v8035 = vpop.f32.mrf.mxu0
  %v8036 = vadd.f32 %v6556, %v8035
  %v8037 = vpop.f32.mrf.mxu0
  %v8038 = vadd.f32 %v6561, %v8037
  %v8039 = vpop.f32.mrf.mxu0
  %v8040 = vadd.f32 %v6561, %v8039
  %8041 = vmatprep.mubr.bf16.mxu0 0
  %8042 = vmatmul.mubr.bf16.gmra.mxu0 %v7526
  %v8043 = vpop.f32.mrf.mxu0
  %v8044 = vadd.f32 %v6566, %v8043
  %v8045 = vpop.f32.mrf.mxu0
  %v8046 = vadd.f32 %v6566, %v8045
  %v8047 = vpop.f32.mrf.mxu0
  %v8048 = vadd.f32 %v6571, %v8047
  %v8049 = vpop.f32.mrf.mxu0
  %v8050 = vadd.f32 %v6571, %v8049
  %8051 = vmatprep.mubr.bf16.mxu0 0
  %8052 = vmatmul.mubr.bf16.gmra.mxu0 %v7529
  %v8053 = vpop.f32.mrf.mxu0
  %v8054 = vadd.f32 %v6576, %v8053
  %v8055 = vpop.f32.mrf.mxu0
  %v8056 = vadd.f32 %v6576, %v8055
  %v8057 = vpop.f32.mrf.mxu0
  %v8058 = vadd.f32 %v6581, %v8057
  %v8059 = vpop.f32.mrf.mxu0
  %v8060 = vadd.f32 %v6581, %v8059
  %8061 = vmatprep.mubr.bf16.mxu0 0
  %8062 = vmatmul.mubr.bf16.gmra.mxu0 %v7532
  %v8063 = vpop.f32.mrf.mxu0
  %v8064 = vadd.f32 %v6586, %v8063
  %v8065 = vpop.f32.mrf.mxu0
  %v8066 = vadd.f32 %v6586, %v8065
  %v8067 = vpop.f32.mrf.mxu0
  %v8068 = vadd.f32 %v6591, %v8067
  %v8069 = vpop.f32.mrf.mxu0
  %v8070 = vadd.f32 %v6591, %v8069
  %8071 = vmatprep.mubr.bf16.mxu0 0
  %8072 = vmatmul.mubr.bf16.gmra.mxu0 %v7535
  %v8073 = vpop.f32.mrf.mxu0
  %v8074 = vadd.f32 %v6596, %v8073
  %v8075 = vpop.f32.mrf.mxu0
  %v8076 = vadd.f32 %v6596, %v8075
  %v8077 = vpop.f32.mrf.mxu0
  %v8078 = vadd.f32 %v6601, %v8077
  %v8079 = vpop.f32.mrf.mxu0
  %v8080 = vadd.f32 %v6601, %v8079
  %8081 = vmatprep.mubr.bf16.mxu0 0
  %8082 = vmatmul.mubr.bf16.gmra.mxu0 %v7538
  %v8083 = vpop.f32.mrf.mxu0
  %v8084 = vadd.f32 %v6606, %v8083
  %v8085 = vpop.f32.mrf.mxu0
  %v8086 = vadd.f32 %v6606, %v8085
  %v8087 = vpop.f32.mrf.mxu0
  %v8088 = vadd.f32 %v6611, %v8087
  %v8089 = vpop.f32.mrf.mxu0
  %v8090 = vadd.f32 %v6611, %v8089
  %8091 = vmatprep.mubr.bf16.mxu0 0
  %8092 = vmatmul.mubr.bf16.gmra.mxu0 %v7541
  %v8093 = vpop.f32.mrf.mxu0
  %v8094 = vadd.f32 %v6616, %v8093
  %v8095 = vpop.f32.mrf.mxu0
  %v8096 = vadd.f32 %v6616, %v8095
  %v8097 = vpop.f32.mrf.mxu0
  %v8098 = vadd.f32 %v6621, %v8097
  %v8099 = vpop.f32.mrf.mxu0
  %v8100 = vadd.f32 %v6621, %v8099
  %8101 = vmatprep.mubr.bf16.mxu0 0
  %8102 = vmatmul.mubr.bf16.gmra.mxu0 %v7544
  %v8103 = vpop.f32.mrf.mxu0
  %v8104 = vadd.f32 %v6626, %v8103
  %v8105 = vpop.f32.mrf.mxu0
  %v8106 = vadd.f32 %v6626, %v8105
  %v8107 = vpop.f32.mrf.mxu0
  %v8108 = vadd.f32 %v6631, %v8107
  %v8109 = vpop.f32.mrf.mxu0
  %v8110 = vadd.f32 %v6631, %v8109
  %8111 = vmatprep.mubr.bf16.mxu0 0
  %8112 = vmatmul.mubr.bf16.gmra.mxu0 %v7547
  %v8113 = vpop.f32.mrf.mxu0
  %v8114 = vadd.f32 %v6636, %v8113
  %v8115 = vpop.f32.mrf.mxu0
  %v8116 = vadd.f32 %v6636, %v8115
  %v8117 = vpop.f32.mrf.mxu0
  %v8118 = vadd.f32 %v6641, %v8117
  %v8119 = vpop.f32.mrf.mxu0
  %v8120 = vadd.f32 %v6641, %v8119
  %8121 = vmatprep.mubr.bf16.mxu0 0
  %8122 = vmatmul.mubr.bf16.gmra.mxu0 %v7550
  %v8123 = vpop.f32.mrf.mxu0
  %v8124 = vadd.f32 %v6646, %v8123
  %v8125 = vpop.f32.mrf.mxu0
  %v8126 = vadd.f32 %v6646, %v8125
  %v8127 = vpop.f32.mrf.mxu0
  %v8128 = vadd.f32 %v6651, %v8127
  %v8129 = vpop.f32.mrf.mxu0
  %v8130 = vadd.f32 %v6651, %v8129
  %8131 = vmatprep.mubr.bf16.mxu0 0
  %8132 = vmatmul.mubr.bf16.gmra.mxu0 %v7553
  %v8133 = vpop.f32.mrf.mxu0
  %v8134 = vadd.f32 %v6656, %v8133
  %v8135 = vpop.f32.mrf.mxu0
  %v8136 = vadd.f32 %v6656, %v8135
  %v8137 = vpop.f32.mrf.mxu0
  %v8138 = vadd.f32 %v6661, %v8137
  %v8139 = vpop.f32.mrf.mxu0
  %v8140 = vadd.f32 %v6661, %v8139
  %8141 = vmatprep.mubr.bf16.mxu0 0
  %8142 = vmatmul.mubr.bf16.gmra.mxu0 %v7556
  %v8143 = vpop.f32.mrf.mxu0
  %v8144 = vadd.f32 %v6666, %v8143
  %v8145 = vpop.f32.mrf.mxu0
  %v8146 = vadd.f32 %v6666, %v8145
  %v8147 = vpop.f32.mrf.mxu0
  %v8148 = vadd.f32 %v6671, %v8147
  %v8149 = vpop.f32.mrf.mxu0
  %v8150 = vadd.f32 %v6671, %v8149
  %8151 = vmatprep.mubr.bf16.mxu0 0
  %8152 = vmatmul.mubr.bf16.gmra.mxu0 %v7559
  %v8153 = vpop.f32.mrf.mxu0
  %v8154 = vadd.f32 %v6676, %v8153
  %v8155 = vpop.f32.mrf.mxu0
  %v8156 = vadd.f32 %v6676, %v8155
  %v8157 = vpop.f32.mrf.mxu0
  %v8158 = vadd.f32 %v6681, %v8157
  %v8159 = vpop.f32.mrf.mxu0
  %v8160 = vadd.f32 %v6681, %v8159
  %8161 = vmatprep.mubr.bf16.mxu0 0
  %8162 = vmatmul.mubr.bf16.gmra.mxu0 %v7562
  %v8163 = vpop.f32.mrf.mxu0
  %v8164 = vadd.f32 %v6686, %v8163
  %v8165 = vpop.f32.mrf.mxu0
  %v8166 = vadd.f32 %v6686, %v8165
  %v8167 = vpop.f32.mrf.mxu0
  %v8168 = vadd.f32 %v6691, %v8167
  %v8169 = vpop.f32.mrf.mxu0
  %v8170 = vadd.f32 %v6691, %v8169
  %8171 = vmatprep.mubr.bf16.mxu0 0
  %8172 = vmatmul.mubr.bf16.gmra.mxu0 %v7565
  %v8173 = vpop.f32.mrf.mxu0
  %v8174 = vadd.f32 %v6696, %v8173
  %v8175 = vpop.f32.mrf.mxu0
  %v8176 = vadd.f32 %v6696, %v8175
  %v8177 = vpop.f32.mrf.mxu0
  %v8178 = vadd.f32 %v6701, %v8177
  %v8179 = vpop.f32.mrf.mxu0
  %v8180 = vadd.f32 %v6701, %v8179
  %8181 = vmatprep.mubr.bf16.mxu0 0
  %8182 = vmatmul.mubr.bf16.gmra.mxu0 %v7568
  %v8183 = vpop.f32.mrf.mxu0
  %v8184 = vadd.f32 %v6706, %v8183
  %v8185 = vpop.f32.mrf.mxu0
  %v8186 = vadd.f32 %v6706, %v8185
  %v8187 = vpop.f32.mrf.mxu0
  %v8188 = vadd.f32 %v6711, %v8187
  %v8189 = vpop.f32.mrf.mxu0
  %v8190 = vadd.f32 %v6711, %v8189
  %8191 = vmatprep.mubr.bf16.mxu0 0
  %8192 = vmatmul.mubr.bf16.gmra.mxu0 %v7571
  %v8193 = vpop.f32.mrf.mxu0
  %v8194 = vadd.f32 %v6716, %v8193
  %v8195 = vpop.f32.mrf.mxu0
  %v8196 = vadd.f32 %v6716, %v8195
  %v8197 = vpop.f32.mrf.mxu0
  %v8198 = vadd.f32 %v6721, %v8197
  %v8199 = vpop.f32.mrf.mxu0
  %v8200 = vadd.f32 %v6721, %v8199
  %8201 = vmatprep.mubr.bf16.mxu0 0
  %8202 = vmatmul.mubr.bf16.gmra.mxu0 %v7574
  %v8203 = vpop.f32.mrf.mxu0
  %v8204 = vadd.f32 %v6726, %v8203
  %v8205 = vpop.f32.mrf.mxu0
  %v8206 = vadd.f32 %v6726, %v8205
  %v8207 = vpop.f32.mrf.mxu0
  %v8208 = vadd.f32 %v6731, %v8207
  %v8209 = vpop.f32.mrf.mxu0
  %v8210 = vadd.f32 %v6731, %v8209
  %8211 = vmatprep.mubr.bf16.mxu0 0
  %8212 = vmatmul.mubr.bf16.gmra.mxu0 %v7577
  %v8213 = vpop.f32.mrf.mxu0
  %v8214 = vadd.f32 %v6736, %v8213
  %v8215 = vpop.f32.mrf.mxu0
  %v8216 = vadd.f32 %v6736, %v8215
  %v8217 = vpop.f32.mrf.mxu0
  %v8218 = vadd.f32 %v6741, %v8217
  %v8219 = vpop.f32.mrf.mxu0
  %v8220 = vadd.f32 %v6741, %v8219
  %8221 = vmatprep.mubr.bf16.mxu0 0
  %8222 = vmatmul.mubr.bf16.gmra.mxu0 %v7580
  %v8223 = vpop.f32.mrf.mxu0
  %v8224 = vadd.f32 %v6746, %v8223
  %v8225 = vpop.f32.mrf.mxu0
  %v8226 = vadd.f32 %v6746, %v8225
  %v8227 = vpop.f32.mrf.mxu0
  %v8228 = vadd.f32 %v6751, %v8227
  %v8229 = vpop.f32.mrf.mxu0
  %v8230 = vadd.f32 %v6751, %v8229
  %8231 = vmatprep.mubr.bf16.mxu0 0
  %8232 = vmatmul.mubr.bf16.gmra.mxu0 %v7583
  %v8233 = vpop.f32.mrf.mxu0
  %v8234 = vadd.f32 %v6756, %v8233
  %v8235 = vpop.f32.mrf.mxu0
  %v8236 = vadd.f32 %v6756, %v8235
  %v8237 = vpop.f32.mrf.mxu0
  %v8238 = vadd.f32 %v6761, %v8237
  %v8239 = vpop.f32.mrf.mxu0
  %v8240 = vadd.f32 %v6761, %v8239
  %8241 = vmatprep.mubr.bf16.mxu0 0
  %8242 = vmatmul.mubr.bf16.gmra.mxu0 %v7586
  %v8243 = vpop.f32.mrf.mxu0
  %v8244 = vadd.f32 %v6766, %v8243
  %v8245 = vpop.f32.mrf.mxu0
  %v8246 = vadd.f32 %v6766, %v8245
  %v8247 = vpop.f32.mrf.mxu0
  %v8248 = vadd.f32 %v6771, %v8247
  %v8249 = vpop.f32.mrf.mxu0
  %v8250 = vadd.f32 %v6771, %v8249
  %8251 = vmatprep.mubr.bf16.mxu0 0
  %8252 = vmatmul.mubr.bf16.gmra.mxu0 %v7589
  %v8253 = vpop.f32.mrf.mxu0
  %v8254 = vadd.f32 %v6776, %v8253
  %v8255 = vpop.f32.mrf.mxu0
  %v8256 = vadd.f32 %v6776, %v8255
  %v8257 = vpop.f32.mrf.mxu0
  %v8258 = vadd.f32 %v6781, %v8257
  %v8259 = vpop.f32.mrf.mxu0
  %v8260 = vadd.f32 %v6781, %v8259
  %8261 = vmatprep.mubr.bf16.mxu0 0
  %8262 = vmatmul.mubr.bf16.gmra.mxu0 %v7592
  %v8263 = vpop.f32.mrf.mxu0
  %v8264 = vadd.f32 %v6786, %v8263
  %v8265 = vpop.f32.mrf.mxu0
  %v8266 = vadd.f32 %v6786, %v8265
  %v8267 = vpop.f32.mrf.mxu0
  %v8268 = vadd.f32 %v6791, %v8267
  %v8269 = vpop.f32.mrf.mxu0
  %v8270 = vadd.f32 %v6791, %v8269
  %8271 = vmatprep.mubr.bf16.mxu0 0
  %8272 = vmatmul.mubr.bf16.gmra.mxu0 %v7595
  %v8273 = vpop.f32.mrf.mxu0
  %v8274 = vadd.f32 %v6796, %v8273
  %v8275 = vpop.f32.mrf.mxu0
  %v8276 = vadd.f32 %v6796, %v8275
  %v8277 = vpop.f32.mrf.mxu0
  %v8278 = vadd.f32 %v6801, %v8277
  %v8279 = vpop.f32.mrf.mxu0
  %v8280 = vadd.f32 %v6801, %v8279
  %8281 = vmatprep.mubr.bf16.mxu0 0
  %8282 = vmatmul.mubr.bf16.gmra.mxu0 %v7598
  %v8283 = vpop.f32.mrf.mxu0
  %v8284 = vadd.f32 %v6806, %v8283
  %v8285 = vpop.f32.mrf.mxu0
  %v8286 = vadd.f32 %v6806, %v8285
  %v8287 = vpop.f32.mrf.mxu0
  %v8288 = vadd.f32 %v6811, %v8287
  %v8289 = vpop.f32.mrf.mxu0
  %v8290 = vadd.f32 %v6811, %v8289
  %8291 = vmatprep.mubr.bf16.mxu0 0
  %8292 = vmatmul.mubr.bf16.gmra.mxu0 %v7601
  %v8293 = vpop.f32.mrf.mxu0
  %v8294 = vadd.f32 %v6816, %v8293
  %v8295 = vpop.f32.mrf.mxu0
  %v8296 = vadd.f32 %v6816, %v8295
  %v8297 = vpop.f32.mrf.mxu0
  %v8298 = vadd.f32 %v6821, %v8297
  %v8299 = vpop.f32.mrf.mxu0
  %v8300 = vadd.f32 %v6821, %v8299
  %8301 = vmatprep.mubr.bf16.mxu0 0
  %8302 = vmatmul.mubr.bf16.gmra.mxu0 %v7604
  %v8303 = vpop.f32.mrf.mxu0
  %v8304 = vadd.f32 %v6826, %v8303
  %v8305 = vpop.f32.mrf.mxu0
  %v8306 = vadd.f32 %v6826, %v8305
  %v8307 = vpop.f32.mrf.mxu0
  %v8308 = vadd.f32 %v6831, %v8307
  %v8309 = vpop.f32.mrf.mxu0
  %v8310 = vadd.f32 %v6831, %v8309
  %8311 = vmatprep.mubr.bf16.mxu0 0
  %8312 = vmatmul.mubr.bf16.gmra.mxu0 %v7607
  %v8313 = vpop.f32.mrf.mxu0
  %v8314 = vadd.f32 %v6836, %v8313
  %v8315 = vpop.f32.mrf.mxu0
  %v8316 = vadd.f32 %v6836, %v8315
  %v8317 = vpop.f32.mrf.mxu0
  %v8318 = vadd.f32 %v6841, %v8317
  %v8319 = vpop.f32.mrf.mxu0
  %v8320 = vadd.f32 %v6841, %v8319
  %8321 = vmatprep.mubr.bf16.mxu0 0
  %8322 = vmatmul.mubr.bf16.gmra.mxu0 %v7610
  %v8323 = vpop.f32.mrf.mxu0
  %v8324 = vadd.f32 %v6846, %v8323
  %v8325 = vpop.f32.mrf.mxu0
  %v8326 = vadd.f32 %v6846, %v8325
  %v8327 = vpop.f32.mrf.mxu0
  %v8328 = vadd.f32 %v6851, %v8327
  %v8329 = vpop.f32.mrf.mxu0
  %v8330 = vadd.f32 %v6851, %v8329
  %8331 = vmatprep.mubr.bf16.mxu0 0
  %8332 = vmatmul.mubr.bf16.gmra.mxu0 %v7613
  %v8333 = vpop.f32.mrf.mxu0
  %v8334 = vadd.f32 %v6856, %v8333
  %v8335 = vpop.f32.mrf.mxu0
  %v8336 = vadd.f32 %v6856, %v8335
  %v8337 = vpop.f32.mrf.mxu0
  %v8338 = vadd.f32 %v6861, %v8337
  %v8339 = vpop.f32.mrf.mxu0
  %v8340 = vadd.f32 %v6861, %v8339
  %8341 = vmatprep.mubr.bf16.mxu0 0
  %8342 = vmatmul.mubr.bf16.gmra.mxu0 %v7616
  %v8343 = vpop.f32.mrf.mxu0
  %v8344 = vadd.f32 %v6866, %v8343
  %v8345 = vpop.f32.mrf.mxu0
  %v8346 = vadd.f32 %v6866, %v8345
  %v8347 = vpop.f32.mrf.mxu0
  %v8348 = vadd.f32 %v6871, %v8347
  %v8349 = vpop.f32.mrf.mxu0
  %v8350 = vadd.f32 %v6871, %v8349
  %8351 = vmatprep.mubr.bf16.mxu0 0
  %8352 = vmatmul.mubr.bf16.gmra.mxu0 %v7619
  %v8353 = vpop.f32.mrf.mxu0
  %v8354 = vadd.f32 %v6876, %v8353
  %v8355 = vpop.f32.mrf.mxu0
  %v8356 = vadd.f32 %v6876, %v8355
  %v8357 = vpop.f32.mrf.mxu0
  %v8358 = vadd.f32 %v6881, %v8357
  %v8359 = vpop.f32.mrf.mxu0
  %v8360 = vadd.f32 %v6881, %v8359
  %8361 = vmatprep.mubr.bf16.mxu0 0
  %8362 = vmatmul.mubr.bf16.gmra.mxu0 %v7622
  %v8363 = vpop.f32.mrf.mxu0
  %v8364 = vadd.f32 %v6886, %v8363
  %v8365 = vpop.f32.mrf.mxu0
  %v8366 = vadd.f32 %v6886, %v8365
  %v8367 = vpop.f32.mrf.mxu0
  %v8368 = vadd.f32 %v6891, %v8367
  %v8369 = vpop.f32.mrf.mxu0
  %v8370 = vadd.f32 %v6891, %v8369
  %8371 = vmatprep.mubr.bf16.mxu0 0
  %8372 = vmatmul.mubr.bf16.gmra.mxu0 %v7625
  %v8373 = vpop.f32.mrf.mxu0
  %v8374 = vadd.f32 %v6896, %v8373
  %v8375 = vpop.f32.mrf.mxu0
  %v8376 = vadd.f32 %v6896, %v8375
  %v8377 = vpop.f32.mrf.mxu0
  %v8378 = vadd.f32 %v6901, %v8377
  %v8379 = vpop.f32.mrf.mxu0
  %v8380 = vadd.f32 %v6901, %v8379
  %8381 = vmatprep.mubr.bf16.mxu0 0
  %8382 = vmatmul.mubr.bf16.gmra.mxu0 %v7628
  %v8383 = vpop.f32.mrf.mxu0
  %v8384 = vadd.f32 %v6906, %v8383
  %v8385 = vpop.f32.mrf.mxu0
  %v8386 = vadd.f32 %v6906, %v8385
  %v8387 = vpop.f32.mrf.mxu0
  %v8388 = vadd.f32 %v6911, %v8387
  %v8389 = vpop.f32.mrf.mxu0
  %v8390 = vadd.f32 %v6911, %v8389
  %8391 = vmatprep.mubr.bf16.mxu0 0
  %8392 = vmatmul.mubr.bf16.gmra.mxu0 %v7631
  %v8393 = vpop.f32.mrf.mxu0
  %v8394 = vadd.f32 %v6916, %v8393
  %v8395 = vpop.f32.mrf.mxu0
  %v8396 = vadd.f32 %v6916, %v8395
  %v8397 = vpop.f32.mrf.mxu0
  %v8398 = vadd.f32 %v6921, %v8397
  %v8399 = vpop.f32.mrf.mxu0
  %v8400 = vadd.f32 %v6921, %v8399
  %8401 = vmatprep.mubr.bf16.mxu0 0
  %8402 = vmatmul.mubr.bf16.gmra.mxu0 %v7634
  %v8403 = vpop.f32.mrf.mxu0
  %v8404 = vadd.f32 %v6926, %v8403
  %v8405 = vpop.f32.mrf.mxu0
  %v8406 = vadd.f32 %v6926, %v8405
  %v8407 = vpop.f32.mrf.mxu0
  %v8408 = vadd.f32 %v6931, %v8407
  %v8409 = vpop.f32.mrf.mxu0
  %v8410 = vadd.f32 %v6931, %v8409
  %8411 = vmatprep.mubr.bf16.mxu0 0
  %8412 = vmatmul.mubr.bf16.gmra.mxu0 %v7637
  %v8413 = vpop.f32.mrf.mxu0
  %v8414 = vadd.f32 %v6936, %v8413
  %v8415 = vpop.f32.mrf.mxu0
  %v8416 = vadd.f32 %v6936, %v8415
  %v8417 = vpop.f32.mrf.mxu0
  %v8418 = vadd.f32 %v6941, %v8417
  %v8419 = vpop.f32.mrf.mxu0
  %v8420 = vadd.f32 %v6941, %v8419
  %8421 = vmatprep.mubr.bf16.mxu0 0
  %8422 = vmatmul.mubr.bf16.gmra.mxu0 %v7640
  %v8423 = vpop.f32.mrf.mxu0
  %v8424 = vadd.f32 %v6946, %v8423
  %v8425 = vpop.f32.mrf.mxu0
  %v8426 = vadd.f32 %v6946, %v8425
  %v8427 = vpop.f32.mrf.mxu0
  %v8428 = vadd.f32 %v6951, %v8427
  %v8429 = vpop.f32.mrf.mxu0
  %v8430 = vadd.f32 %v6951, %v8429
  %8431 = vmatprep.mubr.bf16.mxu0 0
  %8432 = vmatmul.mubr.bf16.gmra.mxu0 %v7643
  %v8433 = vpop.f32.mrf.mxu0
  %v8434 = vadd.f32 %v6956, %v8433
  %v8435 = vpop.f32.mrf.mxu0
  %v8436 = vadd.f32 %v6956, %v8435
  %v8437 = vpop.f32.mrf.mxu0
  %v8438 = vadd.f32 %v6961, %v8437
  %v8439 = vpop.f32.mrf.mxu0
  %v8440 = vadd.f32 %v6961, %v8439
  %8441 = vmatprep.mubr.bf16.mxu0 0
  %8442 = vmatmul.mubr.bf16.gmra.mxu0 %v7646
  %v8443 = vpop.f32.mrf.mxu0
  %v8444 = vadd.f32 %v6966, %v8443
  %v8445 = vpop.f32.mrf.mxu0
  %v8446 = vadd.f32 %v6966, %v8445
  %v8447 = vpop.f32.mrf.mxu0
  %v8448 = vadd.f32 %v6971, %v8447
  %v8449 = vpop.f32.mrf.mxu0
  %v8450 = vadd.f32 %v6971, %v8449
  %8451 = vmatprep.mubr.bf16.mxu0 0
  %8452 = vmatmul.mubr.bf16.gmra.mxu0 %v7649
  %v8453 = vpop.f32.mrf.mxu0
  %v8454 = vadd.f32 %v6976, %v8453
  %v8455 = vpop.f32.mrf.mxu0
  %v8456 = vadd.f32 %v6976, %v8455
  %v8457 = vpop.f32.mrf.mxu0
  %v8458 = vadd.f32 %v6981, %v8457
  %v8459 = vpop.f32.mrf.mxu0
  %v8460 = vadd.f32 %v6981, %v8459
  %8461 = vmatprep.mubr.bf16.mxu0 0
  %8462 = vmatmul.mubr.bf16.gmra.mxu0 %v7652
  %v8463 = vpop.f32.mrf.mxu0
  %v8464 = vadd.f32 %v6986, %v8463
  %v8465 = vpop.f32.mrf.mxu0
  %v8466 = vadd.f32 %v6986, %v8465
  %v8467 = vpop.f32.mrf.mxu0
  %v8468 = vadd.f32 %v6991, %v8467
  %v8469 = vpop.f32.mrf.mxu0
  %v8470 = vadd.f32 %v6991, %v8469
  %8471 = vmatprep.mubr.bf16.mxu0 0
  %8472 = vmatmul.mubr.bf16.gmra.mxu0 %v7655
  %v8473 = vpop.f32.mrf.mxu0
  %v8474 = vadd.f32 %v6996, %v8473
  %v8475 = vpop.f32.mrf.mxu0
  %v8476 = vadd.f32 %v6996, %v8475
  %v8477 = vpop.f32.mrf.mxu0
  %v8478 = vadd.f32 %v7001, %v8477
  %v8479 = vpop.f32.mrf.mxu0
  %v8480 = vadd.f32 %v7001, %v8479
  %8481 = vmatprep.mubr.bf16.mxu0 0
  %8482 = vmatmul.mubr.bf16.gmra.mxu0 %v7658
  %v8483 = vpop.f32.mrf.mxu0
  %v8484 = vadd.f32 %v7006, %v8483
  %v8485 = vpop.f32.mrf.mxu0
  %v8486 = vadd.f32 %v7006, %v8485
  %v8487 = vpop.f32.mrf.mxu0
  %v8488 = vadd.f32 %v7011, %v8487
  %v8489 = vpop.f32.mrf.mxu0
  %v8490 = vadd.f32 %v7011, %v8489
  %8491 = vmatprep.mubr.bf16.mxu0 0
  %8492 = vmatmul.mubr.bf16.gmra.mxu0 %v7661
  %v8493 = vpop.f32.mrf.mxu0
  %v8494 = vadd.f32 %v7016, %v8493
  %v8495 = vpop.f32.mrf.mxu0
  %v8496 = vadd.f32 %v7016, %v8495
  %v8497 = vpop.f32.mrf.mxu0
  %v8498 = vadd.f32 %v7021, %v8497
  %v8499 = vpop.f32.mrf.mxu0
  %v8500 = vadd.f32 %v7021, %v8499
  %8501 = vdwg.mxu0
  %v8502 = vmax.f32 %v7704, 0.0
  %v8503 = vmax.f32 %v7706, 0.0
  %v8504 = vmax.f32 %v7708, 0.0
  %v8505 = vmax.f32 %v7710, 0.0
  %v8506 = vmax.f32 %v7714, 0.0
  %v8507 = vmax.f32 %v7716, 0.0
  %v8508 = vmax.f32 %v7718, 0.0
  %v8509 = vmax.f32 %v7720, 0.0
  %v8510 = vmax.f32 %v7724, 0.0
  %v8511 = vmax.f32 %v7726, 0.0
  %v8512 = vmax.f32 %v7728, 0.0
  %v8513 = vmax.f32 %v7730, 0.0
  %v8514 = vmax.f32 %v7734, 0.0
  %v8515 = vmax.f32 %v7736, 0.0
  %v8516 = vmax.f32 %v7738, 0.0
  %v8517 = vmax.f32 %v7740, 0.0
  %v8518 = vmax.f32 %v7744, 0.0
  %v8519 = vmax.f32 %v7746, 0.0
  %v8520 = vmax.f32 %v7748, 0.0
  %v8521 = vmax.f32 %v7750, 0.0
  %v8522 = vmax.f32 %v7754, 0.0
  %v8523 = vmax.f32 %v7756, 0.0
  %v8524 = vmax.f32 %v7758, 0.0
  %v8525 = vmax.f32 %v7760, 0.0
  %v8526 = vmax.f32 %v7764, 0.0
  %v8527 = vmax.f32 %v7766, 0.0
  %v8528 = vmax.f32 %v7768, 0.0
  %v8529 = vmax.f32 %v7770, 0.0
  %v8530 = vmax.f32 %v7774, 0.0
  %v8531 = vmax.f32 %v7776, 0.0
  %v8532 = vmax.f32 %v7778, 0.0
  %v8533 = vmax.f32 %v7780, 0.0
  %v8534 = vmax.f32 %v7784, 0.0
  %v8535 = vmax.f32 %v7786, 0.0
  %v8536 = vmax.f32 %v7788, 0.0
  %v8537 = vmax.f32 %v7790, 0.0
  %v8538 = vmax.f32 %v7794, 0.0
  %v8539 = vmax.f32 %v7796, 0.0
  %v8540 = vmax.f32 %v7798, 0.0
  %v8541 = vmax.f32 %v7800, 0.0
  %v8542 = vmax.f32 %v7804, 0.0
  %v8543 = vmax.f32 %v7806, 0.0
  %v8544 = vmax.f32 %v7808, 0.0
  %v8545 = vmax.f32 %v7810, 0.0
  %v8546 = vmax.f32 %v7814, 0.0
  %v8547 = vmax.f32 %v7816, 0.0
  %v8548 = vmax.f32 %v7818, 0.0
  %v8549 = vmax.f32 %v7820, 0.0
  %v8550 = vmax.f32 %v7824, 0.0
  %v8551 = vmax.f32 %v7826, 0.0
  %v8552 = vmax.f32 %v7828, 0.0
  %v8553 = vmax.f32 %v7830, 0.0
  %v8554 = vmax.f32 %v7834, 0.0
  %v8555 = vmax.f32 %v7836, 0.0
  %v8556 = vmax.f32 %v7838, 0.0
  %v8557 = vmax.f32 %v7840, 0.0
  %v8558 = vmax.f32 %v7844, 0.0
  %v8559 = vmax.f32 %v7846, 0.0
  %v8560 = vmax.f32 %v7848, 0.0
  %v8561 = vmax.f32 %v7850, 0.0
  %v8562 = vmax.f32 %v7854, 0.0
  %v8563 = vmax.f32 %v7856, 0.0
  %v8564 = vmax.f32 %v7858, 0.0
  %v8565 = vmax.f32 %v7860, 0.0
  %v8566 = vmax.f32 %v7864, 0.0
  %v8567 = vmax.f32 %v7866, 0.0
  %v8568 = vmax.f32 %v7868, 0.0
  %v8569 = vmax.f32 %v7870, 0.0
  %v8570 = vmax.f32 %v7874, 0.0
  %v8571 = vmax.f32 %v7876, 0.0
  %v8572 = vmax.f32 %v7878, 0.0
  %v8573 = vmax.f32 %v7880, 0.0
  %v8574 = vmax.f32 %v7884, 0.0
  %v8575 = vmax.f32 %v7886, 0.0
  %v8576 = vmax.f32 %v7888, 0.0
  %v8577 = vmax.f32 %v7890, 0.0
  %v8578 = vmax.f32 %v7894, 0.0
  %v8579 = vmax.f32 %v7896, 0.0
  %v8580 = vmax.f32 %v7898, 0.0
  %v8581 = vmax.f32 %v7900, 0.0
  %v8582 = vmax.f32 %v7904, 0.0
  %v8583 = vmax.f32 %v7906, 0.0
  %v8584 = vmax.f32 %v7908, 0.0
  %v8585 = vmax.f32 %v7910, 0.0
  %v8586 = vmax.f32 %v7914, 0.0
  %v8587 = vmax.f32 %v7916, 0.0
  %v8588 = vmax.f32 %v7918, 0.0
  %v8589 = vmax.f32 %v7920, 0.0
  %v8590 = vmax.f32 %v7924, 0.0
  %v8591 = vmax.f32 %v7926, 0.0
  %v8592 = vmax.f32 %v7928, 0.0
  %v8593 = vmax.f32 %v7930, 0.0
  %v8594 = vmax.f32 %v7934, 0.0
  %v8595 = vmax.f32 %v7936, 0.0
  %v8596 = vmax.f32 %v7938, 0.0
  %v8597 = vmax.f32 %v7940, 0.0
  %v8598 = vmax.f32 %v7944, 0.0
  %v8599 = vmax.f32 %v7946, 0.0
  %v8600 = vmax.f32 %v7948, 0.0
  %v8601 = vmax.f32 %v7950, 0.0
  %v8602 = vmax.f32 %v7954, 0.0
  %v8603 = vmax.f32 %v7956, 0.0
  %v8604 = vmax.f32 %v7958, 0.0
  %v8605 = vmax.f32 %v7960, 0.0
  %v8606 = vmax.f32 %v7964, 0.0
  %v8607 = vmax.f32 %v7966, 0.0
  %v8608 = vmax.f32 %v7968, 0.0
  %v8609 = vmax.f32 %v7970, 0.0
  %v8610 = vmax.f32 %v7974, 0.0
  %v8611 = vmax.f32 %v7976, 0.0
  %v8612 = vmax.f32 %v7978, 0.0
  %v8613 = vmax.f32 %v7980, 0.0
  %v8614 = vmax.f32 %v7984, 0.0
  %v8615 = vmax.f32 %v7986, 0.0
  %v8616 = vmax.f32 %v7988, 0.0
  %v8617 = vmax.f32 %v7990, 0.0
  %v8618 = vmax.f32 %v7994, 0.0
  %v8619 = vmax.f32 %v7996, 0.0
  %v8620 = vmax.f32 %v7998, 0.0
  %v8621 = vmax.f32 %v8000, 0.0
  %v8622 = vmax.f32 %v8004, 0.0
  %v8623 = vmax.f32 %v8006, 0.0
  %v8624 = vmax.f32 %v8008, 0.0
  %v8625 = vmax.f32 %v8010, 0.0
  %v8626 = vmax.f32 %v8014, 0.0
  %v8627 = vmax.f32 %v8016, 0.0
  %v8628 = vmax.f32 %v8018, 0.0
  %v8629 = vmax.f32 %v8020, 0.0
  %v8630 = vmax.f32 %v8024, 0.0
  %v8631 = vmax.f32 %v8026, 0.0
  %v8632 = vmax.f32 %v8028, 0.0
  %v8633 = vmax.f32 %v8030, 0.0
  %v8634 = vmax.f32 %v8034, 0.0
  %v8635 = vmax.f32 %v8036, 0.0
  %v8636 = vmax.f32 %v8038, 0.0
  %v8637 = vmax.f32 %v8040, 0.0
  %v8638 = vmax.f32 %v8044, 0.0
  %v8639 = vmax.f32 %v8046, 0.0
  %v8640 = vmax.f32 %v8048, 0.0
  %v8641 = vmax.f32 %v8050, 0.0
  %v8642 = vmax.f32 %v8054, 0.0
  %v8643 = vmax.f32 %v8056, 0.0
  %v8644 = vmax.f32 %v8058, 0.0
  %v8645 = vmax.f32 %v8060, 0.0
  %v8646 = vmax.f32 %v8064, 0.0
  %v8647 = vmax.f32 %v8066, 0.0
  %v8648 = vmax.f32 %v8068, 0.0
  %v8649 = vmax.f32 %v8070, 0.0
  %v8650 = vmax.f32 %v8074, 0.0
  %v8651 = vmax.f32 %v8076, 0.0
  %v8652 = vmax.f32 %v8078, 0.0
  %v8653 = vmax.f32 %v8080, 0.0
  %v8654 = vmax.f32 %v8084, 0.0
  %v8655 = vmax.f32 %v8086, 0.0
  %v8656 = vmax.f32 %v8088, 0.0
  %v8657 = vmax.f32 %v8090, 0.0
  %v8658 = vmax.f32 %v8094, 0.0
  %v8659 = vmax.f32 %v8096, 0.0
  %v8660 = vmax.f32 %v8098, 0.0
  %v8661 = vmax.f32 %v8100, 0.0
  %v8662 = vmax.f32 %v8104, 0.0
  %v8663 = vmax.f32 %v8106, 0.0
  %v8664 = vmax.f32 %v8108, 0.0
  %v8665 = vmax.f32 %v8110, 0.0
  %v8666 = vmax.f32 %v8114, 0.0
  %v8667 = vmax.f32 %v8116, 0.0
  %v8668 = vmax.f32 %v8118, 0.0
  %v8669 = vmax.f32 %v8120, 0.0
  %v8670 = vmax.f32 %v8124, 0.0
  %v8671 = vmax.f32 %v8126, 0.0
  %v8672 = vmax.f32 %v8128, 0.0
  %v8673 = vmax.f32 %v8130, 0.0
  %v8674 = vmax.f32 %v8134, 0.0
  %v8675 = vmax.f32 %v8136, 0.0
  %v8676 = vmax.f32 %v8138, 0.0
  %v8677 = vmax.f32 %v8140, 0.0
  %v8678 = vmax.f32 %v8144, 0.0
  %v8679 = vmax.f32 %v8146, 0.0
  %v8680 = vmax.f32 %v8148, 0.0
  %v8681 = vmax.f32 %v8150, 0.0
  %v8682 = vmax.f32 %v8154, 0.0
  %v8683 = vmax.f32 %v8156, 0.0
  %v8684 = vmax.f32 %v8158, 0.0
  %v8685 = vmax.f32 %v8160, 0.0
  %v8686 = vmax.f32 %v8164, 0.0
  %v8687 = vmax.f32 %v8166, 0.0
  %v8688 = vmax.f32 %v8168, 0.0
  %v8689 = vmax.f32 %v8170, 0.0
  %v8690 = vmax.f32 %v8174, 0.0
  %v8691 = vmax.f32 %v8176, 0.0
  %v8692 = vmax.f32 %v8178, 0.0
  %v8693 = vmax.f32 %v8180, 0.0
  %v8694 = vmax.f32 %v8184, 0.0
  %v8695 = vmax.f32 %v8186, 0.0
  %v8696 = vmax.f32 %v8188, 0.0
  %v8697 = vmax.f32 %v8190, 0.0
  %v8698 = vmax.f32 %v8194, 0.0
  %v8699 = vmax.f32 %v8196, 0.0
  %v8700 = vmax.f32 %v8198, 0.0
  %v8701 = vmax.f32 %v8200, 0.0
  %v8702 = vmax.f32 %v8204, 0.0
  %v8703 = vmax.f32 %v8206, 0.0
  %v8704 = vmax.f32 %v8208, 0.0
  %v8705 = vmax.f32 %v8210, 0.0
  %v8706 = vmax.f32 %v8214, 0.0
  %v8707 = vmax.f32 %v8216, 0.0
  %v8708 = vmax.f32 %v8218, 0.0
  %v8709 = vmax.f32 %v8220, 0.0
  %v8710 = vmax.f32 %v8224, 0.0
  %v8711 = vmax.f32 %v8226, 0.0
  %v8712 = vmax.f32 %v8228, 0.0
  %v8713 = vmax.f32 %v8230, 0.0
  %v8714 = vmax.f32 %v8234, 0.0
  %v8715 = vmax.f32 %v8236, 0.0
  %v8716 = vmax.f32 %v8238, 0.0
  %v8717 = vmax.f32 %v8240, 0.0
  %v8718 = vmax.f32 %v8244, 0.0
  %v8719 = vmax.f32 %v8246, 0.0
  %v8720 = vmax.f32 %v8248, 0.0
  %v8721 = vmax.f32 %v8250, 0.0
  %v8722 = vmax.f32 %v8254, 0.0
  %v8723 = vmax.f32 %v8256, 0.0
  %v8724 = vmax.f32 %v8258, 0.0
  %v8725 = vmax.f32 %v8260, 0.0
  %v8726 = vmax.f32 %v8264, 0.0
  %v8727 = vmax.f32 %v8266, 0.0
  %v8728 = vmax.f32 %v8268, 0.0
  %v8729 = vmax.f32 %v8270, 0.0
  %v8730 = vmax.f32 %v8274, 0.0
  %v8731 = vmax.f32 %v8276, 0.0
  %v8732 = vmax.f32 %v8278, 0.0
  %v8733 = vmax.f32 %v8280, 0.0
  %v8734 = vmax.f32 %v8284, 0.0
  %v8735 = vmax.f32 %v8286, 0.0
  %v8736 = vmax.f32 %v8288, 0.0
  %v8737 = vmax.f32 %v8290, 0.0
  %v8738 = vmax.f32 %v8294, 0.0
  %v8739 = vmax.f32 %v8296, 0.0
  %v8740 = vmax.f32 %v8298, 0.0
  %v8741 = vmax.f32 %v8300, 0.0
  %v8742 = vmax.f32 %v8304, 0.0
  %v8743 = vmax.f32 %v8306, 0.0
  %v8744 = vmax.f32 %v8308, 0.0
  %v8745 = vmax.f32 %v8310, 0.0
  %v8746 = vmax.f32 %v8314, 0.0
  %v8747 = vmax.f32 %v8316, 0.0
  %v8748 = vmax.f32 %v8318, 0.0
  %v8749 = vmax.f32 %v8320, 0.0
  %v8750 = vmax.f32 %v8324, 0.0
  %v8751 = vmax.f32 %v8326, 0.0
  %v8752 = vmax.f32 %v8328, 0.0
  %v8753 = vmax.f32 %v8330, 0.0
  %v8754 = vmax.f32 %v8334, 0.0
  %v8755 = vmax.f32 %v8336, 0.0
  %v8756 = vmax.f32 %v8338, 0.0
  %v8757 = vmax.f32 %v8340, 0.0
  %v8758 = vmax.f32 %v8344, 0.0
  %v8759 = vmax.f32 %v8346, 0.0
  %v8760 = vmax.f32 %v8348, 0.0
  %v8761 = vmax.f32 %v8350, 0.0
  %v8762 = vmax.f32 %v8354, 0.0
  %v8763 = vmax.f32 %v8356, 0.0
  %v8764 = vmax.f32 %v8358, 0.0
  %v8765 = vmax.f32 %v8360, 0.0
  %v8766 = vmax.f32 %v8364, 0.0
  %v8767 = vmax.f32 %v8366, 0.0
  %v8768 = vmax.f32 %v8368, 0.0
  %v8769 = vmax.f32 %v8370, 0.0
  %v8770 = vmax.f32 %v8374, 0.0
  %v8771 = vmax.f32 %v8376, 0.0
  %v8772 = vmax.f32 %v8378, 0.0
  %v8773 = vmax.f32 %v8380, 0.0
  %v8774 = vmax.f32 %v8384, 0.0
  %v8775 = vmax.f32 %v8386, 0.0
  %v8776 = vmax.f32 %v8388, 0.0
  %v8777 = vmax.f32 %v8390, 0.0
  %v8778 = vmax.f32 %v8394, 0.0
  %v8779 = vmax.f32 %v8396, 0.0
  %v8780 = vmax.f32 %v8398, 0.0
  %v8781 = vmax.f32 %v8400, 0.0
  %v8782 = vmax.f32 %v8404, 0.0
  %v8783 = vmax.f32 %v8406, 0.0
  %v8784 = vmax.f32 %v8408, 0.0
  %v8785 = vmax.f32 %v8410, 0.0
  %v8786 = vmax.f32 %v8414, 0.0
  %v8787 = vmax.f32 %v8416, 0.0
  %v8788 = vmax.f32 %v8418, 0.0
  %v8789 = vmax.f32 %v8420, 0.0
  %v8790 = vmax.f32 %v8424, 0.0
  %v8791 = vmax.f32 %v8426, 0.0
  %v8792 = vmax.f32 %v8428, 0.0
  %v8793 = vmax.f32 %v8430, 0.0
  %v8794 = vmax.f32 %v8434, 0.0
  %v8795 = vmax.f32 %v8436, 0.0
  %v8796 = vmax.f32 %v8438, 0.0
  %v8797 = vmax.f32 %v8440, 0.0
  %v8798 = vmax.f32 %v8444, 0.0
  %v8799 = vmax.f32 %v8446, 0.0
  %v8800 = vmax.f32 %v8448, 0.0
  %v8801 = vmax.f32 %v8450, 0.0
  %v8802 = vmax.f32 %v8454, 0.0
  %v8803 = vmax.f32 %v8456, 0.0
  %v8804 = vmax.f32 %v8458, 0.0
  %v8805 = vmax.f32 %v8460, 0.0
  %v8806 = vmax.f32 %v8464, 0.0
  %v8807 = vmax.f32 %v8466, 0.0
  %v8808 = vmax.f32 %v8468, 0.0
  %v8809 = vmax.f32 %v8470, 0.0
  %v8810 = vmax.f32 %v8474, 0.0
  %v8811 = vmax.f32 %v8476, 0.0
  %v8812 = vmax.f32 %v8478, 0.0
  %v8813 = vmax.f32 %v8480, 0.0
  %v8814 = vmax.f32 %v8484, 0.0
  %v8815 = vmax.f32 %v8486, 0.0
  %v8816 = vmax.f32 %v8488, 0.0
  %v8817 = vmax.f32 %v8490, 0.0
  %v8818 = vmax.f32 %v8494, 0.0
  %v8819 = vmax.f32 %v8496, 0.0
  %v8820 = vmax.f32 %v8498, 0.0
  %v8821 = vmax.f32 %v8500, 0.0
  %v8822 = vmin.f32 %v8502, 6.0
  %v8823 = vmin.f32 %v8503, 6.0
  %v8824 = vmin.f32 %v8504, 6.0
  %v8825 = vmin.f32 %v8505, 6.0
  %v8826 = vmin.f32 %v8506, 6.0
  %v8827 = vmin.f32 %v8507, 6.0
  %v8828 = vmin.f32 %v8508, 6.0
  %v8829 = vmin.f32 %v8509, 6.0
  %v8830 = vmin.f32 %v8510, 6.0
  %v8831 = vmin.f32 %v8511, 6.0
  %v8832 = vmin.f32 %v8512, 6.0
  %v8833 = vmin.f32 %v8513, 6.0
  %v8834 = vmin.f32 %v8514, 6.0
  %v8835 = vmin.f32 %v8515, 6.0
  %v8836 = vmin.f32 %v8516, 6.0
  %v8837 = vmin.f32 %v8517, 6.0
  %v8838 = vmin.f32 %v8518, 6.0
  %v8839 = vmin.f32 %v8519, 6.0
  %v8840 = vmin.f32 %v8520, 6.0
  %v8841 = vmin.f32 %v8521, 6.0
  %v8842 = vmin.f32 %v8522, 6.0
  %v8843 = vmin.f32 %v8523, 6.0
  %v8844 = vmin.f32 %v8524, 6.0
  %v8845 = vmin.f32 %v8525, 6.0
  %v8846 = vmin.f32 %v8526, 6.0
  %v8847 = vmin.f32 %v8527, 6.0
  %v8848 = vmin.f32 %v8528, 6.0
  %v8849 = vmin.f32 %v8529, 6.0
  %v8850 = vmin.f32 %v8530, 6.0
  %v8851 = vmin.f32 %v8531, 6.0
  %v8852 = vmin.f32 %v8532, 6.0
  %v8853 = vmin.f32 %v8533, 6.0
  %v8854 = vmin.f32 %v8534, 6.0
  %v8855 = vmin.f32 %v8535, 6.0
  %v8856 = vmin.f32 %v8536, 6.0
  %v8857 = vmin.f32 %v8537, 6.0
  %v8858 = vmin.f32 %v8538, 6.0
  %v8859 = vmin.f32 %v8539, 6.0
  %v8860 = vmin.f32 %v8540, 6.0
  %v8861 = vmin.f32 %v8541, 6.0
  %v8862 = vmin.f32 %v8542, 6.0
  %v8863 = vmin.f32 %v8543, 6.0
  %v8864 = vmin.f32 %v8544, 6.0
  %v8865 = vmin.f32 %v8545, 6.0
  %v8866 = vmin.f32 %v8546, 6.0
  %v8867 = vmin.f32 %v8547, 6.0
  %v8868 = vmin.f32 %v8548, 6.0
  %v8869 = vmin.f32 %v8549, 6.0
  %v8870 = vmin.f32 %v8550, 6.0
  %v8871 = vmin.f32 %v8551, 6.0
  %v8872 = vmin.f32 %v8552, 6.0
  %v8873 = vmin.f32 %v8553, 6.0
  %v8874 = vmin.f32 %v8554, 6.0
  %v8875 = vmin.f32 %v8555, 6.0
  %v8876 = vmin.f32 %v8556, 6.0
  %v8877 = vmin.f32 %v8557, 6.0
  %v8878 = vmin.f32 %v8558, 6.0
  %v8879 = vmin.f32 %v8559, 6.0
  %v8880 = vmin.f32 %v8560, 6.0
  %v8881 = vmin.f32 %v8561, 6.0
  %v8882 = vmin.f32 %v8562, 6.0
  %v8883 = vmin.f32 %v8563, 6.0
  %v8884 = vmin.f32 %v8564, 6.0
  %v8885 = vmin.f32 %v8565, 6.0
  %v8886 = vmin.f32 %v8566, 6.0
  %v8887 = vmin.f32 %v8567, 6.0
  %v8888 = vmin.f32 %v8568, 6.0
  %v8889 = vmin.f32 %v8569, 6.0
  %v8890 = vmin.f32 %v8570, 6.0
  %v8891 = vmin.f32 %v8571, 6.0
  %v8892 = vmin.f32 %v8572, 6.0
  %v8893 = vmin.f32 %v8573, 6.0
  %v8894 = vmin.f32 %v8574, 6.0
  %v8895 = vmin.f32 %v8575, 6.0
  %v8896 = vmin.f32 %v8576, 6.0
  %v8897 = vmin.f32 %v8577, 6.0
  %v8898 = vmin.f32 %v8578, 6.0
  %v8899 = vmin.f32 %v8579, 6.0
  %v8900 = vmin.f32 %v8580, 6.0
  %v8901 = vmin.f32 %v8581, 6.0
  %v8902 = vmin.f32 %v8582, 6.0
  %v8903 = vmin.f32 %v8583, 6.0
  %v8904 = vmin.f32 %v8584, 6.0
  %v8905 = vmin.f32 %v8585, 6.0
  %v8906 = vmin.f32 %v8586, 6.0
  %v8907 = vmin.f32 %v8587, 6.0
  %v8908 = vmin.f32 %v8588, 6.0
  %v8909 = vmin.f32 %v8589, 6.0
  %v8910 = vmin.f32 %v8590, 6.0
  %v8911 = vmin.f32 %v8591, 6.0
  %v8912 = vmin.f32 %v8592, 6.0
  %v8913 = vmin.f32 %v8593, 6.0
  %v8914 = vmin.f32 %v8594, 6.0
  %v8915 = vmin.f32 %v8595, 6.0
  %v8916 = vmin.f32 %v8596, 6.0
  %v8917 = vmin.f32 %v8597, 6.0
  %v8918 = vmin.f32 %v8598, 6.0
  %v8919 = vmin.f32 %v8599, 6.0
  %v8920 = vmin.f32 %v8600, 6.0
  %v8921 = vmin.f32 %v8601, 6.0
  %v8922 = vmin.f32 %v8602, 6.0
  %v8923 = vmin.f32 %v8603, 6.0
  %v8924 = vmin.f32 %v8604, 6.0
  %v8925 = vmin.f32 %v8605, 6.0
  %v8926 = vmin.f32 %v8606, 6.0
  %v8927 = vmin.f32 %v8607, 6.0
  %v8928 = vmin.f32 %v8608, 6.0
  %v8929 = vmin.f32 %v8609, 6.0
  %v8930 = vmin.f32 %v8610, 6.0
  %v8931 = vmin.f32 %v8611, 6.0
  %v8932 = vmin.f32 %v8612, 6.0
  %v8933 = vmin.f32 %v8613, 6.0
  %v8934 = vmin.f32 %v8614, 6.0
  %v8935 = vmin.f32 %v8615, 6.0
  %v8936 = vmin.f32 %v8616, 6.0
  %v8937 = vmin.f32 %v8617, 6.0
  %v8938 = vmin.f32 %v8618, 6.0
  %v8939 = vmin.f32 %v8619, 6.0
  %v8940 = vmin.f32 %v8620, 6.0
  %v8941 = vmin.f32 %v8621, 6.0
  %v8942 = vmin.f32 %v8622, 6.0
  %v8943 = vmin.f32 %v8623, 6.0
  %v8944 = vmin.f32 %v8624, 6.0
  %v8945 = vmin.f32 %v8625, 6.0
  %v8946 = vmin.f32 %v8626, 6.0
  %v8947 = vmin.f32 %v8627, 6.0
  %v8948 = vmin.f32 %v8628, 6.0
  %v8949 = vmin.f32 %v8629, 6.0
  %v8950 = vmin.f32 %v8630, 6.0
  %v8951 = vmin.f32 %v8631, 6.0
  %v8952 = vmin.f32 %v8632, 6.0
  %v8953 = vmin.f32 %v8633, 6.0
  %v8954 = vmin.f32 %v8634, 6.0
  %v8955 = vmin.f32 %v8635, 6.0
  %v8956 = vmin.f32 %v8636, 6.0
  %v8957 = vmin.f32 %v8637, 6.0
  %v8958 = vmin.f32 %v8638, 6.0
  %v8959 = vmin.f32 %v8639, 6.0
  %v8960 = vmin.f32 %v8640, 6.0
  %v8961 = vmin.f32 %v8641, 6.0
  %v8962 = vmin.f32 %v8642, 6.0
  %v8963 = vmin.f32 %v8643, 6.0
  %v8964 = vmin.f32 %v8644, 6.0
  %v8965 = vmin.f32 %v8645, 6.0
  %v8966 = vmin.f32 %v8646, 6.0
  %v8967 = vmin.f32 %v8647, 6.0
  %v8968 = vmin.f32 %v8648, 6.0
  %v8969 = vmin.f32 %v8649, 6.0
  %v8970 = vmin.f32 %v8650, 6.0
  %v8971 = vmin.f32 %v8651, 6.0
  %v8972 = vmin.f32 %v8652, 6.0
  %v8973 = vmin.f32 %v8653, 6.0
  %v8974 = vmin.f32 %v8654, 6.0
  %v8975 = vmin.f32 %v8655, 6.0
  %v8976 = vmin.f32 %v8656, 6.0
  %v8977 = vmin.f32 %v8657, 6.0
  %v8978 = vmin.f32 %v8658, 6.0
  %v8979 = vmin.f32 %v8659, 6.0
  %v8980 = vmin.f32 %v8660, 6.0
  %v8981 = vmin.f32 %v8661, 6.0
  %v8982 = vmin.f32 %v8662, 6.0
  %v8983 = vmin.f32 %v8663, 6.0
  %v8984 = vmin.f32 %v8664, 6.0
  %v8985 = vmin.f32 %v8665, 6.0
  %v8986 = vmin.f32 %v8666, 6.0
  %v8987 = vmin.f32 %v8667, 6.0
  %v8988 = vmin.f32 %v8668, 6.0
  %v8989 = vmin.f32 %v8669, 6.0
  %v8990 = vmin.f32 %v8670, 6.0
  %v8991 = vmin.f32 %v8671, 6.0
  %v8992 = vmin.f32 %v8672, 6.0
  %v8993 = vmin.f32 %v8673, 6.0
  %v8994 = vmin.f32 %v8674, 6.0
  %v8995 = vmin.f32 %v8675, 6.0
  %v8996 = vmin.f32 %v8676, 6.0
  %v8997 = vmin.f32 %v8677, 6.0
  %v8998 = vmin.f32 %v8678, 6.0
  %v8999 = vmin.f32 %v8679, 6.0
  %v9000 = vmin.f32 %v8680, 6.0
  %v9001 = vmin.f32 %v8681, 6.0
  %v9002 = vmin.f32 %v8682, 6.0
  %v9003 = vmin.f32 %v8683, 6.0
  %v9004 = vmin.f32 %v8684, 6.0
  %v9005 = vmin.f32 %v8685, 6.0
  %v9006 = vmin.f32 %v8686, 6.0
  %v9007 = vmin.f32 %v8687, 6.0
  %v9008 = vmin.f32 %v8688, 6.0
  %v9009 = vmin.f32 %v8689, 6.0
  %v9010 = vmin.f32 %v8690, 6.0
  %v9011 = vmin.f32 %v8691, 6.0
  %v9012 = vmin.f32 %v8692, 6.0
  %v9013 = vmin.f32 %v8693, 6.0
  %v9014 = vmin.f32 %v8694, 6.0
  %v9015 = vmin.f32 %v8695, 6.0
  %v9016 = vmin.f32 %v8696, 6.0
  %v9017 = vmin.f32 %v8697, 6.0
  %v9018 = vmin.f32 %v8698, 6.0
  %v9019 = vmin.f32 %v8699, 6.0
  %v9020 = vmin.f32 %v8700, 6.0
  %v9021 = vmin.f32 %v8701, 6.0
  %v9022 = vmin.f32 %v8702, 6.0
  %v9023 = vmin.f32 %v8703, 6.0
  %v9024 = vmin.f32 %v8704, 6.0
  %v9025 = vmin.f32 %v8705, 6.0
  %v9026 = vmin.f32 %v8706, 6.0
  %v9027 = vmin.f32 %v8707, 6.0
  %v9028 = vmin.f32 %v8708, 6.0
  %v9029 = vmin.f32 %v8709, 6.0
  %v9030 = vmin.f32 %v8710, 6.0
  %v9031 = vmin.f32 %v8711, 6.0
  %v9032 = vmin.f32 %v8712, 6.0
  %v9033 = vmin.f32 %v8713, 6.0
  %v9034 = vmin.f32 %v8714, 6.0
  %v9035 = vmin.f32 %v8715, 6.0
  %v9036 = vmin.f32 %v8716, 6.0
  %v9037 = vmin.f32 %v8717, 6.0
  %v9038 = vmin.f32 %v8718, 6.0
  %v9039 = vmin.f32 %v8719, 6.0
  %v9040 = vmin.f32 %v8720, 6.0
  %v9041 = vmin.f32 %v8721, 6.0
  %v9042 = vmin.f32 %v8722, 6.0
  %v9043 = vmin.f32 %v8723, 6.0
  %v9044 = vmin.f32 %v8724, 6.0
  %v9045 = vmin.f32 %v8725, 6.0
  %v9046 = vmin.f32 %v8726, 6.0
  %v9047 = vmin.f32 %v8727, 6.0
  %v9048 = vmin.f32 %v8728, 6.0
  %v9049 = vmin.f32 %v8729, 6.0
  %v9050 = vmin.f32 %v8730, 6.0
  %v9051 = vmin.f32 %v8731, 6.0
  %v9052 = vmin.f32 %v8732, 6.0
  %v9053 = vmin.f32 %v8733, 6.0
  %v9054 = vmin.f32 %v8734, 6.0
  %v9055 = vmin.f32 %v8735, 6.0
  %v9056 = vmin.f32 %v8736, 6.0
  %v9057 = vmin.f32 %v8737, 6.0
  %v9058 = vmin.f32 %v8738, 6.0
  %v9059 = vmin.f32 %v8739, 6.0
  %v9060 = vmin.f32 %v8740, 6.0
  %v9061 = vmin.f32 %v8741, 6.0
  %v9062 = vmin.f32 %v8742, 6.0
  %v9063 = vmin.f32 %v8743, 6.0
  %v9064 = vmin.f32 %v8744, 6.0
  %v9065 = vmin.f32 %v8745, 6.0
  %v9066 = vmin.f32 %v8746, 6.0
  %v9067 = vmin.f32 %v8747, 6.0
  %v9068 = vmin.f32 %v8748, 6.0
  %v9069 = vmin.f32 %v8749, 6.0
  %v9070 = vmin.f32 %v8750, 6.0
  %v9071 = vmin.f32 %v8751, 6.0
  %v9072 = vmin.f32 %v8752, 6.0
  %v9073 = vmin.f32 %v8753, 6.0
  %v9074 = vmin.f32 %v8754, 6.0
  %v9075 = vmin.f32 %v8755, 6.0
  %v9076 = vmin.f32 %v8756, 6.0
  %v9077 = vmin.f32 %v8757, 6.0
  %v9078 = vmin.f32 %v8758, 6.0
  %v9079 = vmin.f32 %v8759, 6.0
  %v9080 = vmin.f32 %v8760, 6.0
  %v9081 = vmin.f32 %v8761, 6.0
  %v9082 = vmin.f32 %v8762, 6.0
  %v9083 = vmin.f32 %v8763, 6.0
  %v9084 = vmin.f32 %v8764, 6.0
  %v9085 = vmin.f32 %v8765, 6.0
  %v9086 = vmin.f32 %v8766, 6.0
  %v9087 = vmin.f32 %v8767, 6.0
  %v9088 = vmin.f32 %v8768, 6.0
  %v9089 = vmin.f32 %v8769, 6.0
  %v9090 = vmin.f32 %v8770, 6.0
  %v9091 = vmin.f32 %v8771, 6.0
  %v9092 = vmin.f32 %v8772, 6.0
  %v9093 = vmin.f32 %v8773, 6.0
  %v9094 = vmin.f32 %v8774, 6.0
  %v9095 = vmin.f32 %v8775, 6.0
  %v9096 = vmin.f32 %v8776, 6.0
  %v9097 = vmin.f32 %v8777, 6.0
  %v9098 = vmin.f32 %v8778, 6.0
  %v9099 = vmin.f32 %v8779, 6.0
  %v9100 = vmin.f32 %v8780, 6.0
  %v9101 = vmin.f32 %v8781, 6.0
  %v9102 = vmin.f32 %v8782, 6.0
  %v9103 = vmin.f32 %v8783, 6.0
  %v9104 = vmin.f32 %v8784, 6.0
  %v9105 = vmin.f32 %v8785, 6.0
  %v9106 = vmin.f32 %v8786, 6.0
  %v9107 = vmin.f32 %v8787, 6.0
  %v9108 = vmin.f32 %v8788, 6.0
  %v9109 = vmin.f32 %v8789, 6.0
  %v9110 = vmin.f32 %v8790, 6.0
  %v9111 = vmin.f32 %v8791, 6.0
  %v9112 = vmin.f32 %v8792, 6.0
  %v9113 = vmin.f32 %v8793, 6.0
  %v9114 = vmin.f32 %v8794, 6.0
  %v9115 = vmin.f32 %v8795, 6.0
  %v9116 = vmin.f32 %v8796, 6.0
  %v9117 = vmin.f32 %v8797, 6.0
  %v9118 = vmin.f32 %v8798, 6.0
  %v9119 = vmin.f32 %v8799, 6.0
  %v9120 = vmin.f32 %v8800, 6.0
  %v9121 = vmin.f32 %v8801, 6.0
  %v9122 = vmin.f32 %v8802, 6.0
  %v9123 = vmin.f32 %v8803, 6.0
  %v9124 = vmin.f32 %v8804, 6.0
  %v9125 = vmin.f32 %v8805, 6.0
  %v9126 = vmin.f32 %v8806, 6.0
  %v9127 = vmin.f32 %v8807, 6.0
  %v9128 = vmin.f32 %v8808, 6.0
  %v9129 = vmin.f32 %v8809, 6.0
  %v9130 = vmin.f32 %v8810, 6.0
  %v9131 = vmin.f32 %v8811, 6.0
  %v9132 = vmin.f32 %v8812, 6.0
  %v9133 = vmin.f32 %v8813, 6.0
  %v9134 = vmin.f32 %v8814, 6.0
  %v9135 = vmin.f32 %v8815, 6.0
  %v9136 = vmin.f32 %v8816, 6.0
  %v9137 = vmin.f32 %v8817, 6.0
  %v9138 = vmin.f32 %v8818, 6.0
  %v9139 = vmin.f32 %v8819, 6.0
  %v9140 = vmin.f32 %v8820, 6.0
  %v9141 = vmin.f32 %v8821, 6.0
  %v9143 = vand.u32 %v6221, %v1968
  %v9146 = vand.u32 %v6222, %v1968
  %9148 = vmatprep.subr.bf16.mxu0 0
  %9149 = vmatpush1.bf16.msra.mxu0 0
  %9150 = vmatprep.subr.bf16.mxu0 0
  %9151 = vmatpush1.bf16.msra.mxu0 0
  %9152 = vmatprep.subr.bf16.mxu0 0
  %9153 = vmatpush1.bf16.msra.mxu0 0
  %9154 = vmatprep.subr.bf16.mxu0 0
  %9155 = vmatpush1.bf16.msra.mxu0 0
  %9156 = vmatprep.subr.bf16.mxu0 0
  %9157 = vmatpush1.bf16.msra.mxu0 0
  %9158 = vmatprep.subr.bf16.mxu0 0
  %9159 = vmatpush1.bf16.msra.mxu0 0
  %9160 = vmatprep.subr.bf16.mxu0 0
  %9161 = vmatpush1.bf16.msra.mxu0 0
  %9162 = vmatprep.subr.bf16.mxu0 %v9146
  %9163 = vmatpush1.bf16.msra.mxu0 %v9143
  %9164 = vmatprep.subr.bf16.mxu0 0
  %9165 = vmatpush2.bf16.msra.mxu0 0
  %9166 = vmatprep.subr.bf16.mxu0 0
  %9167 = vmatpush2.bf16.msra.mxu0 0
  %9168 = vmatprep.subr.bf16.mxu0 0
  %9169 = vmatpush2.bf16.msra.mxu0 0
  %9170 = vmatprep.subr.bf16.mxu0 0
  %9171 = vmatpush2.bf16.msra.mxu0 0
  %9172 = vmatprep.subr.bf16.mxu0 0
  %9173 = vmatpush2.bf16.msra.mxu0 0
  %9174 = vmatprep.subr.bf16.mxu0 0
  %9175 = vmatpush2.bf16.msra.mxu0 0
  %9176 = vmatprep.subr.bf16.mxu0 0
  %9177 = vmatpush2.bf16.msra.mxu0 0
  %9178 = vmatprep.subr.bf16.mxu0 0
  %9179 = vmatpush2.bf16.msra.mxu0 0
  %9180 = vmatprep.mubr.bf16.mxu0 0
  %9181 = vmatmul.mubr.bf16.gmra.mxu0 %v7424
  %v9182 = vpop.f32.mrf.mxu0
  %v9183 = vadd.f32 %v6226, %v9182
  %v9184 = vpop.f32.mrf.mxu0
  %v9185 = vadd.f32 %v6226, %v9184
  %v9186 = vpop.f32.mrf.mxu0
  %v9187 = vadd.f32 %v6231, %v9186
  %v9188 = vpop.f32.mrf.mxu0
  %v9189 = vadd.f32 %v6231, %v9188
  %9190 = vmatprep.mubr.bf16.mxu0 0
  %9191 = vmatmul.mubr.bf16.gmra.mxu0 %v7427
  %v9192 = vpop.f32.mrf.mxu0
  %v9193 = vadd.f32 %v6236, %v9192
  %v9194 = vpop.f32.mrf.mxu0
  %v9195 = vadd.f32 %v6236, %v9194
  %v9196 = vpop.f32.mrf.mxu0
  %v9197 = vadd.f32 %v6241, %v9196
  %v9198 = vpop.f32.mrf.mxu0
  %v9199 = vadd.f32 %v6241, %v9198
  %9200 = vmatprep.mubr.bf16.mxu0 0
  %9201 = vmatmul.mubr.bf16.gmra.mxu0 %v7430
  %v9202 = vpop.f32.mrf.mxu0
  %v9203 = vadd.f32 %v6246, %v9202
  %v9204 = vpop.f32.mrf.mxu0
  %v9205 = vadd.f32 %v6246, %v9204
  %v9206 = vpop.f32.mrf.mxu0
  %v9207 = vadd.f32 %v6251, %v9206
  %v9208 = vpop.f32.mrf.mxu0
  %v9209 = vadd.f32 %v6251, %v9208
  %9210 = vmatprep.mubr.bf16.mxu0 0
  %9211 = vmatmul.mubr.bf16.gmra.mxu0 %v7433
  %v9212 = vpop.f32.mrf.mxu0
  %v9213 = vadd.f32 %v6256, %v9212
  %v9214 = vpop.f32.mrf.mxu0
  %v9215 = vadd.f32 %v6256, %v9214
  %v9216 = vpop.f32.mrf.mxu0
  %v9217 = vadd.f32 %v6261, %v9216
  %v9218 = vpop.f32.mrf.mxu0
  %v9219 = vadd.f32 %v6261, %v9218
  %9220 = vmatprep.mubr.bf16.mxu0 0
  %9221 = vmatmul.mubr.bf16.gmra.mxu0 %v7436
  %v9222 = vpop.f32.mrf.mxu0
  %v9223 = vadd.f32 %v6266, %v9222
  %v9224 = vpop.f32.mrf.mxu0
  %v9225 = vadd.f32 %v6266, %v9224
  %v9226 = vpop.f32.mrf.mxu0
  %v9227 = vadd.f32 %v6271, %v9226
  %v9228 = vpop.f32.mrf.mxu0
  %v9229 = vadd.f32 %v6271, %v9228
  %9230 = vmatprep.mubr.bf16.mxu0 0
  %9231 = vmatmul.mubr.bf16.gmra.mxu0 %v7439
  %v9232 = vpop.f32.mrf.mxu0
  %v9233 = vadd.f32 %v6276, %v9232
  %v9234 = vpop.f32.mrf.mxu0
  %v9235 = vadd.f32 %v6276, %v9234
  %v9236 = vpop.f32.mrf.mxu0
  %v9237 = vadd.f32 %v6281, %v9236
  %v9238 = vpop.f32.mrf.mxu0
  %v9239 = vadd.f32 %v6281, %v9238
  %9240 = vmatprep.mubr.bf16.mxu0 0
  %9241 = vmatmul.mubr.bf16.gmra.mxu0 %v7442
  %v9242 = vpop.f32.mrf.mxu0
  %v9243 = vadd.f32 %v6286, %v9242
  %v9244 = vpop.f32.mrf.mxu0
  %v9245 = vadd.f32 %v6286, %v9244
  %v9246 = vpop.f32.mrf.mxu0
  %v9247 = vadd.f32 %v6291, %v9246
  %v9248 = vpop.f32.mrf.mxu0
  %v9249 = vadd.f32 %v6291, %v9248
  %9250 = vmatprep.mubr.bf16.mxu0 0
  %9251 = vmatmul.mubr.bf16.gmra.mxu0 %v7445
  %v9252 = vpop.f32.mrf.mxu0
  %v9253 = vadd.f32 %v6296, %v9252
  %v9254 = vpop.f32.mrf.mxu0
  %v9255 = vadd.f32 %v6296, %v9254
  %v9256 = vpop.f32.mrf.mxu0
  %v9257 = vadd.f32 %v6301, %v9256
  %v9258 = vpop.f32.mrf.mxu0
  %v9259 = vadd.f32 %v6301, %v9258
  %9260 = vmatprep.mubr.bf16.mxu0 0
  %9261 = vmatmul.mubr.bf16.gmra.mxu0 %v7448
  %v9262 = vpop.f32.mrf.mxu0
  %v9263 = vadd.f32 %v6306, %v9262
  %v9264 = vpop.f32.mrf.mxu0
  %v9265 = vadd.f32 %v6306, %v9264
  %v9266 = vpop.f32.mrf.mxu0
  %v9267 = vadd.f32 %v6311, %v9266
  %v9268 = vpop.f32.mrf.mxu0
  %v9269 = vadd.f32 %v6311, %v9268
  %9270 = vmatprep.mubr.bf16.mxu0 0
  %9271 = vmatmul.mubr.bf16.gmra.mxu0 %v7451
  %v9272 = vpop.f32.mrf.mxu0
  %v9273 = vadd.f32 %v6316, %v9272
  %v9274 = vpop.f32.mrf.mxu0
  %v9275 = vadd.f32 %v6316, %v9274
  %v9276 = vpop.f32.mrf.mxu0
  %v9277 = vadd.f32 %v6321, %v9276
  %v9278 = vpop.f32.mrf.mxu0
  %v9279 = vadd.f32 %v6321, %v9278
  %9280 = vmatprep.mubr.bf16.mxu0 0
  %9281 = vmatmul.mubr.bf16.gmra.mxu0 %v7454
  %v9282 = vpop.f32.mrf.mxu0
  %v9283 = vadd.f32 %v6326, %v9282
  %v9284 = vpop.f32.mrf.mxu0
  %v9285 = vadd.f32 %v6326, %v9284
  %v9286 = vpop.f32.mrf.mxu0
  %v9287 = vadd.f32 %v6331, %v9286
  %v9288 = vpop.f32.mrf.mxu0
  %v9289 = vadd.f32 %v6331, %v9288
  %9290 = vmatprep.mubr.bf16.mxu0 0
  %9291 = vmatmul.mubr.bf16.gmra.mxu0 %v7457
  %v9292 = vpop.f32.mrf.mxu0
  %v9293 = vadd.f32 %v6336, %v9292
  %v9294 = vpop.f32.mrf.mxu0
  %v9295 = vadd.f32 %v6336, %v9294
  %v9296 = vpop.f32.mrf.mxu0
  %v9297 = vadd.f32 %v6341, %v9296
  %v9298 = vpop.f32.mrf.mxu0
  %v9299 = vadd.f32 %v6341, %v9298
  %9300 = vmatprep.mubr.bf16.mxu0 0
  %9301 = vmatmul.mubr.bf16.gmra.mxu0 %v7460
  %v9302 = vpop.f32.mrf.mxu0
  %v9303 = vadd.f32 %v6346, %v9302
  %v9304 = vpop.f32.mrf.mxu0
  %v9305 = vadd.f32 %v6346, %v9304
  %v9306 = vpop.f32.mrf.mxu0
  %v9307 = vadd.f32 %v6351, %v9306
  %v9308 = vpop.f32.mrf.mxu0
  %v9309 = vadd.f32 %v6351, %v9308
  %9310 = vmatprep.mubr.bf16.mxu0 0
  %9311 = vmatmul.mubr.bf16.gmra.mxu0 %v7463
  %v9312 = vpop.f32.mrf.mxu0
  %v9313 = vadd.f32 %v6356, %v9312
  %v9314 = vpop.f32.mrf.mxu0
  %v9315 = vadd.f32 %v6356, %v9314
  %v9316 = vpop.f32.mrf.mxu0
  %v9317 = vadd.f32 %v6361, %v9316
  %v9318 = vpop.f32.mrf.mxu0
  %v9319 = vadd.f32 %v6361, %v9318
  %9320 = vmatprep.mubr.bf16.mxu0 0
  %9321 = vmatmul.mubr.bf16.gmra.mxu0 %v7466
  %v9322 = vpop.f32.mrf.mxu0
  %v9323 = vadd.f32 %v6366, %v9322
  %v9324 = vpop.f32.mrf.mxu0
  %v9325 = vadd.f32 %v6366, %v9324
  %v9326 = vpop.f32.mrf.mxu0
  %v9327 = vadd.f32 %v6371, %v9326
  %v9328 = vpop.f32.mrf.mxu0
  %v9329 = vadd.f32 %v6371, %v9328
  %9330 = vmatprep.mubr.bf16.mxu0 0
  %9331 = vmatmul.mubr.bf16.gmra.mxu0 %v7469
  %v9332 = vpop.f32.mrf.mxu0
  %v9333 = vadd.f32 %v6376, %v9332
  %v9334 = vpop.f32.mrf.mxu0
  %v9335 = vadd.f32 %v6376, %v9334
  %v9336 = vpop.f32.mrf.mxu0
  %v9337 = vadd.f32 %v6381, %v9336
  %v9338 = vpop.f32.mrf.mxu0
  %v9339 = vadd.f32 %v6381, %v9338
  %9340 = vmatprep.mubr.bf16.mxu0 0
  %9341 = vmatmul.mubr.bf16.gmra.mxu0 %v7472
  %v9342 = vpop.f32.mrf.mxu0
  %v9343 = vadd.f32 %v6386, %v9342
  %v9344 = vpop.f32.mrf.mxu0
  %v9345 = vadd.f32 %v6386, %v9344
  %v9346 = vpop.f32.mrf.mxu0
  %v9347 = vadd.f32 %v6391, %v9346
  %v9348 = vpop.f32.mrf.mxu0
  %v9349 = vadd.f32 %v6391, %v9348
  %9350 = vmatprep.mubr.bf16.mxu0 0
  %9351 = vmatmul.mubr.bf16.gmra.mxu0 %v7475
  %v9352 = vpop.f32.mrf.mxu0
  %v9353 = vadd.f32 %v6396, %v9352
  %v9354 = vpop.f32.mrf.mxu0
  %v9355 = vadd.f32 %v6396, %v9354
  %v9356 = vpop.f32.mrf.mxu0
  %v9357 = vadd.f32 %v6401, %v9356
  %v9358 = vpop.f32.mrf.mxu0
  %v9359 = vadd.f32 %v6401, %v9358
  %9360 = vmatprep.mubr.bf16.mxu0 0
  %9361 = vmatmul.mubr.bf16.gmra.mxu0 %v7478
  %v9362 = vpop.f32.mrf.mxu0
  %v9363 = vadd.f32 %v6406, %v9362
  %v9364 = vpop.f32.mrf.mxu0
  %v9365 = vadd.f32 %v6406, %v9364
  %v9366 = vpop.f32.mrf.mxu0
  %v9367 = vadd.f32 %v6411, %v9366
  %v9368 = vpop.f32.mrf.mxu0
  %v9369 = vadd.f32 %v6411, %v9368
  %9370 = vmatprep.mubr.bf16.mxu0 0
  %9371 = vmatmul.mubr.bf16.gmra.mxu0 %v7481
  %v9372 = vpop.f32.mrf.mxu0
  %v9373 = vadd.f32 %v6416, %v9372
  %v9374 = vpop.f32.mrf.mxu0
  %v9375 = vadd.f32 %v6416, %v9374
  %v9376 = vpop.f32.mrf.mxu0
  %v9377 = vadd.f32 %v6421, %v9376
  %v9378 = vpop.f32.mrf.mxu0
  %v9379 = vadd.f32 %v6421, %v9378
  %9380 = vmatprep.mubr.bf16.mxu0 0
  %9381 = vmatmul.mubr.bf16.gmra.mxu0 %v7484
  %v9382 = vpop.f32.mrf.mxu0
  %v9383 = vadd.f32 %v6426, %v9382
  %v9384 = vpop.f32.mrf.mxu0
  %v9385 = vadd.f32 %v6426, %v9384
  %v9386 = vpop.f32.mrf.mxu0
  %v9387 = vadd.f32 %v6431, %v9386
  %v9388 = vpop.f32.mrf.mxu0
  %v9389 = vadd.f32 %v6431, %v9388
  %9390 = vmatprep.mubr.bf16.mxu0 0
  %9391 = vmatmul.mubr.bf16.gmra.mxu0 %v7487
  %v9392 = vpop.f32.mrf.mxu0
  %v9393 = vadd.f32 %v6436, %v9392
  %v9394 = vpop.f32.mrf.mxu0
  %v9395 = vadd.f32 %v6436, %v9394
  %v9396 = vpop.f32.mrf.mxu0
  %v9397 = vadd.f32 %v6441, %v9396
  %v9398 = vpop.f32.mrf.mxu0
  %v9399 = vadd.f32 %v6441, %v9398
  %9400 = vmatprep.mubr.bf16.mxu0 0
  %9401 = vmatmul.mubr.bf16.gmra.mxu0 %v7490
  %v9402 = vpop.f32.mrf.mxu0
  %v9403 = vadd.f32 %v6446, %v9402
  %v9404 = vpop.f32.mrf.mxu0
  %v9405 = vadd.f32 %v6446, %v9404
  %v9406 = vpop.f32.mrf.mxu0
  %v9407 = vadd.f32 %v6451, %v9406
  %v9408 = vpop.f32.mrf.mxu0
  %v9409 = vadd.f32 %v6451, %v9408
  %9410 = vmatprep.mubr.bf16.mxu0 0
  %9411 = vmatmul.mubr.bf16.gmra.mxu0 %v7493
  %v9412 = vpop.f32.mrf.mxu0
  %v9413 = vadd.f32 %v6456, %v9412
  %v9414 = vpop.f32.mrf.mxu0
  %v9415 = vadd.f32 %v6456, %v9414
  %v9416 = vpop.f32.mrf.mxu0
  %v9417 = vadd.f32 %v6461, %v9416
  %v9418 = vpop.f32.mrf.mxu0
  %v9419 = vadd.f32 %v6461, %v9418
  %9420 = vmatprep.mubr.bf16.mxu0 0
  %9421 = vmatmul.mubr.bf16.gmra.mxu0 %v7496
  %v9422 = vpop.f32.mrf.mxu0
  %v9423 = vadd.f32 %v6466, %v9422
  %v9424 = vpop.f32.mrf.mxu0
  %v9425 = vadd.f32 %v6466, %v9424
  %v9426 = vpop.f32.mrf.mxu0
  %v9427 = vadd.f32 %v6471, %v9426
  %v9428 = vpop.f32.mrf.mxu0
  %v9429 = vadd.f32 %v6471, %v9428
  %9430 = vmatprep.mubr.bf16.mxu0 0
  %9431 = vmatmul.mubr.bf16.gmra.mxu0 %v7499
  %v9432 = vpop.f32.mrf.mxu0
  %v9433 = vadd.f32 %v6476, %v9432
  %v9434 = vpop.f32.mrf.mxu0
  %v9435 = vadd.f32 %v6476, %v9434
  %v9436 = vpop.f32.mrf.mxu0
  %v9437 = vadd.f32 %v6481, %v9436
  %v9438 = vpop.f32.mrf.mxu0
  %v9439 = vadd.f32 %v6481, %v9438
  %9440 = vmatprep.mubr.bf16.mxu0 0
  %9441 = vmatmul.mubr.bf16.gmra.mxu0 %v7502
  %v9442 = vpop.f32.mrf.mxu0
  %v9443 = vadd.f32 %v6486, %v9442
  %v9444 = vpop.f32.mrf.mxu0
  %v9445 = vadd.f32 %v6486, %v9444
  %v9446 = vpop.f32.mrf.mxu0
  %v9447 = vadd.f32 %v6491, %v9446
  %v9448 = vpop.f32.mrf.mxu0
  %v9449 = vadd.f32 %v6491, %v9448
  %9450 = vmatprep.mubr.bf16.mxu0 0
  %9451 = vmatmul.mubr.bf16.gmra.mxu0 %v7505
  %v9452 = vpop.f32.mrf.mxu0
  %v9453 = vadd.f32 %v6496, %v9452
  %v9454 = vpop.f32.mrf.mxu0
  %v9455 = vadd.f32 %v6496, %v9454
  %v9456 = vpop.f32.mrf.mxu0
  %v9457 = vadd.f32 %v6501, %v9456
  %v9458 = vpop.f32.mrf.mxu0
  %v9459 = vadd.f32 %v6501, %v9458
  %9460 = vmatprep.mubr.bf16.mxu0 0
  %9461 = vmatmul.mubr.bf16.gmra.mxu0 %v7508
  %v9462 = vpop.f32.mrf.mxu0
  %v9463 = vadd.f32 %v6506, %v9462
  %v9464 = vpop.f32.mrf.mxu0
  %v9465 = vadd.f32 %v6506, %v9464
  %v9466 = vpop.f32.mrf.mxu0
  %v9467 = vadd.f32 %v6511, %v9466
  %v9468 = vpop.f32.mrf.mxu0
  %v9469 = vadd.f32 %v6511, %v9468
  %9470 = vmatprep.mubr.bf16.mxu0 0
  %9471 = vmatmul.mubr.bf16.gmra.mxu0 %v7511
  %v9472 = vpop.f32.mrf.mxu0
  %v9473 = vadd.f32 %v6516, %v9472
  %v9474 = vpop.f32.mrf.mxu0
  %v9475 = vadd.f32 %v6516, %v9474
  %v9476 = vpop.f32.mrf.mxu0
  %v9477 = vadd.f32 %v6521, %v9476
  %v9478 = vpop.f32.mrf.mxu0
  %v9479 = vadd.f32 %v6521, %v9478
  %9480 = vmatprep.mubr.bf16.mxu0 0
  %9481 = vmatmul.mubr.bf16.gmra.mxu0 %v7514
  %v9482 = vpop.f32.mrf.mxu0
  %v9483 = vadd.f32 %v6526, %v9482
  %v9484 = vpop.f32.mrf.mxu0
  %v9485 = vadd.f32 %v6526, %v9484
  %v9486 = vpop.f32.mrf.mxu0
  %v9487 = vadd.f32 %v6531, %v9486
  %v9488 = vpop.f32.mrf.mxu0
  %v9489 = vadd.f32 %v6531, %v9488
  %9490 = vmatprep.mubr.bf16.mxu0 0
  %9491 = vmatmul.mubr.bf16.gmra.mxu0 %v7517
  %v9492 = vpop.f32.mrf.mxu0
  %v9493 = vadd.f32 %v6536, %v9492
  %v9494 = vpop.f32.mrf.mxu0
  %v9495 = vadd.f32 %v6536, %v9494
  %v9496 = vpop.f32.mrf.mxu0
  %v9497 = vadd.f32 %v6541, %v9496
  %v9498 = vpop.f32.mrf.mxu0
  %v9499 = vadd.f32 %v6541, %v9498
  %9500 = vmatprep.mubr.bf16.mxu0 0
  %9501 = vmatmul.mubr.bf16.gmra.mxu0 %v7520
  %v9502 = vpop.f32.mrf.mxu0
  %v9503 = vadd.f32 %v6546, %v9502
  %v9504 = vpop.f32.mrf.mxu0
  %v9505 = vadd.f32 %v6546, %v9504
  %v9506 = vpop.f32.mrf.mxu0
  %v9507 = vadd.f32 %v6551, %v9506
  %v9508 = vpop.f32.mrf.mxu0
  %v9509 = vadd.f32 %v6551, %v9508
  %9510 = vmatprep.mubr.bf16.mxu0 0
  %9511 = vmatmul.mubr.bf16.gmra.mxu0 %v7523
  %v9512 = vpop.f32.mrf.mxu0
  %v9513 = vadd.f32 %v6556, %v9512
  %v9514 = vpop.f32.mrf.mxu0
  %v9515 = vadd.f32 %v6556, %v9514
  %v9516 = vpop.f32.mrf.mxu0
  %v9517 = vadd.f32 %v6561, %v9516
  %v9518 = vpop.f32.mrf.mxu0
  %v9519 = vadd.f32 %v6561, %v9518
  %9520 = vmatprep.mubr.bf16.mxu0 0
  %9521 = vmatmul.mubr.bf16.gmra.mxu0 %v7526
  %v9522 = vpop.f32.mrf.mxu0
  %v9523 = vadd.f32 %v6566, %v9522
  %v9524 = vpop.f32.mrf.mxu0
  %v9525 = vadd.f32 %v6566, %v9524
  %v9526 = vpop.f32.mrf.mxu0
  %v9527 = vadd.f32 %v6571, %v9526
  %v9528 = vpop.f32.mrf.mxu0
  %v9529 = vadd.f32 %v6571, %v9528
  %9530 = vmatprep.mubr.bf16.mxu0 0
  %9531 = vmatmul.mubr.bf16.gmra.mxu0 %v7529
  %v9532 = vpop.f32.mrf.mxu0
  %v9533 = vadd.f32 %v6576, %v9532
  %v9534 = vpop.f32.mrf.mxu0
  %v9535 = vadd.f32 %v6576, %v9534
  %v9536 = vpop.f32.mrf.mxu0
  %v9537 = vadd.f32 %v6581, %v9536
  %v9538 = vpop.f32.mrf.mxu0
  %v9539 = vadd.f32 %v6581, %v9538
  %9540 = vmatprep.mubr.bf16.mxu0 0
  %9541 = vmatmul.mubr.bf16.gmra.mxu0 %v7532
  %v9542 = vpop.f32.mrf.mxu0
  %v9543 = vadd.f32 %v6586, %v9542
  %v9544 = vpop.f32.mrf.mxu0
  %v9545 = vadd.f32 %v6586, %v9544
  %v9546 = vpop.f32.mrf.mxu0
  %v9547 = vadd.f32 %v6591, %v9546
  %v9548 = vpop.f32.mrf.mxu0
  %v9549 = vadd.f32 %v6591, %v9548
  %9550 = vmatprep.mubr.bf16.mxu0 0
  %9551 = vmatmul.mubr.bf16.gmra.mxu0 %v7535
  %v9552 = vpop.f32.mrf.mxu0
  %v9553 = vadd.f32 %v6596, %v9552
  %v9554 = vpop.f32.mrf.mxu0
  %v9555 = vadd.f32 %v6596, %v9554
  %v9556 = vpop.f32.mrf.mxu0
  %v9557 = vadd.f32 %v6601, %v9556
  %v9558 = vpop.f32.mrf.mxu0
  %v9559 = vadd.f32 %v6601, %v9558
  %9560 = vmatprep.mubr.bf16.mxu0 0
  %9561 = vmatmul.mubr.bf16.gmra.mxu0 %v7538
  %v9562 = vpop.f32.mrf.mxu0
  %v9563 = vadd.f32 %v6606, %v9562
  %v9564 = vpop.f32.mrf.mxu0
  %v9565 = vadd.f32 %v6606, %v9564
  %v9566 = vpop.f32.mrf.mxu0
  %v9567 = vadd.f32 %v6611, %v9566
  %v9568 = vpop.f32.mrf.mxu0
  %v9569 = vadd.f32 %v6611, %v9568
  %9570 = vmatprep.mubr.bf16.mxu0 0
  %9571 = vmatmul.mubr.bf16.gmra.mxu0 %v7541
  %v9572 = vpop.f32.mrf.mxu0
  %v9573 = vadd.f32 %v6616, %v9572
  %v9574 = vpop.f32.mrf.mxu0
  %v9575 = vadd.f32 %v6616, %v9574
  %v9576 = vpop.f32.mrf.mxu0
  %v9577 = vadd.f32 %v6621, %v9576
  %v9578 = vpop.f32.mrf.mxu0
  %v9579 = vadd.f32 %v6621, %v9578
  %9580 = vmatprep.mubr.bf16.mxu0 0
  %9581 = vmatmul.mubr.bf16.gmra.mxu0 %v7544
  %v9582 = vpop.f32.mrf.mxu0
  %v9583 = vadd.f32 %v6626, %v9582
  %v9584 = vpop.f32.mrf.mxu0
  %v9585 = vadd.f32 %v6626, %v9584
  %v9586 = vpop.f32.mrf.mxu0
  %v9587 = vadd.f32 %v6631, %v9586
  %v9588 = vpop.f32.mrf.mxu0
  %v9589 = vadd.f32 %v6631, %v9588
  %9590 = vmatprep.mubr.bf16.mxu0 0
  %9591 = vmatmul.mubr.bf16.gmra.mxu0 %v7547
  %v9592 = vpop.f32.mrf.mxu0
  %v9593 = vadd.f32 %v6636, %v9592
  %v9594 = vpop.f32.mrf.mxu0
  %v9595 = vadd.f32 %v6636, %v9594
  %v9596 = vpop.f32.mrf.mxu0
  %v9597 = vadd.f32 %v6641, %v9596
  %v9598 = vpop.f32.mrf.mxu0
  %v9599 = vadd.f32 %v6641, %v9598
  %9600 = vmatprep.mubr.bf16.mxu0 0
  %9601 = vmatmul.mubr.bf16.gmra.mxu0 %v7550
  %v9602 = vpop.f32.mrf.mxu0
  %v9603 = vadd.f32 %v6646, %v9602
  %v9604 = vpop.f32.mrf.mxu0
  %v9605 = vadd.f32 %v6646, %v9604
  %v9606 = vpop.f32.mrf.mxu0
  %v9607 = vadd.f32 %v6651, %v9606
  %v9608 = vpop.f32.mrf.mxu0
  %v9609 = vadd.f32 %v6651, %v9608
  %9610 = vmatprep.mubr.bf16.mxu0 0
  %9611 = vmatmul.mubr.bf16.gmra.mxu0 %v7553
  %v9612 = vpop.f32.mrf.mxu0
  %v9613 = vadd.f32 %v6656, %v9612
  %v9614 = vpop.f32.mrf.mxu0
  %v9615 = vadd.f32 %v6656, %v9614
  %v9616 = vpop.f32.mrf.mxu0
  %v9617 = vadd.f32 %v6661, %v9616
  %v9618 = vpop.f32.mrf.mxu0
  %v9619 = vadd.f32 %v6661, %v9618
  %9620 = vmatprep.mubr.bf16.mxu0 0
  %9621 = vmatmul.mubr.bf16.gmra.mxu0 %v7556
  %v9622 = vpop.f32.mrf.mxu0
  %v9623 = vadd.f32 %v6666, %v9622
  %v9624 = vpop.f32.mrf.mxu0
  %v9625 = vadd.f32 %v6666, %v9624
  %v9626 = vpop.f32.mrf.mxu0
  %v9627 = vadd.f32 %v6671, %v9626
  %v9628 = vpop.f32.mrf.mxu0
  %v9629 = vadd.f32 %v6671, %v9628
  %9630 = vmatprep.mubr.bf16.mxu0 0
  %9631 = vmatmul.mubr.bf16.gmra.mxu0 %v7559
  %v9632 = vpop.f32.mrf.mxu0
  %v9633 = vadd.f32 %v6676, %v9632
  %v9634 = vpop.f32.mrf.mxu0
  %v9635 = vadd.f32 %v6676, %v9634
  %v9636 = vpop.f32.mrf.mxu0
  %v9637 = vadd.f32 %v6681, %v9636
  %v9638 = vpop.f32.mrf.mxu0
  %v9639 = vadd.f32 %v6681, %v9638
  %9640 = vmatprep.mubr.bf16.mxu0 0
  %9641 = vmatmul.mubr.bf16.gmra.mxu0 %v7562
  %v9642 = vpop.f32.mrf.mxu0
  %v9643 = vadd.f32 %v6686, %v9642
  %v9644 = vpop.f32.mrf.mxu0
  %v9645 = vadd.f32 %v6686, %v9644
  %v9646 = vpop.f32.mrf.mxu0
  %v9647 = vadd.f32 %v6691, %v9646
  %v9648 = vpop.f32.mrf.mxu0
  %v9649 = vadd.f32 %v6691, %v9648
  %9650 = vmatprep.mubr.bf16.mxu0 0
  %9651 = vmatmul.mubr.bf16.gmra.mxu0 %v7565
  %v9652 = vpop.f32.mrf.mxu0
  %v9653 = vadd.f32 %v6696, %v9652
  %v9654 = vpop.f32.mrf.mxu0
  %v9655 = vadd.f32 %v6696, %v9654
  %v9656 = vpop.f32.mrf.mxu0
  %v9657 = vadd.f32 %v6701, %v9656
  %v9658 = vpop.f32.mrf.mxu0
  %v9659 = vadd.f32 %v6701, %v9658
  %9660 = vmatprep.mubr.bf16.mxu0 0
  %9661 = vmatmul.mubr.bf16.gmra.mxu0 %v7568
  %v9662 = vpop.f32.mrf.mxu0
  %v9663 = vadd.f32 %v6706, %v9662
  %v9664 = vpop.f32.mrf.mxu0
  %v9665 = vadd.f32 %v6706, %v9664
  %v9666 = vpop.f32.mrf.mxu0
  %v9667 = vadd.f32 %v6711, %v9666
  %v9668 = vpop.f32.mrf.mxu0
  %v9669 = vadd.f32 %v6711, %v9668
  %9670 = vmatprep.mubr.bf16.mxu0 0
  %9671 = vmatmul.mubr.bf16.gmra.mxu0 %v7571
  %v9672 = vpop.f32.mrf.mxu0
  %v9673 = vadd.f32 %v6716, %v9672
  %v9674 = vpop.f32.mrf.mxu0
  %v9675 = vadd.f32 %v6716, %v9674
  %v9676 = vpop.f32.mrf.mxu0
  %v9677 = vadd.f32 %v6721, %v9676
  %v9678 = vpop.f32.mrf.mxu0
  %v9679 = vadd.f32 %v6721, %v9678
  %9680 = vmatprep.mubr.bf16.mxu0 0
  %9681 = vmatmul.mubr.bf16.gmra.mxu0 %v7574
  %v9682 = vpop.f32.mrf.mxu0
  %v9683 = vadd.f32 %v6726, %v9682
  %v9684 = vpop.f32.mrf.mxu0
  %v9685 = vadd.f32 %v6726, %v9684
  %v9686 = vpop.f32.mrf.mxu0
  %v9687 = vadd.f32 %v6731, %v9686
  %v9688 = vpop.f32.mrf.mxu0
  %v9689 = vadd.f32 %v6731, %v9688
  %9690 = vmatprep.mubr.bf16.mxu0 0
  %9691 = vmatmul.mubr.bf16.gmra.mxu0 %v7577
  %v9692 = vpop.f32.mrf.mxu0
  %v9693 = vadd.f32 %v6736, %v9692
  %v9694 = vpop.f32.mrf.mxu0
  %v9695 = vadd.f32 %v6736, %v9694
  %v9696 = vpop.f32.mrf.mxu0
  %v9697 = vadd.f32 %v6741, %v9696
  %v9698 = vpop.f32.mrf.mxu0
  %v9699 = vadd.f32 %v6741, %v9698
  %9700 = vmatprep.mubr.bf16.mxu0 0
  %9701 = vmatmul.mubr.bf16.gmra.mxu0 %v7580
  %v9702 = vpop.f32.mrf.mxu0
  %v9703 = vadd.f32 %v6746, %v9702
  %v9704 = vpop.f32.mrf.mxu0
  %v9705 = vadd.f32 %v6746, %v9704
  %v9706 = vpop.f32.mrf.mxu0
  %v9707 = vadd.f32 %v6751, %v9706
  %v9708 = vpop.f32.mrf.mxu0
  %v9709 = vadd.f32 %v6751, %v9708
  %9710 = vmatprep.mubr.bf16.mxu0 0
  %9711 = vmatmul.mubr.bf16.gmra.mxu0 %v7583
  %v9712 = vpop.f32.mrf.mxu0
  %v9713 = vadd.f32 %v6756, %v9712
  %v9714 = vpop.f32.mrf.mxu0
  %v9715 = vadd.f32 %v6756, %v9714
  %v9716 = vpop.f32.mrf.mxu0
  %v9717 = vadd.f32 %v6761, %v9716
  %v9718 = vpop.f32.mrf.mxu0
  %v9719 = vadd.f32 %v6761, %v9718
  %9720 = vmatprep.mubr.bf16.mxu0 0
  %9721 = vmatmul.mubr.bf16.gmra.mxu0 %v7586
  %v9722 = vpop.f32.mrf.mxu0
  %v9723 = vadd.f32 %v6766, %v9722
  %v9724 = vpop.f32.mrf.mxu0
  %v9725 = vadd.f32 %v6766, %v9724
  %v9726 = vpop.f32.mrf.mxu0
  %v9727 = vadd.f32 %v6771, %v9726
  %v9728 = vpop.f32.mrf.mxu0
  %v9729 = vadd.f32 %v6771, %v9728
  %9730 = vmatprep.mubr.bf16.mxu0 0
  %9731 = vmatmul.mubr.bf16.gmra.mxu0 %v7589
  %v9732 = vpop.f32.mrf.mxu0
  %v9733 = vadd.f32 %v6776, %v9732
  %v9734 = vpop.f32.mrf.mxu0
  %v9735 = vadd.f32 %v6776, %v9734
  %v9736 = vpop.f32.mrf.mxu0
  %v9737 = vadd.f32 %v6781, %v9736
  %v9738 = vpop.f32.mrf.mxu0
  %v9739 = vadd.f32 %v6781, %v9738
  %9740 = vmatprep.mubr.bf16.mxu0 0
  %9741 = vmatmul.mubr.bf16.gmra.mxu0 %v7592
  %v9742 = vpop.f32.mrf.mxu0
  %v9743 = vadd.f32 %v6786, %v9742
  %v9744 = vpop.f32.mrf.mxu0
  %v9745 = vadd.f32 %v6786, %v9744
  %v9746 = vpop.f32.mrf.mxu0
  %v9747 = vadd.f32 %v6791, %v9746
  %v9748 = vpop.f32.mrf.mxu0
  %v9749 = vadd.f32 %v6791, %v9748
  %9750 = vmatprep.mubr.bf16.mxu0 0
  %9751 = vmatmul.mubr.bf16.gmra.mxu0 %v7595
  %v9752 = vpop.f32.mrf.mxu0
  %v9753 = vadd.f32 %v6796, %v9752
  %v9754 = vpop.f32.mrf.mxu0
  %v9755 = vadd.f32 %v6796, %v9754
  %v9756 = vpop.f32.mrf.mxu0
  %v9757 = vadd.f32 %v6801, %v9756
  %v9758 = vpop.f32.mrf.mxu0
  %v9759 = vadd.f32 %v6801, %v9758
  %9760 = vmatprep.mubr.bf16.mxu0 0
  %9761 = vmatmul.mubr.bf16.gmra.mxu0 %v7598
  %v9762 = vpop.f32.mrf.mxu0
  %v9763 = vadd.f32 %v6806, %v9762
  %v9764 = vpop.f32.mrf.mxu0
  %v9765 = vadd.f32 %v6806, %v9764
  %v9766 = vpop.f32.mrf.mxu0
  %v9767 = vadd.f32 %v6811, %v9766
  %v9768 = vpop.f32.mrf.mxu0
  %v9769 = vadd.f32 %v6811, %v9768
  %9770 = vmatprep.mubr.bf16.mxu0 0
  %9771 = vmatmul.mubr.bf16.gmra.mxu0 %v7601
  %v9772 = vpop.f32.mrf.mxu0
  %v9773 = vadd.f32 %v6816, %v9772
  %v9774 = vpop.f32.mrf.mxu0
  %v9775 = vadd.f32 %v6816, %v9774
  %v9776 = vpop.f32.mrf.mxu0
  %v9777 = vadd.f32 %v6821, %v9776
  %v9778 = vpop.f32.mrf.mxu0
  %v9779 = vadd.f32 %v6821, %v9778
  %9780 = vmatprep.mubr.bf16.mxu0 0
  %9781 = vmatmul.mubr.bf16.gmra.mxu0 %v7604
  %v9782 = vpop.f32.mrf.mxu0
  %v9783 = vadd.f32 %v6826, %v9782
  %v9784 = vpop.f32.mrf.mxu0
  %v9785 = vadd.f32 %v6826, %v9784
  %v9786 = vpop.f32.mrf.mxu0
  %v9787 = vadd.f32 %v6831, %v9786
  %v9788 = vpop.f32.mrf.mxu0
  %v9789 = vadd.f32 %v6831, %v9788
  %9790 = vmatprep.mubr.bf16.mxu0 0
  %9791 = vmatmul.mubr.bf16.gmra.mxu0 %v7607
  %v9792 = vpop.f32.mrf.mxu0
  %v9793 = vadd.f32 %v6836, %v9792
  %v9794 = vpop.f32.mrf.mxu0
  %v9795 = vadd.f32 %v6836, %v9794
  %v9796 = vpop.f32.mrf.mxu0
  %v9797 = vadd.f32 %v6841, %v9796
  %v9798 = vpop.f32.mrf.mxu0
  %v9799 = vadd.f32 %v6841, %v9798
  %9800 = vmatprep.mubr.bf16.mxu0 0
  %9801 = vmatmul.mubr.bf16.gmra.mxu0 %v7610
  %v9802 = vpop.f32.mrf.mxu0
  %v9803 = vadd.f32 %v6846, %v9802
  %v9804 = vpop.f32.mrf.mxu0
  %v9805 = vadd.f32 %v6846, %v9804
  %v9806 = vpop.f32.mrf.mxu0
  %v9807 = vadd.f32 %v6851, %v9806
  %v9808 = vpop.f32.mrf.mxu0
  %v9809 = vadd.f32 %v6851, %v9808
  %9810 = vmatprep.mubr.bf16.mxu0 0
  %9811 = vmatmul.mubr.bf16.gmra.mxu0 %v7613
  %v9812 = vpop.f32.mrf.mxu0
  %v9813 = vadd.f32 %v6856, %v9812
  %v9814 = vpop.f32.mrf.mxu0
  %v9815 = vadd.f32 %v6856, %v9814
  %v9816 = vpop.f32.mrf.mxu0
  %v9817 = vadd.f32 %v6861, %v9816
  %v9818 = vpop.f32.mrf.mxu0
  %v9819 = vadd.f32 %v6861, %v9818
  %9820 = vmatprep.mubr.bf16.mxu0 0
  %9821 = vmatmul.mubr.bf16.gmra.mxu0 %v7616
  %v9822 = vpop.f32.mrf.mxu0
  %v9823 = vadd.f32 %v6866, %v9822
  %v9824 = vpop.f32.mrf.mxu0
  %v9825 = vadd.f32 %v6866, %v9824
  %v9826 = vpop.f32.mrf.mxu0
  %v9827 = vadd.f32 %v6871, %v9826
  %v9828 = vpop.f32.mrf.mxu0
  %v9829 = vadd.f32 %v6871, %v9828
  %9830 = vmatprep.mubr.bf16.mxu0 0
  %9831 = vmatmul.mubr.bf16.gmra.mxu0 %v7619
  %v9832 = vpop.f32.mrf.mxu0
  %v9833 = vadd.f32 %v6876, %v9832
  %v9834 = vpop.f32.mrf.mxu0
  %v9835 = vadd.f32 %v6876, %v9834
  %v9836 = vpop.f32.mrf.mxu0
  %v9837 = vadd.f32 %v6881, %v9836
  %v9838 = vpop.f32.mrf.mxu0
  %v9839 = vadd.f32 %v6881, %v9838
  %9840 = vmatprep.mubr.bf16.mxu0 0
  %9841 = vmatmul.mubr.bf16.gmra.mxu0 %v7622
  %v9842 = vpop.f32.mrf.mxu0
  %v9843 = vadd.f32 %v6886, %v9842
  %v9844 = vpop.f32.mrf.mxu0
  %v9845 = vadd.f32 %v6886, %v9844
  %v9846 = vpop.f32.mrf.mxu0
  %v9847 = vadd.f32 %v6891, %v9846
  %v9848 = vpop.f32.mrf.mxu0
  %v9849 = vadd.f32 %v6891, %v9848
  %9850 = vmatprep.mubr.bf16.mxu0 0
  %9851 = vmatmul.mubr.bf16.gmra.mxu0 %v7625
  %v9852 = vpop.f32.mrf.mxu0
  %v9853 = vadd.f32 %v6896, %v9852
  %v9854 = vpop.f32.mrf.mxu0
  %v9855 = vadd.f32 %v6896, %v9854
  %v9856 = vpop.f32.mrf.mxu0
  %v9857 = vadd.f32 %v6901, %v9856
  %v9858 = vpop.f32.mrf.mxu0
  %v9859 = vadd.f32 %v6901, %v9858
  %9860 = vmatprep.mubr.bf16.mxu0 0
  %9861 = vmatmul.mubr.bf16.gmra.mxu0 %v7628
  %v9862 = vpop.f32.mrf.mxu0
  %v9863 = vadd.f32 %v6906, %v9862
  %v9864 = vpop.f32.mrf.mxu0
  %v9865 = vadd.f32 %v6906, %v9864
  %v9866 = vpop.f32.mrf.mxu0
  %v9867 = vadd.f32 %v6911, %v9866
  %v9868 = vpop.f32.mrf.mxu0
  %v9869 = vadd.f32 %v6911, %v9868
  %9870 = vmatprep.mubr.bf16.mxu0 0
  %9871 = vmatmul.mubr.bf16.gmra.mxu0 %v7631
  %v9872 = vpop.f32.mrf.mxu0
  %v9873 = vadd.f32 %v6916, %v9872
  %v9874 = vpop.f32.mrf.mxu0
  %v9875 = vadd.f32 %v6916, %v9874
  %v9876 = vpop.f32.mrf.mxu0
  %v9877 = vadd.f32 %v6921, %v9876
  %v9878 = vpop.f32.mrf.mxu0
  %v9879 = vadd.f32 %v6921, %v9878
  %9880 = vmatprep.mubr.bf16.mxu0 0
  %9881 = vmatmul.mubr.bf16.gmra.mxu0 %v7634
  %v9882 = vpop.f32.mrf.mxu0
  %v9883 = vadd.f32 %v6926, %v9882
  %v9884 = vpop.f32.mrf.mxu0
  %v9885 = vadd.f32 %v6926, %v9884
  %v9886 = vpop.f32.mrf.mxu0
  %v9887 = vadd.f32 %v6931, %v9886
  %v9888 = vpop.f32.mrf.mxu0
  %v9889 = vadd.f32 %v6931, %v9888
  %9890 = vmatprep.mubr.bf16.mxu0 0
  %9891 = vmatmul.mubr.bf16.gmra.mxu0 %v7637
  %v9892 = vpop.f32.mrf.mxu0
  %v9893 = vadd.f32 %v6936, %v9892
  %v9894 = vpop.f32.mrf.mxu0
  %v9895 = vadd.f32 %v6936, %v9894
  %v9896 = vpop.f32.mrf.mxu0
  %v9897 = vadd.f32 %v6941, %v9896
  %v9898 = vpop.f32.mrf.mxu0
  %v9899 = vadd.f32 %v6941, %v9898
  %9900 = vmatprep.mubr.bf16.mxu0 0
  %9901 = vmatmul.mubr.bf16.gmra.mxu0 %v7640
  %v9902 = vpop.f32.mrf.mxu0
  %v9903 = vadd.f32 %v6946, %v9902
  %v9904 = vpop.f32.mrf.mxu0
  %v9905 = vadd.f32 %v6946, %v9904
  %v9906 = vpop.f32.mrf.mxu0
  %v9907 = vadd.f32 %v6951, %v9906
  %v9908 = vpop.f32.mrf.mxu0
  %v9909 = vadd.f32 %v6951, %v9908
  %9910 = vmatprep.mubr.bf16.mxu0 0
  %9911 = vmatmul.mubr.bf16.gmra.mxu0 %v7643
  %v9912 = vpop.f32.mrf.mxu0
  %v9913 = vadd.f32 %v6956, %v9912
  %v9914 = vpop.f32.mrf.mxu0
  %v9915 = vadd.f32 %v6956, %v9914
  %v9916 = vpop.f32.mrf.mxu0
  %v9917 = vadd.f32 %v6961, %v9916
  %v9918 = vpop.f32.mrf.mxu0
  %v9919 = vadd.f32 %v6961, %v9918
  %9920 = vmatprep.mubr.bf16.mxu0 0
  %9921 = vmatmul.mubr.bf16.gmra.mxu0 %v7646
  %v9922 = vpop.f32.mrf.mxu0
  %v9923 = vadd.f32 %v6966, %v9922
  %v9924 = vpop.f32.mrf.mxu0
  %v9925 = vadd.f32 %v6966, %v9924
  %v9926 = vpop.f32.mrf.mxu0
  %v9927 = vadd.f32 %v6971, %v9926
  %v9928 = vpop.f32.mrf.mxu0
  %v9929 = vadd.f32 %v6971, %v9928
  %9930 = vmatprep.mubr.bf16.mxu0 0
  %9931 = vmatmul.mubr.bf16.gmra.mxu0 %v7649
  %v9932 = vpop.f32.mrf.mxu0
  %v9933 = vadd.f32 %v6976, %v9932
  %v9934 = vpop.f32.mrf.mxu0
  %v9935 = vadd.f32 %v6976, %v9934
  %v9936 = vpop.f32.mrf.mxu0
  %v9937 = vadd.f32 %v6981, %v9936
  %v9938 = vpop.f32.mrf.mxu0
  %v9939 = vadd.f32 %v6981, %v9938
  %9940 = vmatprep.mubr.bf16.mxu0 0
  %9941 = vmatmul.mubr.bf16.gmra.mxu0 %v7652
  %v9942 = vpop.f32.mrf.mxu0
  %v9943 = vadd.f32 %v6986, %v9942
  %v9944 = vpop.f32.mrf.mxu0
  %v9945 = vadd.f32 %v6986, %v9944
  %v9946 = vpop.f32.mrf.mxu0
  %v9947 = vadd.f32 %v6991, %v9946
  %v9948 = vpop.f32.mrf.mxu0
  %v9949 = vadd.f32 %v6991, %v9948
  %9950 = vmatprep.mubr.bf16.mxu0 0
  %9951 = vmatmul.mubr.bf16.gmra.mxu0 %v7655
  %v9952 = vpop.f32.mrf.mxu0
  %v9953 = vadd.f32 %v6996, %v9952
  %v9954 = vpop.f32.mrf.mxu0
  %v9955 = vadd.f32 %v6996, %v9954
  %v9956 = vpop.f32.mrf.mxu0
  %v9957 = vadd.f32 %v7001, %v9956
  %v9958 = vpop.f32.mrf.mxu0
  %v9959 = vadd.f32 %v7001, %v9958
  %9960 = vmatprep.mubr.bf16.mxu0 0
  %9961 = vmatmul.mubr.bf16.gmra.mxu0 %v7658
  %v9962 = vpop.f32.mrf.mxu0
  %v9963 = vadd.f32 %v7006, %v9962
  %v9964 = vpop.f32.mrf.mxu0
  %v9965 = vadd.f32 %v7006, %v9964
  %v9966 = vpop.f32.mrf.mxu0
  %v9967 = vadd.f32 %v7011, %v9966
  %v9968 = vpop.f32.mrf.mxu0
  %v9969 = vadd.f32 %v7011, %v9968
  %9970 = vmatprep.mubr.bf16.mxu0 0
  %9971 = vmatmul.mubr.bf16.gmra.mxu0 %v7661
  %v9972 = vpop.f32.mrf.mxu0
  %v9973 = vadd.f32 %v7016, %v9972
  %v9974 = vpop.f32.mrf.mxu0
  %v9975 = vadd.f32 %v7016, %v9974
  %v9976 = vpop.f32.mrf.mxu0
  %v9977 = vadd.f32 %v7021, %v9976
  %v9978 = vpop.f32.mrf.mxu0
  %v9979 = vadd.f32 %v7021, %v9978
  %9980 = vdwg.mxu0
  %v9981 = vmax.f32 %v9183, 0.0
  %v9982 = vmax.f32 %v9185, 0.0
  %v9983 = vmax.f32 %v9187, 0.0
  %v9984 = vmax.f32 %v9189, 0.0
  %v9985 = vmax.f32 %v9193, 0.0
  %v9986 = vmax.f32 %v9195, 0.0
  %v9987 = vmax.f32 %v9197, 0.0
  %v9988 = vmax.f32 %v9199, 0.0
  %v9989 = vmax.f32 %v9203, 0.0
  %v9990 = vmax.f32 %v9205, 0.0
  %v9991 = vmax.f32 %v9207, 0.0
  %v9992 = vmax.f32 %v9209, 0.0
  %v9993 = vmax.f32 %v9213, 0.0
  %v9994 = vmax.f32 %v9215, 0.0
  %v9995 = vmax.f32 %v9217, 0.0
  %v9996 = vmax.f32 %v9219, 0.0
  %v9997 = vmax.f32 %v9223, 0.0
  %v9998 = vmax.f32 %v9225, 0.0
  %v9999 = vmax.f32 %v9227, 0.0
  %v10000 = vmax.f32 %v9229, 0.0
  %v10001 = vmax.f32 %v9233, 0.0
  %v10002 = vmax.f32 %v9235, 0.0
  %v10003 = vmax.f32 %v9237, 0.0
  %v10004 = vmax.f32 %v9239, 0.0
  %v10005 = vmax.f32 %v9243, 0.0
  %v10006 = vmax.f32 %v9245, 0.0
  %v10007 = vmax.f32 %v9247, 0.0
  %v10008 = vmax.f32 %v9249, 0.0
  %v10009 = vmax.f32 %v9253, 0.0
  %v10010 = vmax.f32 %v9255, 0.0
  %v10011 = vmax.f32 %v9257, 0.0
  %v10012 = vmax.f32 %v9259, 0.0
  %v10013 = vmax.f32 %v9263, 0.0
  %v10014 = vmax.f32 %v9265, 0.0
  %v10015 = vmax.f32 %v9267, 0.0
  %v10016 = vmax.f32 %v9269, 0.0
  %v10017 = vmax.f32 %v9273, 0.0
  %v10018 = vmax.f32 %v9275, 0.0
  %v10019 = vmax.f32 %v9277, 0.0
  %v10020 = vmax.f32 %v9279, 0.0
  %v10021 = vmax.f32 %v9283, 0.0
  %v10022 = vmax.f32 %v9285, 0.0
  %v10023 = vmax.f32 %v9287, 0.0
  %v10024 = vmax.f32 %v9289, 0.0
  %v10025 = vmax.f32 %v9293, 0.0
  %v10026 = vmax.f32 %v9295, 0.0
  %v10027 = vmax.f32 %v9297, 0.0
  %v10028 = vmax.f32 %v9299, 0.0
  %v10029 = vmax.f32 %v9303, 0.0
  %v10030 = vmax.f32 %v9305, 0.0
  %v10031 = vmax.f32 %v9307, 0.0
  %v10032 = vmax.f32 %v9309, 0.0
  %v10033 = vmax.f32 %v9313, 0.0
  %v10034 = vmax.f32 %v9315, 0.0
  %v10035 = vmax.f32 %v9317, 0.0
  %v10036 = vmax.f32 %v9319, 0.0
  %v10037 = vmax.f32 %v9323, 0.0
  %v10038 = vmax.f32 %v9325, 0.0
  %v10039 = vmax.f32 %v9327, 0.0
  %v10040 = vmax.f32 %v9329, 0.0
  %v10041 = vmax.f32 %v9333, 0.0
  %v10042 = vmax.f32 %v9335, 0.0
  %v10043 = vmax.f32 %v9337, 0.0
  %v10044 = vmax.f32 %v9339, 0.0
  %v10045 = vmax.f32 %v9343, 0.0
  %v10046 = vmax.f32 %v9345, 0.0
  %v10047 = vmax.f32 %v9347, 0.0
  %v10048 = vmax.f32 %v9349, 0.0
  %v10049 = vmax.f32 %v9353, 0.0
  %v10050 = vmax.f32 %v9355, 0.0
  %v10051 = vmax.f32 %v9357, 0.0
  %v10052 = vmax.f32 %v9359, 0.0
  %v10053 = vmax.f32 %v9363, 0.0
  %v10054 = vmax.f32 %v9365, 0.0
  %v10055 = vmax.f32 %v9367, 0.0
  %v10056 = vmax.f32 %v9369, 0.0
  %v10057 = vmax.f32 %v9373, 0.0
  %v10058 = vmax.f32 %v9375, 0.0
  %v10059 = vmax.f32 %v9377, 0.0
  %v10060 = vmax.f32 %v9379, 0.0
  %v10061 = vmax.f32 %v9383, 0.0
  %v10062 = vmax.f32 %v9385, 0.0
  %v10063 = vmax.f32 %v9387, 0.0
  %v10064 = vmax.f32 %v9389, 0.0
  %v10065 = vmax.f32 %v9393, 0.0
  %v10066 = vmax.f32 %v9395, 0.0
  %v10067 = vmax.f32 %v9397, 0.0
  %v10068 = vmax.f32 %v9399, 0.0
  %v10069 = vmax.f32 %v9403, 0.0
  %v10070 = vmax.f32 %v9405, 0.0
  %v10071 = vmax.f32 %v9407, 0.0
  %v10072 = vmax.f32 %v9409, 0.0
  %v10073 = vmax.f32 %v9413, 0.0
  %v10074 = vmax.f32 %v9415, 0.0
  %v10075 = vmax.f32 %v9417, 0.0
  %v10076 = vmax.f32 %v9419, 0.0
  %v10077 = vmax.f32 %v9423, 0.0
  %v10078 = vmax.f32 %v9425, 0.0
  %v10079 = vmax.f32 %v9427, 0.0
  %v10080 = vmax.f32 %v9429, 0.0
  %v10081 = vmax.f32 %v9433, 0.0
  %v10082 = vmax.f32 %v9435, 0.0
  %v10083 = vmax.f32 %v9437, 0.0
  %v10084 = vmax.f32 %v9439, 0.0
  %v10085 = vmax.f32 %v9443, 0.0
  %v10086 = vmax.f32 %v9445, 0.0
  %v10087 = vmax.f32 %v9447, 0.0
  %v10088 = vmax.f32 %v9449, 0.0
  %v10089 = vmax.f32 %v9453, 0.0
  %v10090 = vmax.f32 %v9455, 0.0
  %v10091 = vmax.f32 %v9457, 0.0
  %v10092 = vmax.f32 %v9459, 0.0
  %v10093 = vmax.f32 %v9463, 0.0
  %v10094 = vmax.f32 %v9465, 0.0
  %v10095 = vmax.f32 %v9467, 0.0
  %v10096 = vmax.f32 %v9469, 0.0
  %v10097 = vmax.f32 %v9473, 0.0
  %v10098 = vmax.f32 %v9475, 0.0
  %v10099 = vmax.f32 %v9477, 0.0
  %v10100 = vmax.f32 %v9479, 0.0
  %v10101 = vmax.f32 %v9483, 0.0
  %v10102 = vmax.f32 %v9485, 0.0
  %v10103 = vmax.f32 %v9487, 0.0
  %v10104 = vmax.f32 %v9489, 0.0
  %v10105 = vmax.f32 %v9493, 0.0
  %v10106 = vmax.f32 %v9495, 0.0
  %v10107 = vmax.f32 %v9497, 0.0
  %v10108 = vmax.f32 %v9499, 0.0
  %v10109 = vmax.f32 %v9503, 0.0
  %v10110 = vmax.f32 %v9505, 0.0
  %v10111 = vmax.f32 %v9507, 0.0
  %v10112 = vmax.f32 %v9509, 0.0
  %v10113 = vmax.f32 %v9513, 0.0
  %v10114 = vmax.f32 %v9515, 0.0
  %v10115 = vmax.f32 %v9517, 0.0
  %v10116 = vmax.f32 %v9519, 0.0
  %v10117 = vmax.f32 %v9523, 0.0
  %v10118 = vmax.f32 %v9525, 0.0
  %v10119 = vmax.f32 %v9527, 0.0
  %v10120 = vmax.f32 %v9529, 0.0
  %v10121 = vmax.f32 %v9533, 0.0
  %v10122 = vmax.f32 %v9535, 0.0
  %v10123 = vmax.f32 %v9537, 0.0
  %v10124 = vmax.f32 %v9539, 0.0
  %v10125 = vmax.f32 %v9543, 0.0
  %v10126 = vmax.f32 %v9545, 0.0
  %v10127 = vmax.f32 %v9547, 0.0
  %v10128 = vmax.f32 %v9549, 0.0
  %v10129 = vmax.f32 %v9553, 0.0
  %v10130 = vmax.f32 %v9555, 0.0
  %v10131 = vmax.f32 %v9557, 0.0
  %v10132 = vmax.f32 %v9559, 0.0
  %v10133 = vmax.f32 %v9563, 0.0
  %v10134 = vmax.f32 %v9565, 0.0
  %v10135 = vmax.f32 %v9567, 0.0
  %v10136 = vmax.f32 %v9569, 0.0
  %v10137 = vmax.f32 %v9573, 0.0
  %v10138 = vmax.f32 %v9575, 0.0
  %v10139 = vmax.f32 %v9577, 0.0
  %v10140 = vmax.f32 %v9579, 0.0
  %v10141 = vmax.f32 %v9583, 0.0
  %v10142 = vmax.f32 %v9585, 0.0
  %v10143 = vmax.f32 %v9587, 0.0
  %v10144 = vmax.f32 %v9589, 0.0
  %v10145 = vmax.f32 %v9593, 0.0
  %v10146 = vmax.f32 %v9595, 0.0
  %v10147 = vmax.f32 %v9597, 0.0
  %v10148 = vmax.f32 %v9599, 0.0
  %v10149 = vmax.f32 %v9603, 0.0
  %v10150 = vmax.f32 %v9605, 0.0
  %v10151 = vmax.f32 %v9607, 0.0
  %v10152 = vmax.f32 %v9609, 0.0
  %v10153 = vmax.f32 %v9613, 0.0
  %v10154 = vmax.f32 %v9615, 0.0
  %v10155 = vmax.f32 %v9617, 0.0
  %v10156 = vmax.f32 %v9619, 0.0
  %v10157 = vmax.f32 %v9623, 0.0
  %v10158 = vmax.f32 %v9625, 0.0
  %v10159 = vmax.f32 %v9627, 0.0
  %v10160 = vmax.f32 %v9629, 0.0
  %v10161 = vmax.f32 %v9633, 0.0
  %v10162 = vmax.f32 %v9635, 0.0
  %v10163 = vmax.f32 %v9637, 0.0
  %v10164 = vmax.f32 %v9639, 0.0
  %v10165 = vmax.f32 %v9643, 0.0
  %v10166 = vmax.f32 %v9645, 0.0
  %v10167 = vmax.f32 %v9647, 0.0
  %v10168 = vmax.f32 %v9649, 0.0
  %v10169 = vmax.f32 %v9653, 0.0
  %v10170 = vmax.f32 %v9655, 0.0
  %v10171 = vmax.f32 %v9657, 0.0
  %v10172 = vmax.f32 %v9659, 0.0
  %v10173 = vmax.f32 %v9663, 0.0
  %v10174 = vmax.f32 %v9665, 0.0
  %v10175 = vmax.f32 %v9667, 0.0
  %v10176 = vmax.f32 %v9669, 0.0
  %v10177 = vmax.f32 %v9673, 0.0
  %v10178 = vmax.f32 %v9675, 0.0
  %v10179 = vmax.f32 %v9677, 0.0
  %v10180 = vmax.f32 %v9679, 0.0
  %v10181 = vmax.f32 %v9683, 0.0
  %v10182 = vmax.f32 %v9685, 0.0
  %v10183 = vmax.f32 %v9687, 0.0
  %v10184 = vmax.f32 %v9689, 0.0
  %v10185 = vmax.f32 %v9693, 0.0
  %v10186 = vmax.f32 %v9695, 0.0
  %v10187 = vmax.f32 %v9697, 0.0
  %v10188 = vmax.f32 %v9699, 0.0
  %v10189 = vmax.f32 %v9703, 0.0
  %v10190 = vmax.f32 %v9705, 0.0
  %v10191 = vmax.f32 %v9707, 0.0
  %v10192 = vmax.f32 %v9709, 0.0
  %v10193 = vmax.f32 %v9713, 0.0
  %v10194 = vmax.f32 %v9715, 0.0
  %v10195 = vmax.f32 %v9717, 0.0
  %v10196 = vmax.f32 %v9719, 0.0
  %v10197 = vmax.f32 %v9723, 0.0
  %v10198 = vmax.f32 %v9725, 0.0
  %v10199 = vmax.f32 %v9727, 0.0
  %v10200 = vmax.f32 %v9729, 0.0
  %v10201 = vmax.f32 %v9733, 0.0
  %v10202 = vmax.f32 %v9735, 0.0
  %v10203 = vmax.f32 %v9737, 0.0
  %v10204 = vmax.f32 %v9739, 0.0
  %v10205 = vmax.f32 %v9743, 0.0
  %v10206 = vmax.f32 %v9745, 0.0
  %v10207 = vmax.f32 %v9747, 0.0
  %v10208 = vmax.f32 %v9749, 0.0
  %v10209 = vmax.f32 %v9753, 0.0
  %v10210 = vmax.f32 %v9755, 0.0
  %v10211 = vmax.f32 %v9757, 0.0
  %v10212 = vmax.f32 %v9759, 0.0
  %v10213 = vmax.f32 %v9763, 0.0
  %v10214 = vmax.f32 %v9765, 0.0
  %v10215 = vmax.f32 %v9767, 0.0
  %v10216 = vmax.f32 %v9769, 0.0
  %v10217 = vmax.f32 %v9773, 0.0
  %v10218 = vmax.f32 %v9775, 0.0
  %v10219 = vmax.f32 %v9777, 0.0
  %v10220 = vmax.f32 %v9779, 0.0
  %v10221 = vmax.f32 %v9783, 0.0
  %v10222 = vmax.f32 %v9785, 0.0
  %v10223 = vmax.f32 %v9787, 0.0
  %v10224 = vmax.f32 %v9789, 0.0
  %v10225 = vmax.f32 %v9793, 0.0
  %v10226 = vmax.f32 %v9795, 0.0
  %v10227 = vmax.f32 %v9797, 0.0
  %v10228 = vmax.f32 %v9799, 0.0
  %v10229 = vmax.f32 %v9803, 0.0
  %v10230 = vmax.f32 %v9805, 0.0
  %v10231 = vmax.f32 %v9807, 0.0
  %v10232 = vmax.f32 %v9809, 0.0
  %v10233 = vmax.f32 %v9813, 0.0
  %v10234 = vmax.f32 %v9815, 0.0
  %v10235 = vmax.f32 %v9817, 0.0
  %v10236 = vmax.f32 %v9819, 0.0
  %v10237 = vmax.f32 %v9823, 0.0
  %v10238 = vmax.f32 %v9825, 0.0
  %v10239 = vmax.f32 %v9827, 0.0
  %v10240 = vmax.f32 %v9829, 0.0
  %v10241 = vmax.f32 %v9833, 0.0
  %v10242 = vmax.f32 %v9835, 0.0
  %v10243 = vmax.f32 %v9837, 0.0
  %v10244 = vmax.f32 %v9839, 0.0
  %v10245 = vmax.f32 %v9843, 0.0
  %v10246 = vmax.f32 %v9845, 0.0
  %v10247 = vmax.f32 %v9847, 0.0
  %v10248 = vmax.f32 %v9849, 0.0
  %v10249 = vmax.f32 %v9853, 0.0
  %v10250 = vmax.f32 %v9855, 0.0
  %v10251 = vmax.f32 %v9857, 0.0
  %v10252 = vmax.f32 %v9859, 0.0
  %v10253 = vmax.f32 %v9863, 0.0
  %v10254 = vmax.f32 %v9865, 0.0
  %v10255 = vmax.f32 %v9867, 0.0
  %v10256 = vmax.f32 %v9869, 0.0
  %v10257 = vmax.f32 %v9873, 0.0
  %v10258 = vmax.f32 %v9875, 0.0
  %v10259 = vmax.f32 %v9877, 0.0
  %v10260 = vmax.f32 %v9879, 0.0
  %v10261 = vmax.f32 %v9883, 0.0
  %v10262 = vmax.f32 %v9885, 0.0
  %v10263 = vmax.f32 %v9887, 0.0
  %v10264 = vmax.f32 %v9889, 0.0
  %v10265 = vmax.f32 %v9893, 0.0
  %v10266 = vmax.f32 %v9895, 0.0
  %v10267 = vmax.f32 %v9897, 0.0
  %v10268 = vmax.f32 %v9899, 0.0
  %v10269 = vmax.f32 %v9903, 0.0
  %v10270 = vmax.f32 %v9905, 0.0
  %v10271 = vmax.f32 %v9907, 0.0
  %v10272 = vmax.f32 %v9909, 0.0
  %v10273 = vmax.f32 %v9913, 0.0
  %v10274 = vmax.f32 %v9915, 0.0
  %v10275 = vmax.f32 %v9917, 0.0
  %v10276 = vmax.f32 %v9919, 0.0
  %v10277 = vmax.f32 %v9923, 0.0
  %v10278 = vmax.f32 %v9925, 0.0
  %v10279 = vmax.f32 %v9927, 0.0
  %v10280 = vmax.f32 %v9929, 0.0
  %v10281 = vmax.f32 %v9933, 0.0
  %v10282 = vmax.f32 %v9935, 0.0
  %v10283 = vmax.f32 %v9937, 0.0
  %v10284 = vmax.f32 %v9939, 0.0
  %v10285 = vmax.f32 %v9943, 0.0
  %v10286 = vmax.f32 %v9945, 0.0
  %v10287 = vmax.f32 %v9947, 0.0
  %v10288 = vmax.f32 %v9949, 0.0
  %v10289 = vmax.f32 %v9953, 0.0
  %v10290 = vmax.f32 %v9955, 0.0
  %v10291 = vmax.f32 %v9957, 0.0
  %v10292 = vmax.f32 %v9959, 0.0
  %v10293 = vmax.f32 %v9963, 0.0
  %v10294 = vmax.f32 %v9965, 0.0
  %v10295 = vmax.f32 %v9967, 0.0
  %v10296 = vmax.f32 %v9969, 0.0
  %v10297 = vmax.f32 %v9973, 0.0
  %v10298 = vmax.f32 %v9975, 0.0
  %v10299 = vmax.f32 %v9977, 0.0
  %v10300 = vmax.f32 %v9979, 0.0
  %v10301 = vmin.f32 %v9981, 6.0
  %v10302 = vmin.f32 %v9982, 6.0
  %v10303 = vmin.f32 %v9983, 6.0
  %v10304 = vmin.f32 %v9984, 6.0
  %v10305 = vmin.f32 %v9985, 6.0
  %v10306 = vmin.f32 %v9986, 6.0
  %v10307 = vmin.f32 %v9987, 6.0
  %v10308 = vmin.f32 %v9988, 6.0
  %v10309 = vmin.f32 %v9989, 6.0
  %v10310 = vmin.f32 %v9990, 6.0
  %v10311 = vmin.f32 %v9991, 6.0
  %v10312 = vmin.f32 %v9992, 6.0
  %v10313 = vmin.f32 %v9993, 6.0
  %v10314 = vmin.f32 %v9994, 6.0
  %v10315 = vmin.f32 %v9995, 6.0
  %v10316 = vmin.f32 %v9996, 6.0
  %v10317 = vmin.f32 %v9997, 6.0
  %v10318 = vmin.f32 %v9998, 6.0
  %v10319 = vmin.f32 %v9999, 6.0
  %v10320 = vmin.f32 %v10000, 6.0
  %v10321 = vmin.f32 %v10001, 6.0
  %v10322 = vmin.f32 %v10002, 6.0
  %v10323 = vmin.f32 %v10003, 6.0
  %v10324 = vmin.f32 %v10004, 6.0
  %v10325 = vmin.f32 %v10005, 6.0
  %v10326 = vmin.f32 %v10006, 6.0
  %v10327 = vmin.f32 %v10007, 6.0
  %v10328 = vmin.f32 %v10008, 6.0
  %v10329 = vmin.f32 %v10009, 6.0
  %v10330 = vmin.f32 %v10010, 6.0
  %v10331 = vmin.f32 %v10011, 6.0
  %v10332 = vmin.f32 %v10012, 6.0
  %v10333 = vmin.f32 %v10013, 6.0
  %v10334 = vmin.f32 %v10014, 6.0
  %v10335 = vmin.f32 %v10015, 6.0
  %v10336 = vmin.f32 %v10016, 6.0
  %v10337 = vmin.f32 %v10017, 6.0
  %v10338 = vmin.f32 %v10018, 6.0
  %v10339 = vmin.f32 %v10019, 6.0
  %v10340 = vmin.f32 %v10020, 6.0
  %v10341 = vmin.f32 %v10021, 6.0
  %v10342 = vmin.f32 %v10022, 6.0
  %v10343 = vmin.f32 %v10023, 6.0
  %v10344 = vmin.f32 %v10024, 6.0
  %v10345 = vmin.f32 %v10025, 6.0
  %v10346 = vmin.f32 %v10026, 6.0
  %v10347 = vmin.f32 %v10027, 6.0
  %v10348 = vmin.f32 %v10028, 6.0
  %v10349 = vmin.f32 %v10029, 6.0
  %v10350 = vmin.f32 %v10030, 6.0
  %v10351 = vmin.f32 %v10031, 6.0
  %v10352 = vmin.f32 %v10032, 6.0
  %v10353 = vmin.f32 %v10033, 6.0
  %v10354 = vmin.f32 %v10034, 6.0
  %v10355 = vmin.f32 %v10035, 6.0
  %v10356 = vmin.f32 %v10036, 6.0
  %v10357 = vmin.f32 %v10037, 6.0
  %v10358 = vmin.f32 %v10038, 6.0
  %v10359 = vmin.f32 %v10039, 6.0
  %v10360 = vmin.f32 %v10040, 6.0
  %v10361 = vmin.f32 %v10041, 6.0
  %v10362 = vmin.f32 %v10042, 6.0
  %v10363 = vmin.f32 %v10043, 6.0
  %v10364 = vmin.f32 %v10044, 6.0
  %v10365 = vmin.f32 %v10045, 6.0
  %v10366 = vmin.f32 %v10046, 6.0
  %v10367 = vmin.f32 %v10047, 6.0
  %v10368 = vmin.f32 %v10048, 6.0
  %v10369 = vmin.f32 %v10049, 6.0
  %v10370 = vmin.f32 %v10050, 6.0
  %v10371 = vmin.f32 %v10051, 6.0
  %v10372 = vmin.f32 %v10052, 6.0
  %v10373 = vmin.f32 %v10053, 6.0
  %v10374 = vmin.f32 %v10054, 6.0
  %v10375 = vmin.f32 %v10055, 6.0
  %v10376 = vmin.f32 %v10056, 6.0
  %v10377 = vmin.f32 %v10057, 6.0
  %v10378 = vmin.f32 %v10058, 6.0
  %v10379 = vmin.f32 %v10059, 6.0
  %v10380 = vmin.f32 %v10060, 6.0
  %v10381 = vmin.f32 %v10061, 6.0
  %v10382 = vmin.f32 %v10062, 6.0
  %v10383 = vmin.f32 %v10063, 6.0
  %v10384 = vmin.f32 %v10064, 6.0
  %v10385 = vmin.f32 %v10065, 6.0
  %v10386 = vmin.f32 %v10066, 6.0
  %v10387 = vmin.f32 %v10067, 6.0
  %v10388 = vmin.f32 %v10068, 6.0
  %v10389 = vmin.f32 %v10069, 6.0
  %v10390 = vmin.f32 %v10070, 6.0
  %v10391 = vmin.f32 %v10071, 6.0
  %v10392 = vmin.f32 %v10072, 6.0
  %v10393 = vmin.f32 %v10073, 6.0
  %v10394 = vmin.f32 %v10074, 6.0
  %v10395 = vmin.f32 %v10075, 6.0
  %v10396 = vmin.f32 %v10076, 6.0
  %v10397 = vmin.f32 %v10077, 6.0
  %v10398 = vmin.f32 %v10078, 6.0
  %v10399 = vmin.f32 %v10079, 6.0
  %v10400 = vmin.f32 %v10080, 6.0
  %v10401 = vmin.f32 %v10081, 6.0
  %v10402 = vmin.f32 %v10082, 6.0
  %v10403 = vmin.f32 %v10083, 6.0
  %v10404 = vmin.f32 %v10084, 6.0
  %v10405 = vmin.f32 %v10085, 6.0
  %v10406 = vmin.f32 %v10086, 6.0
  %v10407 = vmin.f32 %v10087, 6.0
  %v10408 = vmin.f32 %v10088, 6.0
  %v10409 = vmin.f32 %v10089, 6.0
  %v10410 = vmin.f32 %v10090, 6.0
  %v10411 = vmin.f32 %v10091, 6.0
  %v10412 = vmin.f32 %v10092, 6.0
  %v10413 = vmin.f32 %v10093, 6.0
  %v10414 = vmin.f32 %v10094, 6.0
  %v10415 = vmin.f32 %v10095, 6.0
  %v10416 = vmin.f32 %v10096, 6.0
  %v10417 = vmin.f32 %v10097, 6.0
  %v10418 = vmin.f32 %v10098, 6.0
  %v10419 = vmin.f32 %v10099, 6.0
  %v10420 = vmin.f32 %v10100, 6.0
  %v10421 = vmin.f32 %v10101, 6.0
  %v10422 = vmin.f32 %v10102, 6.0
  %v10423 = vmin.f32 %v10103, 6.0
  %v10424 = vmin.f32 %v10104, 6.0
  %v10425 = vmin.f32 %v10105, 6.0
  %v10426 = vmin.f32 %v10106, 6.0
  %v10427 = vmin.f32 %v10107, 6.0
  %v10428 = vmin.f32 %v10108, 6.0
  %v10429 = vmin.f32 %v10109, 6.0
  %v10430 = vmin.f32 %v10110, 6.0
  %v10431 = vmin.f32 %v10111, 6.0
  %v10432 = vmin.f32 %v10112, 6.0
  %v10433 = vmin.f32 %v10113, 6.0
  %v10434 = vmin.f32 %v10114, 6.0
  %v10435 = vmin.f32 %v10115, 6.0
  %v10436 = vmin.f32 %v10116, 6.0
  %v10437 = vmin.f32 %v10117, 6.0
  %v10438 = vmin.f32 %v10118, 6.0
  %v10439 = vmin.f32 %v10119, 6.0
  %v10440 = vmin.f32 %v10120, 6.0
  %v10441 = vmin.f32 %v10121, 6.0
  %v10442 = vmin.f32 %v10122, 6.0
  %v10443 = vmin.f32 %v10123, 6.0
  %v10444 = vmin.f32 %v10124, 6.0
  %v10445 = vmin.f32 %v10125, 6.0
  %v10446 = vmin.f32 %v10126, 6.0
  %v10447 = vmin.f32 %v10127, 6.0
  %v10448 = vmin.f32 %v10128, 6.0
  %v10449 = vmin.f32 %v10129, 6.0
  %v10450 = vmin.f32 %v10130, 6.0
  %v10451 = vmin.f32 %v10131, 6.0
  %v10452 = vmin.f32 %v10132, 6.0
  %v10453 = vmin.f32 %v10133, 6.0
  %v10454 = vmin.f32 %v10134, 6.0
  %v10455 = vmin.f32 %v10135, 6.0
  %v10456 = vmin.f32 %v10136, 6.0
  %v10457 = vmin.f32 %v10137, 6.0
  %v10458 = vmin.f32 %v10138, 6.0
  %v10459 = vmin.f32 %v10139, 6.0
  %v10460 = vmin.f32 %v10140, 6.0
  %v10461 = vmin.f32 %v10141, 6.0
  %v10462 = vmin.f32 %v10142, 6.0
  %v10463 = vmin.f32 %v10143, 6.0
  %v10464 = vmin.f32 %v10144, 6.0
  %v10465 = vmin.f32 %v10145, 6.0
  %v10466 = vmin.f32 %v10146, 6.0
  %v10467 = vmin.f32 %v10147, 6.0
  %v10468 = vmin.f32 %v10148, 6.0
  %v10469 = vmin.f32 %v10149, 6.0
  %v10470 = vmin.f32 %v10150, 6.0
  %v10471 = vmin.f32 %v10151, 6.0
  %v10472 = vmin.f32 %v10152, 6.0
  %v10473 = vmin.f32 %v10153, 6.0
  %v10474 = vmin.f32 %v10154, 6.0
  %v10475 = vmin.f32 %v10155, 6.0
  %v10476 = vmin.f32 %v10156, 6.0
  %v10477 = vmin.f32 %v10157, 6.0
  %v10478 = vmin.f32 %v10158, 6.0
  %v10479 = vmin.f32 %v10159, 6.0
  %v10480 = vmin.f32 %v10160, 6.0
  %v10481 = vmin.f32 %v10161, 6.0
  %v10482 = vmin.f32 %v10162, 6.0
  %v10483 = vmin.f32 %v10163, 6.0
  %v10484 = vmin.f32 %v10164, 6.0
  %v10485 = vmin.f32 %v10165, 6.0
  %v10486 = vmin.f32 %v10166, 6.0
  %v10487 = vmin.f32 %v10167, 6.0
  %v10488 = vmin.f32 %v10168, 6.0
  %v10489 = vmin.f32 %v10169, 6.0
  %v10490 = vmin.f32 %v10170, 6.0
  %v10491 = vmin.f32 %v10171, 6.0
  %v10492 = vmin.f32 %v10172, 6.0
  %v10493 = vmin.f32 %v10173, 6.0
  %v10494 = vmin.f32 %v10174, 6.0
  %v10495 = vmin.f32 %v10175, 6.0
  %v10496 = vmin.f32 %v10176, 6.0
  %v10497 = vmin.f32 %v10177, 6.0
  %v10498 = vmin.f32 %v10178, 6.0
  %v10499 = vmin.f32 %v10179, 6.0
  %v10500 = vmin.f32 %v10180, 6.0
  %v10501 = vmin.f32 %v10181, 6.0
  %v10502 = vmin.f32 %v10182, 6.0
  %v10503 = vmin.f32 %v10183, 6.0
  %v10504 = vmin.f32 %v10184, 6.0
  %v10505 = vmin.f32 %v10185, 6.0
  %v10506 = vmin.f32 %v10186, 6.0
  %v10507 = vmin.f32 %v10187, 6.0
  %v10508 = vmin.f32 %v10188, 6.0
  %v10509 = vmin.f32 %v10189, 6.0
  %v10510 = vmin.f32 %v10190, 6.0
  %v10511 = vmin.f32 %v10191, 6.0
  %v10512 = vmin.f32 %v10192, 6.0
  %v10513 = vmin.f32 %v10193, 6.0
  %v10514 = vmin.f32 %v10194, 6.0
  %v10515 = vmin.f32 %v10195, 6.0
  %v10516 = vmin.f32 %v10196, 6.0
  %v10517 = vmin.f32 %v10197, 6.0
  %v10518 = vmin.f32 %v10198, 6.0
  %v10519 = vmin.f32 %v10199, 6.0
  %v10520 = vmin.f32 %v10200, 6.0
  %v10521 = vmin.f32 %v10201, 6.0
  %v10522 = vmin.f32 %v10202, 6.0
  %v10523 = vmin.f32 %v10203, 6.0
  %v10524 = vmin.f32 %v10204, 6.0
  %v10525 = vmin.f32 %v10205, 6.0
  %v10526 = vmin.f32 %v10206, 6.0
  %v10527 = vmin.f32 %v10207, 6.0
  %v10528 = vmin.f32 %v10208, 6.0
  %v10529 = vmin.f32 %v10209, 6.0
  %v10530 = vmin.f32 %v10210, 6.0
  %v10531 = vmin.f32 %v10211, 6.0
  %v10532 = vmin.f32 %v10212, 6.0
  %v10533 = vmin.f32 %v10213, 6.0
  %v10534 = vmin.f32 %v10214, 6.0
  %v10535 = vmin.f32 %v10215, 6.0
  %v10536 = vmin.f32 %v10216, 6.0
  %v10537 = vmin.f32 %v10217, 6.0
  %v10538 = vmin.f32 %v10218, 6.0
  %v10539 = vmin.f32 %v10219, 6.0
  %v10540 = vmin.f32 %v10220, 6.0
  %v10541 = vmin.f32 %v10221, 6.0
  %v10542 = vmin.f32 %v10222, 6.0
  %v10543 = vmin.f32 %v10223, 6.0
  %v10544 = vmin.f32 %v10224, 6.0
  %v10545 = vmin.f32 %v10225, 6.0
  %v10546 = vmin.f32 %v10226, 6.0
  %v10547 = vmin.f32 %v10227, 6.0
  %v10548 = vmin.f32 %v10228, 6.0
  %v10549 = vmin.f32 %v10229, 6.0
  %v10550 = vmin.f32 %v10230, 6.0
  %v10551 = vmin.f32 %v10231, 6.0
  %v10552 = vmin.f32 %v10232, 6.0
  %v10553 = vmin.f32 %v10233, 6.0
  %v10554 = vmin.f32 %v10234, 6.0
  %v10555 = vmin.f32 %v10235, 6.0
  %v10556 = vmin.f32 %v10236, 6.0
  %v10557 = vmin.f32 %v10237, 6.0
  %v10558 = vmin.f32 %v10238, 6.0
  %v10559 = vmin.f32 %v10239, 6.0
  %v10560 = vmin.f32 %v10240, 6.0
  %v10561 = vmin.f32 %v10241, 6.0
  %v10562 = vmin.f32 %v10242, 6.0
  %v10563 = vmin.f32 %v10243, 6.0
  %v10564 = vmin.f32 %v10244, 6.0
  %v10565 = vmin.f32 %v10245, 6.0
  %v10566 = vmin.f32 %v10246, 6.0
  %v10567 = vmin.f32 %v10247, 6.0
  %v10568 = vmin.f32 %v10248, 6.0
  %v10569 = vmin.f32 %v10249, 6.0
  %v10570 = vmin.f32 %v10250, 6.0
  %v10571 = vmin.f32 %v10251, 6.0
  %v10572 = vmin.f32 %v10252, 6.0
  %v10573 = vmin.f32 %v10253, 6.0
  %v10574 = vmin.f32 %v10254, 6.0
  %v10575 = vmin.f32 %v10255, 6.0
  %v10576 = vmin.f32 %v10256, 6.0
  %v10577 = vmin.f32 %v10257, 6.0
  %v10578 = vmin.f32 %v10258, 6.0
  %v10579 = vmin.f32 %v10259, 6.0
  %v10580 = vmin.f32 %v10260, 6.0
  %v10581 = vmin.f32 %v10261, 6.0
  %v10582 = vmin.f32 %v10262, 6.0
  %v10583 = vmin.f32 %v10263, 6.0
  %v10584 = vmin.f32 %v10264, 6.0
  %v10585 = vmin.f32 %v10265, 6.0
  %v10586 = vmin.f32 %v10266, 6.0
  %v10587 = vmin.f32 %v10267, 6.0
  %v10588 = vmin.f32 %v10268, 6.0
  %v10589 = vmin.f32 %v10269, 6.0
  %v10590 = vmin.f32 %v10270, 6.0
  %v10591 = vmin.f32 %v10271, 6.0
  %v10592 = vmin.f32 %v10272, 6.0
  %v10593 = vmin.f32 %v10273, 6.0
  %v10594 = vmin.f32 %v10274, 6.0
  %v10595 = vmin.f32 %v10275, 6.0
  %v10596 = vmin.f32 %v10276, 6.0
  %v10597 = vmin.f32 %v10277, 6.0
  %v10598 = vmin.f32 %v10278, 6.0
  %v10599 = vmin.f32 %v10279, 6.0
  %v10600 = vmin.f32 %v10280, 6.0
  %v10601 = vmin.f32 %v10281, 6.0
  %v10602 = vmin.f32 %v10282, 6.0
  %v10603 = vmin.f32 %v10283, 6.0
  %v10604 = vmin.f32 %v10284, 6.0
  %v10605 = vmin.f32 %v10285, 6.0
  %v10606 = vmin.f32 %v10286, 6.0
  %v10607 = vmin.f32 %v10287, 6.0
  %v10608 = vmin.f32 %v10288, 6.0
  %v10609 = vmin.f32 %v10289, 6.0
  %v10610 = vmin.f32 %v10290, 6.0
  %v10611 = vmin.f32 %v10291, 6.0
  %v10612 = vmin.f32 %v10292, 6.0
  %v10613 = vmin.f32 %v10293, 6.0
  %v10614 = vmin.f32 %v10294, 6.0
  %v10615 = vmin.f32 %v10295, 6.0
  %v10616 = vmin.f32 %v10296, 6.0
  %v10617 = vmin.f32 %v10297, 6.0
  %v10618 = vmin.f32 %v10298, 6.0
  %v10619 = vmin.f32 %v10299, 6.0
  %v10620 = vmin.f32 %v10300, 6.0
  %v10621 = vsub.f32 %v10301, %v8822
  %v10622 = vsub.f32 %v10302, %v8823
  %v10623 = vsub.f32 %v10303, %v8824
  %v10624 = vsub.f32 %v10304, %v8825
  %v10625 = vsub.f32 %v10305, %v8826
  %v10626 = vsub.f32 %v10306, %v8827
  %v10627 = vsub.f32 %v10307, %v8828
  %v10628 = vsub.f32 %v10308, %v8829
  %v10629 = vsub.f32 %v10309, %v8830
  %v10630 = vsub.f32 %v10310, %v8831
  %v10631 = vsub.f32 %v10311, %v8832
  %v10632 = vsub.f32 %v10312, %v8833
  %v10633 = vsub.f32 %v10313, %v8834
  %v10634 = vsub.f32 %v10314, %v8835
  %v10635 = vsub.f32 %v10315, %v8836
  %v10636 = vsub.f32 %v10316, %v8837
  %v10637 = vsub.f32 %v10317, %v8838
  %v10638 = vsub.f32 %v10318, %v8839
  %v10639 = vsub.f32 %v10319, %v8840
  %v10640 = vsub.f32 %v10320, %v8841
  %v10641 = vsub.f32 %v10321, %v8842
  %v10642 = vsub.f32 %v10322, %v8843
  %v10643 = vsub.f32 %v10323, %v8844
  %v10644 = vsub.f32 %v10324, %v8845
  %v10645 = vsub.f32 %v10325, %v8846
  %v10646 = vsub.f32 %v10326, %v8847
  %v10647 = vsub.f32 %v10327, %v8848
  %v10648 = vsub.f32 %v10328, %v8849
  %v10649 = vsub.f32 %v10329, %v8850
  %v10650 = vsub.f32 %v10330, %v8851
  %v10651 = vsub.f32 %v10331, %v8852
  %v10652 = vsub.f32 %v10332, %v8853
  %v10653 = vsub.f32 %v10333, %v8854
  %v10654 = vsub.f32 %v10334, %v8855
  %v10655 = vsub.f32 %v10335, %v8856
  %v10656 = vsub.f32 %v10336, %v8857
  %v10657 = vsub.f32 %v10337, %v8858
  %v10658 = vsub.f32 %v10338, %v8859
  %v10659 = vsub.f32 %v10339, %v8860
  %v10660 = vsub.f32 %v10340, %v8861
  %v10661 = vsub.f32 %v10341, %v8862
  %v10662 = vsub.f32 %v10342, %v8863
  %v10663 = vsub.f32 %v10343, %v8864
  %v10664 = vsub.f32 %v10344, %v8865
  %v10665 = vsub.f32 %v10345, %v8866
  %v10666 = vsub.f32 %v10346, %v8867
  %v10667 = vsub.f32 %v10347, %v8868
  %v10668 = vsub.f32 %v10348, %v8869
  %v10669 = vsub.f32 %v10349, %v8870
  %v10670 = vsub.f32 %v10350, %v8871
  %v10671 = vsub.f32 %v10351, %v8872
  %v10672 = vsub.f32 %v10352, %v8873
  %v10673 = vsub.f32 %v10353, %v8874
  %v10674 = vsub.f32 %v10354, %v8875
  %v10675 = vsub.f32 %v10355, %v8876
  %v10676 = vsub.f32 %v10356, %v8877
  %v10677 = vsub.f32 %v10357, %v8878
  %v10678 = vsub.f32 %v10358, %v8879
  %v10679 = vsub.f32 %v10359, %v8880
  %v10680 = vsub.f32 %v10360, %v8881
  %v10681 = vsub.f32 %v10361, %v8882
  %v10682 = vsub.f32 %v10362, %v8883
  %v10683 = vsub.f32 %v10363, %v8884
  %v10684 = vsub.f32 %v10364, %v8885
  %v10685 = vsub.f32 %v10365, %v8886
  %v10686 = vsub.f32 %v10366, %v8887
  %v10687 = vsub.f32 %v10367, %v8888
  %v10688 = vsub.f32 %v10368, %v8889
  %v10689 = vsub.f32 %v10369, %v8890
  %v10690 = vsub.f32 %v10370, %v8891
  %v10691 = vsub.f32 %v10371, %v8892
  %v10692 = vsub.f32 %v10372, %v8893
  %v10693 = vsub.f32 %v10373, %v8894
  %v10694 = vsub.f32 %v10374, %v8895
  %v10695 = vsub.f32 %v10375, %v8896
  %v10696 = vsub.f32 %v10376, %v8897
  %v10697 = vsub.f32 %v10377, %v8898
  %v10698 = vsub.f32 %v10378, %v8899
  %v10699 = vsub.f32 %v10379, %v8900
  %v10700 = vsub.f32 %v10380, %v8901
  %v10701 = vsub.f32 %v10381, %v8902
  %v10702 = vsub.f32 %v10382, %v8903
  %v10703 = vsub.f32 %v10383, %v8904
  %v10704 = vsub.f32 %v10384, %v8905
  %v10705 = vsub.f32 %v10385, %v8906
  %v10706 = vsub.f32 %v10386, %v8907
  %v10707 = vsub.f32 %v10387, %v8908
  %v10708 = vsub.f32 %v10388, %v8909
  %v10709 = vsub.f32 %v10389, %v8910
  %v10710 = vsub.f32 %v10390, %v8911
  %v10711 = vsub.f32 %v10391, %v8912
  %v10712 = vsub.f32 %v10392, %v8913
  %v10713 = vsub.f32 %v10393, %v8914
  %v10714 = vsub.f32 %v10394, %v8915
  %v10715 = vsub.f32 %v10395, %v8916
  %v10716 = vsub.f32 %v10396, %v8917
  %v10717 = vsub.f32 %v10397, %v8918
  %v10718 = vsub.f32 %v10398, %v8919
  %v10719 = vsub.f32 %v10399, %v8920
  %v10720 = vsub.f32 %v10400, %v8921
  %v10721 = vsub.f32 %v10401, %v8922
  %v10722 = vsub.f32 %v10402, %v8923
  %v10723 = vsub.f32 %v10403, %v8924
  %v10724 = vsub.f32 %v10404, %v8925
  %v10725 = vsub.f32 %v10405, %v8926
  %v10726 = vsub.f32 %v10406, %v8927
  %v10727 = vsub.f32 %v10407, %v8928
  %v10728 = vsub.f32 %v10408, %v8929
  %v10729 = vsub.f32 %v10409, %v8930
  %v10730 = vsub.f32 %v10410, %v8931
  %v10731 = vsub.f32 %v10411, %v8932
  %v10732 = vsub.f32 %v10412, %v8933
  %v10733 = vsub.f32 %v10413, %v8934
  %v10734 = vsub.f32 %v10414, %v8935
  %v10735 = vsub.f32 %v10415, %v8936
  %v10736 = vsub.f32 %v10416, %v8937
  %v10737 = vsub.f32 %v10417, %v8938
  %v10738 = vsub.f32 %v10418, %v8939
  %v10739 = vsub.f32 %v10419, %v8940
  %v10740 = vsub.f32 %v10420, %v8941
  %v10741 = vsub.f32 %v10421, %v8942
  %v10742 = vsub.f32 %v10422, %v8943
  %v10743 = vsub.f32 %v10423, %v8944
  %v10744 = vsub.f32 %v10424, %v8945
  %v10745 = vsub.f32 %v10425, %v8946
  %v10746 = vsub.f32 %v10426, %v8947
  %v10747 = vsub.f32 %v10427, %v8948
  %v10748 = vsub.f32 %v10428, %v8949
  %v10749 = vsub.f32 %v10429, %v8950
  %v10750 = vsub.f32 %v10430, %v8951
  %v10751 = vsub.f32 %v10431, %v8952
  %v10752 = vsub.f32 %v10432, %v8953
  %v10753 = vsub.f32 %v10433, %v8954
  %v10754 = vsub.f32 %v10434, %v8955
  %v10755 = vsub.f32 %v10435, %v8956
  %v10756 = vsub.f32 %v10436, %v8957
  %v10757 = vsub.f32 %v10437, %v8958
  %v10758 = vsub.f32 %v10438, %v8959
  %v10759 = vsub.f32 %v10439, %v8960
  %v10760 = vsub.f32 %v10440, %v8961
  %v10761 = vsub.f32 %v10441, %v8962
  %v10762 = vsub.f32 %v10442, %v8963
  %v10763 = vsub.f32 %v10443, %v8964
  %v10764 = vsub.f32 %v10444, %v8965
  %v10765 = vsub.f32 %v10445, %v8966
  %v10766 = vsub.f32 %v10446, %v8967
  %v10767 = vsub.f32 %v10447, %v8968
  %v10768 = vsub.f32 %v10448, %v8969
  %v10769 = vsub.f32 %v10449, %v8970
  %v10770 = vsub.f32 %v10450, %v8971
  %v10771 = vsub.f32 %v10451, %v8972
  %v10772 = vsub.f32 %v10452, %v8973
  %v10773 = vsub.f32 %v10453, %v8974
  %v10774 = vsub.f32 %v10454, %v8975
  %v10775 = vsub.f32 %v10455, %v8976
  %v10776 = vsub.f32 %v10456, %v8977
  %v10777 = vsub.f32 %v10457, %v8978
  %v10778 = vsub.f32 %v10458, %v8979
  %v10779 = vsub.f32 %v10459, %v8980
  %v10780 = vsub.f32 %v10460, %v8981
  %v10781 = vsub.f32 %v10461, %v8982
  %v10782 = vsub.f32 %v10462, %v8983
  %v10783 = vsub.f32 %v10463, %v8984
  %v10784 = vsub.f32 %v10464, %v8985
  %v10785 = vsub.f32 %v10465, %v8986
  %v10786 = vsub.f32 %v10466, %v8987
  %v10787 = vsub.f32 %v10467, %v8988
  %v10788 = vsub.f32 %v10468, %v8989
  %v10789 = vsub.f32 %v10469, %v8990
  %v10790 = vsub.f32 %v10470, %v8991
  %v10791 = vsub.f32 %v10471, %v8992
  %v10792 = vsub.f32 %v10472, %v8993
  %v10793 = vsub.f32 %v10473, %v8994
  %v10794 = vsub.f32 %v10474, %v8995
  %v10795 = vsub.f32 %v10475, %v8996
  %v10796 = vsub.f32 %v10476, %v8997
  %v10797 = vsub.f32 %v10477, %v8998
  %v10798 = vsub.f32 %v10478, %v8999
  %v10799 = vsub.f32 %v10479, %v9000
  %v10800 = vsub.f32 %v10480, %v9001
  %v10801 = vsub.f32 %v10481, %v9002
  %v10802 = vsub.f32 %v10482, %v9003
  %v10803 = vsub.f32 %v10483, %v9004
  %v10804 = vsub.f32 %v10484, %v9005
  %v10805 = vsub.f32 %v10485, %v9006
  %v10806 = vsub.f32 %v10486, %v9007
  %v10807 = vsub.f32 %v10487, %v9008
  %v10808 = vsub.f32 %v10488, %v9009
  %v10809 = vsub.f32 %v10489, %v9010
  %v10810 = vsub.f32 %v10490, %v9011
  %v10811 = vsub.f32 %v10491, %v9012
  %v10812 = vsub.f32 %v10492, %v9013
  %v10813 = vsub.f32 %v10493, %v9014
  %v10814 = vsub.f32 %v10494, %v9015
  %v10815 = vsub.f32 %v10495, %v9016
  %v10816 = vsub.f32 %v10496, %v9017
  %v10817 = vsub.f32 %v10497, %v9018
  %v10818 = vsub.f32 %v10498, %v9019
  %v10819 = vsub.f32 %v10499, %v9020
  %v10820 = vsub.f32 %v10500, %v9021
  %v10821 = vsub.f32 %v10501, %v9022
  %v10822 = vsub.f32 %v10502, %v9023
  %v10823 = vsub.f32 %v10503, %v9024
  %v10824 = vsub.f32 %v10504, %v9025
  %v10825 = vsub.f32 %v10505, %v9026
  %v10826 = vsub.f32 %v10506, %v9027
  %v10827 = vsub.f32 %v10507, %v9028
  %v10828 = vsub.f32 %v10508, %v9029
  %v10829 = vsub.f32 %v10509, %v9030
  %v10830 = vsub.f32 %v10510, %v9031
  %v10831 = vsub.f32 %v10511, %v9032
  %v10832 = vsub.f32 %v10512, %v9033
  %v10833 = vsub.f32 %v10513, %v9034
  %v10834 = vsub.f32 %v10514, %v9035
  %v10835 = vsub.f32 %v10515, %v9036
  %v10836 = vsub.f32 %v10516, %v9037
  %v10837 = vsub.f32 %v10517, %v9038
  %v10838 = vsub.f32 %v10518, %v9039
  %v10839 = vsub.f32 %v10519, %v9040
  %v10840 = vsub.f32 %v10520, %v9041
  %v10841 = vsub.f32 %v10521, %v9042
  %v10842 = vsub.f32 %v10522, %v9043
  %v10843 = vsub.f32 %v10523, %v9044
  %v10844 = vsub.f32 %v10524, %v9045
  %v10845 = vsub.f32 %v10525, %v9046
  %v10846 = vsub.f32 %v10526, %v9047
  %v10847 = vsub.f32 %v10527, %v9048
  %v10848 = vsub.f32 %v10528, %v9049
  %v10849 = vsub.f32 %v10529, %v9050
  %v10850 = vsub.f32 %v10530, %v9051
  %v10851 = vsub.f32 %v10531, %v9052
  %v10852 = vsub.f32 %v10532, %v9053
  %v10853 = vsub.f32 %v10533, %v9054
  %v10854 = vsub.f32 %v10534, %v9055
  %v10855 = vsub.f32 %v10535, %v9056
  %v10856 = vsub.f32 %v10536, %v9057
  %v10857 = vsub.f32 %v10537, %v9058
  %v10858 = vsub.f32 %v10538, %v9059
  %v10859 = vsub.f32 %v10539, %v9060
  %v10860 = vsub.f32 %v10540, %v9061
  %v10861 = vsub.f32 %v10541, %v9062
  %v10862 = vsub.f32 %v10542, %v9063
  %v10863 = vsub.f32 %v10543, %v9064
  %v10864 = vsub.f32 %v10544, %v9065
  %v10865 = vsub.f32 %v10545, %v9066
  %v10866 = vsub.f32 %v10546, %v9067
  %v10867 = vsub.f32 %v10547, %v9068
  %v10868 = vsub.f32 %v10548, %v9069
  %v10869 = vsub.f32 %v10549, %v9070
  %v10870 = vsub.f32 %v10550, %v9071
  %v10871 = vsub.f32 %v10551, %v9072
  %v10872 = vsub.f32 %v10552, %v9073
  %v10873 = vsub.f32 %v10553, %v9074
  %v10874 = vsub.f32 %v10554, %v9075
  %v10875 = vsub.f32 %v10555, %v9076
  %v10876 = vsub.f32 %v10556, %v9077
  %v10877 = vsub.f32 %v10557, %v9078
  %v10878 = vsub.f32 %v10558, %v9079
  %v10879 = vsub.f32 %v10559, %v9080
  %v10880 = vsub.f32 %v10560, %v9081
  %v10881 = vsub.f32 %v10561, %v9082
  %v10882 = vsub.f32 %v10562, %v9083
  %v10883 = vsub.f32 %v10563, %v9084
  %v10884 = vsub.f32 %v10564, %v9085
  %v10885 = vsub.f32 %v10565, %v9086
  %v10886 = vsub.f32 %v10566, %v9087
  %v10887 = vsub.f32 %v10567, %v9088
  %v10888 = vsub.f32 %v10568, %v9089
  %v10889 = vsub.f32 %v10569, %v9090
  %v10890 = vsub.f32 %v10570, %v9091
  %v10891 = vsub.f32 %v10571, %v9092
  %v10892 = vsub.f32 %v10572, %v9093
  %v10893 = vsub.f32 %v10573, %v9094
  %v10894 = vsub.f32 %v10574, %v9095
  %v10895 = vsub.f32 %v10575, %v9096
  %v10896 = vsub.f32 %v10576, %v9097
  %v10897 = vsub.f32 %v10577, %v9098
  %v10898 = vsub.f32 %v10578, %v9099
  %v10899 = vsub.f32 %v10579, %v9100
  %v10900 = vsub.f32 %v10580, %v9101
  %v10901 = vsub.f32 %v10581, %v9102
  %v10902 = vsub.f32 %v10582, %v9103
  %v10903 = vsub.f32 %v10583, %v9104
  %v10904 = vsub.f32 %v10584, %v9105
  %v10905 = vsub.f32 %v10585, %v9106
  %v10906 = vsub.f32 %v10586, %v9107
  %v10907 = vsub.f32 %v10587, %v9108
  %v10908 = vsub.f32 %v10588, %v9109
  %v10909 = vsub.f32 %v10589, %v9110
  %v10910 = vsub.f32 %v10590, %v9111
  %v10911 = vsub.f32 %v10591, %v9112
  %v10912 = vsub.f32 %v10592, %v9113
  %v10913 = vsub.f32 %v10593, %v9114
  %v10914 = vsub.f32 %v10594, %v9115
  %v10915 = vsub.f32 %v10595, %v9116
  %v10916 = vsub.f32 %v10596, %v9117
  %v10917 = vsub.f32 %v10597, %v9118
  %v10918 = vsub.f32 %v10598, %v9119
  %v10919 = vsub.f32 %v10599, %v9120
  %v10920 = vsub.f32 %v10600, %v9121
  %v10921 = vsub.f32 %v10601, %v9122
  %v10922 = vsub.f32 %v10602, %v9123
  %v10923 = vsub.f32 %v10603, %v9124
  %v10924 = vsub.f32 %v10604, %v9125
  %v10925 = vsub.f32 %v10605, %v9126
  %v10926 = vsub.f32 %v10606, %v9127
  %v10927 = vsub.f32 %v10607, %v9128
  %v10928 = vsub.f32 %v10608, %v9129
  %v10929 = vsub.f32 %v10609, %v9130
  %v10930 = vsub.f32 %v10610, %v9131
  %v10931 = vsub.f32 %v10611, %v9132
  %v10932 = vsub.f32 %v10612, %v9133
  %v10933 = vsub.f32 %v10613, %v9134
  %v10934 = vsub.f32 %v10614, %v9135
  %v10935 = vsub.f32 %v10615, %v9136
  %v10936 = vsub.f32 %v10616, %v9137
  %v10937 = vsub.f32 %v10617, %v9138
  %v10938 = vsub.f32 %v10618, %v9139
  %v10939 = vsub.f32 %v10619, %v9140
  %v10940 = vsub.f32 %v10620, %v9141
  %v10941 = vadd.f32 %v10621, %v10622
  %10942 = vadd.xlane.f32.xlu0 %v10941
  %v10943 = vpop.xlane.xlu0 %10942
  %v10944 = vadd.f32 %v10623, %v10624
  %10945 = vadd.xlane.f32.xlu0 %v10944
  %v10946 = vpop.xlane.xlu0 %10945
  %v10947 = vadd.f32 %v10625, %v10626
  %10948 = vadd.xlane.f32.xlu0 %v10947
  %v10949 = vpop.xlane.xlu0 %10948
  %v10950 = vadd.f32 %v10627, %v10628
  %10951 = vadd.xlane.f32.xlu0 %v10950
  %v10952 = vpop.xlane.xlu0 %10951
  %v10953 = vadd.f32 %v10629, %v10630
  %10954 = vadd.xlane.f32.xlu0 %v10953
  %v10955 = vpop.xlane.xlu0 %10954
  %v10956 = vadd.f32 %v10631, %v10632
  %10957 = vadd.xlane.f32.xlu0 %v10956
  %v10958 = vpop.xlane.xlu0 %10957
  %v10959 = vadd.f32 %v10633, %v10634
  %10960 = vadd.xlane.f32.xlu0 %v10959
  %v10961 = vpop.xlane.xlu0 %10960
  %v10962 = vadd.f32 %v10635, %v10636
  %10963 = vadd.xlane.f32.xlu0 %v10962
  %v10964 = vpop.xlane.xlu0 %10963
  %v10965 = vadd.f32 %v10637, %v10638
  %10966 = vadd.xlane.f32.xlu0 %v10965
  %v10967 = vpop.xlane.xlu0 %10966
  %v10968 = vadd.f32 %v10639, %v10640
  %10969 = vadd.xlane.f32.xlu0 %v10968
  %v10970 = vpop.xlane.xlu0 %10969
  %v10971 = vadd.f32 %v10641, %v10642
  %10972 = vadd.xlane.f32.xlu0 %v10971
  %v10973 = vpop.xlane.xlu0 %10972
  %v10974 = vadd.f32 %v10643, %v10644
  %10975 = vadd.xlane.f32.xlu0 %v10974
  %v10976 = vpop.xlane.xlu0 %10975
  %v10977 = vadd.f32 %v10645, %v10646
  %10978 = vadd.xlane.f32.xlu0 %v10977
  %v10979 = vpop.xlane.xlu0 %10978
  %v10980 = vadd.f32 %v10647, %v10648
  %10981 = vadd.xlane.f32.xlu0 %v10980
  %v10982 = vpop.xlane.xlu0 %10981
  %v10983 = vadd.f32 %v10649, %v10650
  %10984 = vadd.xlane.f32.xlu0 %v10983
  %v10985 = vpop.xlane.xlu0 %10984
  %v10986 = vadd.f32 %v10651, %v10652
  %10987 = vadd.xlane.f32.xlu0 %v10986
  %v10988 = vpop.xlane.xlu0 %10987
  %v10989 = vadd.f32 %v10653, %v10654
  %10990 = vadd.xlane.f32.xlu0 %v10989
  %v10991 = vpop.xlane.xlu0 %10990
  %v10992 = vadd.f32 %v10655, %v10656
  %10993 = vadd.xlane.f32.xlu0 %v10992
  %v10994 = vpop.xlane.xlu0 %10993
  %v10995 = vadd.f32 %v10657, %v10658
  %10996 = vadd.xlane.f32.xlu0 %v10995
  %v10997 = vpop.xlane.xlu0 %10996
  %v10998 = vadd.f32 %v10659, %v10660
  %10999 = vadd.xlane.f32.xlu0 %v10998
  %v11000 = vpop.xlane.xlu0 %10999
  %v11001 = vadd.f32 %v10661, %v10662
  %11002 = vadd.xlane.f32.xlu0 %v11001
  %v11003 = vpop.xlane.xlu0 %11002
  %v11004 = vadd.f32 %v10663, %v10664
  %11005 = vadd.xlane.f32.xlu0 %v11004
  %v11006 = vpop.xlane.xlu0 %11005
  %v11007 = vadd.f32 %v10665, %v10666
  %11008 = vadd.xlane.f32.xlu0 %v11007
  %v11009 = vpop.xlane.xlu0 %11008
  %v11010 = vadd.f32 %v10667, %v10668
  %11011 = vadd.xlane.f32.xlu0 %v11010
  %v11012 = vpop.xlane.xlu0 %11011
  %v11013 = vadd.f32 %v10669, %v10670
  %11014 = vadd.xlane.f32.xlu0 %v11013
  %v11015 = vpop.xlane.xlu0 %11014
  %v11016 = vadd.f32 %v10671, %v10672
  %11017 = vadd.xlane.f32.xlu0 %v11016
  %v11018 = vpop.xlane.xlu0 %11017
  %v11019 = vadd.f32 %v10673, %v10674
  %11020 = vadd.xlane.f32.xlu0 %v11019
  %v11021 = vpop.xlane.xlu0 %11020
  %v11022 = vadd.f32 %v10675, %v10676
  %11023 = vadd.xlane.f32.xlu0 %v11022
  %v11024 = vpop.xlane.xlu0 %11023
  %v11025 = vadd.f32 %v10677, %v10678
  %11026 = vadd.xlane.f32.xlu0 %v11025
  %v11027 = vpop.xlane.xlu0 %11026
  %v11028 = vadd.f32 %v10679, %v10680
  %11029 = vadd.xlane.f32.xlu0 %v11028
  %v11030 = vpop.xlane.xlu0 %11029
  %v11031 = vadd.f32 %v10681, %v10682
  %11032 = vadd.xlane.f32.xlu0 %v11031
  %v11033 = vpop.xlane.xlu0 %11032
  %v11034 = vadd.f32 %v10683, %v10684
  %11035 = vadd.xlane.f32.xlu0 %v11034
  %v11036 = vpop.xlane.xlu0 %11035
  %v11037 = vadd.f32 %v10685, %v10686
  %11038 = vadd.xlane.f32.xlu0 %v11037
  %v11039 = vpop.xlane.xlu0 %11038
  %v11040 = vadd.f32 %v10687, %v10688
  %11041 = vadd.xlane.f32.xlu0 %v11040
  %v11042 = vpop.xlane.xlu0 %11041
  %v11043 = vadd.f32 %v10689, %v10690
  %11044 = vadd.xlane.f32.xlu0 %v11043
  %v11045 = vpop.xlane.xlu0 %11044
  %v11046 = vadd.f32 %v10691, %v10692
  %11047 = vadd.xlane.f32.xlu0 %v11046
  %v11048 = vpop.xlane.xlu0 %11047
  %v11049 = vadd.f32 %v10693, %v10694
  %11050 = vadd.xlane.f32.xlu0 %v11049
  %v11051 = vpop.xlane.xlu0 %11050
  %v11052 = vadd.f32 %v10695, %v10696
  %11053 = vadd.xlane.f32.xlu0 %v11052
  %v11054 = vpop.xlane.xlu0 %11053
  %v11055 = vadd.f32 %v10697, %v10698
  %11056 = vadd.xlane.f32.xlu0 %v11055
  %v11057 = vpop.xlane.xlu0 %11056
  %v11058 = vadd.f32 %v10699, %v10700
  %11059 = vadd.xlane.f32.xlu0 %v11058
  %v11060 = vpop.xlane.xlu0 %11059
  %v11061 = vadd.f32 %v10701, %v10702
  %11062 = vadd.xlane.f32.xlu0 %v11061
  %v11063 = vpop.xlane.xlu0 %11062
  %v11064 = vadd.f32 %v10703, %v10704
  %11065 = vadd.xlane.f32.xlu0 %v11064
  %v11066 = vpop.xlane.xlu0 %11065
  %v11067 = vadd.f32 %v10705, %v10706
  %11068 = vadd.xlane.f32.xlu0 %v11067
  %v11069 = vpop.xlane.xlu0 %11068
  %v11070 = vadd.f32 %v10707, %v10708
  %11071 = vadd.xlane.f32.xlu0 %v11070
  %v11072 = vpop.xlane.xlu0 %11071
  %v11073 = vadd.f32 %v10709, %v10710
  %11074 = vadd.xlane.f32.xlu0 %v11073
  %v11075 = vpop.xlane.xlu0 %11074
  %v11076 = vadd.f32 %v10711, %v10712
  %11077 = vadd.xlane.f32.xlu0 %v11076
  %v11078 = vpop.xlane.xlu0 %11077
  %v11079 = vadd.f32 %v10713, %v10714
  %11080 = vadd.xlane.f32.xlu0 %v11079
  %v11081 = vpop.xlane.xlu0 %11080
  %v11082 = vadd.f32 %v10715, %v10716
  %11083 = vadd.xlane.f32.xlu0 %v11082
  %v11084 = vpop.xlane.xlu0 %11083
  %v11085 = vadd.f32 %v10717, %v10718
  %11086 = vadd.xlane.f32.xlu0 %v11085
  %v11087 = vpop.xlane.xlu0 %11086
  %v11088 = vadd.f32 %v10719, %v10720
  %11089 = vadd.xlane.f32.xlu0 %v11088
  %v11090 = vpop.xlane.xlu0 %11089
  %v11091 = vadd.f32 %v10721, %v10722
  %11092 = vadd.xlane.f32.xlu0 %v11091
  %v11093 = vpop.xlane.xlu0 %11092
  %v11094 = vadd.f32 %v10723, %v10724
  %11095 = vadd.xlane.f32.xlu0 %v11094
  %v11096 = vpop.xlane.xlu0 %11095
  %v11097 = vadd.f32 %v10725, %v10726
  %11098 = vadd.xlane.f32.xlu0 %v11097
  %v11099 = vpop.xlane.xlu0 %11098
  %v11100 = vadd.f32 %v10727, %v10728
  %11101 = vadd.xlane.f32.xlu0 %v11100
  %v11102 = vpop.xlane.xlu0 %11101
  %v11103 = vadd.f32 %v10729, %v10730
  %11104 = vadd.xlane.f32.xlu0 %v11103
  %v11105 = vpop.xlane.xlu0 %11104
  %v11106 = vadd.f32 %v10731, %v10732
  %11107 = vadd.xlane.f32.xlu0 %v11106
  %v11108 = vpop.xlane.xlu0 %11107
  %v11109 = vadd.f32 %v10733, %v10734
  %11110 = vadd.xlane.f32.xlu0 %v11109
  %v11111 = vpop.xlane.xlu0 %11110
  %v11112 = vadd.f32 %v10735, %v10736
  %11113 = vadd.xlane.f32.xlu0 %v11112
  %v11114 = vpop.xlane.xlu0 %11113
  %v11115 = vadd.f32 %v10737, %v10738
  %11116 = vadd.xlane.f32.xlu0 %v11115
  %v11117 = vpop.xlane.xlu0 %11116
  %v11118 = vadd.f32 %v10739, %v10740
  %11119 = vadd.xlane.f32.xlu0 %v11118
  %v11120 = vpop.xlane.xlu0 %11119
  %v11121 = vadd.f32 %v10741, %v10742
  %11122 = vadd.xlane.f32.xlu0 %v11121
  %v11123 = vpop.xlane.xlu0 %11122
  %v11124 = vadd.f32 %v10743, %v10744
  %11125 = vadd.xlane.f32.xlu0 %v11124
  %v11126 = vpop.xlane.xlu0 %11125
  %v11127 = vadd.f32 %v10745, %v10746
  %11128 = vadd.xlane.f32.xlu0 %v11127
  %v11129 = vpop.xlane.xlu0 %11128
  %v11130 = vadd.f32 %v10747, %v10748
  %11131 = vadd.xlane.f32.xlu0 %v11130
  %v11132 = vpop.xlane.xlu0 %11131
  %v11133 = vadd.f32 %v10749, %v10750
  %11134 = vadd.xlane.f32.xlu0 %v11133
  %v11135 = vpop.xlane.xlu0 %11134
  %v11136 = vadd.f32 %v10751, %v10752
  %11137 = vadd.xlane.f32.xlu0 %v11136
  %v11138 = vpop.xlane.xlu0 %11137
  %v11139 = vadd.f32 %v10753, %v10754
  %11140 = vadd.xlane.f32.xlu0 %v11139
  %v11141 = vpop.xlane.xlu0 %11140
  %v11142 = vadd.f32 %v10755, %v10756
  %11143 = vadd.xlane.f32.xlu0 %v11142
  %v11144 = vpop.xlane.xlu0 %11143
  %v11145 = vadd.f32 %v10757, %v10758
  %11146 = vadd.xlane.f32.xlu0 %v11145
  %v11147 = vpop.xlane.xlu0 %11146
  %v11148 = vadd.f32 %v10759, %v10760
  %11149 = vadd.xlane.f32.xlu0 %v11148
  %v11150 = vpop.xlane.xlu0 %11149
  %v11151 = vadd.f32 %v10761, %v10762
  %11152 = vadd.xlane.f32.xlu0 %v11151
  %v11153 = vpop.xlane.xlu0 %11152
  %v11154 = vadd.f32 %v10763, %v10764
  %11155 = vadd.xlane.f32.xlu0 %v11154
  %v11156 = vpop.xlane.xlu0 %11155
  %v11157 = vadd.f32 %v10765, %v10766
  %11158 = vadd.xlane.f32.xlu0 %v11157
  %v11159 = vpop.xlane.xlu0 %11158
  %v11160 = vadd.f32 %v10767, %v10768
  %11161 = vadd.xlane.f32.xlu0 %v11160
  %v11162 = vpop.xlane.xlu0 %11161
  %v11163 = vadd.f32 %v10769, %v10770
  %11164 = vadd.xlane.f32.xlu0 %v11163
  %v11165 = vpop.xlane.xlu0 %11164
  %v11166 = vadd.f32 %v10771, %v10772
  %11167 = vadd.xlane.f32.xlu0 %v11166
  %v11168 = vpop.xlane.xlu0 %11167
  %v11169 = vadd.f32 %v10773, %v10774
  %11170 = vadd.xlane.f32.xlu0 %v11169
  %v11171 = vpop.xlane.xlu0 %11170
  %v11172 = vadd.f32 %v10775, %v10776
  %11173 = vadd.xlane.f32.xlu0 %v11172
  %v11174 = vpop.xlane.xlu0 %11173
  %v11175 = vadd.f32 %v10777, %v10778
  %11176 = vadd.xlane.f32.xlu0 %v11175
  %v11177 = vpop.xlane.xlu0 %11176
  %v11178 = vadd.f32 %v10779, %v10780
  %11179 = vadd.xlane.f32.xlu0 %v11178
  %v11180 = vpop.xlane.xlu0 %11179
  %v11181 = vadd.f32 %v10781, %v10782
  %11182 = vadd.xlane.f32.xlu0 %v11181
  %v11183 = vpop.xlane.xlu0 %11182
  %v11184 = vadd.f32 %v10783, %v10784
  %11185 = vadd.xlane.f32.xlu0 %v11184
  %v11186 = vpop.xlane.xlu0 %11185
  %v11187 = vadd.f32 %v10785, %v10786
  %11188 = vadd.xlane.f32.xlu0 %v11187
  %v11189 = vpop.xlane.xlu0 %11188
  %v11190 = vadd.f32 %v10787, %v10788
  %11191 = vadd.xlane.f32.xlu0 %v11190
  %v11192 = vpop.xlane.xlu0 %11191
  %v11193 = vadd.f32 %v10789, %v10790
  %11194 = vadd.xlane.f32.xlu0 %v11193
  %v11195 = vpop.xlane.xlu0 %11194
  %v11196 = vadd.f32 %v10791, %v10792
  %11197 = vadd.xlane.f32.xlu0 %v11196
  %v11198 = vpop.xlane.xlu0 %11197
  %v11199 = vadd.f32 %v10793, %v10794
  %11200 = vadd.xlane.f32.xlu0 %v11199
  %v11201 = vpop.xlane.xlu0 %11200
  %v11202 = vadd.f32 %v10795, %v10796
  %11203 = vadd.xlane.f32.xlu0 %v11202
  %v11204 = vpop.xlane.xlu0 %11203
  %v11205 = vadd.f32 %v10797, %v10798
  %11206 = vadd.xlane.f32.xlu0 %v11205
  %v11207 = vpop.xlane.xlu0 %11206
  %v11208 = vadd.f32 %v10799, %v10800
  %11209 = vadd.xlane.f32.xlu0 %v11208
  %v11210 = vpop.xlane.xlu0 %11209
  %v11211 = vadd.f32 %v10801, %v10802
  %11212 = vadd.xlane.f32.xlu0 %v11211
  %v11213 = vpop.xlane.xlu0 %11212
  %v11214 = vadd.f32 %v10803, %v10804
  %11215 = vadd.xlane.f32.xlu0 %v11214
  %v11216 = vpop.xlane.xlu0 %11215
  %v11217 = vadd.f32 %v10805, %v10806
  %11218 = vadd.xlane.f32.xlu0 %v11217
  %v11219 = vpop.xlane.xlu0 %11218
  %v11220 = vadd.f32 %v10807, %v10808
  %11221 = vadd.xlane.f32.xlu0 %v11220
  %v11222 = vpop.xlane.xlu0 %11221
  %v11223 = vadd.f32 %v10809, %v10810
  %11224 = vadd.xlane.f32.xlu0 %v11223
  %v11225 = vpop.xlane.xlu0 %11224
  %v11226 = vadd.f32 %v10811, %v10812
  %11227 = vadd.xlane.f32.xlu0 %v11226
  %v11228 = vpop.xlane.xlu0 %11227
  %v11229 = vadd.f32 %v10813, %v10814
  %11230 = vadd.xlane.f32.xlu0 %v11229
  %v11231 = vpop.xlane.xlu0 %11230
  %v11232 = vadd.f32 %v10815, %v10816
  %11233 = vadd.xlane.f32.xlu0 %v11232
  %v11234 = vpop.xlane.xlu0 %11233
  %v11235 = vadd.f32 %v10817, %v10818
  %11236 = vadd.xlane.f32.xlu0 %v11235
  %v11237 = vpop.xlane.xlu0 %11236
  %v11238 = vadd.f32 %v10819, %v10820
  %11239 = vadd.xlane.f32.xlu0 %v11238
  %v11240 = vpop.xlane.xlu0 %11239
  %v11241 = vadd.f32 %v10821, %v10822
  %11242 = vadd.xlane.f32.xlu0 %v11241
  %v11243 = vpop.xlane.xlu0 %11242
  %v11244 = vadd.f32 %v10823, %v10824
  %11245 = vadd.xlane.f32.xlu0 %v11244
  %v11246 = vpop.xlane.xlu0 %11245
  %v11247 = vadd.f32 %v10825, %v10826
  %11248 = vadd.xlane.f32.xlu0 %v11247
  %v11249 = vpop.xlane.xlu0 %11248
  %v11250 = vadd.f32 %v10827, %v10828
  %11251 = vadd.xlane.f32.xlu0 %v11250
  %v11252 = vpop.xlane.xlu0 %11251
  %v11253 = vadd.f32 %v10829, %v10830
  %11254 = vadd.xlane.f32.xlu0 %v11253
  %v11255 = vpop.xlane.xlu0 %11254
  %v11256 = vadd.f32 %v10831, %v10832
  %11257 = vadd.xlane.f32.xlu0 %v11256
  %v11258 = vpop.xlane.xlu0 %11257
  %v11259 = vadd.f32 %v10833, %v10834
  %11260 = vadd.xlane.f32.xlu0 %v11259
  %v11261 = vpop.xlane.xlu0 %11260
  %v11262 = vadd.f32 %v10835, %v10836
  %11263 = vadd.xlane.f32.xlu0 %v11262
  %v11264 = vpop.xlane.xlu0 %11263
  %v11265 = vadd.f32 %v10837, %v10838
  %11266 = vadd.xlane.f32.xlu0 %v11265
  %v11267 = vpop.xlane.xlu0 %11266
  %v11268 = vadd.f32 %v10839, %v10840
  %11269 = vadd.xlane.f32.xlu0 %v11268
  %v11270 = vpop.xlane.xlu0 %11269
  %v11271 = vadd.f32 %v10841, %v10842
  %11272 = vadd.xlane.f32.xlu0 %v11271
  %v11273 = vpop.xlane.xlu0 %11272
  %v11274 = vadd.f32 %v10843, %v10844
  %11275 = vadd.xlane.f32.xlu0 %v11274
  %v11276 = vpop.xlane.xlu0 %11275
  %v11277 = vadd.f32 %v10845, %v10846
  %11278 = vadd.xlane.f32.xlu0 %v11277
  %v11279 = vpop.xlane.xlu0 %11278
  %v11280 = vadd.f32 %v10847, %v10848
  %11281 = vadd.xlane.f32.xlu0 %v11280
  %v11282 = vpop.xlane.xlu0 %11281
  %v11283 = vadd.f32 %v10849, %v10850
  %11284 = vadd.xlane.f32.xlu0 %v11283
  %v11285 = vpop.xlane.xlu0 %11284
  %v11286 = vadd.f32 %v10851, %v10852
  %11287 = vadd.xlane.f32.xlu0 %v11286
  %v11288 = vpop.xlane.xlu0 %11287
  %v11289 = vadd.f32 %v10853, %v10854
  %11290 = vadd.xlane.f32.xlu0 %v11289
  %v11291 = vpop.xlane.xlu0 %11290
  %v11292 = vadd.f32 %v10855, %v10856
  %11293 = vadd.xlane.f32.xlu0 %v11292
  %v11294 = vpop.xlane.xlu0 %11293
  %v11295 = vadd.f32 %v10857, %v10858
  %11296 = vadd.xlane.f32.xlu0 %v11295
  %v11297 = vpop.xlane.xlu0 %11296
  %v11298 = vadd.f32 %v10859, %v10860
  %11299 = vadd.xlane.f32.xlu0 %v11298
  %v11300 = vpop.xlane.xlu0 %11299
  %v11301 = vadd.f32 %v10861, %v10862
  %11302 = vadd.xlane.f32.xlu0 %v11301
  %v11303 = vpop.xlane.xlu0 %11302
  %v11304 = vadd.f32 %v10863, %v10864
  %11305 = vadd.xlane.f32.xlu0 %v11304
  %v11306 = vpop.xlane.xlu0 %11305
  %v11307 = vadd.f32 %v10865, %v10866
  %11308 = vadd.xlane.f32.xlu0 %v11307
  %v11309 = vpop.xlane.xlu0 %11308
  %v11310 = vadd.f32 %v10867, %v10868
  %11311 = vadd.xlane.f32.xlu0 %v11310
  %v11312 = vpop.xlane.xlu0 %11311
  %v11313 = vadd.f32 %v10869, %v10870
  %11314 = vadd.xlane.f32.xlu0 %v11313
  %v11315 = vpop.xlane.xlu0 %11314
  %v11316 = vadd.f32 %v10871, %v10872
  %11317 = vadd.xlane.f32.xlu0 %v11316
  %v11318 = vpop.xlane.xlu0 %11317
  %v11319 = vadd.f32 %v10873, %v10874
  %11320 = vadd.xlane.f32.xlu0 %v11319
  %v11321 = vpop.xlane.xlu0 %11320
  %v11322 = vadd.f32 %v10875, %v10876
  %11323 = vadd.xlane.f32.xlu0 %v11322
  %v11324 = vpop.xlane.xlu0 %11323
  %v11325 = vadd.f32 %v10877, %v10878
  %11326 = vadd.xlane.f32.xlu0 %v11325
  %v11327 = vpop.xlane.xlu0 %11326
  %v11328 = vadd.f32 %v10879, %v10880
  %11329 = vadd.xlane.f32.xlu0 %v11328
  %v11330 = vpop.xlane.xlu0 %11329
  %v11331 = vadd.f32 %v10881, %v10882
  %11332 = vadd.xlane.f32.xlu0 %v11331
  %v11333 = vpop.xlane.xlu0 %11332
  %v11334 = vadd.f32 %v10883, %v10884
  %11335 = vadd.xlane.f32.xlu0 %v11334
  %v11336 = vpop.xlane.xlu0 %11335
  %v11337 = vadd.f32 %v10885, %v10886
  %11338 = vadd.xlane.f32.xlu0 %v11337
  %v11339 = vpop.xlane.xlu0 %11338
  %v11340 = vadd.f32 %v10887, %v10888
  %11341 = vadd.xlane.f32.xlu0 %v11340
  %v11342 = vpop.xlane.xlu0 %11341
  %v11343 = vadd.f32 %v10889, %v10890
  %11344 = vadd.xlane.f32.xlu0 %v11343
  %v11345 = vpop.xlane.xlu0 %11344
  %v11346 = vadd.f32 %v10891, %v10892
  %11347 = vadd.xlane.f32.xlu0 %v11346
  %v11348 = vpop.xlane.xlu0 %11347
  %v11349 = vadd.f32 %v10893, %v10894
  %11350 = vadd.xlane.f32.xlu0 %v11349
  %v11351 = vpop.xlane.xlu0 %11350
  %v11352 = vadd.f32 %v10895, %v10896
  %11353 = vadd.xlane.f32.xlu0 %v11352
  %v11354 = vpop.xlane.xlu0 %11353
  %v11355 = vadd.f32 %v10897, %v10898
  %11356 = vadd.xlane.f32.xlu0 %v11355
  %v11357 = vpop.xlane.xlu0 %11356
  %v11358 = vadd.f32 %v10899, %v10900
  %11359 = vadd.xlane.f32.xlu0 %v11358
  %v11360 = vpop.xlane.xlu0 %11359
  %v11361 = vadd.f32 %v10901, %v10902
  %11362 = vadd.xlane.f32.xlu0 %v11361
  %v11363 = vpop.xlane.xlu0 %11362
  %v11364 = vadd.f32 %v10903, %v10904
  %11365 = vadd.xlane.f32.xlu0 %v11364
  %v11366 = vpop.xlane.xlu0 %11365
  %v11367 = vadd.f32 %v10905, %v10906
  %11368 = vadd.xlane.f32.xlu0 %v11367
  %v11369 = vpop.xlane.xlu0 %11368
  %v11370 = vadd.f32 %v10907, %v10908
  %11371 = vadd.xlane.f32.xlu0 %v11370
  %v11372 = vpop.xlane.xlu0 %11371
  %v11373 = vadd.f32 %v10909, %v10910
  %11374 = vadd.xlane.f32.xlu0 %v11373
  %v11375 = vpop.xlane.xlu0 %11374
  %v11376 = vadd.f32 %v10911, %v10912
  %11377 = vadd.xlane.f32.xlu0 %v11376
  %v11378 = vpop.xlane.xlu0 %11377
  %v11379 = vadd.f32 %v10913, %v10914
  %11380 = vadd.xlane.f32.xlu0 %v11379
  %v11381 = vpop.xlane.xlu0 %11380
  %v11382 = vadd.f32 %v10915, %v10916
  %11383 = vadd.xlane.f32.xlu0 %v11382
  %v11384 = vpop.xlane.xlu0 %11383
  %v11385 = vadd.f32 %v10917, %v10918
  %11386 = vadd.xlane.f32.xlu0 %v11385
  %v11387 = vpop.xlane.xlu0 %11386
  %v11388 = vadd.f32 %v10919, %v10920
  %11389 = vadd.xlane.f32.xlu0 %v11388
  %v11390 = vpop.xlane.xlu0 %11389
  %v11391 = vadd.f32 %v10921, %v10922
  %11392 = vadd.xlane.f32.xlu0 %v11391
  %v11393 = vpop.xlane.xlu0 %11392
  %v11394 = vadd.f32 %v10923, %v10924
  %11395 = vadd.xlane.f32.xlu0 %v11394
  %v11396 = vpop.xlane.xlu0 %11395
  %v11397 = vadd.f32 %v10925, %v10926
  %11398 = vadd.xlane.f32.xlu0 %v11397
  %v11399 = vpop.xlane.xlu0 %11398
  %v11400 = vadd.f32 %v10927, %v10928
  %11401 = vadd.xlane.f32.xlu0 %v11400
  %v11402 = vpop.xlane.xlu0 %11401
  %v11403 = vadd.f32 %v10929, %v10930
  %11404 = vadd.xlane.f32.xlu0 %v11403
  %v11405 = vpop.xlane.xlu0 %11404
  %v11406 = vadd.f32 %v10931, %v10932
  %11407 = vadd.xlane.f32.xlu0 %v11406
  %v11408 = vpop.xlane.xlu0 %11407
  %v11409 = vadd.f32 %v10933, %v10934
  %11410 = vadd.xlane.f32.xlu0 %v11409
  %v11411 = vpop.xlane.xlu0 %11410
  %v11412 = vadd.f32 %v10935, %v10936
  %11413 = vadd.xlane.f32.xlu0 %v11412
  %v11414 = vpop.xlane.xlu0 %11413
  %v11415 = vadd.f32 %v10937, %v10938
  %11416 = vadd.xlane.f32.xlu0 %v11415
  %v11417 = vpop.xlane.xlu0 %11416
  %v11418 = vadd.f32 %v10939, %v10940
  %11419 = vadd.xlane.f32.xlu0 %v11418
  %v11420 = vpop.xlane.xlu0 %11419
  %v11421 = vadd.f32 %v5727, %v10943
  %v11422 = vadd.f32 %v5728, %v10946
  %v11423 = vadd.f32 %v5729, %v10949
  %v11424 = vadd.f32 %v5730, %v10952
  %v11425 = vadd.f32 %v5731, %v10955
  %v11426 = vadd.f32 %v5732, %v10958
  %v11427 = vadd.f32 %v5733, %v10961
  %v11428 = vadd.f32 %v5734, %v10964
  %v11429 = vadd.f32 %v5735, %v10967
  %v11430 = vadd.f32 %v5736, %v10970
  %v11431 = vadd.f32 %v5737, %v10973
  %v11432 = vadd.f32 %v5738, %v10976
  %v11433 = vadd.f32 %v5739, %v10979
  %v11434 = vadd.f32 %v5740, %v10982
  %v11435 = vadd.f32 %v5741, %v10985
  %v11436 = vadd.f32 %v5742, %v10988
  %v11437 = vadd.f32 %v5743, %v10991
  %v11438 = vadd.f32 %v5744, %v10994
  %v11439 = vadd.f32 %v5745, %v10997
  %v11440 = vadd.f32 %v5746, %v11000
  %v11441 = vadd.f32 %v5747, %v11003
  %v11442 = vadd.f32 %v5748, %v11006
  %v11443 = vadd.f32 %v5749, %v11009
  %v11444 = vadd.f32 %v5750, %v11012
  %v11445 = vadd.f32 %v5751, %v11015
  %v11446 = vadd.f32 %v5752, %v11018
  %v11447 = vadd.f32 %v5753, %v11021
  %v11448 = vadd.f32 %v5754, %v11024
  %v11449 = vadd.f32 %v5755, %v11027
  %v11450 = vadd.f32 %v5756, %v11030
  %v11451 = vadd.f32 %v5757, %v11033
  %v11452 = vadd.f32 %v5758, %v11036
  %v11453 = vadd.f32 %v5759, %v11039
  %v11454 = vadd.f32 %v5760, %v11042
  %v11455 = vadd.f32 %v5761, %v11045
  %v11456 = vadd.f32 %v5762, %v11048
  %v11457 = vadd.f32 %v5763, %v11051
  %v11458 = vadd.f32 %v5764, %v11054
  %v11459 = vadd.f32 %v5765, %v11057
  %v11460 = vadd.f32 %v5766, %v11060
  %v11461 = vadd.f32 %v5767, %v11063
  %v11462 = vadd.f32 %v5768, %v11066
  %v11463 = vadd.f32 %v5769, %v11069
  %v11464 = vadd.f32 %v5770, %v11072
  %v11465 = vadd.f32 %v5771, %v11075
  %v11466 = vadd.f32 %v5772, %v11078
  %v11467 = vadd.f32 %v5773, %v11081
  %v11468 = vadd.f32 %v5774, %v11084
  %v11469 = vadd.f32 %v5775, %v11087
  %v11470 = vadd.f32 %v5776, %v11090
  %v11471 = vadd.f32 %v5777, %v11093
  %v11472 = vadd.f32 %v5778, %v11096
  %v11473 = vadd.f32 %v5779, %v11099
  %v11474 = vadd.f32 %v5780, %v11102
  %v11475 = vadd.f32 %v5781, %v11105
  %v11476 = vadd.f32 %v5782, %v11108
  %v11477 = vadd.f32 %v5783, %v11111
  %v11478 = vadd.f32 %v5784, %v11114
  %v11479 = vadd.f32 %v5785, %v11117
  %v11480 = vadd.f32 %v5786, %v11120
  %v11481 = vadd.f32 %v5787, %v11123
  %v11482 = vadd.f32 %v5788, %v11126
  %v11483 = vadd.f32 %v5789, %v11129
  %v11484 = vadd.f32 %v5790, %v11132
  %v11485 = vadd.f32 %v5791, %v11135
  %v11486 = vadd.f32 %v5792, %v11138
  %v11487 = vadd.f32 %v5793, %v11141
  %v11488 = vadd.f32 %v5794, %v11144
  %v11489 = vadd.f32 %v5795, %v11147
  %v11490 = vadd.f32 %v5796, %v11150
  %v11491 = vadd.f32 %v5797, %v11153
  %v11492 = vadd.f32 %v5798, %v11156
  %v11493 = vadd.f32 %v5799, %v11159
  %v11494 = vadd.f32 %v5800, %v11162
  %v11495 = vadd.f32 %v5801, %v11165
  %v11496 = vadd.f32 %v5802, %v11168
  %v11497 = vadd.f32 %v5803, %v11171
  %v11498 = vadd.f32 %v5804, %v11174
  %v11499 = vadd.f32 %v5805, %v11177
  %v11500 = vadd.f32 %v5806, %v11180
  %v11501 = vadd.f32 %v5807, %v11183
  %v11502 = vadd.f32 %v5808, %v11186
  %v11503 = vadd.f32 %v5809, %v11189
  %v11504 = vadd.f32 %v5810, %v11192
  %v11505 = vadd.f32 %v5811, %v11195
  %v11506 = vadd.f32 %v5812, %v11198
  %v11507 = vadd.f32 %v5813, %v11201
  %v11508 = vadd.f32 %v5814, %v11204
  %v11509 = vadd.f32 %v5815, %v11207
  %v11510 = vadd.f32 %v5816, %v11210
  %v11511 = vadd.f32 %v5817, %v11213
  %v11512 = vadd.f32 %v5818, %v11216
  %v11513 = vadd.f32 %v5819, %v11219
  %v11514 = vadd.f32 %v5820, %v11222
  %v11515 = vadd.f32 %v5821, %v11225
  %v11516 = vadd.f32 %v5822, %v11228
  %v11517 = vadd.f32 %v5823, %v11231
  %v11518 = vadd.f32 %v5824, %v11234
  %v11519 = vadd.f32 %v5825, %v11237
  %v11520 = vadd.f32 %v5826, %v11240
  %v11521 = vadd.f32 %v5827, %v11243
  %v11522 = vadd.f32 %v5828, %v11246
  %v11523 = vadd.f32 %v5829, %v11249
  %v11524 = vadd.f32 %v5830, %v11252
  %v11525 = vadd.f32 %v5831, %v11255
  %v11526 = vadd.f32 %v5832, %v11258
  %v11527 = vadd.f32 %v5833, %v11261
  %v11528 = vadd.f32 %v5834, %v11264
  %v11529 = vadd.f32 %v5835, %v11267
  %v11530 = vadd.f32 %v5836, %v11270
  %v11531 = vadd.f32 %v5837, %v11273
  %v11532 = vadd.f32 %v5838, %v11276
  %v11533 = vadd.f32 %v5839, %v11279
  %v11534 = vadd.f32 %v5840, %v11282
  %v11535 = vadd.f32 %v5841, %v11285
  %v11536 = vadd.f32 %v5842, %v11288
  %v11537 = vadd.f32 %v5843, %v11291
  %v11538 = vadd.f32 %v5844, %v11294
  %v11539 = vadd.f32 %v5845, %v11297
  %v11540 = vadd.f32 %v5846, %v11300
  %v11541 = vadd.f32 %v5847, %v11303
  %v11542 = vadd.f32 %v5848, %v11306
  %v11543 = vadd.f32 %v5849, %v11309
  %v11544 = vadd.f32 %v5850, %v11312
  %v11545 = vadd.f32 %v5851, %v11315
  %v11546 = vadd.f32 %v5852, %v11318
  %v11547 = vadd.f32 %v5853, %v11321
  %v11548 = vadd.f32 %v5854, %v11324
  %v11549 = vadd.f32 %v5855, %v11327
  %v11550 = vadd.f32 %v5856, %v11330
  %v11551 = vadd.f32 %v5857, %v11333
  %v11552 = vadd.f32 %v5858, %v11336
  %v11553 = vadd.f32 %v5859, %v11339
  %v11554 = vadd.f32 %v5860, %v11342
  %v11555 = vadd.f32 %v5861, %v11345
  %v11556 = vadd.f32 %v5862, %v11348
  %v11557 = vadd.f32 %v5863, %v11351
  %v11558 = vadd.f32 %v5864, %v11354
  %v11559 = vadd.f32 %v5865, %v11357
  %v11560 = vadd.f32 %v5866, %v11360
  %v11561 = vadd.f32 %v5867, %v11363
  %v11562 = vadd.f32 %v5868, %v11366
  %v11563 = vadd.f32 %v5869, %v11369
  %v11564 = vadd.f32 %v5870, %v11372
  %v11565 = vadd.f32 %v5871, %v11375
  %v11566 = vadd.f32 %v5872, %v11378
  %v11567 = vadd.f32 %v5873, %v11381
  %v11568 = vadd.f32 %v5874, %v11384
  %v11569 = vadd.f32 %v5875, %v11387
  %v11570 = vadd.f32 %v5876, %v11390
  %v11571 = vadd.f32 %v5877, %v11393
  %v11572 = vadd.f32 %v5878, %v11396
  %v11573 = vadd.f32 %v5879, %v11399
  %v11574 = vadd.f32 %v5880, %v11402
  %v11575 = vadd.f32 %v5881, %v11405
  %v11576 = vadd.f32 %v5882, %v11408
  %v11577 = vadd.f32 %v5883, %v11411
  %v11578 = vadd.f32 %v5884, %v11414
  %v11579 = vadd.f32 %v5885, %v11417
  %v11580 = vadd.f32 %v5886, %v11420
  %v11581 = vld [vmem:[#allocation2] sm:$0xff]
  %v11582 = vld [vmem:[#allocation2 + $0x8] sm:$0xff]
  %v11583 = vld [vmem:[#allocation2 + $0x10] sm:$0xff]
  %v11584 = vld [vmem:[#allocation2 + $0x18] sm:$0xff]
  %v11585 = vld [vmem:[#allocation2 + $0x20] sm:$0xff]
  %v11586 = vld [vmem:[#allocation2 + $0x28] sm:$0xff]
  %v11587 = vld [vmem:[#allocation2 + $0x30] sm:$0xff]
  %v11588 = vld [vmem:[#allocation2 + $0x38] sm:$0xff]
  %v11589 = vld [vmem:[#allocation2 + $0x40] sm:$0xff]
  %v11590 = vld [vmem:[#allocation2 + $0x48] sm:$0xff]
  %v11591 = vld [vmem:[#allocation2 + $0x50] sm:$0xff]
  %v11592 = vld [vmem:[#allocation2 + $0x58] sm:$0xff]
  %v11593 = vld [vmem:[#allocation2 + $0x60] sm:$0xff]
  %v11594 = vld [vmem:[#allocation2 + $0x68] sm:$0xff]
  %v11595 = vld [vmem:[#allocation2 + $0x70] sm:$0xff]
  %v11596 = vld [vmem:[#allocation2 + $0x78] sm:$0xff]
  %v11597 = vld [vmem:[#allocation2 + $0x80] sm:$0xff]
  %v11598 = vld [vmem:[#allocation2 + $0x88] sm:$0xff]
  %v11599 = vld [vmem:[#allocation2 + $0x90] sm:$0xff]
  %v11600 = vld [vmem:[#allocation2 + $0x98] sm:$0xff]
  %v11601 = vld [vmem:[#allocation2 + $0xa0] sm:$0xff]
  %v11602 = vld [vmem:[#allocation2 + $0xa8] sm:$0xff]
  %v11603 = vld [vmem:[#allocation2 + $0xb0] sm:$0xff]
  %v11604 = vld [vmem:[#allocation2 + $0xb8] sm:$0xff]
  %v11605 = vld [vmem:[#allocation2 + $0xc0] sm:$0xff]
  %v11606 = vld [vmem:[#allocation2 + $0xc8] sm:$0xff]
  %v11607 = vld [vmem:[#allocation2 + $0xd0] sm:$0xff]
  %v11608 = vld [vmem:[#allocation2 + $0xd8] sm:$0xff]
  %v11609 = vld [vmem:[#allocation2 + $0xe0] sm:$0xff]
  %v11610 = vld [vmem:[#allocation2 + $0xe8] sm:$0xff]
  %v11611 = vld [vmem:[#allocation2 + $0xf0] sm:$0xff]
  %v11612 = vld [vmem:[#allocation2 + $0xf8] sm:$0xff]
  %v11613 = vld [vmem:[#allocation2 + $0x100] sm:$0xff]
  %v11614 = vld [vmem:[#allocation2 + $0x108] sm:$0xff]
  %v11615 = vld [vmem:[#allocation2 + $0x110] sm:$0xff]
  %v11616 = vld [vmem:[#allocation2 + $0x118] sm:$0xff]
  %v11617 = vld [vmem:[#allocation2 + $0x120] sm:$0xff]
  %v11618 = vld [vmem:[#allocation2 + $0x128] sm:$0xff]
  %v11619 = vld [vmem:[#allocation2 + $0x130] sm:$0xff]
  %v11620 = vld [vmem:[#allocation2 + $0x138] sm:$0xff]
  %v11621 = vld [vmem:[#allocation2 + $0x140] sm:$0xff]
  %v11622 = vld [vmem:[#allocation2 + $0x148] sm:$0xff]
  %v11623 = vld [vmem:[#allocation2 + $0x150] sm:$0xff]
  %v11624 = vld [vmem:[#allocation2 + $0x158] sm:$0xff]
  %v11625 = vld [vmem:[#allocation2 + $0x160] sm:$0xff]
  %v11626 = vld [vmem:[#allocation2 + $0x168] sm:$0xff]
  %v11627 = vld [vmem:[#allocation2 + $0x170] sm:$0xff]
  %v11628 = vld [vmem:[#allocation2 + $0x178] sm:$0xff]
  %v11629 = vld [vmem:[#allocation2 + $0x180] sm:$0xff]
  %v11630 = vld [vmem:[#allocation2 + $0x188] sm:$0xff]
  %v11631 = vld [vmem:[#allocation2 + $0x190] sm:$0xff]
  %v11632 = vld [vmem:[#allocation2 + $0x198] sm:$0xff]
  %v11633 = vld [vmem:[#allocation2 + $0x1a0] sm:$0xff]
  %v11634 = vld [vmem:[#allocation2 + $0x1a8] sm:$0xff]
  %v11635 = vld [vmem:[#allocation2 + $0x1b0] sm:$0xff]
  %v11636 = vld [vmem:[#allocation2 + $0x1b8] sm:$0xff]
  %v11637 = vld [vmem:[#allocation2 + $0x1c0] sm:$0xff]
  %v11638 = vld [vmem:[#allocation2 + $0x1c8] sm:$0xff]
  %v11639 = vld [vmem:[#allocation2 + $0x1d0] sm:$0xff]
  %v11640 = vld [vmem:[#allocation2 + $0x1d8] sm:$0xff]
  %v11641 = vld [vmem:[#allocation2 + $0x1e0] sm:$0xff]
  %v11642 = vld [vmem:[#allocation2 + $0x1e8] sm:$0xff]
  %v11643 = vld [vmem:[#allocation2 + $0x1f0] sm:$0xff]
  %v11644 = vld [vmem:[#allocation2 + $0x1f8] sm:$0xff]
  %v11645 = vld [vmem:[#allocation2 + $0x200] sm:$0xff]
  %v11646 = vld [vmem:[#allocation2 + $0x208] sm:$0xff]
  %v11647 = vld [vmem:[#allocation2 + $0x210] sm:$0xff]
  %v11648 = vld [vmem:[#allocation2 + $0x218] sm:$0xff]
  %v11649 = vld [vmem:[#allocation2 + $0x220] sm:$0xff]
  %v11650 = vld [vmem:[#allocation2 + $0x228] sm:$0xff]
  %v11651 = vld [vmem:[#allocation2 + $0x230] sm:$0xff]
  %v11652 = vld [vmem:[#allocation2 + $0x238] sm:$0xff]
  %v11653 = vld [vmem:[#allocation2 + $0x240] sm:$0xff]
  %v11654 = vld [vmem:[#allocation2 + $0x248] sm:$0xff]
  %v11655 = vld [vmem:[#allocation2 + $0x250] sm:$0xff]
  %v11656 = vld [vmem:[#allocation2 + $0x258] sm:$0xff]
  %v11657 = vld [vmem:[#allocation2 + $0x260] sm:$0xff]
  %v11658 = vld [vmem:[#allocation2 + $0x268] sm:$0xff]
  %v11659 = vld [vmem:[#allocation2 + $0x270] sm:$0xff]
  %v11660 = vld [vmem:[#allocation2 + $0x278] sm:$0xff]
  %v11661 = vld [vmem:[#allocation2 + $0x280] sm:$0xff]
  %v11662 = vld [vmem:[#allocation2 + $0x288] sm:$0xff]
  %v11663 = vld [vmem:[#allocation2 + $0x290] sm:$0xff]
  %v11664 = vld [vmem:[#allocation2 + $0x298] sm:$0xff]
  %v11665 = vld [vmem:[#allocation2 + $0x2a0] sm:$0xff]
  %v11666 = vld [vmem:[#allocation2 + $0x2a8] sm:$0xff]
  %v11667 = vld [vmem:[#allocation2 + $0x2b0] sm:$0xff]
  %v11668 = vld [vmem:[#allocation2 + $0x2b8] sm:$0xff]
  %v11669 = vld [vmem:[#allocation2 + $0x2c0] sm:$0xff]
  %v11670 = vld [vmem:[#allocation2 + $0x2c8] sm:$0xff]
  %v11671 = vld [vmem:[#allocation2 + $0x2d0] sm:$0xff]
  %v11672 = vld [vmem:[#allocation2 + $0x2d8] sm:$0xff]
  %v11673 = vld [vmem:[#allocation2 + $0x2e0] sm:$0xff]
  %v11674 = vld [vmem:[#allocation2 + $0x2e8] sm:$0xff]
  %v11675 = vld [vmem:[#allocation2 + $0x2f0] sm:$0xff]
  %v11676 = vld [vmem:[#allocation2 + $0x2f8] sm:$0xff]
  %v11677 = vld [vmem:[#allocation2 + $0x300] sm:$0xff]
  %v11678 = vld [vmem:[#allocation2 + $0x308] sm:$0xff]
  %v11679 = vld [vmem:[#allocation2 + $0x310] sm:$0xff]
  %v11680 = vld [vmem:[#allocation2 + $0x318] sm:$0xff]
  %v11681 = vld [vmem:[#allocation2 + $0x320] sm:$0xff]
  %v11682 = vld [vmem:[#allocation2 + $0x328] sm:$0xff]
  %v11683 = vld [vmem:[#allocation2 + $0x330] sm:$0xff]
  %v11684 = vld [vmem:[#allocation2 + $0x338] sm:$0xff]
  %v11685 = vld [vmem:[#allocation2 + $0x340] sm:$0xff]
  %v11686 = vld [vmem:[#allocation2 + $0x348] sm:$0xff]
  %v11687 = vld [vmem:[#allocation2 + $0x350] sm:$0xff]
  %v11688 = vld [vmem:[#allocation2 + $0x358] sm:$0xff]
  %v11689 = vld [vmem:[#allocation2 + $0x360] sm:$0xff]
  %v11690 = vld [vmem:[#allocation2 + $0x368] sm:$0xff]
  %v11691 = vld [vmem:[#allocation2 + $0x370] sm:$0xff]
  %v11692 = vld [vmem:[#allocation2 + $0x378] sm:$0xff]
  %v11693 = vld [vmem:[#allocation2 + $0x380] sm:$0xff]
  %v11694 = vld [vmem:[#allocation2 + $0x388] sm:$0xff]
  %v11695 = vld [vmem:[#allocation2 + $0x390] sm:$0xff]
  %v11696 = vld [vmem:[#allocation2 + $0x398] sm:$0xff]
  %v11697 = vld [vmem:[#allocation2 + $0x3a0] sm:$0xff]
  %v11698 = vld [vmem:[#allocation2 + $0x3a8] sm:$0xff]
  %v11699 = vld [vmem:[#allocation2 + $0x3b0] sm:$0xff]
  %v11700 = vld [vmem:[#allocation2 + $0x3b8] sm:$0xff]
  %v11701 = vld [vmem:[#allocation2 + $0x3c0] sm:$0xff]
  %v11702 = vld [vmem:[#allocation2 + $0x3c8] sm:$0xff]
  %v11703 = vld [vmem:[#allocation2 + $0x3d0] sm:$0xff]
  %v11704 = vld [vmem:[#allocation2 + $0x3d8] sm:$0xff]
  %v11705 = vld [vmem:[#allocation2 + $0x3e0] sm:$0xff]
  %v11706 = vld [vmem:[#allocation2 + $0x3e8] sm:$0xff]
  %v11707 = vld [vmem:[#allocation2 + $0x3f0] sm:$0xff]
  %v11708 = vld [vmem:[#allocation2 + $0x3f8] sm:$0xff]
  %v11709 = vld [vmem:[#allocation2 + $0x400] sm:$0xff]
  %v11710 = vld [vmem:[#allocation2 + $0x408] sm:$0xff]
  %v11711 = vld [vmem:[#allocation2 + $0x410] sm:$0xff]
  %v11712 = vld [vmem:[#allocation2 + $0x418] sm:$0xff]
  %v11713 = vld [vmem:[#allocation2 + $0x420] sm:$0xff]
  %v11714 = vld [vmem:[#allocation2 + $0x428] sm:$0xff]
  %v11715 = vld [vmem:[#allocation2 + $0x430] sm:$0xff]
  %v11716 = vld [vmem:[#allocation2 + $0x438] sm:$0xff]
  %v11717 = vld [vmem:[#allocation2 + $0x440] sm:$0xff]
  %v11718 = vld [vmem:[#allocation2 + $0x448] sm:$0xff]
  %v11719 = vld [vmem:[#allocation2 + $0x450] sm:$0xff]
  %v11720 = vld [vmem:[#allocation2 + $0x458] sm:$0xff]
  %v11721 = vld [vmem:[#allocation2 + $0x460] sm:$0xff]
  %v11722 = vld [vmem:[#allocation2 + $0x468] sm:$0xff]
  %v11723 = vld [vmem:[#allocation2 + $0x470] sm:$0xff]
  %v11724 = vld [vmem:[#allocation2 + $0x478] sm:$0xff]
  %v11725 = vld [vmem:[#allocation2 + $0x480] sm:$0xff]
  %v11726 = vld [vmem:[#allocation2 + $0x488] sm:$0xff]
  %v11727 = vld [vmem:[#allocation2 + $0x490] sm:$0xff]
  %v11728 = vld [vmem:[#allocation2 + $0x498] sm:$0xff]
  %v11729 = vld [vmem:[#allocation2 + $0x4a0] sm:$0xff]
  %v11730 = vld [vmem:[#allocation2 + $0x4a8] sm:$0xff]
  %v11731 = vld [vmem:[#allocation2 + $0x4b0] sm:$0xff]
  %v11732 = vld [vmem:[#allocation2 + $0x4b8] sm:$0xff]
  %v11733 = vld [vmem:[#allocation2 + $0x4c0] sm:$0xff]
  %v11734 = vld [vmem:[#allocation2 + $0x4c8] sm:$0xff]
  %v11735 = vld [vmem:[#allocation2 + $0x4d0] sm:$0xff]
  %v11736 = vld [vmem:[#allocation2 + $0x4d8] sm:$0xff]
  %v11737 = vld [vmem:[#allocation2 + $0x4e0] sm:$0xff]
  %v11738 = vld [vmem:[#allocation2 + $0x4e8] sm:$0xff]
  %v11739 = vld [vmem:[#allocation2 + $0x4f0] sm:$0xff]
  %v11740 = vld [vmem:[#allocation2 + $0x4f8] sm:$0xff]
  %v11741 = vadd.f32 %v11581, %v11421
  %v11742 = vadd.f32 %v11582, %v11422
  %v11743 = vadd.f32 %v11583, %v11423
  %v11744 = vadd.f32 %v11584, %v11424
  %v11745 = vadd.f32 %v11585, %v11425
  %v11746 = vadd.f32 %v11586, %v11426
  %v11747 = vadd.f32 %v11587, %v11427
  %v11748 = vadd.f32 %v11588, %v11428
  %v11749 = vadd.f32 %v11589, %v11429
  %v11750 = vadd.f32 %v11590, %v11430
  %v11751 = vadd.f32 %v11591, %v11431
  %v11752 = vadd.f32 %v11592, %v11432
  %v11753 = vadd.f32 %v11593, %v11433
  %v11754 = vadd.f32 %v11594, %v11434
  %v11755 = vadd.f32 %v11595, %v11435
  %v11756 = vadd.f32 %v11596, %v11436
  %v11757 = vadd.f32 %v11597, %v11437
  %v11758 = vadd.f32 %v11598, %v11438
  %v11759 = vadd.f32 %v11599, %v11439
  %v11760 = vadd.f32 %v11600, %v11440
  %v11761 = vadd.f32 %v11601, %v11441
  %v11762 = vadd.f32 %v11602, %v11442
  %v11763 = vadd.f32 %v11603, %v11443
  %v11764 = vadd.f32 %v11604, %v11444
  %v11765 = vadd.f32 %v11605, %v11445
  %v11766 = vadd.f32 %v11606, %v11446
  %v11767 = vadd.f32 %v11607, %v11447
  %v11768 = vadd.f32 %v11608, %v11448
  %v11769 = vadd.f32 %v11609, %v11449
  %v11770 = vadd.f32 %v11610, %v11450
  %v11771 = vadd.f32 %v11611, %v11451
  %v11772 = vadd.f32 %v11612, %v11452
  %v11773 = vadd.f32 %v11613, %v11453
  %v11774 = vadd.f32 %v11614, %v11454
  %v11775 = vadd.f32 %v11615, %v11455
  %v11776 = vadd.f32 %v11616, %v11456
  %v11777 = vadd.f32 %v11617, %v11457
  %v11778 = vadd.f32 %v11618, %v11458
  %v11779 = vadd.f32 %v11619, %v11459
  %v11780 = vadd.f32 %v11620, %v11460
  %v11781 = vadd.f32 %v11621, %v11461
  %v11782 = vadd.f32 %v11622, %v11462
  %v11783 = vadd.f32 %v11623, %v11463
  %v11784 = vadd.f32 %v11624, %v11464
  %v11785 = vadd.f32 %v11625, %v11465
  %v11786 = vadd.f32 %v11626, %v11466
  %v11787 = vadd.f32 %v11627, %v11467
  %v11788 = vadd.f32 %v11628, %v11468
  %v11789 = vadd.f32 %v11629, %v11469
  %v11790 = vadd.f32 %v11630, %v11470
  %v11791 = vadd.f32 %v11631, %v11471
  %v11792 = vadd.f32 %v11632, %v11472
  %v11793 = vadd.f32 %v11633, %v11473
  %v11794 = vadd.f32 %v11634, %v11474
  %v11795 = vadd.f32 %v11635, %v11475
  %v11796 = vadd.f32 %v11636, %v11476
  %v11797 = vadd.f32 %v11637, %v11477
  %v11798 = vadd.f32 %v11638, %v11478
  %v11799 = vadd.f32 %v11639, %v11479
  %v11800 = vadd.f32 %v11640, %v11480
  %v11801 = vadd.f32 %v11641, %v11481
  %v11802 = vadd.f32 %v11642, %v11482
  %v11803 = vadd.f32 %v11643, %v11483
  %v11804 = vadd.f32 %v11644, %v11484
  %v11805 = vadd.f32 %v11645, %v11485
  %v11806 = vadd.f32 %v11646, %v11486
  %v11807 = vadd.f32 %v11647, %v11487
  %v11808 = vadd.f32 %v11648, %v11488
  %v11809 = vadd.f32 %v11649, %v11489
  %v11810 = vadd.f32 %v11650, %v11490
  %v11811 = vadd.f32 %v11651, %v11491
  %v11812 = vadd.f32 %v11652, %v11492
  %v11813 = vadd.f32 %v11653, %v11493
  %v11814 = vadd.f32 %v11654, %v11494
  %v11815 = vadd.f32 %v11655, %v11495
  %v11816 = vadd.f32 %v11656, %v11496
  %v11817 = vadd.f32 %v11657, %v11497
  %v11818 = vadd.f32 %v11658, %v11498
  %v11819 = vadd.f32 %v11659, %v11499
  %v11820 = vadd.f32 %v11660, %v11500
  %v11821 = vadd.f32 %v11661, %v11501
  %v11822 = vadd.f32 %v11662, %v11502
  %v11823 = vadd.f32 %v11663, %v11503
  %v11824 = vadd.f32 %v11664, %v11504
  %v11825 = vadd.f32 %v11665, %v11505
  %v11826 = vadd.f32 %v11666, %v11506
  %v11827 = vadd.f32 %v11667, %v11507
  %v11828 = vadd.f32 %v11668, %v11508
  %v11829 = vadd.f32 %v11669, %v11509
  %v11830 = vadd.f32 %v11670, %v11510
  %v11831 = vadd.f32 %v11671, %v11511
  %v11832 = vadd.f32 %v11672, %v11512
  %v11833 = vadd.f32 %v11673, %v11513
  %v11834 = vadd.f32 %v11674, %v11514
  %v11835 = vadd.f32 %v11675, %v11515
  %v11836 = vadd.f32 %v11676, %v11516
  %v11837 = vadd.f32 %v11677, %v11517
  %v11838 = vadd.f32 %v11678, %v11518
  %v11839 = vadd.f32 %v11679, %v11519
  %v11840 = vadd.f32 %v11680, %v11520
  %v11841 = vadd.f32 %v11681, %v11521
  %v11842 = vadd.f32 %v11682, %v11522
  %v11843 = vadd.f32 %v11683, %v11523
  %v11844 = vadd.f32 %v11684, %v11524
  %v11845 = vadd.f32 %v11685, %v11525
  %v11846 = vadd.f32 %v11686, %v11526
  %v11847 = vadd.f32 %v11687, %v11527
  %v11848 = vadd.f32 %v11688, %v11528
  %v11849 = vadd.f32 %v11689, %v11529
  %v11850 = vadd.f32 %v11690, %v11530
  %v11851 = vadd.f32 %v11691, %v11531
  %v11852 = vadd.f32 %v11692, %v11532
  %v11853 = vadd.f32 %v11693, %v11533
  %v11854 = vadd.f32 %v11694, %v11534
  %v11855 = vadd.f32 %v11695, %v11535
  %v11856 = vadd.f32 %v11696, %v11536
  %v11857 = vadd.f32 %v11697, %v11537
  %v11858 = vadd.f32 %v11698, %v11538
  %v11859 = vadd.f32 %v11699, %v11539
  %v11860 = vadd.f32 %v11700, %v11540
  %v11861 = vadd.f32 %v11701, %v11541
  %v11862 = vadd.f32 %v11702, %v11542
  %v11863 = vadd.f32 %v11703, %v11543
  %v11864 = vadd.f32 %v11704, %v11544
  %v11865 = vadd.f32 %v11705, %v11545
  %v11866 = vadd.f32 %v11706, %v11546
  %v11867 = vadd.f32 %v11707, %v11547
  %v11868 = vadd.f32 %v11708, %v11548
  %v11869 = vadd.f32 %v11709, %v11549
  %v11870 = vadd.f32 %v11710, %v11550
  %v11871 = vadd.f32 %v11711, %v11551
  %v11872 = vadd.f32 %v11712, %v11552
  %v11873 = vadd.f32 %v11713, %v11553
  %v11874 = vadd.f32 %v11714, %v11554
  %v11875 = vadd.f32 %v11715, %v11555
  %v11876 = vadd.f32 %v11716, %v11556
  %v11877 = vadd.f32 %v11717, %v11557
  %v11878 = vadd.f32 %v11718, %v11558
  %v11879 = vadd.f32 %v11719, %v11559
  %v11880 = vadd.f32 %v11720, %v11560
  %v11881 = vadd.f32 %v11721, %v11561
  %v11882 = vadd.f32 %v11722, %v11562
  %v11883 = vadd.f32 %v11723, %v11563
  %v11884 = vadd.f32 %v11724, %v11564
  %v11885 = vadd.f32 %v11725, %v11565
  %v11886 = vadd.f32 %v11726, %v11566
  %v11887 = vadd.f32 %v11727, %v11567
  %v11888 = vadd.f32 %v11728, %v11568
  %v11889 = vadd.f32 %v11729, %v11569
  %v11890 = vadd.f32 %v11730, %v11570
  %v11891 = vadd.f32 %v11731, %v11571
  %v11892 = vadd.f32 %v11732, %v11572
  %v11893 = vadd.f32 %v11733, %v11573
  %v11894 = vadd.f32 %v11734, %v11574
  %v11895 = vadd.f32 %v11735, %v11575
  %v11896 = vadd.f32 %v11736, %v11576
  %v11897 = vadd.f32 %v11737, %v11577
  %v11898 = vadd.f32 %v11738, %v11578
  %v11899 = vadd.f32 %v11739, %v11579
  %v11900 = vadd.f32 %v11740, %v11580
  %vm11901 = vcmask 7168
  %11902 = vst.msk [vmem:[#allocation2] sm:$0xff] %vm11901, %v11741
  %11903 = vst.msk [vmem:[#allocation2 + $0x8] sm:$0xff] %vm11901, %v11742
  %11904 = vst.msk [vmem:[#allocation2 + $0x10] sm:$0xff] %vm11901, %v11743
  %11905 = vst.msk [vmem:[#allocation2 + $0x18] sm:$0xff] %vm11901, %v11744
  %11906 = vst.msk [vmem:[#allocation2 + $0x20] sm:$0xff] %vm11901, %v11745
  %11907 = vst.msk [vmem:[#allocation2 + $0x28] sm:$0xff] %vm11901, %v11746
  %11908 = vst.msk [vmem:[#allocation2 + $0x30] sm:$0xff] %vm11901, %v11747
  %11909 = vst.msk [vmem:[#allocation2 + $0x38] sm:$0xff] %vm11901, %v11748
  %11910 = vst.msk [vmem:[#allocation2 + $0x40] sm:$0xff] %vm11901, %v11749
  %11911 = vst.msk [vmem:[#allocation2 + $0x48] sm:$0xff] %vm11901, %v11750
  %11912 = vst.msk [vmem:[#allocation2 + $0x50] sm:$0xff] %vm11901, %v11751
  %11913 = vst.msk [vmem:[#allocation2 + $0x58] sm:$0xff] %vm11901, %v11752
  %11914 = vst.msk [vmem:[#allocation2 + $0x60] sm:$0xff] %vm11901, %v11753
  %11915 = vst.msk [vmem:[#allocation2 + $0x68] sm:$0xff] %vm11901, %v11754
  %11916 = vst.msk [vmem:[#allocation2 + $0x70] sm:$0xff] %vm11901, %v11755
  %11917 = vst.msk [vmem:[#allocation2 + $0x78] sm:$0xff] %vm11901, %v11756
  %11918 = vst.msk [vmem:[#allocation2 + $0x80] sm:$0xff] %vm11901, %v11757
  %11919 = vst.msk [vmem:[#allocation2 + $0x88] sm:$0xff] %vm11901, %v11758
  %11920 = vst.msk [vmem:[#allocation2 + $0x90] sm:$0xff] %vm11901, %v11759
  %11921 = vst.msk [vmem:[#allocation2 + $0x98] sm:$0xff] %vm11901, %v11760
  %11922 = vst.msk [vmem:[#allocation2 + $0xa0] sm:$0xff] %vm11901, %v11761
  %11923 = vst.msk [vmem:[#allocation2 + $0xa8] sm:$0xff] %vm11901, %v11762
  %11924 = vst.msk [vmem:[#allocation2 + $0xb0] sm:$0xff] %vm11901, %v11763
  %11925 = vst.msk [vmem:[#allocation2 + $0xb8] sm:$0xff] %vm11901, %v11764
  %11926 = vst.msk [vmem:[#allocation2 + $0xc0] sm:$0xff] %vm11901, %v11765
  %11927 = vst.msk [vmem:[#allocation2 + $0xc8] sm:$0xff] %vm11901, %v11766
  %11928 = vst.msk [vmem:[#allocation2 + $0xd0] sm:$0xff] %vm11901, %v11767
  %11929 = vst.msk [vmem:[#allocation2 + $0xd8] sm:$0xff] %vm11901, %v11768
  %11930 = vst.msk [vmem:[#allocation2 + $0xe0] sm:$0xff] %vm11901, %v11769
  %11931 = vst.msk [vmem:[#allocation2 + $0xe8] sm:$0xff] %vm11901, %v11770
  %11932 = vst.msk [vmem:[#allocation2 + $0xf0] sm:$0xff] %vm11901, %v11771
  %11933 = vst.msk [vmem:[#allocation2 + $0xf8] sm:$0xff] %vm11901, %v11772
  %11934 = vst.msk [vmem:[#allocation2 + $0x100] sm:$0xff] %vm11901, %v11773
  %11935 = vst.msk [vmem:[#allocation2 + $0x108] sm:$0xff] %vm11901, %v11774
  %11936 = vst.msk [vmem:[#allocation2 + $0x110] sm:$0xff] %vm11901, %v11775
  %11937 = vst.msk [vmem:[#allocation2 + $0x118] sm:$0xff] %vm11901, %v11776
  %11938 = vst.msk [vmem:[#allocation2 + $0x120] sm:$0xff] %vm11901, %v11777
  %11939 = vst.msk [vmem:[#allocation2 + $0x128] sm:$0xff] %vm11901, %v11778
  %11940 = vst.msk [vmem:[#allocation2 + $0x130] sm:$0xff] %vm11901, %v11779
  %11941 = vst.msk [vmem:[#allocation2 + $0x138] sm:$0xff] %vm11901, %v11780
  %11942 = vst.msk [vmem:[#allocation2 + $0x140] sm:$0xff] %vm11901, %v11781
  %11943 = vst.msk [vmem:[#allocation2 + $0x148] sm:$0xff] %vm11901, %v11782
  %11944 = vst.msk [vmem:[#allocation2 + $0x150] sm:$0xff] %vm11901, %v11783
  %11945 = vst.msk [vmem:[#allocation2 + $0x158] sm:$0xff] %vm11901, %v11784
  %11946 = vst.msk [vmem:[#allocation2 + $0x160] sm:$0xff] %vm11901, %v11785
  %11947 = vst.msk [vmem:[#allocation2 + $0x168] sm:$0xff] %vm11901, %v11786
  %11948 = vst.msk [vmem:[#allocation2 + $0x170] sm:$0xff] %vm11901, %v11787
  %11949 = vst.msk [vmem:[#allocation2 + $0x178] sm:$0xff] %vm11901, %v11788
  %11950 = vst.msk [vmem:[#allocation2 + $0x180] sm:$0xff] %vm11901, %v11789
  %11951 = vst.msk [vmem:[#allocation2 + $0x188] sm:$0xff] %vm11901, %v11790
  %11952 = vst.msk [vmem:[#allocation2 + $0x190] sm:$0xff] %vm11901, %v11791
  %11953 = vst.msk [vmem:[#allocation2 + $0x198] sm:$0xff] %vm11901, %v11792
  %11954 = vst.msk [vmem:[#allocation2 + $0x1a0] sm:$0xff] %vm11901, %v11793
  %11955 = vst.msk [vmem:[#allocation2 + $0x1a8] sm:$0xff] %vm11901, %v11794
  %11956 = vst.msk [vmem:[#allocation2 + $0x1b0] sm:$0xff] %vm11901, %v11795
  %11957 = vst.msk [vmem:[#allocation2 + $0x1b8] sm:$0xff] %vm11901, %v11796
  %11958 = vst.msk [vmem:[#allocation2 + $0x1c0] sm:$0xff] %vm11901, %v11797
  %11959 = vst.msk [vmem:[#allocation2 + $0x1c8] sm:$0xff] %vm11901, %v11798
  %11960 = vst.msk [vmem:[#allocation2 + $0x1d0] sm:$0xff] %vm11901, %v11799
  %11961 = vst.msk [vmem:[#allocation2 + $0x1d8] sm:$0xff] %vm11901, %v11800
  %11962 = vst.msk [vmem:[#allocation2 + $0x1e0] sm:$0xff] %vm11901, %v11801
  %11963 = vst.msk [vmem:[#allocation2 + $0x1e8] sm:$0xff] %vm11901, %v11802
  %11964 = vst.msk [vmem:[#allocation2 + $0x1f0] sm:$0xff] %vm11901, %v11803
  %11965 = vst.msk [vmem:[#allocation2 + $0x1f8] sm:$0xff] %vm11901, %v11804
  %11966 = vst.msk [vmem:[#allocation2 + $0x200] sm:$0xff] %vm11901, %v11805
  %11967 = vst.msk [vmem:[#allocation2 + $0x208] sm:$0xff] %vm11901, %v11806
  %11968 = vst.msk [vmem:[#allocation2 + $0x210] sm:$0xff] %vm11901, %v11807
  %11969 = vst.msk [vmem:[#allocation2 + $0x218] sm:$0xff] %vm11901, %v11808
  %11970 = vst.msk [vmem:[#allocation2 + $0x220] sm:$0xff] %vm11901, %v11809
  %11971 = vst.msk [vmem:[#allocation2 + $0x228] sm:$0xff] %vm11901, %v11810
  %11972 = vst.msk [vmem:[#allocation2 + $0x230] sm:$0xff] %vm11901, %v11811
  %11973 = vst.msk [vmem:[#allocation2 + $0x238] sm:$0xff] %vm11901, %v11812
  %11974 = vst.msk [vmem:[#allocation2 + $0x240] sm:$0xff] %vm11901, %v11813
  %11975 = vst.msk [vmem:[#allocation2 + $0x248] sm:$0xff] %vm11901, %v11814
  %11976 = vst.msk [vmem:[#allocation2 + $0x250] sm:$0xff] %vm11901, %v11815
  %11977 = vst.msk [vmem:[#allocation2 + $0x258] sm:$0xff] %vm11901, %v11816
  %11978 = vst.msk [vmem:[#allocation2 + $0x260] sm:$0xff] %vm11901, %v11817
  %11979 = vst.msk [vmem:[#allocation2 + $0x268] sm:$0xff] %vm11901, %v11818
  %11980 = vst.msk [vmem:[#allocation2 + $0x270] sm:$0xff] %vm11901, %v11819
  %11981 = vst.msk [vmem:[#allocation2 + $0x278] sm:$0xff] %vm11901, %v11820
  %11982 = vst.msk [vmem:[#allocation2 + $0x280] sm:$0xff] %vm11901, %v11821
  %11983 = vst.msk [vmem:[#allocation2 + $0x288] sm:$0xff] %vm11901, %v11822
  %11984 = vst.msk [vmem:[#allocation2 + $0x290] sm:$0xff] %vm11901, %v11823
  %11985 = vst.msk [vmem:[#allocation2 + $0x298] sm:$0xff] %vm11901, %v11824
  %11986 = vst.msk [vmem:[#allocation2 + $0x2a0] sm:$0xff] %vm11901, %v11825
  %11987 = vst.msk [vmem:[#allocation2 + $0x2a8] sm:$0xff] %vm11901, %v11826
  %11988 = vst.msk [vmem:[#allocation2 + $0x2b0] sm:$0xff] %vm11901, %v11827
  %11989 = vst.msk [vmem:[#allocation2 + $0x2b8] sm:$0xff] %vm11901, %v11828
  %11990 = vst.msk [vmem:[#allocation2 + $0x2c0] sm:$0xff] %vm11901, %v11829
  %11991 = vst.msk [vmem:[#allocation2 + $0x2c8] sm:$0xff] %vm11901, %v11830
  %11992 = vst.msk [vmem:[#allocation2 + $0x2d0] sm:$0xff] %vm11901, %v11831
  %11993 = vst.msk [vmem:[#allocation2 + $0x2d8] sm:$0xff] %vm11901, %v11832
  %11994 = vst.msk [vmem:[#allocation2 + $0x2e0] sm:$0xff] %vm11901, %v11833
  %11995 = vst.msk [vmem:[#allocation2 + $0x2e8] sm:$0xff] %vm11901, %v11834
  %11996 = vst.msk [vmem:[#allocation2 + $0x2f0] sm:$0xff] %vm11901, %v11835
  %11997 = vst.msk [vmem:[#allocation2 + $0x2f8] sm:$0xff] %vm11901, %v11836
  %11998 = vst.msk [vmem:[#allocation2 + $0x300] sm:$0xff] %vm11901, %v11837
  %11999 = vst.msk [vmem:[#allocation2 + $0x308] sm:$0xff] %vm11901, %v11838
  %12000 = vst.msk [vmem:[#allocation2 + $0x310] sm:$0xff] %vm11901, %v11839
  %12001 = vst.msk [vmem:[#allocation2 + $0x318] sm:$0xff] %vm11901, %v11840
  %12002 = vst.msk [vmem:[#allocation2 + $0x320] sm:$0xff] %vm11901, %v11841
  %12003 = vst.msk [vmem:[#allocation2 + $0x328] sm:$0xff] %vm11901, %v11842
  %12004 = vst.msk [vmem:[#allocation2 + $0x330] sm:$0xff] %vm11901, %v11843
  %12005 = vst.msk [vmem:[#allocation2 + $0x338] sm:$0xff] %vm11901, %v11844
  %12006 = vst.msk [vmem:[#allocation2 + $0x340] sm:$0xff] %vm11901, %v11845
  %12007 = vst.msk [vmem:[#allocation2 + $0x348] sm:$0xff] %vm11901, %v11846
  %12008 = vst.msk [vmem:[#allocation2 + $0x350] sm:$0xff] %vm11901, %v11847
  %12009 = vst.msk [vmem:[#allocation2 + $0x358] sm:$0xff] %vm11901, %v11848
  %12010 = vst.msk [vmem:[#allocation2 + $0x360] sm:$0xff] %vm11901, %v11849
  %12011 = vst.msk [vmem:[#allocation2 + $0x368] sm:$0xff] %vm11901, %v11850
  %12012 = vst.msk [vmem:[#allocation2 + $0x370] sm:$0xff] %vm11901, %v11851
  %12013 = vst.msk [vmem:[#allocation2 + $0x378] sm:$0xff] %vm11901, %v11852
  %12014 = vst.msk [vmem:[#allocation2 + $0x380] sm:$0xff] %vm11901, %v11853
  %12015 = vst.msk [vmem:[#allocation2 + $0x388] sm:$0xff] %vm11901, %v11854
  %12016 = vst.msk [vmem:[#allocation2 + $0x390] sm:$0xff] %vm11901, %v11855
  %12017 = vst.msk [vmem:[#allocation2 + $0x398] sm:$0xff] %vm11901, %v11856
  %12018 = vst.msk [vmem:[#allocation2 + $0x3a0] sm:$0xff] %vm11901, %v11857
  %12019 = vst.msk [vmem:[#allocation2 + $0x3a8] sm:$0xff] %vm11901, %v11858
  %12020 = vst.msk [vmem:[#allocation2 + $0x3b0] sm:$0xff] %vm11901, %v11859
  %12021 = vst.msk [vmem:[#allocation2 + $0x3b8] sm:$0xff] %vm11901, %v11860
  %12022 = vst.msk [vmem:[#allocation2 + $0x3c0] sm:$0xff] %vm11901, %v11861
  %12023 = vst.msk [vmem:[#allocation2 + $0x3c8] sm:$0xff] %vm11901, %v11862
  %12024 = vst.msk [vmem:[#allocation2 + $0x3d0] sm:$0xff] %vm11901, %v11863
  %12025 = vst.msk [vmem:[#allocation2 + $0x3d8] sm:$0xff] %vm11901, %v11864
  %12026 = vst.msk [vmem:[#allocation2 + $0x3e0] sm:$0xff] %vm11901, %v11865
  %12027 = vst.msk [vmem:[#allocation2 + $0x3e8] sm:$0xff] %vm11901, %v11866
  %12028 = vst.msk [vmem:[#allocation2 + $0x3f0] sm:$0xff] %vm11901, %v11867
  %12029 = vst.msk [vmem:[#allocation2 + $0x3f8] sm:$0xff] %vm11901, %v11868
  %12030 = vst.msk [vmem:[#allocation2 + $0x400] sm:$0xff] %vm11901, %v11869
  %12031 = vst.msk [vmem:[#allocation2 + $0x408] sm:$0xff] %vm11901, %v11870
  %12032 = vst.msk [vmem:[#allocation2 + $0x410] sm:$0xff] %vm11901, %v11871
  %12033 = vst.msk [vmem:[#allocation2 + $0x418] sm:$0xff] %vm11901, %v11872
  %12034 = vst.msk [vmem:[#allocation2 + $0x420] sm:$0xff] %vm11901, %v11873
  %12035 = vst.msk [vmem:[#allocation2 + $0x428] sm:$0xff] %vm11901, %v11874
  %12036 = vst.msk [vmem:[#allocation2 + $0x430] sm:$0xff] %vm11901, %v11875
  %12037 = vst.msk [vmem:[#allocation2 + $0x438] sm:$0xff] %vm11901, %v11876
  %12038 = vst.msk [vmem:[#allocation2 + $0x440] sm:$0xff] %vm11901, %v11877
  %12039 = vst.msk [vmem:[#allocation2 + $0x448] sm:$0xff] %vm11901, %v11878
  %12040 = vst.msk [vmem:[#allocation2 + $0x450] sm:$0xff] %vm11901, %v11879
  %12041 = vst.msk [vmem:[#allocation2 + $0x458] sm:$0xff] %vm11901, %v11880
  %12042 = vst.msk [vmem:[#allocation2 + $0x460] sm:$0xff] %vm11901, %v11881
  %12043 = vst.msk [vmem:[#allocation2 + $0x468] sm:$0xff] %vm11901, %v11882
  %12044 = vst.msk [vmem:[#allocation2 + $0x470] sm:$0xff] %vm11901, %v11883
  %12045 = vst.msk [vmem:[#allocation2 + $0x478] sm:$0xff] %vm11901, %v11884
  %12046 = vst.msk [vmem:[#allocation2 + $0x480] sm:$0xff] %vm11901, %v11885
  %12047 = vst.msk [vmem:[#allocation2 + $0x488] sm:$0xff] %vm11901, %v11886
  %12048 = vst.msk [vmem:[#allocation2 + $0x490] sm:$0xff] %vm11901, %v11887
  %12049 = vst.msk [vmem:[#allocation2 + $0x498] sm:$0xff] %vm11901, %v11888
  %12050 = vst.msk [vmem:[#allocation2 + $0x4a0] sm:$0xff] %vm11901, %v11889
  %12051 = vst.msk [vmem:[#allocation2 + $0x4a8] sm:$0xff] %vm11901, %v11890
  %12052 = vst.msk [vmem:[#allocation2 + $0x4b0] sm:$0xff] %vm11901, %v11891
  %12053 = vst.msk [vmem:[#allocation2 + $0x4b8] sm:$0xff] %vm11901, %v11892
  %12054 = vst.msk [vmem:[#allocation2 + $0x4c0] sm:$0xff] %vm11901, %v11893
  %12055 = vst.msk [vmem:[#allocation2 + $0x4c8] sm:$0xff] %vm11901, %v11894
  %12056 = vst.msk [vmem:[#allocation2 + $0x4d0] sm:$0xff] %vm11901, %v11895
  %12057 = vst.msk [vmem:[#allocation2 + $0x4d8] sm:$0xff] %vm11901, %v11896
  %12058 = vst.msk [vmem:[#allocation2 + $0x4e0] sm:$0xff] %vm11901, %v11897
  %12059 = vst.msk [vmem:[#allocation2 + $0x4e8] sm:$0xff] %vm11901, %v11898
  %12060 = vst.msk [vmem:[#allocation2 + $0x4f0] sm:$0xff] %vm11901, %v11899
  %12061 = vst.msk [vmem:[#allocation2 + $0x4f8] sm:$0xff] %vm11901, %v11900
  // Predicated region
  $region30: #{avg_feat_forward.1} parent=0 // pred_check
    %p12062 = pneg %p27
  $region31: #{avg_feat_forward.1} parent=0 // pred_check_branch
    %12064 = sbr.rel (%p12062) target = $region33
  $region32: #{avg_feat_forward.1} parent=0 // pred_region
    %v12065 = vld [vmem:[#allocation2] sm:$0xff]
    %v12066 = vld [vmem:[#allocation2 + $0x8] sm:$0xff]
    %v12067 = vld [vmem:[#allocation2 + $0x10] sm:$0xff]
    %v12068 = vld [vmem:[#allocation2 + $0x18] sm:$0xff]
    %v12069 = vld [vmem:[#allocation2 + $0x20] sm:$0xff]
    %v12070 = vld [vmem:[#allocation2 + $0x28] sm:$0xff]
    %v12071 = vld [vmem:[#allocation2 + $0x30] sm:$0xff]
    %v12072 = vld [vmem:[#allocation2 + $0x38] sm:$0xff]
    %v12073 = vld [vmem:[#allocation2 + $0x40] sm:$0xff]
    %v12074 = vld [vmem:[#allocation2 + $0x48] sm:$0xff]
    %v12075 = vld [vmem:[#allocation2 + $0x50] sm:$0xff]
    %v12076 = vld [vmem:[#allocation2 + $0x58] sm:$0xff]
    %v12077 = vld [vmem:[#allocation2 + $0x60] sm:$0xff]
    %v12078 = vld [vmem:[#allocation2 + $0x68] sm:$0xff]
    %v12079 = vld [vmem:[#allocation2 + $0x70] sm:$0xff]
    %v12080 = vld [vmem:[#allocation2 + $0x78] sm:$0xff]
    %v12081 = vld [vmem:[#allocation2 + $0x80] sm:$0xff]
    %v12082 = vld [vmem:[#allocation2 + $0x88] sm:$0xff]
    %v12083 = vld [vmem:[#allocation2 + $0x90] sm:$0xff]
    %v12084 = vld [vmem:[#allocation2 + $0x98] sm:$0xff]
    %v12085 = vld [vmem:[#allocation2 + $0xa0] sm:$0xff]
    %v12086 = vld [vmem:[#allocation2 + $0xa8] sm:$0xff]
    %v12087 = vld [vmem:[#allocation2 + $0xb0] sm:$0xff]
    %v12088 = vld [vmem:[#allocation2 + $0xb8] sm:$0xff]
    %v12089 = vld [vmem:[#allocation2 + $0xc0] sm:$0xff]
    %v12090 = vld [vmem:[#allocation2 + $0xc8] sm:$0xff]
    %v12091 = vld [vmem:[#allocation2 + $0xd0] sm:$0xff]
    %v12092 = vld [vmem:[#allocation2 + $0xd8] sm:$0xff]
    %v12093 = vld [vmem:[#allocation2 + $0xe0] sm:$0xff]
    %v12094 = vld [vmem:[#allocation2 + $0xe8] sm:$0xff]
    %v12095 = vld [vmem:[#allocation2 + $0xf0] sm:$0xff]
    %v12096 = vld [vmem:[#allocation2 + $0xf8] sm:$0xff]
    %v12097 = vld [vmem:[#allocation2 + $0x100] sm:$0xff]
    %v12098 = vld [vmem:[#allocation2 + $0x108] sm:$0xff]
    %v12099 = vld [vmem:[#allocation2 + $0x110] sm:$0xff]
    %v12100 = vld [vmem:[#allocation2 + $0x118] sm:$0xff]
    %v12101 = vld [vmem:[#allocation2 + $0x120] sm:$0xff]
    %v12102 = vld [vmem:[#allocation2 + $0x128] sm:$0xff]
    %v12103 = vld [vmem:[#allocation2 + $0x130] sm:$0xff]
    %v12104 = vld [vmem:[#allocation2 + $0x138] sm:$0xff]
    %v12105 = vld [vmem:[#allocation2 + $0x140] sm:$0xff]
    %v12106 = vld [vmem:[#allocation2 + $0x148] sm:$0xff]
    %v12107 = vld [vmem:[#allocation2 + $0x150] sm:$0xff]
    %v12108 = vld [vmem:[#allocation2 + $0x158] sm:$0xff]
    %v12109 = vld [vmem:[#allocation2 + $0x160] sm:$0xff]
    %v12110 = vld [vmem:[#allocation2 + $0x168] sm:$0xff]
    %v12111 = vld [vmem:[#allocation2 + $0x170] sm:$0xff]
    %v12112 = vld [vmem:[#allocation2 + $0x178] sm:$0xff]
    %v12113 = vld [vmem:[#allocation2 + $0x180] sm:$0xff]
    %v12114 = vld [vmem:[#allocation2 + $0x188] sm:$0xff]
    %v12115 = vld [vmem:[#allocation2 + $0x190] sm:$0xff]
    %v12116 = vld [vmem:[#allocation2 + $0x198] sm:$0xff]
    %v12117 = vld [vmem:[#allocation2 + $0x1a0] sm:$0xff]
    %v12118 = vld [vmem:[#allocation2 + $0x1a8] sm:$0xff]
    %v12119 = vld [vmem:[#allocation2 + $0x1b0] sm:$0xff]
    %v12120 = vld [vmem:[#allocation2 + $0x1b8] sm:$0xff]
    %v12121 = vld [vmem:[#allocation2 + $0x1c0] sm:$0xff]
    %v12122 = vld [vmem:[#allocation2 + $0x1c8] sm:$0xff]
    %v12123 = vld [vmem:[#allocation2 + $0x1d0] sm:$0xff]
    %v12124 = vld [vmem:[#allocation2 + $0x1d8] sm:$0xff]
    %v12125 = vld [vmem:[#allocation2 + $0x1e0] sm:$0xff]
    %v12126 = vld [vmem:[#allocation2 + $0x1e8] sm:$0xff]
    %v12127 = vld [vmem:[#allocation2 + $0x1f0] sm:$0xff]
    %v12128 = vld [vmem:[#allocation2 + $0x1f8] sm:$0xff]
    %v12129 = vld [vmem:[#allocation2 + $0x200] sm:$0xff]
    %v12130 = vld [vmem:[#allocation2 + $0x208] sm:$0xff]
    %v12131 = vld [vmem:[#allocation2 + $0x210] sm:$0xff]
    %v12132 = vld [vmem:[#allocation2 + $0x218] sm:$0xff]
    %v12133 = vld [vmem:[#allocation2 + $0x220] sm:$0xff]
    %v12134 = vld [vmem:[#allocation2 + $0x228] sm:$0xff]
    %v12135 = vld [vmem:[#allocation2 + $0x230] sm:$0xff]
    %v12136 = vld [vmem:[#allocation2 + $0x238] sm:$0xff]
    %v12137 = vld [vmem:[#allocation2 + $0x240] sm:$0xff]
    %v12138 = vld [vmem:[#allocation2 + $0x248] sm:$0xff]
    %v12139 = vld [vmem:[#allocation2 + $0x250] sm:$0xff]
    %v12140 = vld [vmem:[#allocation2 + $0x258] sm:$0xff]
    %v12141 = vld [vmem:[#allocation2 + $0x260] sm:$0xff]
    %v12142 = vld [vmem:[#allocation2 + $0x268] sm:$0xff]
    %v12143 = vld [vmem:[#allocation2 + $0x270] sm:$0xff]
    %v12144 = vld [vmem:[#allocation2 + $0x278] sm:$0xff]
    %v12145 = vld [vmem:[#allocation2 + $0x280] sm:$0xff]
    %v12146 = vld [vmem:[#allocation2 + $0x288] sm:$0xff]
    %v12147 = vld [vmem:[#allocation2 + $0x290] sm:$0xff]
    %v12148 = vld [vmem:[#allocation2 + $0x298] sm:$0xff]
    %v12149 = vld [vmem:[#allocation2 + $0x2a0] sm:$0xff]
    %v12150 = vld [vmem:[#allocation2 + $0x2a8] sm:$0xff]
    %v12151 = vld [vmem:[#allocation2 + $0x2b0] sm:$0xff]
    %v12152 = vld [vmem:[#allocation2 + $0x2b8] sm:$0xff]
    %v12153 = vld [vmem:[#allocation2 + $0x2c0] sm:$0xff]
    %v12154 = vld [vmem:[#allocation2 + $0x2c8] sm:$0xff]
    %v12155 = vld [vmem:[#allocation2 + $0x2d0] sm:$0xff]
    %v12156 = vld [vmem:[#allocation2 + $0x2d8] sm:$0xff]
    %v12157 = vld [vmem:[#allocation2 + $0x2e0] sm:$0xff]
    %v12158 = vld [vmem:[#allocation2 + $0x2e8] sm:$0xff]
    %v12159 = vld [vmem:[#allocation2 + $0x2f0] sm:$0xff]
    %v12160 = vld [vmem:[#allocation2 + $0x2f8] sm:$0xff]
    %v12161 = vld [vmem:[#allocation2 + $0x300] sm:$0xff]
    %v12162 = vld [vmem:[#allocation2 + $0x308] sm:$0xff]
    %v12163 = vld [vmem:[#allocation2 + $0x310] sm:$0xff]
    %v12164 = vld [vmem:[#allocation2 + $0x318] sm:$0xff]
    %v12165 = vld [vmem:[#allocation2 + $0x320] sm:$0xff]
    %v12166 = vld [vmem:[#allocation2 + $0x328] sm:$0xff]
    %v12167 = vld [vmem:[#allocation2 + $0x330] sm:$0xff]
    %v12168 = vld [vmem:[#allocation2 + $0x338] sm:$0xff]
    %v12169 = vld [vmem:[#allocation2 + $0x340] sm:$0xff]
    %v12170 = vld [vmem:[#allocation2 + $0x348] sm:$0xff]
    %v12171 = vld [vmem:[#allocation2 + $0x350] sm:$0xff]
    %v12172 = vld [vmem:[#allocation2 + $0x358] sm:$0xff]
    %v12173 = vld [vmem:[#allocation2 + $0x360] sm:$0xff]
    %v12174 = vld [vmem:[#allocation2 + $0x368] sm:$0xff]
    %v12175 = vld [vmem:[#allocation2 + $0x370] sm:$0xff]
    %v12176 = vld [vmem:[#allocation2 + $0x378] sm:$0xff]
    %v12177 = vld [vmem:[#allocation2 + $0x380] sm:$0xff]
    %v12178 = vld [vmem:[#allocation2 + $0x388] sm:$0xff]
    %v12179 = vld [vmem:[#allocation2 + $0x390] sm:$0xff]
    %v12180 = vld [vmem:[#allocation2 + $0x398] sm:$0xff]
    %v12181 = vld [vmem:[#allocation2 + $0x3a0] sm:$0xff]
    %v12182 = vld [vmem:[#allocation2 + $0x3a8] sm:$0xff]
    %v12183 = vld [vmem:[#allocation2 + $0x3b0] sm:$0xff]
    %v12184 = vld [vmem:[#allocation2 + $0x3b8] sm:$0xff]
    %v12185 = vld [vmem:[#allocation2 + $0x3c0] sm:$0xff]
    %v12186 = vld [vmem:[#allocation2 + $0x3c8] sm:$0xff]
    %v12187 = vld [vmem:[#allocation2 + $0x3d0] sm:$0xff]
    %v12188 = vld [vmem:[#allocation2 + $0x3d8] sm:$0xff]
    %v12189 = vld [vmem:[#allocation2 + $0x3e0] sm:$0xff]
    %v12190 = vld [vmem:[#allocation2 + $0x3e8] sm:$0xff]
    %v12191 = vld [vmem:[#allocation2 + $0x3f0] sm:$0xff]
    %v12192 = vld [vmem:[#allocation2 + $0x3f8] sm:$0xff]
    %v12193 = vld [vmem:[#allocation2 + $0x400] sm:$0xff]
    %v12194 = vld [vmem:[#allocation2 + $0x408] sm:$0xff]
    %v12195 = vld [vmem:[#allocation2 + $0x410] sm:$0xff]
    %v12196 = vld [vmem:[#allocation2 + $0x418] sm:$0xff]
    %v12197 = vld [vmem:[#allocation2 + $0x420] sm:$0xff]
    %v12198 = vld [vmem:[#allocation2 + $0x428] sm:$0xff]
    %v12199 = vld [vmem:[#allocation2 + $0x430] sm:$0xff]
    %v12200 = vld [vmem:[#allocation2 + $0x438] sm:$0xff]
    %v12201 = vld [vmem:[#allocation2 + $0x440] sm:$0xff]
    %v12202 = vld [vmem:[#allocation2 + $0x448] sm:$0xff]
    %v12203 = vld [vmem:[#allocation2 + $0x450] sm:$0xff]
    %v12204 = vld [vmem:[#allocation2 + $0x458] sm:$0xff]
    %v12205 = vld [vmem:[#allocation2 + $0x460] sm:$0xff]
    %v12206 = vld [vmem:[#allocation2 + $0x468] sm:$0xff]
    %v12207 = vld [vmem:[#allocation2 + $0x470] sm:$0xff]
    %v12208 = vld [vmem:[#allocation2 + $0x478] sm:$0xff]
    %v12209 = vld [vmem:[#allocation2 + $0x480] sm:$0xff]
    %v12210 = vld [vmem:[#allocation2 + $0x488] sm:$0xff]
    %v12211 = vld [vmem:[#allocation2 + $0x490] sm:$0xff]
    %v12212 = vld [vmem:[#allocation2 + $0x498] sm:$0xff]
    %v12213 = vld [vmem:[#allocation2 + $0x4a0] sm:$0xff]
    %v12214 = vld [vmem:[#allocation2 + $0x4a8] sm:$0xff]
    %v12215 = vld [vmem:[#allocation2 + $0x4b0] sm:$0xff]
    %v12216 = vld [vmem:[#allocation2 + $0x4b8] sm:$0xff]
    %v12217 = vld [vmem:[#allocation2 + $0x4c0] sm:$0xff]
    %v12218 = vld [vmem:[#allocation2 + $0x4c8] sm:$0xff]
    %v12219 = vld [vmem:[#allocation2 + $0x4d0] sm:$0xff]
    %v12220 = vld [vmem:[#allocation2 + $0x4d8] sm:$0xff]
    %v12221 = vld [vmem:[#allocation2 + $0x4e0] sm:$0xff]
    %v12222 = vld [vmem:[#allocation2 + $0x4e8] sm:$0xff]
    %v12223 = vld [vmem:[#allocation2 + $0x4f0] sm:$0xff]
    %v12224 = vld [vmem:[#allocation2 + $0x4f8] sm:$0xff]
    %v12225 = vmul.f32 %v12065, 0.0009765625
    %v12226 = vmul.f32 %v12066, 0.0009765625
    %v12227 = vmul.f32 %v12067, 0.0009765625
    %v12228 = vmul.f32 %v12068, 0.0009765625
    %v12229 = vmul.f32 %v12069, 0.0009765625
    %v12230 = vmul.f32 %v12070, 0.0009765625
    %v12231 = vmul.f32 %v12071, 0.0009765625
    %v12232 = vmul.f32 %v12072, 0.0009765625
    %v12233 = vmul.f32 %v12073, 0.0009765625
    %v12234 = vmul.f32 %v12074, 0.0009765625
    %v12235 = vmul.f32 %v12075, 0.0009765625
    %v12236 = vmul.f32 %v12076, 0.0009765625
    %v12237 = vmul.f32 %v12077, 0.0009765625
    %v12238 = vmul.f32 %v12078, 0.0009765625
    %v12239 = vmul.f32 %v12079, 0.0009765625
    %v12240 = vmul.f32 %v12080, 0.0009765625
    %v12241 = vmul.f32 %v12081, 0.0009765625
    %v12242 = vmul.f32 %v12082, 0.0009765625
    %v12243 = vmul.f32 %v12083, 0.0009765625
    %v12244 = vmul.f32 %v12084, 0.0009765625
    %v12245 = vmul.f32 %v12085, 0.0009765625
    %v12246 = vmul.f32 %v12086, 0.0009765625
    %v12247 = vmul.f32 %v12087, 0.0009765625
    %v12248 = vmul.f32 %v12088, 0.0009765625
    %v12249 = vmul.f32 %v12089, 0.0009765625
    %v12250 = vmul.f32 %v12090, 0.0009765625
    %v12251 = vmul.f32 %v12091, 0.0009765625
    %v12252 = vmul.f32 %v12092, 0.0009765625
    %v12253 = vmul.f32 %v12093, 0.0009765625
    %v12254 = vmul.f32 %v12094, 0.0009765625
    %v12255 = vmul.f32 %v12095, 0.0009765625
    %v12256 = vmul.f32 %v12096, 0.0009765625
    %v12257 = vmul.f32 %v12097, 0.0009765625
    %v12258 = vmul.f32 %v12098, 0.0009765625
    %v12259 = vmul.f32 %v12099, 0.0009765625
    %v12260 = vmul.f32 %v12100, 0.0009765625
    %v12261 = vmul.f32 %v12101, 0.0009765625
    %v12262 = vmul.f32 %v12102, 0.0009765625
    %v12263 = vmul.f32 %v12103, 0.0009765625
    %v12264 = vmul.f32 %v12104, 0.0009765625
    %v12265 = vmul.f32 %v12105, 0.0009765625
    %v12266 = vmul.f32 %v12106, 0.0009765625
    %v12267 = vmul.f32 %v12107, 0.0009765625
    %v12268 = vmul.f32 %v12108, 0.0009765625
    %v12269 = vmul.f32 %v12109, 0.0009765625
    %v12270 = vmul.f32 %v12110, 0.0009765625
    %v12271 = vmul.f32 %v12111, 0.0009765625
    %v12272 = vmul.f32 %v12112, 0.0009765625
    %v12273 = vmul.f32 %v12113, 0.0009765625
    %v12274 = vmul.f32 %v12114, 0.0009765625
    %v12275 = vmul.f32 %v12115, 0.0009765625
    %v12276 = vmul.f32 %v12116, 0.0009765625
    %v12277 = vmul.f32 %v12117, 0.0009765625
    %v12278 = vmul.f32 %v12118, 0.0009765625
    %v12279 = vmul.f32 %v12119, 0.0009765625
    %v12280 = vmul.f32 %v12120, 0.0009765625
    %v12281 = vmul.f32 %v12121, 0.0009765625
    %v12282 = vmul.f32 %v12122, 0.0009765625
    %v12283 = vmul.f32 %v12123, 0.0009765625
    %v12284 = vmul.f32 %v12124, 0.0009765625
    %v12285 = vmul.f32 %v12125, 0.0009765625
    %v12286 = vmul.f32 %v12126, 0.0009765625
    %v12287 = vmul.f32 %v12127, 0.0009765625
    %v12288 = vmul.f32 %v12128, 0.0009765625
    %v12289 = vmul.f32 %v12129, 0.0009765625
    %v12290 = vmul.f32 %v12130, 0.0009765625
    %v12291 = vmul.f32 %v12131, 0.0009765625
    %v12292 = vmul.f32 %v12132, 0.0009765625
    %v12293 = vmul.f32 %v12133, 0.0009765625
    %v12294 = vmul.f32 %v12134, 0.0009765625
    %v12295 = vmul.f32 %v12135, 0.0009765625
    %v12296 = vmul.f32 %v12136, 0.0009765625
    %v12297 = vmul.f32 %v12137, 0.0009765625
    %v12298 = vmul.f32 %v12138, 0.0009765625
    %v12299 = vmul.f32 %v12139, 0.0009765625
    %v12300 = vmul.f32 %v12140, 0.0009765625
    %v12301 = vmul.f32 %v12141, 0.0009765625
    %v12302 = vmul.f32 %v12142, 0.0009765625
    %v12303 = vmul.f32 %v12143, 0.0009765625
    %v12304 = vmul.f32 %v12144, 0.0009765625
    %v12305 = vmul.f32 %v12145, 0.0009765625
    %v12306 = vmul.f32 %v12146, 0.0009765625
    %v12307 = vmul.f32 %v12147, 0.0009765625
    %v12308 = vmul.f32 %v12148, 0.0009765625
    %v12309 = vmul.f32 %v12149, 0.0009765625
    %v12310 = vmul.f32 %v12150, 0.0009765625
    %v12311 = vmul.f32 %v12151, 0.0009765625
    %v12312 = vmul.f32 %v12152, 0.0009765625
    %v12313 = vmul.f32 %v12153, 0.0009765625
    %v12314 = vmul.f32 %v12154, 0.0009765625
    %v12315 = vmul.f32 %v12155, 0.0009765625
    %v12316 = vmul.f32 %v12156, 0.0009765625
    %v12317 = vmul.f32 %v12157, 0.0009765625
    %v12318 = vmul.f32 %v12158, 0.0009765625
    %v12319 = vmul.f32 %v12159, 0.0009765625
    %v12320 = vmul.f32 %v12160, 0.0009765625
    %v12321 = vmul.f32 %v12161, 0.0009765625
    %v12322 = vmul.f32 %v12162, 0.0009765625
    %v12323 = vmul.f32 %v12163, 0.0009765625
    %v12324 = vmul.f32 %v12164, 0.0009765625
    %v12325 = vmul.f32 %v12165, 0.0009765625
    %v12326 = vmul.f32 %v12166, 0.0009765625
    %v12327 = vmul.f32 %v12167, 0.0009765625
    %v12328 = vmul.f32 %v12168, 0.0009765625
    %v12329 = vmul.f32 %v12169, 0.0009765625
    %v12330 = vmul.f32 %v12170, 0.0009765625
    %v12331 = vmul.f32 %v12171, 0.0009765625
    %v12332 = vmul.f32 %v12172, 0.0009765625
    %v12333 = vmul.f32 %v12173, 0.0009765625
    %v12334 = vmul.f32 %v12174, 0.0009765625
    %v12335 = vmul.f32 %v12175, 0.0009765625
    %v12336 = vmul.f32 %v12176, 0.0009765625
    %v12337 = vmul.f32 %v12177, 0.0009765625
    %v12338 = vmul.f32 %v12178, 0.0009765625
    %v12339 = vmul.f32 %v12179, 0.0009765625
    %v12340 = vmul.f32 %v12180, 0.0009765625
    %v12341 = vmul.f32 %v12181, 0.0009765625
    %v12342 = vmul.f32 %v12182, 0.0009765625
    %v12343 = vmul.f32 %v12183, 0.0009765625
    %v12344 = vmul.f32 %v12184, 0.0009765625
    %v12345 = vmul.f32 %v12185, 0.0009765625
    %v12346 = vmul.f32 %v12186, 0.0009765625
    %v12347 = vmul.f32 %v12187, 0.0009765625
    %v12348 = vmul.f32 %v12188, 0.0009765625
    %v12349 = vmul.f32 %v12189, 0.0009765625
    %v12350 = vmul.f32 %v12190, 0.0009765625
    %v12351 = vmul.f32 %v12191, 0.0009765625
    %v12352 = vmul.f32 %v12192, 0.0009765625
    %v12353 = vmul.f32 %v12193, 0.0009765625
    %v12354 = vmul.f32 %v12194, 0.0009765625
    %v12355 = vmul.f32 %v12195, 0.0009765625
    %v12356 = vmul.f32 %v12196, 0.0009765625
    %v12357 = vmul.f32 %v12197, 0.0009765625
    %v12358 = vmul.f32 %v12198, 0.0009765625
    %v12359 = vmul.f32 %v12199, 0.0009765625
    %v12360 = vmul.f32 %v12200, 0.0009765625
    %v12361 = vmul.f32 %v12201, 0.0009765625
    %v12362 = vmul.f32 %v12202, 0.0009765625
    %v12363 = vmul.f32 %v12203, 0.0009765625
    %v12364 = vmul.f32 %v12204, 0.0009765625
    %v12365 = vmul.f32 %v12205, 0.0009765625
    %v12366 = vmul.f32 %v12206, 0.0009765625
    %v12367 = vmul.f32 %v12207, 0.0009765625
    %v12368 = vmul.f32 %v12208, 0.0009765625
    %v12369 = vmul.f32 %v12209, 0.0009765625
    %v12370 = vmul.f32 %v12210, 0.0009765625
    %v12371 = vmul.f32 %v12211, 0.0009765625
    %v12372 = vmul.f32 %v12212, 0.0009765625
    %v12373 = vmul.f32 %v12213, 0.0009765625
    %v12374 = vmul.f32 %v12214, 0.0009765625
    %v12375 = vmul.f32 %v12215, 0.0009765625
    %v12376 = vmul.f32 %v12216, 0.0009765625
    %v12377 = vmul.f32 %v12217, 0.0009765625
    %v12378 = vmul.f32 %v12218, 0.0009765625
    %v12379 = vmul.f32 %v12219, 0.0009765625
    %v12380 = vmul.f32 %v12220, 0.0009765625
    %v12381 = vmul.f32 %v12221, 0.0009765625
    %v12382 = vmul.f32 %v12222, 0.0009765625
    %v12383 = vmul.f32 %v12223, 0.0009765625
    %v12384 = vmul.f32 %v12224, 0.0009765625
    %v12385 = vld [vmem:[%s4] sm:$0xff]
    %v12386 = vld [vmem:[%s4 + $0x8] sm:$0xff]
    %v12387 = vld [vmem:[%s4 + $0x10] sm:$0xff]
    %v12388 = vld [vmem:[%s4 + $0x18] sm:$0xff]
    %v12389 = vld [vmem:[%s4 + $0x20] sm:$0xff]
    %v12390 = vpack.c.bf16 %v12226, %v12225
    %v12391 = vpack.c.bf16 %v12228, %v12227
    %v12392 = vpack.c.bf16 %v12230, %v12229
    %v12393 = vpack.c.bf16 %v12232, %v12231
    %v12394 = vpack.c.bf16 %v12234, %v12233
    %v12395 = vpack.c.bf16 %v12236, %v12235
    %v12396 = vpack.c.bf16 %v12238, %v12237
    %v12397 = vpack.c.bf16 %v12240, %v12239
    %v12398 = vpack.c.bf16 %v12242, %v12241
    %v12399 = vpack.c.bf16 %v12244, %v12243
    %v12400 = vpack.c.bf16 %v12246, %v12245
    %v12401 = vpack.c.bf16 %v12248, %v12247
    %v12402 = vpack.c.bf16 %v12250, %v12249
    %v12403 = vpack.c.bf16 %v12252, %v12251
    %v12404 = vpack.c.bf16 %v12254, %v12253
    %v12405 = vpack.c.bf16 %v12256, %v12255
    %v12406 = vpack.c.bf16 %v12258, %v12257
    %v12407 = vpack.c.bf16 %v12260, %v12259
    %v12408 = vpack.c.bf16 %v12262, %v12261
    %v12409 = vpack.c.bf16 %v12264, %v12263
    %v12410 = vpack.c.bf16 %v12266, %v12265
    %v12411 = vpack.c.bf16 %v12268, %v12267
    %v12412 = vpack.c.bf16 %v12270, %v12269
    %v12413 = vpack.c.bf16 %v12272, %v12271
    %v12414 = vpack.c.bf16 %v12274, %v12273
    %v12415 = vpack.c.bf16 %v12276, %v12275
    %v12416 = vpack.c.bf16 %v12278, %v12277
    %v12417 = vpack.c.bf16 %v12280, %v12279
    %v12418 = vpack.c.bf16 %v12282, %v12281
    %v12419 = vpack.c.bf16 %v12284, %v12283
    %v12420 = vpack.c.bf16 %v12286, %v12285
    %v12421 = vpack.c.bf16 %v12288, %v12287
    %v12422 = vpack.c.bf16 %v12290, %v12289
    %v12423 = vpack.c.bf16 %v12292, %v12291
    %v12424 = vpack.c.bf16 %v12294, %v12293
    %v12425 = vpack.c.bf16 %v12296, %v12295
    %v12426 = vpack.c.bf16 %v12298, %v12297
    %v12427 = vpack.c.bf16 %v12300, %v12299
    %v12428 = vpack.c.bf16 %v12302, %v12301
    %v12429 = vpack.c.bf16 %v12304, %v12303
    %v12430 = vpack.c.bf16 %v12306, %v12305
    %v12431 = vpack.c.bf16 %v12308, %v12307
    %v12432 = vpack.c.bf16 %v12310, %v12309
    %v12433 = vpack.c.bf16 %v12312, %v12311
    %v12434 = vpack.c.bf16 %v12314, %v12313
    %v12435 = vpack.c.bf16 %v12316, %v12315
    %v12436 = vpack.c.bf16 %v12318, %v12317
    %v12437 = vpack.c.bf16 %v12320, %v12319
    %v12438 = vpack.c.bf16 %v12322, %v12321
    %v12439 = vpack.c.bf16 %v12324, %v12323
    %v12440 = vpack.c.bf16 %v12326, %v12325
    %v12441 = vpack.c.bf16 %v12328, %v12327
    %v12442 = vpack.c.bf16 %v12330, %v12329
    %v12443 = vpack.c.bf16 %v12332, %v12331
    %v12444 = vpack.c.bf16 %v12334, %v12333
    %v12445 = vpack.c.bf16 %v12336, %v12335
    %v12446 = vpack.c.bf16 %v12338, %v12337
    %v12447 = vpack.c.bf16 %v12340, %v12339
    %v12448 = vpack.c.bf16 %v12342, %v12341
    %v12449 = vpack.c.bf16 %v12344, %v12343
    %v12450 = vpack.c.bf16 %v12346, %v12345
    %v12451 = vpack.c.bf16 %v12348, %v12347
    %v12452 = vpack.c.bf16 %v12350, %v12349
    %v12453 = vpack.c.bf16 %v12352, %v12351
    %v12454 = vpack.c.bf16 %v12354, %v12353
    %v12455 = vpack.c.bf16 %v12356, %v12355
    %v12456 = vpack.c.bf16 %v12358, %v12357
    %v12457 = vpack.c.bf16 %v12360, %v12359
    %v12458 = vpack.c.bf16 %v12362, %v12361
    %v12459 = vpack.c.bf16 %v12364, %v12363
    %v12460 = vpack.c.bf16 %v12366, %v12365
    %v12461 = vpack.c.bf16 %v12368, %v12367
    %v12462 = vpack.c.bf16 %v12370, %v12369
    %v12463 = vpack.c.bf16 %v12372, %v12371
    %v12464 = vpack.c.bf16 %v12374, %v12373
    %v12465 = vpack.c.bf16 %v12376, %v12375
    %v12466 = vpack.c.bf16 %v12378, %v12377
    %v12467 = vpack.c.bf16 %v12380, %v12379
    %v12468 = vpack.c.bf16 %v12382, %v12381
    %v12469 = vpack.c.bf16 %v12384, %v12383
    %v12470 = vld [vmem:[%s5] sm:$0xff]
    %v12476 = vunpack.c.l.b16 %v12385
    %v12477 = vunpack.c.h.b16 %v12385
    %v12478 = vunpack.c.l.b16 %v12386
    %v12479 = vunpack.c.h.b16 %v12386
    %v12480 = vunpack.c.l.b16 %v12387
    %v12481 = vunpack.c.h.b16 %v12387
    %v12482 = vunpack.c.l.b16 %v12388
    %v12483 = vunpack.c.h.b16 %v12388
    %v12484 = vunpack.c.l.b16 %v12389
    %v12485 = vunpack.c.h.b16 %v12389
    %v12486 = vpack.c.b16 %v12476, %v12476
    %v12487 = vpack.c.b16 %v12477, %v12477
    %v12488 = vpack.c.b16 %v12478, %v12478
    %v12489 = vpack.c.b16 %v12479, %v12479
    %v12490 = vpack.c.b16 %v12480, %v12480
    %v12491 = vpack.c.b16 %v12481, %v12481
    %v12492 = vpack.c.b16 %v12482, %v12482
    %v12493 = vpack.c.b16 %v12483, %v12483
    %v12494 = vpack.c.b16 %v12484, %v12484
    %v12495 = vpack.c.b16 %v12485, %v12485
    %12506 = vmatprep.subr.bf16.mxu0 0
    %12507 = vmatpush1.bf16.msra.mxu0 %v12397
    %12508 = vmatprep.subr.bf16.mxu0 0
    %12509 = vmatpush1.bf16.msra.mxu0 %v12396
    %12510 = vmatprep.subr.bf16.mxu0 0
    %12511 = vmatpush1.bf16.msra.mxu0 %v12395
    %12512 = vmatprep.subr.bf16.mxu0 0
    %12513 = vmatpush1.bf16.msra.mxu0 %v12394
    %12514 = vmatprep.subr.bf16.mxu0 0
    %12515 = vmatpush1.bf16.msra.mxu0 %v12393
    %12516 = vmatprep.subr.bf16.mxu0 0
    %12517 = vmatpush1.bf16.msra.mxu0 %v12392
    %12518 = vmatprep.subr.bf16.mxu0 0
    %12519 = vmatpush1.bf16.msra.mxu0 %v12391
    %12520 = vmatprep.subr.bf16.mxu0 0
    %12521 = vmatpush1.bf16.msra.mxu0 %v12390
    %12522 = vmatprep.subr.bf16.mxu0 0
    %12523 = vmatpush2.bf16.msra.mxu0 %v12405
    %12524 = vmatprep.subr.bf16.mxu0 0
    %12525 = vmatpush2.bf16.msra.mxu0 %v12404
    %12526 = vmatprep.subr.bf16.mxu0 0
    %12527 = vmatpush2.bf16.msra.mxu0 %v12403
    %12528 = vmatprep.subr.bf16.mxu0 0
    %12529 = vmatpush2.bf16.msra.mxu0 %v12402
    %12530 = vmatprep.subr.bf16.mxu0 0
    %12531 = vmatpush2.bf16.msra.mxu0 %v12401
    %12532 = vmatprep.subr.bf16.mxu0 0
    %12533 = vmatpush2.bf16.msra.mxu0 %v12400
    %12534 = vmatprep.subr.bf16.mxu0 0
    %12535 = vmatpush2.bf16.msra.mxu0 %v12399
    %12536 = vmatprep.subr.bf16.mxu0 0
    %12537 = vmatpush2.bf16.msra.mxu0 %v12398
    %12538 = vmatprep.mubr.bf16.mxu0 %v12487
    %12539 = vmatmul.mubr.bf16.gmra.mxu0 %v12486
    %v12540 = vpop.f32.mrf.mxu0
    %v12541 = vadd.f32 %v12470, %v12540
    %v12542 = vpop.f32.mrf.mxu0
    %v12543 = vpop.f32.mrf.mxu0
    %v12544 = vpop.f32.mrf.mxu0
    %12545 = vdwg.mxu0
    %12546 = vmatprep.subr.bf16.mxu0 0
    %12547 = vmatpush1.bf16.msra.mxu0 %v12413
    %12548 = vmatprep.subr.bf16.mxu0 0
    %12549 = vmatpush1.bf16.msra.mxu0 %v12412
    %12550 = vmatprep.subr.bf16.mxu0 0
    %12551 = vmatpush1.bf16.msra.mxu0 %v12411
    %12552 = vmatprep.subr.bf16.mxu0 0
    %12553 = vmatpush1.bf16.msra.mxu0 %v12410
    %12554 = vmatprep.subr.bf16.mxu0 0
    %12555 = vmatpush1.bf16.msra.mxu0 %v12409
    %12556 = vmatprep.subr.bf16.mxu0 0
    %12557 = vmatpush1.bf16.msra.mxu0 %v12408
    %12558 = vmatprep.subr.bf16.mxu0 0
    %12559 = vmatpush1.bf16.msra.mxu0 %v12407
    %12560 = vmatprep.subr.bf16.mxu0 0
    %12561 = vmatpush1.bf16.msra.mxu0 %v12406
    %12562 = vmatprep.subr.bf16.mxu0 0
    %12563 = vmatpush2.bf16.msra.mxu0 %v12421
    %12564 = vmatprep.subr.bf16.mxu0 0
    %12565 = vmatpush2.bf16.msra.mxu0 %v12420
    %12566 = vmatprep.subr.bf16.mxu0 0
    %12567 = vmatpush2.bf16.msra.mxu0 %v12419
    %12568 = vmatprep.subr.bf16.mxu0 0
    %12569 = vmatpush2.bf16.msra.mxu0 %v12418
    %12570 = vmatprep.subr.bf16.mxu0 0
    %12571 = vmatpush2.bf16.msra.mxu0 %v12417
    %12572 = vmatprep.subr.bf16.mxu0 0
    %12573 = vmatpush2.bf16.msra.mxu0 %v12416
    %12574 = vmatprep.subr.bf16.mxu0 0
    %12575 = vmatpush2.bf16.msra.mxu0 %v12415
    %12576 = vmatprep.subr.bf16.mxu0 0
    %12577 = vmatpush2.bf16.msra.mxu0 %v12414
    %12578 = vmatprep.mubr.bf16.mxu0 %v12489
    %12579 = vmatmul.mubr.bf16.gmra.mxu0 %v12488
    %v12580 = vpop.f32.mrf.mxu0
    %v12581 = vadd.f32 %v12541, %v12580
    %v12582 = vpop.f32.mrf.mxu0
    %v12583 = vpop.f32.mrf.mxu0
    %v12584 = vpop.f32.mrf.mxu0
    %12585 = vdwg.mxu0
    %12586 = vmatprep.subr.bf16.mxu0 0
    %12587 = vmatpush1.bf16.msra.mxu0 %v12429
    %12588 = vmatprep.subr.bf16.mxu0 0
    %12589 = vmatpush1.bf16.msra.mxu0 %v12428
    %12590 = vmatprep.subr.bf16.mxu0 0
    %12591 = vmatpush1.bf16.msra.mxu0 %v12427
    %12592 = vmatprep.subr.bf16.mxu0 0
    %12593 = vmatpush1.bf16.msra.mxu0 %v12426
    %12594 = vmatprep.subr.bf16.mxu0 0
    %12595 = vmatpush1.bf16.msra.mxu0 %v12425
    %12596 = vmatprep.subr.bf16.mxu0 0
    %12597 = vmatpush1.bf16.msra.mxu0 %v12424
    %12598 = vmatprep.subr.bf16.mxu0 0
    %12599 = vmatpush1.bf16.msra.mxu0 %v12423
    %12600 = vmatprep.subr.bf16.mxu0 0
    %12601 = vmatpush1.bf16.msra.mxu0 %v12422
    %12602 = vmatprep.subr.bf16.mxu0 0
    %12603 = vmatpush2.bf16.msra.mxu0 %v12437
    %12604 = vmatprep.subr.bf16.mxu0 0
    %12605 = vmatpush2.bf16.msra.mxu0 %v12436
    %12606 = vmatprep.subr.bf16.mxu0 0
    %12607 = vmatpush2.bf16.msra.mxu0 %v12435
    %12608 = vmatprep.subr.bf16.mxu0 0
    %12609 = vmatpush2.bf16.msra.mxu0 %v12434
    %12610 = vmatprep.subr.bf16.mxu0 0
    %12611 = vmatpush2.bf16.msra.mxu0 %v12433
    %12612 = vmatprep.subr.bf16.mxu0 0
    %12613 = vmatpush2.bf16.msra.mxu0 %v12432
    %12614 = vmatprep.subr.bf16.mxu0 0
    %12615 = vmatpush2.bf16.msra.mxu0 %v12431
    %12616 = vmatprep.subr.bf16.mxu0 0
    %12617 = vmatpush2.bf16.msra.mxu0 %v12430
    %12618 = vmatprep.mubr.bf16.mxu0 %v12491
    %12619 = vmatmul.mubr.bf16.gmra.mxu0 %v12490
    %v12620 = vpop.f32.mrf.mxu0
    %v12621 = vadd.f32 %v12581, %v12620
    %v12622 = vpop.f32.mrf.mxu0
    %v12623 = vpop.f32.mrf.mxu0
    %v12624 = vpop.f32.mrf.mxu0
    %12625 = vdwg.mxu0
    %12626 = vmatprep.subr.bf16.mxu0 0
    %12627 = vmatpush1.bf16.msra.mxu0 %v12445
    %12628 = vmatprep.subr.bf16.mxu0 0
    %12629 = vmatpush1.bf16.msra.mxu0 %v12444
    %12630 = vmatprep.subr.bf16.mxu0 0
    %12631 = vmatpush1.bf16.msra.mxu0 %v12443
    %12632 = vmatprep.subr.bf16.mxu0 0
    %12633 = vmatpush1.bf16.msra.mxu0 %v12442
    %12634 = vmatprep.subr.bf16.mxu0 0
    %12635 = vmatpush1.bf16.msra.mxu0 %v12441
    %12636 = vmatprep.subr.bf16.mxu0 0
    %12637 = vmatpush1.bf16.msra.mxu0 %v12440
    %12638 = vmatprep.subr.bf16.mxu0 0
    %12639 = vmatpush1.bf16.msra.mxu0 %v12439
    %12640 = vmatprep.subr.bf16.mxu0 0
    %12641 = vmatpush1.bf16.msra.mxu0 %v12438
    %12642 = vmatprep.subr.bf16.mxu0 0
    %12643 = vmatpush2.bf16.msra.mxu0 %v12453
    %12644 = vmatprep.subr.bf16.mxu0 0
    %12645 = vmatpush2.bf16.msra.mxu0 %v12452
    %12646 = vmatprep.subr.bf16.mxu0 0
    %12647 = vmatpush2.bf16.msra.mxu0 %v12451
    %12648 = vmatprep.subr.bf16.mxu0 0
    %12649 = vmatpush2.bf16.msra.mxu0 %v12450
    %12650 = vmatprep.subr.bf16.mxu0 0
    %12651 = vmatpush2.bf16.msra.mxu0 %v12449
    %12652 = vmatprep.subr.bf16.mxu0 0
    %12653 = vmatpush2.bf16.msra.mxu0 %v12448
    %12654 = vmatprep.subr.bf16.mxu0 0
    %12655 = vmatpush2.bf16.msra.mxu0 %v12447
    %12656 = vmatprep.subr.bf16.mxu0 0
    %12657 = vmatpush2.bf16.msra.mxu0 %v12446
    %12658 = vmatprep.mubr.bf16.mxu0 %v12493
    %12659 = vmatmul.mubr.bf16.gmra.mxu0 %v12492
    %v12660 = vpop.f32.mrf.mxu0
    %v12661 = vadd.f32 %v12621, %v12660
    %v12662 = vpop.f32.mrf.mxu0
    %v12663 = vpop.f32.mrf.mxu0
    %v12664 = vpop.f32.mrf.mxu0
    %12665 = vdwg.mxu0
    %12666 = vmatprep.subr.bf16.mxu0 0
    %12667 = vmatpush1.bf16.msra.mxu0 %v12461
    %12668 = vmatprep.subr.bf16.mxu0 0
    %12669 = vmatpush1.bf16.msra.mxu0 %v12460
    %12670 = vmatprep.subr.bf16.mxu0 0
    %12671 = vmatpush1.bf16.msra.mxu0 %v12459
    %12672 = vmatprep.subr.bf16.mxu0 0
    %12673 = vmatpush1.bf16.msra.mxu0 %v12458
    %12674 = vmatprep.subr.bf16.mxu0 0
    %12675 = vmatpush1.bf16.msra.mxu0 %v12457
    %12676 = vmatprep.subr.bf16.mxu0 0
    %12677 = vmatpush1.bf16.msra.mxu0 %v12456
    %12678 = vmatprep.subr.bf16.mxu0 0
    %12679 = vmatpush1.bf16.msra.mxu0 %v12455
    %12680 = vmatprep.subr.bf16.mxu0 0
    %12681 = vmatpush1.bf16.msra.mxu0 %v12454
    %12682 = vmatprep.subr.bf16.mxu0 0
    %12683 = vmatpush2.bf16.msra.mxu0 %v12469
    %12684 = vmatprep.subr.bf16.mxu0 0
    %12685 = vmatpush2.bf16.msra.mxu0 %v12468
    %12686 = vmatprep.subr.bf16.mxu0 0
    %12687 = vmatpush2.bf16.msra.mxu0 %v12467
    %12688 = vmatprep.subr.bf16.mxu0 0
    %12689 = vmatpush2.bf16.msra.mxu0 %v12466
    %12690 = vmatprep.subr.bf16.mxu0 0
    %12691 = vmatpush2.bf16.msra.mxu0 %v12465
    %12692 = vmatprep.subr.bf16.mxu0 0
    %12693 = vmatpush2.bf16.msra.mxu0 %v12464
    %12694 = vmatprep.subr.bf16.mxu0 0
    %12695 = vmatpush2.bf16.msra.mxu0 %v12463
    %12696 = vmatprep.subr.bf16.mxu0 0
    %12697 = vmatpush2.bf16.msra.mxu0 %v12462
    %12698 = vmatprep.mubr.bf16.mxu0 %v12495
    %12699 = vmatmul.mubr.bf16.gmra.mxu0 %v12494
    %v12700 = vpop.f32.mrf.mxu0
    %v12701 = vadd.f32 %v12661, %v12700
    %v12702 = vpop.f32.mrf.mxu0
    %v12703 = vpop.f32.mrf.mxu0
    %v12704 = vpop.f32.mrf.mxu0
    %12705 = vdwg.mxu0
    %12706 = vst.msk [vmem:[%s6] sm:$0xff] %vm11901, %v12701
  $region33: #{avg_feat_forward.1} parent=0 // pred_fallthru
    _
  // Predicated region
  $region34: #{avg_feat_forward.1} parent=0 // pred_check
    _
  $region35: #{avg_feat_forward.1} parent=0 // pred_check_branch
    %12708 = sbr.rel (0) target = $region37
  $region36: #{avg_feat_forward.1} parent=0 // pred_region
    _
  $region37: #{avg_feat_forward.1} parent=0 // pred_fallthru
    _
  // Predicated region
  $region38: #{avg_feat_forward.1} parent=0 // pred_check
    _
  $region39: #{avg_feat_forward.1} parent=0 // pred_check_branch
    %12710 = sbr.rel (0) target = $region41
  $region40: #{avg_feat_forward.1} parent=0 // pred_region
    _
  $region41: #{avg_feat_forward.1} parent=0 // pred_fallthru
    _

</llo_original>
